<compile_context>
chip_gen: v7x
topology: tpu7x:2x2x1
jax: 0.10.0
libtpu: 0.0.40
codegen_flags: <defaults>
</compile_context>

<pallas_src>
import math

import jax
import jax.numpy as jnp
from jax.experimental import pallas as pl
from jax.experimental.pallas import tpu as pltpu

_EPS = 1e-5


# ---------------------------------------------------------------------------
# in-kernel helpers (operate on loaded jnp arrays)
# ---------------------------------------------------------------------------
def _mm(a, w):
    # (N, L, K) x (K, Cout) -> (N, L, Cout) as a single MXU matmul.
    # LHS is cast to the weight dtype (bf16) right at the dot; accumulate f32.
    n, l, k = a.shape
    out = jnp.dot(a.reshape(n * l, k).astype(w.dtype), w,
                  preferred_element_type=jnp.float32)
    return out.reshape(n, l, w.shape[1])


def _shift(x):
    # x_prev[l] = x[l-1] (0 at l=0);  x_next[l] = x[l+1] (0 at l=L-1)
    n, _, c = x.shape
    zero = jnp.zeros((n, 1, c), x.dtype)
    x_prev = jnp.concatenate([zero, x[:, :-1, :]], axis=1)
    x_next = jnp.concatenate([x[:, 1:, :], zero], axis=1)
    return x_prev, x_next


def _conv_slab(x):
    # Fused im2col slab for Conv1d(k=4, s=2, p=1): (N, L, C) -> (N, L/2, 4*C).
    # tap_k[l] = x_pad[2l+k]  ==  [xo[l-1], xe[l], xo[l], xe[l+1]]
    # where xe/xo are the even/odd spatial rows of x.
    n, l, c = x.shape
    xr = x.reshape(n, l // 2, 2, c)
    xe = xr[:, :, 0, :]
    xo = xr[:, :, 1, :]
    zero = jnp.zeros((n, 1, c), x.dtype)
    xo_prev = jnp.concatenate([zero, xo[:, :-1, :]], axis=1)
    xe_next = jnp.concatenate([xe[:, 1:, :], zero], axis=1)
    return jnp.concatenate([xo_prev, xe, xo, xe_next], axis=-1)


def _convT(x, w_even, w_odd):
    # ConvTranspose1d(k=4, s=2, p=1) as two fused matmuls + even/odd interleave:
    #   y[2m]   = x[m]   @ w1 + x[m-1] @ w3   ->  concat([x, x_prev]) @ w_even
    #   y[2m+1] = x[m+1] @ w0 + x[m]   @ w2   ->  concat([x_next, x]) @ w_odd
    n, l, _ = x.shape
    cout = w_even.shape[1]
    x_prev, x_next = _shift(x)
    y_even = _mm(jnp.concatenate([x, x_prev], axis=-1), w_even)
    y_odd = _mm(jnp.concatenate([x_next, x], axis=-1), w_odd)
    y = jnp.stack([y_even, y_odd], axis=2)            # (N, L, 2, Cout)
    return y.reshape(n, 2 * l, cout)


def _bn_relu(h, gamma, beta):
    # Training-mode BatchNorm1d (biased var, eps=1e-5) + ReLU, all in f32.
    n, l, c = h.shape
    h2 = h.reshape(n * l, c)
    mean = jnp.mean(h2, axis=0, keepdims=True)
    cen = h2 - mean
    var = jnp.mean(cen * cen, axis=0, keepdims=True)
    y = cen * jax.lax.rsqrt(var + _EPS) * gamma + beta
    return jnp.maximum(y, 0.0).reshape(n, l, c)


# ---------------------------------------------------------------------------
# the Pallas kernel: full autoencoder forward, everything resident in VMEM
# ---------------------------------------------------------------------------
def _autoencoder_kernel(
    xt_ref,
    w0, g1, b1, w1, g2, b2, w2, g3, b3, we4,
    wd1, gd1, bd1, we_d2, wo_d2, gd2, bd2, we_d3, wo_d3, gd3, bd3, wv4,
    o_ref,
):
    bf16 = jnp.bfloat16
    xt = xt_ref[...]                                  # (N, W/2, 4) bf16 taps
    n = xt.shape[0]

    # ------------------ encoder ------------------
    h = _mm(xt, w0[...])                              # Conv1d(1,64)   -> (N, W/2, 64)
    h = _bn_relu(h, g1[...], b1[...])
    h = _mm(_conv_slab(h), w1[...])                   # Conv1d(64,128) -> (N, W/4, 128)
    h = _bn_relu(h, g2[...], b2[...])
    h = _mm(_conv_slab(h), w2[...])                   # Conv1d(128,256)-> (N, W/8, 256)
    h = _bn_relu(h, g3[...], b3[...])
    # Conv1d(256, latent, k=W/8, s=1, p=0): full contraction over (L, C).
    z = jnp.dot(h.reshape(n, -1).astype(bf16), we4[...],
                preferred_element_type=jnp.float32)   # (N, latent_pad)
    z = jnp.tanh(z)

    # ------------------ decoder ------------------
    d = jnp.dot(z.astype(bf16), wd1[...],
                preferred_element_type=jnp.float32)   # ConvT(latent,256,W/8,1,0)
    l8 = d.shape[1] // 256
    d = d.reshape(n, l8, 256)
    d = _bn_relu(d, gd1[...], bd1[...])
    d = _convT(d, we_d2[...], wo_d2[...])             # ConvT(256,128) -> (N, W/4, 128)
    d = _bn_relu(d, gd2[...], bd2[...])
    d = _convT(d, we_d3[...], wo_d3[...])             # ConvT(128,64)  -> (N, W/2, 64)
    d = _bn_relu(d, gd3[...], bd3[...])               # stay f32 for the VPU tail

    # Last ConvTranspose1d(64 -> 1): Cout=1 -> VPU multiply + lane reduction.
    wv = wv4[...]                                     # (4, 64) f32 per-tap vectors
    c = wv.shape[1]
    d_prev, d_next = _shift(d)
    y_even = jnp.sum(d * wv[1].reshape(1, 1, c)
                     + d_prev * wv[3].reshape(1, 1, c), axis=-1)    # (N, W/2)
    y_odd = jnp.sum(d_next * wv[0].reshape(1, 1, c)
                    + d * wv[2].reshape(1, 1, c), axis=-1)          # (N, W/2)
    # (N, 2, W/2): plane 0 = even output positions, plane 1 = odd positions.
    o_ref[...] = jnp.tanh(jnp.stack([y_even, y_odd], axis=1))


# ---------------------------------------------------------------------------
# parameter construction (deterministic, mirrors the torch module's shapes)
# ---------------------------------------------------------------------------
def init_params(key, latent_dim, window_size):
    assert window_size % 8 == 0, "window_size must be divisible by 8"
    l8 = window_size // 8
    latp = max(128, -(-latent_dim // 128) * 128)      # pad latent to full lanes
    ks = jax.random.split(key, 8)
    bf16 = jnp.bfloat16

    def u(k, shape, fan_in):
        bound = 1.0 / (fan_in ** 0.5)
        return jax.random.uniform(k, shape, jnp.float32, -bound, bound)

    # PyTorch weight shapes: Conv1d -> (Cout, Cin, K); ConvTranspose1d -> (Cin, Cout, K)
    we1_pt = u(ks[0], (64, 1, 4), 1 * 4)
    we2_pt = u(ks[1], (128, 64, 4), 64 * 4)
    we3_pt = u(ks[2], (256, 128, 4), 128 * 4)
    we4_pt = u(ks[3], (latent_dim, 256, l8), 256 * l8)
    wd1_pt = u(ks[4], (latent_dim, 256, l8), 256 * l8)
    wd2_pt = u(ks[5], (256, 128, 4), 128 * 4)
    wd3_pt = u(ks[6], (128, 64, 4), 64 * 4)
    wd4_pt = u(ks[7], (64, 1, 4), 1 * 4)

    def conv_fused(w_pt):
        # (Cout, Cin, K) -> (K*Cin, Cout), tap-major rows (matches slab concat).
        cout, cin, k = w_pt.shape
        return jnp.transpose(w_pt, (2, 1, 0)).reshape(k * cin, cout).astype(bf16)

    def convT_fused(w_pt):
        # (Cin, Cout, K) -> even-tap (2*Cin, Cout), odd-tap (2*Cin, Cout).
        w_even = jnp.concatenate([w_pt[:, :, 1], w_pt[:, :, 3]], axis=0)
        w_odd = jnp.concatenate([w_pt[:, :, 0], w_pt[:, :, 2]], axis=0)
        return w_even.astype(bf16), w_odd.astype(bf16)

    we4 = jnp.transpose(we4_pt, (2, 1, 0)).reshape(l8 * 256, latent_dim)
    we4 = jnp.pad(we4, ((0, 0), (0, latp - latent_dim))).astype(bf16)
    wd1 = jnp.transpose(wd1_pt, (0, 2, 1)).reshape(latent_dim, l8 * 256)
    wd1 = jnp.pad(wd1, ((0, latp - latent_dim), (0, 0))).astype(bf16)

    we_d2, wo_d2 = convT_fused(wd2_pt)
    we_d3, wo_d3 = convT_fused(wd3_pt)
    wv4 = jnp.transpose(wd4_pt[:, 0, :], (1, 0))      # (4, 64) f32, wv[k, cin]

    ones = lambda c: jnp.ones((1, c), jnp.float32)    # BN gamma (PyTorch default)
    zeros = lambda c: jnp.zeros((1, c), jnp.float32)  # BN beta

    return [
        # encoder
        conv_fused(we1_pt), ones(64), zeros(64),
        conv_fused(we2_pt), ones(128), zeros(128),
        conv_fused(we3_pt), ones(256), zeros(256),
        we4,
        # decoder
        wd1, ones(256), zeros(256),
        we_d2, wo_d2, ones(128), zeros(128),
        we_d3, wo_d3, ones(64), zeros(64),
        wv4,
    ]


# ---------------------------------------------------------------------------
# wrapper
# ---------------------------------------------------------------------------
@jax.jit
def autoencoder_forward(x_ncl, params):
    """x_ncl: (N, 1, W) float32 -> (N, 1, W) float32 (PyTorch NCL layout)."""
    n, _, w = x_ncl.shape

    # First Conv1d has Cin=1: build its im2col tap slab in XLA (layout glue)
    # so the kernel never sees a (N, W, 1) tensor or a K=1 matmul.
    x = x_ncl[:, 0, :].astype(jnp.float32)                        # (N, W)
    xp = jnp.pad(x, ((0, 0), (1, 1)))                             # (N, W+2)
    taps = jnp.stack([xp[:, k::2][:, : w // 2] for k in range(4)],
                     axis=-1).astype(jnp.bfloat16)                # (N, W/2, 4)

    args = (taps, *params)

    # Advisory cost estimate for XLA's scheduler.
    l2, l4, l8 = w // 2, w // 4, w // 8
    latp = params[9].shape[1]
    flops = 2 * n * (l2 * 4 * 64 + l4 * 256 * 128 + l8 * 512 * 256
                     + 2 * (l8 * 256) * latp
                     + 2 * l8 * 512 * 128 + 2 * l4 * 256 * 64 + 2 * l2 * 64)
    in_bytes = sum(math.prod(a.shape) * a.dtype.itemsize for a in args)
    out_bytes = n * 2 * l2 * 4
    cost = pl.CostEstimate(flops=int(flops),
                           transcendentals=int(n * (latp + w)),
                           bytes_accessed=int(in_bytes + out_bytes))

    out = pl.pallas_call(
        _autoencoder_kernel,
        out_shape=jax.ShapeDtypeStruct((n, 2, w // 2), jnp.float32),
        in_specs=[pl.BlockSpec(memory_space=pltpu.MemorySpace.VMEM)] * len(args),
        out_specs=pl.BlockSpec(memory_space=pltpu.MemorySpace.VMEM),
        cost_estimate=cost,
    )(*args)

    # out[:, p, m] = y[:, 2m+p]  ->  interleave back to PyTorch (N, 1, W).
    return jnp.transpose(out, (0, 2, 1)).reshape(n, 1, w)


if __name__ == "__main__":
    batch, latent_dim, window_size = 2, 32, 64
    key = jax.random.PRNGKey(0)
    k_x, k_p = jax.random.split(key)

    x = jax.random.normal(k_x, (batch, 1, window_size), jnp.float32)
    params = init_params(k_p, latent_dim, window_size)

    y = autoencoder_forward(x, params)
    y = jax.block_until_ready(y)

    assert y.shape == (batch, 1, window_size), y.shape
    assert bool(jnp.all(jnp.isfinite(y)))
    assert bool(jnp.all(jnp.abs(y) <= 1.0))  # tanh output range
    print("KERNEL_OK")
</pallas_src>

<mosaic_0001>
module attributes {stable_mosaic.version = 11 : i64} {
  func.func @_autoencoder_kernel(%arg0: memref<2x32x4xbf16, #tpu.memory_space<vmem>>, %arg1: memref<4x64xbf16, #tpu.memory_space<vmem>>, %arg2: memref<1x64xf32, #tpu.memory_space<vmem>>, %arg3: memref<1x64xf32, #tpu.memory_space<vmem>>, %arg4: memref<256x128xbf16, #tpu.memory_space<vmem>>, %arg5: memref<1x128xf32, #tpu.memory_space<vmem>>, %arg6: memref<1x128xf32, #tpu.memory_space<vmem>>, %arg7: memref<512x256xbf16, #tpu.memory_space<vmem>>, %arg8: memref<1x256xf32, #tpu.memory_space<vmem>>, %arg9: memref<1x256xf32, #tpu.memory_space<vmem>>, %arg10: memref<2048x128xbf16, #tpu.memory_space<vmem>>, %arg11: memref<128x2048xbf16, #tpu.memory_space<vmem>>, %arg12: memref<1x256xf32, #tpu.memory_space<vmem>>, %arg13: memref<1x256xf32, #tpu.memory_space<vmem>>, %arg14: memref<512x128xbf16, #tpu.memory_space<vmem>>, %arg15: memref<512x128xbf16, #tpu.memory_space<vmem>>, %arg16: memref<1x128xf32, #tpu.memory_space<vmem>>, %arg17: memref<1x128xf32, #tpu.memory_space<vmem>>, %arg18: memref<256x64xbf16, #tpu.memory_space<vmem>>, %arg19: memref<256x64xbf16, #tpu.memory_space<vmem>>, %arg20: memref<1x64xf32, #tpu.memory_space<vmem>>, %arg21: memref<1x64xf32, #tpu.memory_space<vmem>>, %arg22: memref<4x64xf32, #tpu.memory_space<vmem>>, %arg23: memref<2x2x32xf32, #tpu.memory_space<vmem>>) attributes {dimension_semantics = [], scalar_prefetch = 0 : i64, scratch_operands = 0 : i64, tpu.core_type = #tpu.core_type<tc>} {
    %c0 = arith.constant 0 : index
    %c0_0 = arith.constant 0 : index
    %c0_1 = arith.constant 0 : index
    %0 = vector.load %arg0[%c0, %c0_0, %c0_1] : memref<2x32x4xbf16, #tpu.memory_space<vmem>>, vector<2x32x4xbf16>
    %c0_2 = arith.constant 0 : index
    %c0_3 = arith.constant 0 : index
    %1 = vector.load %arg1[%c0_2, %c0_3] : memref<4x64xbf16, #tpu.memory_space<vmem>>, vector<4x64xbf16>
    %2 = vector.shape_cast %0 : vector<2x32x4xbf16> to vector<64x4xbf16>
    %cst = arith.constant dense<0.000000e+00> : vector<64x64xf32>
    %3 = tpu.matmul %2, %1, %cst {dimension_numbers = #tpu.dot_dimension_numbers<[1], [0], [0], [1], [0, 0, 1, 1], [], []>} : vector<64x4xbf16>, vector<4x64xbf16>, vector<64x64xf32> -> vector<64x64xf32>
    %4 = vector.shape_cast %3 : vector<64x64xf32> to vector<2x32x64xf32>
    %c0_4 = arith.constant 0 : index
    %c0_5 = arith.constant 0 : index
    %5 = vector.load %arg2[%c0_4, %c0_5] : memref<1x64xf32, #tpu.memory_space<vmem>>, vector<1x64xf32>
    %c0_6 = arith.constant 0 : index
    %c0_7 = arith.constant 0 : index
    %6 = vector.load %arg3[%c0_6, %c0_7] : memref<1x64xf32, #tpu.memory_space<vmem>>, vector<1x64xf32>
    %7 = vector.shape_cast %4 : vector<2x32x64xf32> to vector<64x64xf32>
    %cst_8 = arith.constant dense<0.000000e+00> : vector<64xf32>
    %8 = vector.multi_reduction <add>, %7, %cst_8 [0] : vector<64x64xf32> to vector<64xf32>
    %9 = vector.shape_cast %8 : vector<64xf32> to vector<1x64xf32>
    %cst_9 = arith.constant 6.400000e+01 : f32
    %10 = vector.broadcast %cst_9 : f32 to vector<1x64xf32>
    %11 = arith.divf %9, %10 : vector<1x64xf32>
    %12 = vector.broadcast %11 : vector<1x64xf32> to vector<64x64xf32>
    %13 = arith.subf %7, %12 : vector<64x64xf32>
    %14 = arith.mulf %13, %13 : vector<64x64xf32>
    %cst_10 = arith.constant dense<0.000000e+00> : vector<64xf32>
    %15 = vector.multi_reduction <add>, %14, %cst_10 [0] : vector<64x64xf32> to vector<64xf32>
    %16 = vector.shape_cast %15 : vector<64xf32> to vector<1x64xf32>
    %cst_11 = arith.constant 6.400000e+01 : f32
    %17 = vector.broadcast %cst_11 : f32 to vector<1x64xf32>
    %18 = arith.divf %16, %17 : vector<1x64xf32>
    %cst_12 = arith.constant 9.99999974E-6 : f32
    %19 = vector.broadcast %cst_12 : f32 to vector<1x64xf32>
    %20 = arith.addf %18, %19 : vector<1x64xf32>
    %21 = math.rsqrt %20 : vector<1x64xf32>
    %22 = vector.broadcast %21 : vector<1x64xf32> to vector<64x64xf32>
    %23 = arith.mulf %13, %22 : vector<64x64xf32>
    %24 = vector.broadcast %5 : vector<1x64xf32> to vector<64x64xf32>
    %25 = arith.mulf %23, %24 : vector<64x64xf32>
    %26 = vector.broadcast %6 : vector<1x64xf32> to vector<64x64xf32>
    %27 = arith.addf %25, %26 : vector<64x64xf32>
    %cst_13 = arith.constant 0.000000e+00 : f32
    %28 = vector.broadcast %cst_13 : f32 to vector<64x64xf32>
    %29 = arith.maximumf %27, %28 : vector<64x64xf32>
    %30 = vector.shape_cast %29 : vector<64x64xf32> to vector<2x32x64xf32>
    %31 = vector.shape_cast %30 : vector<2x32x64xf32> to vector<2x16x2x64xf32>
    %32 = vector.extract_strided_slice %31 {offsets = [0, 0, 0, 0], sizes = [2, 16, 1, 64], strides = [1, 1, 1, 1]} : vector<2x16x2x64xf32> to vector<2x16x1x64xf32>
    %33 = vector.shape_cast %32 : vector<2x16x1x64xf32> to vector<2x16x64xf32>
    %34 = vector.extract_strided_slice %31 {offsets = [0, 0, 1, 0], sizes = [2, 16, 1, 64], strides = [1, 1, 1, 1]} : vector<2x16x2x64xf32> to vector<2x16x1x64xf32>
    %35 = vector.shape_cast %34 : vector<2x16x1x64xf32> to vector<2x16x64xf32>
    %cst_14 = arith.constant 0.000000e+00 : f32
    %36 = vector.broadcast %cst_14 : f32 to vector<2x1x64xf32>
    %37 = vector.extract_strided_slice %35 {offsets = [0, 0, 0], sizes = [2, 15, 64], strides = [1, 1, 1]} : vector<2x16x64xf32> to vector<2x15x64xf32>
    %38 = tpu.concatenate %36, %37 in 1 : vector<2x1x64xf32>, vector<2x15x64xf32> -> vector<2x16x64xf32>
    %39 = vector.extract_strided_slice %33 {offsets = [0, 1, 0], sizes = [2, 15, 64], strides = [1, 1, 1]} : vector<2x16x64xf32> to vector<2x15x64xf32>
    %40 = tpu.concatenate %39, %36 in 1 : vector<2x15x64xf32>, vector<2x1x64xf32> -> vector<2x16x64xf32>
    %41 = tpu.concatenate %38, %33, %35, %40 in 2 : vector<2x16x64xf32>, vector<2x16x64xf32>, vector<2x16x64xf32>, vector<2x16x64xf32> -> vector<2x16x256xf32>
    %c0_15 = arith.constant 0 : index
    %c0_16 = arith.constant 0 : index
    %42 = vector.load %arg4[%c0_15, %c0_16] : memref<256x128xbf16, #tpu.memory_space<vmem>>, vector<256x128xbf16>
    %43 = vector.shape_cast %41 : vector<2x16x256xf32> to vector<32x256xf32>
    %44 = arith.truncf %43 : vector<32x256xf32> to vector<32x256xbf16>
    %cst_17 = arith.constant dense<0.000000e+00> : vector<32x128xf32>
    %45 = tpu.matmul %44, %42, %cst_17 {dimension_numbers = #tpu.dot_dimension_numbers<[1], [0], [0], [1], [0, 0, 1, 1], [], []>} : vector<32x256xbf16>, vector<256x128xbf16>, vector<32x128xf32> -> vector<32x128xf32>
    %46 = vector.shape_cast %45 : vector<32x128xf32> to vector<2x16x128xf32>
    %c0_18 = arith.constant 0 : index
    %c0_19 = arith.constant 0 : index
    %47 = vector.load %arg5[%c0_18, %c0_19] : memref<1x128xf32, #tpu.memory_space<vmem>>, vector<1x128xf32>
    %c0_20 = arith.constant 0 : index
    %c0_21 = arith.constant 0 : index
    %48 = vector.load %arg6[%c0_20, %c0_21] : memref<1x128xf32, #tpu.memory_space<vmem>>, vector<1x128xf32>
    %49 = vector.shape_cast %46 : vector<2x16x128xf32> to vector<32x128xf32>
    %cst_22 = arith.constant dense<0.000000e+00> : vector<128xf32>
    %50 = vector.multi_reduction <add>, %49, %cst_22 [0] : vector<32x128xf32> to vector<128xf32>
    %51 = vector.shape_cast %50 : vector<128xf32> to vector<1x128xf32>
    %cst_23 = arith.constant 3.200000e+01 : f32
    %52 = vector.broadcast %cst_23 : f32 to vector<1x128xf32>
    %53 = arith.divf %51, %52 : vector<1x128xf32>
    %54 = vector.broadcast %53 : vector<1x128xf32> to vector<32x128xf32>
    %55 = arith.subf %49, %54 : vector<32x128xf32>
    %56 = arith.mulf %55, %55 : vector<32x128xf32>
    %cst_24 = arith.constant dense<0.000000e+00> : vector<128xf32>
    %57 = vector.multi_reduction <add>, %56, %cst_24 [0] : vector<32x128xf32> to vector<128xf32>
    %58 = vector.shape_cast %57 : vector<128xf32> to vector<1x128xf32>
    %cst_25 = arith.constant 3.200000e+01 : f32
    %59 = vector.broadcast %cst_25 : f32 to vector<1x128xf32>
    %60 = arith.divf %58, %59 : vector<1x128xf32>
    %cst_26 = arith.constant 9.99999974E-6 : f32
    %61 = vector.broadcast %cst_26 : f32 to vector<1x128xf32>
    %62 = arith.addf %60, %61 : vector<1x128xf32>
    %63 = math.rsqrt %62 : vector<1x128xf32>
    %64 = vector.broadcast %63 : vector<1x128xf32> to vector<32x128xf32>
    %65 = arith.mulf %55, %64 : vector<32x128xf32>
    %66 = vector.broadcast %47 : vector<1x128xf32> to vector<32x128xf32>
    %67 = arith.mulf %65, %66 : vector<32x128xf32>
    %68 = vector.broadcast %48 : vector<1x128xf32> to vector<32x128xf32>
    %69 = arith.addf %67, %68 : vector<32x128xf32>
    %cst_27 = arith.constant 0.000000e+00 : f32
    %70 = vector.broadcast %cst_27 : f32 to vector<32x128xf32>
    %71 = arith.maximumf %69, %70 : vector<32x128xf32>
    %72 = vector.shape_cast %71 : vector<32x128xf32> to vector<2x16x128xf32>
    %73 = vector.shape_cast %72 : vector<2x16x128xf32> to vector<2x8x2x128xf32>
    %74 = vector.extract_strided_slice %73 {offsets = [0, 0, 0, 0], sizes = [2, 8, 1, 128], strides = [1, 1, 1, 1]} : vector<2x8x2x128xf32> to vector<2x8x1x128xf32>
    %75 = vector.shape_cast %74 : vector<2x8x1x128xf32> to vector<2x8x128xf32>
    %76 = vector.extract_strided_slice %73 {offsets = [0, 0, 1, 0], sizes = [2, 8, 1, 128], strides = [1, 1, 1, 1]} : vector<2x8x2x128xf32> to vector<2x8x1x128xf32>
    %77 = vector.shape_cast %76 : vector<2x8x1x128xf32> to vector<2x8x128xf32>
    %cst_28 = arith.constant 0.000000e+00 : f32
    %78 = vector.broadcast %cst_28 : f32 to vector<2x1x128xf32>
    %79 = vector.extract_strided_slice %77 {offsets = [0, 0, 0], sizes = [2, 7, 128], strides = [1, 1, 1]} : vector<2x8x128xf32> to vector<2x7x128xf32>
    %80 = tpu.concatenate %78, %79 in 1 : vector<2x1x128xf32>, vector<2x7x128xf32> -> vector<2x8x128xf32>
    %81 = vector.extract_strided_slice %75 {offsets = [0, 1, 0], sizes = [2, 7, 128], strides = [1, 1, 1]} : vector<2x8x128xf32> to vector<2x7x128xf32>
    %82 = tpu.concatenate %81, %78 in 1 : vector<2x7x128xf32>, vector<2x1x128xf32> -> vector<2x8x128xf32>
    %83 = tpu.concatenate %80, %75, %77, %82 in 2 : vector<2x8x128xf32>, vector<2x8x128xf32>, vector<2x8x128xf32>, vector<2x8x128xf32> -> vector<2x8x512xf32>
    %c0_29 = arith.constant 0 : index
    %c0_30 = arith.constant 0 : index
    %84 = vector.load %arg7[%c0_29, %c0_30] : memref<512x256xbf16, #tpu.memory_space<vmem>>, vector<512x256xbf16>
    %85 = vector.shape_cast %83 : vector<2x8x512xf32> to vector<16x512xf32>
    %86 = arith.truncf %85 : vector<16x512xf32> to vector<16x512xbf16>
    %cst_31 = arith.constant dense<0.000000e+00> : vector<16x256xf32>
    %87 = tpu.matmul %86, %84, %cst_31 {dimension_numbers = #tpu.dot_dimension_numbers<[1], [0], [0], [1], [0, 0, 1, 1], [], []>} : vector<16x512xbf16>, vector<512x256xbf16>, vector<16x256xf32> -> vector<16x256xf32>
    %88 = vector.shape_cast %87 : vector<16x256xf32> to vector<2x8x256xf32>
    %c0_32 = arith.constant 0 : index
    %c0_33 = arith.constant 0 : index
    %89 = vector.load %arg8[%c0_32, %c0_33] : memref<1x256xf32, #tpu.memory_space<vmem>>, vector<1x256xf32>
    %c0_34 = arith.constant 0 : index
    %c0_35 = arith.constant 0 : index
    %90 = vector.load %arg9[%c0_34, %c0_35] : memref<1x256xf32, #tpu.memory_space<vmem>>, vector<1x256xf32>
    %91 = vector.shape_cast %88 : vector<2x8x256xf32> to vector<16x256xf32>
    %cst_36 = arith.constant dense<0.000000e+00> : vector<256xf32>
    %92 = vector.multi_reduction <add>, %91, %cst_36 [0] : vector<16x256xf32> to vector<256xf32>
    %93 = vector.shape_cast %92 : vector<256xf32> to vector<1x256xf32>
    %cst_37 = arith.constant 1.600000e+01 : f32
    %94 = vector.broadcast %cst_37 : f32 to vector<1x256xf32>
    %95 = arith.divf %93, %94 : vector<1x256xf32>
    %96 = vector.broadcast %95 : vector<1x256xf32> to vector<16x256xf32>
    %97 = arith.subf %91, %96 : vector<16x256xf32>
    %98 = arith.mulf %97, %97 : vector<16x256xf32>
    %cst_38 = arith.constant dense<0.000000e+00> : vector<256xf32>
    %99 = vector.multi_reduction <add>, %98, %cst_38 [0] : vector<16x256xf32> to vector<256xf32>
    %100 = vector.shape_cast %99 : vector<256xf32> to vector<1x256xf32>
    %cst_39 = arith.constant 1.600000e+01 : f32
    %101 = vector.broadcast %cst_39 : f32 to vector<1x256xf32>
    %102 = arith.divf %100, %101 : vector<1x256xf32>
    %cst_40 = arith.constant 9.99999974E-6 : f32
    %103 = vector.broadcast %cst_40 : f32 to vector<1x256xf32>
    %104 = arith.addf %102, %103 : vector<1x256xf32>
    %105 = math.rsqrt %104 : vector<1x256xf32>
    %106 = vector.broadcast %105 : vector<1x256xf32> to vector<16x256xf32>
    %107 = arith.mulf %97, %106 : vector<16x256xf32>
    %108 = vector.broadcast %89 : vector<1x256xf32> to vector<16x256xf32>
    %109 = arith.mulf %107, %108 : vector<16x256xf32>
    %110 = vector.broadcast %90 : vector<1x256xf32> to vector<16x256xf32>
    %111 = arith.addf %109, %110 : vector<16x256xf32>
    %cst_41 = arith.constant 0.000000e+00 : f32
    %112 = vector.broadcast %cst_41 : f32 to vector<16x256xf32>
    %113 = arith.maximumf %111, %112 : vector<16x256xf32>
    %114 = vector.shape_cast %113 : vector<16x256xf32> to vector<2x8x256xf32>
    %115 = vector.shape_cast %114 : vector<2x8x256xf32> to vector<2x2048xf32>
    %116 = arith.truncf %115 : vector<2x2048xf32> to vector<2x2048xbf16>
    %c0_42 = arith.constant 0 : index
    %c0_43 = arith.constant 0 : index
    %117 = vector.load %arg10[%c0_42, %c0_43] : memref<2048x128xbf16, #tpu.memory_space<vmem>>, vector<2048x128xbf16>
    %cst_44 = arith.constant dense<0.000000e+00> : vector<2x128xf32>
    %118 = tpu.matmul %116, %117, %cst_44 {dimension_numbers = #tpu.dot_dimension_numbers<[1], [0], [0], [1], [0, 0, 1, 1], [], []>} : vector<2x2048xbf16>, vector<2048x128xbf16>, vector<2x128xf32> -> vector<2x128xf32>
    %119 = math.tanh %118 : vector<2x128xf32>
    %120 = arith.truncf %119 : vector<2x128xf32> to vector<2x128xbf16>
    %c0_45 = arith.constant 0 : index
    %c0_46 = arith.constant 0 : index
    %121 = vector.load %arg11[%c0_45, %c0_46] : memref<128x2048xbf16, #tpu.memory_space<vmem>>, vector<128x2048xbf16>
    %cst_47 = arith.constant dense<0.000000e+00> : vector<2x2048xf32>
    %122 = tpu.matmul %120, %121, %cst_47 {dimension_numbers = #tpu.dot_dimension_numbers<[1], [0], [0], [1], [0, 0, 1, 1], [], []>} : vector<2x128xbf16>, vector<128x2048xbf16>, vector<2x2048xf32> -> vector<2x2048xf32>
    %123 = vector.shape_cast %122 : vector<2x2048xf32> to vector<2x8x256xf32>
    %c0_48 = arith.constant 0 : index
    %c0_49 = arith.constant 0 : index
    %124 = vector.load %arg12[%c0_48, %c0_49] : memref<1x256xf32, #tpu.memory_space<vmem>>, vector<1x256xf32>
    %c0_50 = arith.constant 0 : index
    %c0_51 = arith.constant 0 : index
    %125 = vector.load %arg13[%c0_50, %c0_51] : memref<1x256xf32, #tpu.memory_space<vmem>>, vector<1x256xf32>
    %126 = vector.shape_cast %123 : vector<2x8x256xf32> to vector<16x256xf32>
    %cst_52 = arith.constant dense<0.000000e+00> : vector<256xf32>
    %127 = vector.multi_reduction <add>, %126, %cst_52 [0] : vector<16x256xf32> to vector<256xf32>
    %128 = vector.shape_cast %127 : vector<256xf32> to vector<1x256xf32>
    %cst_53 = arith.constant 1.600000e+01 : f32
    %129 = vector.broadcast %cst_53 : f32 to vector<1x256xf32>
    %130 = arith.divf %128, %129 : vector<1x256xf32>
    %131 = vector.broadcast %130 : vector<1x256xf32> to vector<16x256xf32>
    %132 = arith.subf %126, %131 : vector<16x256xf32>
    %133 = arith.mulf %132, %132 : vector<16x256xf32>
    %cst_54 = arith.constant dense<0.000000e+00> : vector<256xf32>
    %134 = vector.multi_reduction <add>, %133, %cst_54 [0] : vector<16x256xf32> to vector<256xf32>
    %135 = vector.shape_cast %134 : vector<256xf32> to vector<1x256xf32>
    %cst_55 = arith.constant 1.600000e+01 : f32
    %136 = vector.broadcast %cst_55 : f32 to vector<1x256xf32>
    %137 = arith.divf %135, %136 : vector<1x256xf32>
    %cst_56 = arith.constant 9.99999974E-6 : f32
    %138 = vector.broadcast %cst_56 : f32 to vector<1x256xf32>
    %139 = arith.addf %137, %138 : vector<1x256xf32>
    %140 = math.rsqrt %139 : vector<1x256xf32>
    %141 = vector.broadcast %140 : vector<1x256xf32> to vector<16x256xf32>
    %142 = arith.mulf %132, %141 : vector<16x256xf32>
    %143 = vector.broadcast %124 : vector<1x256xf32> to vector<16x256xf32>
    %144 = arith.mulf %142, %143 : vector<16x256xf32>
    %145 = vector.broadcast %125 : vector<1x256xf32> to vector<16x256xf32>
    %146 = arith.addf %144, %145 : vector<16x256xf32>
    %cst_57 = arith.constant 0.000000e+00 : f32
    %147 = vector.broadcast %cst_57 : f32 to vector<16x256xf32>
    %148 = arith.maximumf %146, %147 : vector<16x256xf32>
    %149 = vector.shape_cast %148 : vector<16x256xf32> to vector<2x8x256xf32>
    %c0_58 = arith.constant 0 : index
    %c0_59 = arith.constant 0 : index
    %150 = vector.load %arg14[%c0_58, %c0_59] : memref<512x128xbf16, #tpu.memory_space<vmem>>, vector<512x128xbf16>
    %c0_60 = arith.constant 0 : index
    %c0_61 = arith.constant 0 : index
    %151 = vector.load %arg15[%c0_60, %c0_61] : memref<512x128xbf16, #tpu.memory_space<vmem>>, vector<512x128xbf16>
    %cst_62 = arith.constant 0.000000e+00 : f32
    %152 = vector.broadcast %cst_62 : f32 to vector<2x1x256xf32>
    %153 = vector.extract_strided_slice %149 {offsets = [0, 0, 0], sizes = [2, 7, 256], strides = [1, 1, 1]} : vector<2x8x256xf32> to vector<2x7x256xf32>
    %154 = tpu.concatenate %152, %153 in 1 : vector<2x1x256xf32>, vector<2x7x256xf32> -> vector<2x8x256xf32>
    %155 = vector.extract_strided_slice %149 {offsets = [0, 1, 0], sizes = [2, 7, 256], strides = [1, 1, 1]} : vector<2x8x256xf32> to vector<2x7x256xf32>
    %156 = tpu.concatenate %155, %152 in 1 : vector<2x7x256xf32>, vector<2x1x256xf32> -> vector<2x8x256xf32>
    %157 = tpu.concatenate %149, %154 in 2 : vector<2x8x256xf32>, vector<2x8x256xf32> -> vector<2x8x512xf32>
    %158 = vector.shape_cast %157 : vector<2x8x512xf32> to vector<16x512xf32>
    %159 = arith.truncf %158 : vector<16x512xf32> to vector<16x512xbf16>
    %cst_63 = arith.constant dense<0.000000e+00> : vector<16x128xf32>
    %160 = tpu.matmul %159, %150, %cst_63 {dimension_numbers = #tpu.dot_dimension_numbers<[1], [0], [0], [1], [0, 0, 1, 1], [], []>} : vector<16x512xbf16>, vector<512x128xbf16>, vector<16x128xf32> -> vector<16x128xf32>
    %161 = vector.shape_cast %160 : vector<16x128xf32> to vector<2x8x128xf32>
    %162 = tpu.concatenate %156, %149 in 2 : vector<2x8x256xf32>, vector<2x8x256xf32> -> vector<2x8x512xf32>
    %163 = vector.shape_cast %162 : vector<2x8x512xf32> to vector<16x512xf32>
    %164 = arith.truncf %163 : vector<16x512xf32> to vector<16x512xbf16>
    %cst_64 = arith.constant dense<0.000000e+00> : vector<16x128xf32>
    %165 = tpu.matmul %164, %151, %cst_64 {dimension_numbers = #tpu.dot_dimension_numbers<[1], [0], [0], [1], [0, 0, 1, 1], [], []>} : vector<16x512xbf16>, vector<512x128xbf16>, vector<16x128xf32> -> vector<16x128xf32>
    %166 = vector.shape_cast %165 : vector<16x128xf32> to vector<2x8x128xf32>
    %167 = vector.shape_cast %161 : vector<2x8x128xf32> to vector<2x8x1x128xf32>
    %168 = vector.shape_cast %166 : vector<2x8x128xf32> to vector<2x8x1x128xf32>
    %169 = tpu.concatenate %167, %168 in 2 : vector<2x8x1x128xf32>, vector<2x8x1x128xf32> -> vector<2x8x2x128xf32>
    %170 = vector.shape_cast %169 : vector<2x8x2x128xf32> to vector<2x16x128xf32>
    %c0_65 = arith.constant 0 : index
    %c0_66 = arith.constant 0 : index
    %171 = vector.load %arg16[%c0_65, %c0_66] : memref<1x128xf32, #tpu.memory_space<vmem>>, vector<1x128xf32>
    %c0_67 = arith.constant 0 : index
    %c0_68 = arith.constant 0 : index
    %172 = vector.load %arg17[%c0_67, %c0_68] : memref<1x128xf32, #tpu.memory_space<vmem>>, vector<1x128xf32>
    %173 = vector.shape_cast %170 : vector<2x16x128xf32> to vector<32x128xf32>
    %cst_69 = arith.constant dense<0.000000e+00> : vector<128xf32>
    %174 = vector.multi_reduction <add>, %173, %cst_69 [0] : vector<32x128xf32> to vector<128xf32>
    %175 = vector.shape_cast %174 : vector<128xf32> to vector<1x128xf32>
    %cst_70 = arith.constant 3.200000e+01 : f32
    %176 = vector.broadcast %cst_70 : f32 to vector<1x128xf32>
    %177 = arith.divf %175, %176 : vector<1x128xf32>
    %178 = vector.broadcast %177 : vector<1x128xf32> to vector<32x128xf32>
    %179 = arith.subf %173, %178 : vector<32x128xf32>
    %180 = arith.mulf %179, %179 : vector<32x128xf32>
    %cst_71 = arith.constant dense<0.000000e+00> : vector<128xf32>
    %181 = vector.multi_reduction <add>, %180, %cst_71 [0] : vector<32x128xf32> to vector<128xf32>
    %182 = vector.shape_cast %181 : vector<128xf32> to vector<1x128xf32>
    %cst_72 = arith.constant 3.200000e+01 : f32
    %183 = vector.broadcast %cst_72 : f32 to vector<1x128xf32>
    %184 = arith.divf %182, %183 : vector<1x128xf32>
    %cst_73 = arith.constant 9.99999974E-6 : f32
    %185 = vector.broadcast %cst_73 : f32 to vector<1x128xf32>
    %186 = arith.addf %184, %185 : vector<1x128xf32>
    %187 = math.rsqrt %186 : vector<1x128xf32>
    %188 = vector.broadcast %187 : vector<1x128xf32> to vector<32x128xf32>
    %189 = arith.mulf %179, %188 : vector<32x128xf32>
    %190 = vector.broadcast %171 : vector<1x128xf32> to vector<32x128xf32>
    %191 = arith.mulf %189, %190 : vector<32x128xf32>
    %192 = vector.broadcast %172 : vector<1x128xf32> to vector<32x128xf32>
    %193 = arith.addf %191, %192 : vector<32x128xf32>
    %cst_74 = arith.constant 0.000000e+00 : f32
    %194 = vector.broadcast %cst_74 : f32 to vector<32x128xf32>
    %195 = arith.maximumf %193, %194 : vector<32x128xf32>
    %196 = vector.shape_cast %195 : vector<32x128xf32> to vector<2x16x128xf32>
    %c0_75 = arith.constant 0 : index
    %c0_76 = arith.constant 0 : index
    %197 = vector.load %arg18[%c0_75, %c0_76] : memref<256x64xbf16, #tpu.memory_space<vmem>>, vector<256x64xbf16>
    %c0_77 = arith.constant 0 : index
    %c0_78 = arith.constant 0 : index
    %198 = vector.load %arg19[%c0_77, %c0_78] : memref<256x64xbf16, #tpu.memory_space<vmem>>, vector<256x64xbf16>
    %cst_79 = arith.constant 0.000000e+00 : f32
    %199 = vector.broadcast %cst_79 : f32 to vector<2x1x128xf32>
    %200 = vector.extract_strided_slice %196 {offsets = [0, 0, 0], sizes = [2, 15, 128], strides = [1, 1, 1]} : vector<2x16x128xf32> to vector<2x15x128xf32>
    %201 = tpu.concatenate %199, %200 in 1 : vector<2x1x128xf32>, vector<2x15x128xf32> -> vector<2x16x128xf32>
    %202 = vector.extract_strided_slice %196 {offsets = [0, 1, 0], sizes = [2, 15, 128], strides = [1, 1, 1]} : vector<2x16x128xf32> to vector<2x15x128xf32>
    %203 = tpu.concatenate %202, %199 in 1 : vector<2x15x128xf32>, vector<2x1x128xf32> -> vector<2x16x128xf32>
    %204 = tpu.concatenate %196, %201 in 2 : vector<2x16x128xf32>, vector<2x16x128xf32> -> vector<2x16x256xf32>
    %205 = vector.shape_cast %204 : vector<2x16x256xf32> to vector<32x256xf32>
    %206 = arith.truncf %205 : vector<32x256xf32> to vector<32x256xbf16>
    %cst_80 = arith.constant dense<0.000000e+00> : vector<32x64xf32>
    %207 = tpu.matmul %206, %197, %cst_80 {dimension_numbers = #tpu.dot_dimension_numbers<[1], [0], [0], [1], [0, 0, 1, 1], [], []>} : vector<32x256xbf16>, vector<256x64xbf16>, vector<32x64xf32> -> vector<32x64xf32>
    %208 = vector.shape_cast %207 : vector<32x64xf32> to vector<2x16x64xf32>
    %209 = tpu.concatenate %203, %196 in 2 : vector<2x16x128xf32>, vector<2x16x128xf32> -> vector<2x16x256xf32>
    %210 = vector.shape_cast %209 : vector<2x16x256xf32> to vector<32x256xf32>
    %211 = arith.truncf %210 : vector<32x256xf32> to vector<32x256xbf16>
    %cst_81 = arith.constant dense<0.000000e+00> : vector<32x64xf32>
    %212 = tpu.matmul %211, %198, %cst_81 {dimension_numbers = #tpu.dot_dimension_numbers<[1], [0], [0], [1], [0, 0, 1, 1], [], []>} : vector<32x256xbf16>, vector<256x64xbf16>, vector<32x64xf32> -> vector<32x64xf32>
    %213 = vector.shape_cast %212 : vector<32x64xf32> to vector<2x16x64xf32>
    %214 = vector.shape_cast %208 : vector<2x16x64xf32> to vector<2x16x1x64xf32>
    %215 = vector.shape_cast %213 : vector<2x16x64xf32> to vector<2x16x1x64xf32>
    %216 = tpu.concatenate %214, %215 in 2 : vector<2x16x1x64xf32>, vector<2x16x1x64xf32> -> vector<2x16x2x64xf32>
    %217 = vector.shape_cast %216 : vector<2x16x2x64xf32> to vector<2x32x64xf32>
    %c0_82 = arith.constant 0 : index
    %c0_83 = arith.constant 0 : index
    %218 = vector.load %arg20[%c0_82, %c0_83] : memref<1x64xf32, #tpu.memory_space<vmem>>, vector<1x64xf32>
    %c0_84 = arith.constant 0 : index
    %c0_85 = arith.constant 0 : index
    %219 = vector.load %arg21[%c0_84, %c0_85] : memref<1x64xf32, #tpu.memory_space<vmem>>, vector<1x64xf32>
    %220 = vector.shape_cast %217 : vector<2x32x64xf32> to vector<64x64xf32>
    %cst_86 = arith.constant dense<0.000000e+00> : vector<64xf32>
    %221 = vector.multi_reduction <add>, %220, %cst_86 [0] : vector<64x64xf32> to vector<64xf32>
    %222 = vector.shape_cast %221 : vector<64xf32> to vector<1x64xf32>
    %cst_87 = arith.constant 6.400000e+01 : f32
    %223 = vector.broadcast %cst_87 : f32 to vector<1x64xf32>
    %224 = arith.divf %222, %223 : vector<1x64xf32>
    %225 = vector.broadcast %224 : vector<1x64xf32> to vector<64x64xf32>
    %226 = arith.subf %220, %225 : vector<64x64xf32>
    %227 = arith.mulf %226, %226 : vector<64x64xf32>
    %cst_88 = arith.constant dense<0.000000e+00> : vector<64xf32>
    %228 = vector.multi_reduction <add>, %227, %cst_88 [0] : vector<64x64xf32> to vector<64xf32>
    %229 = vector.shape_cast %228 : vector<64xf32> to vector<1x64xf32>
    %cst_89 = arith.constant 6.400000e+01 : f32
    %230 = vector.broadcast %cst_89 : f32 to vector<1x64xf32>
    %231 = arith.divf %229, %230 : vector<1x64xf32>
    %cst_90 = arith.constant 9.99999974E-6 : f32
    %232 = vector.broadcast %cst_90 : f32 to vector<1x64xf32>
    %233 = arith.addf %231, %232 : vector<1x64xf32>
    %234 = math.rsqrt %233 : vector<1x64xf32>
    %235 = vector.broadcast %234 : vector<1x64xf32> to vector<64x64xf32>
    %236 = arith.mulf %226, %235 : vector<64x64xf32>
    %237 = vector.broadcast %218 : vector<1x64xf32> to vector<64x64xf32>
    %238 = arith.mulf %236, %237 : vector<64x64xf32>
    %239 = vector.broadcast %219 : vector<1x64xf32> to vector<64x64xf32>
    %240 = arith.addf %238, %239 : vector<64x64xf32>
    %cst_91 = arith.constant 0.000000e+00 : f32
    %241 = vector.broadcast %cst_91 : f32 to vector<64x64xf32>
    %242 = arith.maximumf %240, %241 : vector<64x64xf32>
    %243 = vector.shape_cast %242 : vector<64x64xf32> to vector<2x32x64xf32>
    %c0_92 = arith.constant 0 : index
    %c0_93 = arith.constant 0 : index
    %244 = vector.load %arg22[%c0_92, %c0_93] : memref<4x64xf32, #tpu.memory_space<vmem>>, vector<4x64xf32>
    %cst_94 = arith.constant 0.000000e+00 : f32
    %245 = vector.broadcast %cst_94 : f32 to vector<2x1x64xf32>
    %246 = vector.extract_strided_slice %243 {offsets = [0, 0, 0], sizes = [2, 31, 64], strides = [1, 1, 1]} : vector<2x32x64xf32> to vector<2x31x64xf32>
    %247 = tpu.concatenate %245, %246 in 1 : vector<2x1x64xf32>, vector<2x31x64xf32> -> vector<2x32x64xf32>
    %248 = vector.extract_strided_slice %243 {offsets = [0, 1, 0], sizes = [2, 31, 64], strides = [1, 1, 1]} : vector<2x32x64xf32> to vector<2x31x64xf32>
    %249 = tpu.concatenate %248, %245 in 1 : vector<2x31x64xf32>, vector<2x1x64xf32> -> vector<2x32x64xf32>
    %250 = vector.extract_strided_slice %244 {offsets = [1, 0], sizes = [1, 64], strides = [1, 1]} : vector<4x64xf32> to vector<1x64xf32>
    %251 = vector.shape_cast %250 : vector<1x64xf32> to vector<64xf32>
    %252 = vector.shape_cast %251 : vector<64xf32> to vector<1x1x64xf32>
    %253 = vector.broadcast %252 : vector<1x1x64xf32> to vector<2x32x64xf32>
    %254 = arith.mulf %243, %253 : vector<2x32x64xf32>
    %255 = vector.extract_strided_slice %244 {offsets = [3, 0], sizes = [1, 64], strides = [1, 1]} : vector<4x64xf32> to vector<1x64xf32>
    %256 = vector.shape_cast %255 : vector<1x64xf32> to vector<64xf32>
    %257 = vector.shape_cast %256 : vector<64xf32> to vector<1x1x64xf32>
    %258 = vector.broadcast %257 : vector<1x1x64xf32> to vector<2x32x64xf32>
    %259 = arith.mulf %247, %258 : vector<2x32x64xf32>
    %260 = arith.addf %254, %259 : vector<2x32x64xf32>
    %cst_95 = arith.constant dense<0.000000e+00> : vector<2x32xf32>
    %261 = vector.multi_reduction <add>, %260, %cst_95 [2] : vector<2x32x64xf32> to vector<2x32xf32>
    %262 = vector.extract_strided_slice %244 {offsets = [0, 0], sizes = [1, 64], strides = [1, 1]} : vector<4x64xf32> to vector<1x64xf32>
    %263 = vector.shape_cast %262 : vector<1x64xf32> to vector<64xf32>
    %264 = vector.shape_cast %263 : vector<64xf32> to vector<1x1x64xf32>
    %265 = vector.broadcast %264 : vector<1x1x64xf32> to vector<2x32x64xf32>
    %266 = arith.mulf %249, %265 : vector<2x32x64xf32>
    %267 = vector.extract_strided_slice %244 {offsets = [2, 0], sizes = [1, 64], strides = [1, 1]} : vector<4x64xf32> to vector<1x64xf32>
    %268 = vector.shape_cast %267 : vector<1x64xf32> to vector<64xf32>
    %269 = vector.shape_cast %268 : vector<64xf32> to vector<1x1x64xf32>
    %270 = vector.broadcast %269 : vector<1x1x64xf32> to vector<2x32x64xf32>
    %271 = arith.mulf %243, %270 : vector<2x32x64xf32>
    %272 = arith.addf %266, %271 : vector<2x32x64xf32>
    %cst_96 = arith.constant dense<0.000000e+00> : vector<2x32xf32>
    %273 = vector.multi_reduction <add>, %272, %cst_96 [2] : vector<2x32x64xf32> to vector<2x32xf32>
    %274 = vector.shape_cast %261 : vector<2x32xf32> to vector<2x1x32xf32>
    %275 = vector.shape_cast %273 : vector<2x32xf32> to vector<2x1x32xf32>
    %276 = tpu.concatenate %274, %275 in 1 : vector<2x1x32xf32>, vector<2x1x32xf32> -> vector<2x2x32xf32>
    %277 = math.tanh %276 : vector<2x2x32xf32>
    %c0_97 = arith.constant 0 : index
    %c0_98 = arith.constant 0 : index
    %c0_99 = arith.constant 0 : index
    %278 = vector.load %arg23[%c0_97, %c0_98, %c0_99] : memref<2x2x32xf32, #tpu.memory_space<vmem>>, vector<2x2x32xf32>
    tpu.vector_store %arg23[%c0_97, %c0_98, %c0_99], %277 {strides = array<i32>} : memref<2x2x32xf32, #tpu.memory_space<vmem>>, vector<2x2x32xf32>,
    return
  }
}

</mosaic_0001>

<llo_original>
// kernel: autoencoder_forward.1
$region0: #{autoencoder_forward.1}
  #allocation0 [shape = 'u32[]', space=smem, size = 0x4, offset = 0x4, fixed_abs, tag = 'smem constant byte address 0x4 - core index']
  #allocation1 [shape = 'u32[144,128]{1,0:T(1,128)}', space=vmem, size = 0x12000, scoped, tag = 'internal scratch']
  %s0 = inlined_call_operand.vmem [shape: bf16[2,32,4], index: 0, kind: input, shape index: {}]
  %s1 = inlined_call_operand.vmem [shape: bf16[4,64], index: 1, kind: input, shape index: {}]
  %s2 = inlined_call_operand.hbm [shape: f32[1,64], index: 2, kind: input, shape index: {}]
  %s3 = inlined_call_operand.hbm [shape: f32[1,64], index: 3, kind: input, shape index: {}]
  %s4 = inlined_call_operand.vmem [shape: bf16[256,128], index: 4, kind: input, shape index: {}]
  %s5 = inlined_call_operand.hbm [shape: f32[1,128], index: 5, kind: input, shape index: {}]
  %s6 = inlined_call_operand.hbm [shape: f32[1,128], index: 6, kind: input, shape index: {}]
  %s7 = inlined_call_operand.vmem [shape: bf16[512,256], index: 7, kind: input, shape index: {}]
  %s8 = inlined_call_operand.hbm [shape: f32[1,256], index: 8, kind: input, shape index: {}]
  %s9 = inlined_call_operand.hbm [shape: f32[1,256], index: 9, kind: input, shape index: {}]
  %s10 = inlined_call_operand.hbm [shape: bf16[2048,128], index: 10, kind: input, shape index: {}]
  %s11 = inlined_call_operand.hbm [shape: bf16[128,2048], index: 11, kind: input, shape index: {}]
  %s12 = inlined_call_operand.hbm [shape: f32[1,256], index: 12, kind: input, shape index: {}]
  %s13 = inlined_call_operand.hbm [shape: f32[1,256], index: 13, kind: input, shape index: {}]
  %s14 = inlined_call_operand.hbm [shape: bf16[512,128], index: 14, kind: input, shape index: {}]
  %s15 = inlined_call_operand.hbm [shape: bf16[512,128], index: 15, kind: input, shape index: {}]
  %s16 = inlined_call_operand.hbm [shape: f32[1,128], index: 16, kind: input, shape index: {}]
  %s17 = inlined_call_operand.vmem [shape: f32[1,128], index: 17, kind: input, shape index: {}]
  %s18 = inlined_call_operand.vmem [shape: bf16[256,64], index: 18, kind: input, shape index: {}]
  %s19 = inlined_call_operand.vmem [shape: bf16[256,64], index: 19, kind: input, shape index: {}]
  %s20 = inlined_call_operand.vmem [shape: f32[1,64], index: 20, kind: input, shape index: {}]
  %s21 = inlined_call_operand.vmem [shape: f32[1,64], index: 21, kind: input, shape index: {}]
  %s22 = inlined_call_operand.vmem [shape: f32[4,64], index: 22, kind: input, shape index: {}]
  %s23 = inlined_call_operand.vmem [shape: f32[2,2,32], index: 23, kind: output, shape index: {}]
  %s24 = sld [smem:[#allocation0]]
  $region154: #{autoencoder_forward.1} parent=0
    _
  %s26 = ssub.s32 1, %s24
  %s27 = scalar_select 0, %s26, %s24
  $region1: #{autoencoder_forward.1} parent=0
    #allocation2 [shape = 'u8[512]{0}', space=vmem, size = 0x400, scoped, tag = 'input window, operand 2, single buffered']
    #allocation3 [shape = 's32[1]{0}', space=sflag, size = 0x4, scoped, tag = 'scoped memory for autoencoder_forward.1']
    #allocation4 [shape = 'u8[512]{0}', space=vmem, size = 0x400, scoped, tag = 'input window, operand 3, single buffered']
    #allocation5 [shape = 's32[1]{0}', space=sflag, size = 0x4, scoped, tag = 'scoped memory for autoencoder_forward.1']
    #allocation6 [shape = 'u8[512]{0}', space=vmem, size = 0x400, scoped, tag = 'input window, operand 5, single buffered']
    #allocation7 [shape = 'u8[512]{0}', space=vmem, size = 0x400, scoped, tag = 'input window, operand 6, single buffered']
    #allocation8 [shape = 's32[1]{0}', space=sflag, size = 0x4, scoped, tag = 'scoped memory for autoencoder_forward.1']
    #allocation9 [shape = 'u8[1024]{0}', space=vmem, size = 0x400, scoped, tag = 'input window, operand 8, single buffered']
    #allocation10 [shape = 'u8[1024]{0}', space=vmem, size = 0x400, scoped, tag = 'input window, operand 9, single buffered']
    #allocation11 [shape = 's32[1]{0}', space=sflag, size = 0x4, scoped, tag = 'scoped memory for autoencoder_forward.1']
    #allocation12 [shape = 'u8[524288]{0}', space=vmem, size = 0x80000, scoped, tag = 'input window, operand 10, single buffered']
    #allocation13 [shape = 'u8[524288]{0}', space=vmem, size = 0x80000, scoped, tag = 'input window, operand 11, single buffered']
    #allocation14 [shape = 's32[1]{0}', space=sflag, size = 0x4, scoped, tag = 'scoped memory for autoencoder_forward.1']
    #allocation15 [shape = 'u8[1024]{0}', space=vmem, size = 0x400, scoped, tag = 'input window, operand 12, single buffered']
    #allocation16 [shape = 'u8[1024]{0}', space=vmem, size = 0x400, scoped, tag = 'input window, operand 13, single buffered']
    #allocation17 [shape = 's32[1]{0}', space=sflag, size = 0x4, scoped, tag = 'scoped memory for autoencoder_forward.1']
    #allocation18 [shape = 'u8[131072]{0}', space=vmem, size = 0x20000, scoped, tag = 'input window, operand 14, single buffered']
    #allocation19 [shape = 'u8[131072]{0}', space=vmem, size = 0x20000, scoped, tag = 'input window, operand 15, single buffered']
    #allocation20 [shape = 's32[1]{0}', space=sflag, size = 0x4, scoped, tag = 'scoped memory for autoencoder_forward.1']
    #allocation21 [shape = 'u8[512]{0}', space=vmem, size = 0x400, scoped, tag = 'input window, operand 16, single buffered']
    %28 = vsyncpa [#allocation3], 0
    %29 = vsyncpa [#allocation5], 0
    %30 = vsyncpa [#allocation8], 0
    %31 = vsyncpa [#allocation11], 0
    %32 = vsyncpa [#allocation14], 0
    %33 = vsyncpa [#allocation17], 0
    %34 = vsyncpa [#allocation20], 0
    // Predicated region
    $region2: #{autoencoder_forward.1} parent=1 // pred_check
      _
    $region3: #{autoencoder_forward.1} parent=1 // pred_check_branch
      %36 = sbr.rel (0) target = $region5
    $region4: #{autoencoder_forward.1} parent=1 // pred_region
      _
    $region5: #{autoencoder_forward.1} parent=1 // pred_fallthru
      _
    // Predicated region
    $region6: #{autoencoder_forward.1} parent=1 // pred_check
      _
    $region7: #{autoencoder_forward.1} parent=1 // pred_check_branch
      %38 = sbr.rel (0) target = $region9
    $region8: #{autoencoder_forward.1} parent=1 // pred_region
      _
    $region9: #{autoencoder_forward.1} parent=1 // pred_fallthru
      _
    // Predicated region
    $region10: #{autoencoder_forward.1} parent=1 // pred_check
      _
    $region11: #{autoencoder_forward.1} parent=1 // pred_check_branch
      %40 = sbr.rel (0) target = $region13
    $region12: #{autoencoder_forward.1} parent=1 // pred_region
      %s42 = ssub.s32 16, 16
      %43 = vsyncadd [#allocation3], %s42
      %s45 = sshll.u32 [#allocation2], 4
      %s46 = int_to_ptr.vmem [resolvable:$true] %s45
      %48 = dma.hbm_to_vmem [thread:$0]  %s2, 16, %s46, [#allocation3]
    $region13: #{autoencoder_forward.1} parent=1 // pred_fallthru
      _
    // Predicated region
    $region14: #{autoencoder_forward.1} parent=1 // pred_check
      _
    $region15: #{autoencoder_forward.1} parent=1 // pred_check_branch
      %50 = sbr.rel (0) target = $region17
    $region16: #{autoencoder_forward.1} parent=1 // pred_region
      %s52 = ssub.s32 16, 16
      %53 = vsyncadd [#allocation5], %s52
      %s55 = sshll.u32 [#allocation4], 4
      %s56 = int_to_ptr.vmem [resolvable:$true] %s55
      %58 = dma.hbm_to_vmem [thread:$0]  %s3, 16, %s56, [#allocation5]
    $region17: #{autoencoder_forward.1} parent=1 // pred_fallthru
      _
    // Predicated region
    $region18: #{autoencoder_forward.1} parent=1 // pred_check
      _
    $region19: #{autoencoder_forward.1} parent=1 // pred_check_branch
      %60 = sbr.rel (0) target = $region21
    $region20: #{autoencoder_forward.1} parent=1 // pred_region
      _
    $region21: #{autoencoder_forward.1} parent=1 // pred_fallthru
      _
    // Predicated region
    $region22: #{autoencoder_forward.1} parent=1 // pred_check
      _
    $region23: #{autoencoder_forward.1} parent=1 // pred_check_branch
      %62 = sbr.rel (0) target = $region25
    $region24: #{autoencoder_forward.1} parent=1 // pred_region
      %s64 = ssub.s32 16, 16
      %65 = vsyncadd [#allocation5], %s64
      %s67 = sshll.u32 [#allocation6], 4
      %s68 = int_to_ptr.vmem [resolvable:$true] %s67
      %70 = dma.hbm_to_vmem [thread:$0]  %s5, 16, %s68, [#allocation5]
    $region25: #{autoencoder_forward.1} parent=1 // pred_fallthru
      _
    // Predicated region
    $region26: #{autoencoder_forward.1} parent=1 // pred_check
      _
    $region27: #{autoencoder_forward.1} parent=1 // pred_check_branch
      %72 = sbr.rel (0) target = $region29
    $region28: #{autoencoder_forward.1} parent=1 // pred_region
      %s74 = ssub.s32 16, 16
      %75 = vsyncadd [#allocation8], %s74
      %s77 = sshll.u32 [#allocation7], 4
      %s78 = int_to_ptr.vmem [resolvable:$true] %s77
      %80 = dma.hbm_to_vmem [thread:$0]  %s6, 16, %s78, [#allocation8]
    $region29: #{autoencoder_forward.1} parent=1 // pred_fallthru
      _
    // Predicated region
    $region30: #{autoencoder_forward.1} parent=1 // pred_check
      _
    $region31: #{autoencoder_forward.1} parent=1 // pred_check_branch
      %82 = sbr.rel (0) target = $region33
    $region32: #{autoencoder_forward.1} parent=1 // pred_region
      _
    $region33: #{autoencoder_forward.1} parent=1 // pred_fallthru
      _
    // Predicated region
    $region34: #{autoencoder_forward.1} parent=1 // pred_check
      _
    $region35: #{autoencoder_forward.1} parent=1 // pred_check_branch
      %84 = sbr.rel (0) target = $region37
    $region36: #{autoencoder_forward.1} parent=1 // pred_region
      %s86 = ssub.s32 32, 32
      %87 = vsyncadd [#allocation8], %s86
      %s89 = sshll.u32 [#allocation9], 4
      %s90 = int_to_ptr.vmem [resolvable:$true] %s89
      %92 = dma.hbm_to_vmem [thread:$0]  %s8, 32, %s90, [#allocation8]
    $region37: #{autoencoder_forward.1} parent=1 // pred_fallthru
      _
    // Predicated region
    $region38: #{autoencoder_forward.1} parent=1 // pred_check
      _
    $region39: #{autoencoder_forward.1} parent=1 // pred_check_branch
      %94 = sbr.rel (0) target = $region41
    $region40: #{autoencoder_forward.1} parent=1 // pred_region
      %s96 = ssub.s32 32, 32
      %97 = vsyncadd [#allocation11], %s96
      %s99 = sshll.u32 [#allocation10], 4
      %s100 = int_to_ptr.vmem [resolvable:$true] %s99
      %102 = dma.hbm_to_vmem [thread:$0]  %s9, 32, %s100, [#allocation11]
    $region41: #{autoencoder_forward.1} parent=1 // pred_fallthru
      _
    // Predicated region
    $region42: #{autoencoder_forward.1} parent=1 // pred_check
      _
    $region43: #{autoencoder_forward.1} parent=1 // pred_check_branch
      %104 = sbr.rel (0) target = $region45
    $region44: #{autoencoder_forward.1} parent=1 // pred_region
      %s106 = ssub.s32 16384, 16384
      %107 = vsyncadd [#allocation11], %s106
      %s108 = sshll.u32 [#allocation12], 4
      %s109 = int_to_ptr.vmem [resolvable:$true] %s108
      %114 = dma.hbm_to_vmem [thread:$0]  %s10, 16384, %s109, [#allocation11], 64, 64, 4
    $region45: #{autoencoder_forward.1} parent=1 // pred_fallthru
      _
    // Predicated region
    $region46: #{autoencoder_forward.1} parent=1 // pred_check
      _
    $region47: #{autoencoder_forward.1} parent=1 // pred_check_branch
      %116 = sbr.rel (0) target = $region49
    $region48: #{autoencoder_forward.1} parent=1 // pred_region
      %s118 = ssub.s32 16384, 16384
      %119 = vsyncadd [#allocation14], %s118
      %s120 = sshll.u32 [#allocation13], 4
      %s121 = int_to_ptr.vmem [resolvable:$true] %s120
      %126 = dma.hbm_to_vmem [thread:$0]  %s11, 16384, %s121, [#allocation14], 1024, 1024, 64
    $region49: #{autoencoder_forward.1} parent=1 // pred_fallthru
      _
    // Predicated region
    $region50: #{autoencoder_forward.1} parent=1 // pred_check
      _
    $region51: #{autoencoder_forward.1} parent=1 // pred_check_branch
      %128 = sbr.rel (0) target = $region53
    $region52: #{autoencoder_forward.1} parent=1 // pred_region
      %s130 = ssub.s32 32, 32
      %131 = vsyncadd [#allocation14], %s130
      %s133 = sshll.u32 [#allocation15], 4
      %s134 = int_to_ptr.vmem [resolvable:$true] %s133
      %136 = dma.hbm_to_vmem [thread:$0]  %s12, 32, %s134, [#allocation14]
    $region53: #{autoencoder_forward.1} parent=1 // pred_fallthru
      _
    // Predicated region
    $region54: #{autoencoder_forward.1} parent=1 // pred_check
      _
    $region55: #{autoencoder_forward.1} parent=1 // pred_check_branch
      %138 = sbr.rel (0) target = $region57
    $region56: #{autoencoder_forward.1} parent=1 // pred_region
      %s140 = ssub.s32 32, 32
      %141 = vsyncadd [#allocation17], %s140
      %s143 = sshll.u32 [#allocation16], 4
      %s144 = int_to_ptr.vmem [resolvable:$true] %s143
      %146 = dma.hbm_to_vmem [thread:$0]  %s13, 32, %s144, [#allocation17]
    $region57: #{autoencoder_forward.1} parent=1 // pred_fallthru
      _
    // Predicated region
    $region58: #{autoencoder_forward.1} parent=1 // pred_check
      _
    $region59: #{autoencoder_forward.1} parent=1 // pred_check_branch
      %148 = sbr.rel (0) target = $region61
    $region60: #{autoencoder_forward.1} parent=1 // pred_region
      %s150 = ssub.s32 4096, 4096
      %151 = vsyncadd [#allocation17], %s150
      %s152 = sshll.u32 [#allocation18], 4
      %s153 = int_to_ptr.vmem [resolvable:$true] %s152
      %158 = dma.hbm_to_vmem [thread:$0]  %s14, 4096, %s153, [#allocation17], 64, 64, 4
    $region61: #{autoencoder_forward.1} parent=1 // pred_fallthru
      _
    // Predicated region
    $region62: #{autoencoder_forward.1} parent=1 // pred_check
      _
    $region63: #{autoencoder_forward.1} parent=1 // pred_check_branch
      %160 = sbr.rel (0) target = $region65
    $region64: #{autoencoder_forward.1} parent=1 // pred_region
      %s162 = ssub.s32 4096, 4096
      %163 = vsyncadd [#allocation20], %s162
      %s164 = sshll.u32 [#allocation19], 4
      %s165 = int_to_ptr.vmem [resolvable:$true] %s164
      %170 = dma.hbm_to_vmem [thread:$0]  %s15, 4096, %s165, [#allocation20], 64, 64, 4
    $region65: #{autoencoder_forward.1} parent=1 // pred_fallthru
      _
    // Predicated region
    $region66: #{autoencoder_forward.1} parent=1 // pred_check
      _
    $region67: #{autoencoder_forward.1} parent=1 // pred_check_branch
      %172 = sbr.rel (0) target = $region69
    $region68: #{autoencoder_forward.1} parent=1 // pred_region
      %s174 = ssub.s32 16, 16
      %175 = vsyncadd [#allocation20], %s174
      %s177 = sshll.u32 [#allocation21], 4
      %s178 = int_to_ptr.vmem [resolvable:$true] %s177
      %180 = dma.hbm_to_vmem [thread:$0]  %s16, 16, %s178, [#allocation20]
    $region69: #{autoencoder_forward.1} parent=1 // pred_fallthru
      _
    // Predicated region
    $region70: #{autoencoder_forward.1} parent=1 // pred_check
      _
    $region71: #{autoencoder_forward.1} parent=1 // pred_check_branch
      %182 = sbr.rel (0) target = $region73
    $region72: #{autoencoder_forward.1} parent=1 // pred_region
      _
    $region73: #{autoencoder_forward.1} parent=1 // pred_fallthru
      _
    // Predicated region
    $region74: #{autoencoder_forward.1} parent=1 // pred_check
      _
    $region75: #{autoencoder_forward.1} parent=1 // pred_check_branch
      %184 = sbr.rel (0) target = $region77
    $region76: #{autoencoder_forward.1} parent=1 // pred_region
      _
    $region77: #{autoencoder_forward.1} parent=1 // pred_fallthru
      _
    // Predicated region
    $region78: #{autoencoder_forward.1} parent=1 // pred_check
      _
    $region79: #{autoencoder_forward.1} parent=1 // pred_check_branch
      %186 = sbr.rel (0) target = $region81
    $region80: #{autoencoder_forward.1} parent=1 // pred_region
      _
    $region81: #{autoencoder_forward.1} parent=1 // pred_fallthru
      _
    // Predicated region
    $region82: #{autoencoder_forward.1} parent=1 // pred_check
      _
    $region83: #{autoencoder_forward.1} parent=1 // pred_check_branch
      %188 = sbr.rel (0) target = $region85
    $region84: #{autoencoder_forward.1} parent=1 // pred_region
      _
    $region85: #{autoencoder_forward.1} parent=1 // pred_fallthru
      _
    // Predicated region
    $region86: #{autoencoder_forward.1} parent=1 // pred_check
      _
    $region87: #{autoencoder_forward.1} parent=1 // pred_check_branch
      %190 = sbr.rel (0) target = $region89
    $region88: #{autoencoder_forward.1} parent=1 // pred_region
      _
    $region89: #{autoencoder_forward.1} parent=1 // pred_fallthru
      _
    // Predicated region
    $region90: #{autoencoder_forward.1} parent=1 // pred_check
      _
    $region91: #{autoencoder_forward.1} parent=1 // pred_check_branch
      %192 = sbr.rel (0) target = $region93
    $region92: #{autoencoder_forward.1} parent=1 // pred_region
      _
    $region93: #{autoencoder_forward.1} parent=1 // pred_fallthru
      _
    // Predicated region
    $region94: #{autoencoder_forward.1} parent=1 // pred_check
      _
    $region95: #{autoencoder_forward.1} parent=1 // pred_check_branch
      %194 = sbr.rel (0) target = $region97
    $region96: #{autoencoder_forward.1} parent=1 // pred_region
      %195 = dma.done [#allocation3], 16
    $region97: #{autoencoder_forward.1} parent=1 // pred_fallthru
      _
    // Predicated region
    $region98: #{autoencoder_forward.1} parent=1 // pred_check
      _
    $region99: #{autoencoder_forward.1} parent=1 // pred_check_branch
      %197 = sbr.rel (0) target = $region101
    $region100: #{autoencoder_forward.1} parent=1 // pred_region
      %198 = dma.done [#allocation5], 16
    $region101: #{autoencoder_forward.1} parent=1 // pred_fallthru
      _
    // Predicated region
    $region102: #{autoencoder_forward.1} parent=1 // pred_check
      _
    $region103: #{autoencoder_forward.1} parent=1 // pred_check_branch
      %200 = sbr.rel (0) target = $region105
    $region104: #{autoencoder_forward.1} parent=1 // pred_region
      %201 = dma.done [#allocation5], 16
    $region105: #{autoencoder_forward.1} parent=1 // pred_fallthru
      _
    // Predicated region
    $region106: #{autoencoder_forward.1} parent=1 // pred_check
      _
    $region107: #{autoencoder_forward.1} parent=1 // pred_check_branch
      %203 = sbr.rel (0) target = $region109
    $region108: #{autoencoder_forward.1} parent=1 // pred_region
      %204 = dma.done [#allocation8], 16
    $region109: #{autoencoder_forward.1} parent=1 // pred_fallthru
      _
    // Predicated region
    $region110: #{autoencoder_forward.1} parent=1 // pred_check
      _
    $region111: #{autoencoder_forward.1} parent=1 // pred_check_branch
      %206 = sbr.rel (0) target = $region113
    $region112: #{autoencoder_forward.1} parent=1 // pred_region
      %207 = dma.done [#allocation8], 32
    $region113: #{autoencoder_forward.1} parent=1 // pred_fallthru
      _
    // Predicated region
    $region114: #{autoencoder_forward.1} parent=1 // pred_check
      _
    $region115: #{autoencoder_forward.1} parent=1 // pred_check_branch
      %209 = sbr.rel (0) target = $region117
    $region116: #{autoencoder_forward.1} parent=1 // pred_region
      %210 = dma.done [#allocation11], 32
    $region117: #{autoencoder_forward.1} parent=1 // pred_fallthru
      _
    // Predicated region
    $region118: #{autoencoder_forward.1} parent=1 // pred_check
      _
    $region119: #{autoencoder_forward.1} parent=1 // pred_check_branch
      %212 = sbr.rel (0) target = $region121
    $region120: #{autoencoder_forward.1} parent=1 // pred_region
      %213 = dma.done [#allocation11], 16384
    $region121: #{autoencoder_forward.1} parent=1 // pred_fallthru
      _
    // Predicated region
    $region122: #{autoencoder_forward.1} parent=1 // pred_check
      _
    $region123: #{autoencoder_forward.1} parent=1 // pred_check_branch
      %215 = sbr.rel (0) target = $region125
    $region124: #{autoencoder_forward.1} parent=1 // pred_region
      %216 = dma.done [#allocation14], 16384
    $region125: #{autoencoder_forward.1} parent=1 // pred_fallthru
      _
    // Predicated region
    $region126: #{autoencoder_forward.1} parent=1 // pred_check
      _
    $region127: #{autoencoder_forward.1} parent=1 // pred_check_branch
      %218 = sbr.rel (0) target = $region129
    $region128: #{autoencoder_forward.1} parent=1 // pred_region
      %219 = dma.done [#allocation14], 32
    $region129: #{autoencoder_forward.1} parent=1 // pred_fallthru
      _
    // Predicated region
    $region130: #{autoencoder_forward.1} parent=1 // pred_check
      _
    $region131: #{autoencoder_forward.1} parent=1 // pred_check_branch
      %221 = sbr.rel (0) target = $region133
    $region132: #{autoencoder_forward.1} parent=1 // pred_region
      %222 = dma.done [#allocation17], 32
    $region133: #{autoencoder_forward.1} parent=1 // pred_fallthru
      _
    // Predicated region
    $region134: #{autoencoder_forward.1} parent=1 // pred_check
      _
    $region135: #{autoencoder_forward.1} parent=1 // pred_check_branch
      %224 = sbr.rel (0) target = $region137
    $region136: #{autoencoder_forward.1} parent=1 // pred_region
      %225 = dma.done [#allocation17], 4096
    $region137: #{autoencoder_forward.1} parent=1 // pred_fallthru
      _
    // Predicated region
    $region138: #{autoencoder_forward.1} parent=1 // pred_check
      _
    $region139: #{autoencoder_forward.1} parent=1 // pred_check_branch
      %227 = sbr.rel (0) target = $region141
    $region140: #{autoencoder_forward.1} parent=1 // pred_region
      %228 = dma.done [#allocation20], 4096
    $region141: #{autoencoder_forward.1} parent=1 // pred_fallthru
      _
    // Predicated region
    $region142: #{autoencoder_forward.1} parent=1 // pred_check
      _
    $region143: #{autoencoder_forward.1} parent=1 // pred_check_branch
      %230 = sbr.rel (0) target = $region145
    $region144: #{autoencoder_forward.1} parent=1 // pred_region
      %231 = dma.done [#allocation20], 16
    $region145: #{autoencoder_forward.1} parent=1 // pred_fallthru
      _
    %v233 = vld [vmem:[%s0] sm:$0xf]
    %v234 = vld [vmem:[%s0 + $0x4] sm:$0xf]
    %v235 = vld [vmem:[%s0 + $0x8] sm:$0xf]
    %v236 = vld [vmem:[%s0 + $0xc] sm:$0xf]
    %v237 = vld [vmem:[%s0 + $0x10] sm:$0xf]
    %v238 = vld [vmem:[%s0 + $0x14] sm:$0xf]
    %v239 = vld [vmem:[%s0 + $0x18] sm:$0xf]
    %v240 = vld [vmem:[%s0 + $0x1c] sm:$0xf]
    %v241 = vld [vmem:[%s1] sm:$0x3]
    %v250 = vunpack.c.l.b16 %v233
    %v251 = vunpack.c.l.b16 %v234
    %v252 = vunpack.c.l.b16 %v235
    %v253 = vunpack.c.l.b16 %v236
    %v254 = vunpack.c.l.b16 %v237
    %v255 = vunpack.c.l.b16 %v238
    %v256 = vunpack.c.l.b16 %v239
    %v257 = vunpack.c.l.b16 %v240
    %v258 = vpack.c.b16 %v251, %v250
    %v259 = vpack.c.b16 %v253, %v252
    %v260 = vpack.c.b16 %v255, %v254
    %v261 = vpack.c.b16 %v257, %v256
    %vm262 = vcmask 31744
    %v264 = vsel %vm262, %v258, 0
    %v267 = vsel %vm262, %v259, 0
    %v270 = vsel %vm262, %v260, 0
    %v273 = vsel %vm262, %v261, 0
    %vm275 = vcmask 1041408
    %v277 = vsel %vm275, %v241, 0
    %279 = vmatprep.subr.bf16.mxu0 0
    %280 = vmatpush1.bf16.msra.mxu0 %v277
    %281 = vmatprep.subr.bf16.mxu0 0
    %282 = vmatpush1.bf16.msra.mxu0 0
    %283 = vmatprep.subr.bf16.mxu0 0
    %284 = vmatpush1.bf16.msra.mxu0 0
    %285 = vmatprep.subr.bf16.mxu0 0
    %286 = vmatpush1.bf16.msra.mxu0 0
    %287 = vmatprep.subr.bf16.mxu0 0
    %288 = vmatpush1.bf16.msra.mxu0 0
    %289 = vmatprep.subr.bf16.mxu0 0
    %290 = vmatpush1.bf16.msra.mxu0 0
    %291 = vmatprep.subr.bf16.mxu0 0
    %292 = vmatpush1.bf16.msra.mxu0 0
    %293 = vmatprep.subr.bf16.mxu0 0
    %294 = vmatpush1.bf16.msra.mxu0 0
    %295 = vmatprep.subr.bf16.mxu0 0
    %296 = vmatpush1.bf16.msra.mxu0 0
    %297 = vmatprep.subr.bf16.mxu0 0
    %298 = vmatpush1.bf16.msra.mxu0 0
    %299 = vmatprep.subr.bf16.mxu0 0
    %300 = vmatpush1.bf16.msra.mxu0 0
    %301 = vmatprep.subr.bf16.mxu0 0
    %302 = vmatpush1.bf16.msra.mxu0 0
    %303 = vmatprep.subr.bf16.mxu0 0
    %304 = vmatpush1.bf16.msra.mxu0 0
    %305 = vmatprep.subr.bf16.mxu0 0
    %306 = vmatpush1.bf16.msra.mxu0 0
    %307 = vmatprep.subr.bf16.mxu0 0
    %308 = vmatpush1.bf16.msra.mxu0 0
    %309 = vmatprep.subr.bf16.mxu0 0
    %310 = vmatpush1.bf16.msra.mxu0 0
    %311 = vmatprep.mubr.bf16.mxu0 0
    %312 = vmatmul.mubr.bf16.gmra.mrb[0].mxu0 %v264
    %v313 = vpop.f32.mrb[0].mxu0
    %v314 = vadd.f32 0.0, %v313
    %v315 = vpop.f32.mrb[0].mxu0
    %v316 = vpop.f32.mrb[0].mxu0
    %v317 = vadd.f32 0.0, %v316
    %v318 = vpop.f32.mrb[0].mxu0
    %319 = vmatprep.mubr.bf16.mxu0 0
    %320 = vmatmul.mubr.bf16.gmra.mrb[0].mxu0 %v267
    %v321 = vpop.f32.mrb[0].mxu0
    %v322 = vadd.f32 0.0, %v321
    %v323 = vpop.f32.mrb[0].mxu0
    %v324 = vpop.f32.mrb[0].mxu0
    %v325 = vadd.f32 0.0, %v324
    %v326 = vpop.f32.mrb[0].mxu0
    %327 = vmatprep.mubr.bf16.mxu0 0
    %328 = vmatmul.mubr.bf16.gmra.mrb[0].mxu0 %v270
    %v329 = vpop.f32.mrb[0].mxu0
    %v330 = vadd.f32 0.0, %v329
    %v331 = vpop.f32.mrb[0].mxu0
    %v332 = vpop.f32.mrb[0].mxu0
    %v333 = vadd.f32 0.0, %v332
    %v334 = vpop.f32.mrb[0].mxu0
    %335 = vmatprep.mubr.bf16.mxu0 0
    %336 = vmatmul.mubr.bf16.gmra.mrb[0].mxu0 %v273
    %v337 = vpop.f32.mrb[0].mxu0
    %v338 = vadd.f32 0.0, %v337
    %v339 = vpop.f32.mrb[0].mxu0
    %v340 = vpop.f32.mrb[0].mxu0
    %v341 = vadd.f32 0.0, %v340
    %v342 = vpop.f32.mrb[0].mxu0
    %343 = vdwg.mxu0
    %v344 = vld [vmem:[#allocation2] sm:$0x1]
    %v345 = vld [vmem:[#allocation4] sm:$0x1]
    %vm346 = vcmask 523264
    %v347 = vsel %vm346, %v314, 0.0
    %v348 = vsel %vm346, %v317, 0.0
    %v349 = vadd.f32 %v347, %v348
    %v350 = vsel %vm346, %v322, 0.0
    %v351 = vadd.f32 %v349, %v350
    %v352 = vsel %vm346, %v325, 0.0
    %v353 = vadd.f32 %v351, %v352
    %v354 = vsel %vm346, %v330, 0.0
    %v355 = vadd.f32 %v353, %v354
    %v356 = vsel %vm346, %v333, 0.0
    %v357 = vadd.f32 %v355, %v356
    %v358 = vsel %vm346, %v338, 0.0
    %v359 = vadd.f32 %v357, %v358
    %v360 = vsel %vm346, %v341, 0.0
    %v361 = vadd.f32 %v359, %v360
    %v362 = vrot.slane %v361, 4
    %v363 = vadd.f32 %v361, %v362
    %v364 = vrot.slane %v363, 2
    %v365 = vadd.f32 %v363, %v364
    %v366 = vrot.slane %v365, 1
    %v367 = vadd.f32 %v365, %v366
    %v368 = vrcp.pop 64.0
    %v369 = vmul.f32 %v367, %v368
    %v370 = vsub.f32 %v314, %v369
    %v371 = vsub.f32 %v317, %v369
    %v372 = vsub.f32 %v322, %v369
    %v373 = vsub.f32 %v325, %v369
    %v374 = vsub.f32 %v330, %v369
    %v375 = vsub.f32 %v333, %v369
    %v376 = vsub.f32 %v338, %v369
    %v377 = vsub.f32 %v341, %v369
    %v378 = vmul.f32 %v370, %v370
    %v379 = vmul.f32 %v371, %v371
    %v380 = vmul.f32 %v372, %v372
    %v381 = vmul.f32 %v373, %v373
    %v382 = vmul.f32 %v374, %v374
    %v383 = vmul.f32 %v375, %v375
    %v384 = vmul.f32 %v376, %v376
    %v385 = vmul.f32 %v377, %v377
    %v386 = vsel %vm346, %v378, 0.0
    %v387 = vsel %vm346, %v379, 0.0
    %v388 = vadd.f32 %v386, %v387
    %v389 = vsel %vm346, %v380, 0.0
    %v390 = vadd.f32 %v388, %v389
    %v391 = vsel %vm346, %v381, 0.0
    %v392 = vadd.f32 %v390, %v391
    %v393 = vsel %vm346, %v382, 0.0
    %v394 = vadd.f32 %v392, %v393
    %v395 = vsel %vm346, %v383, 0.0
    %v396 = vadd.f32 %v394, %v395
    %v397 = vsel %vm346, %v384, 0.0
    %v398 = vadd.f32 %v396, %v397
    %v399 = vsel %vm346, %v385, 0.0
    %v400 = vadd.f32 %v398, %v399
    %v401 = vrot.slane %v400, 4
    %v402 = vadd.f32 %v400, %v401
    %v403 = vrot.slane %v402, 2
    %v404 = vadd.f32 %v402, %v403
    %v405 = vrot.slane %v404, 1
    %v406 = vadd.f32 %v404, %v405
    %v407 = vmul.f32 %v406, %v368
    %v408 = vadd.f32 %v407, 1e-05
    %v409 = vrsqrt.pop %v408
    %v410 = vmul.f32 %v370, %v409
    %v411 = vmul.f32 %v371, %v409
    %v412 = vmul.f32 %v372, %v409
    %v413 = vmul.f32 %v373, %v409
    %v414 = vmul.f32 %v374, %v409
    %v415 = vmul.f32 %v375, %v409
    %v416 = vmul.f32 %v376, %v409
    %v417 = vmul.f32 %v377, %v409
    %v419 = vlaneseq
    %v420 = vshrl.u32 %v419, 7
    %v421 = vsub.s32 0, %v420
    %v422 = vrot.slane %v344, %v421
    %v424 = vmul.f32 %v410, %v422
    %v425 = vmul.f32 %v411, %v422
    %v426 = vmul.f32 %v412, %v422
    %v427 = vmul.f32 %v413, %v422
    %v428 = vmul.f32 %v414, %v422
    %v429 = vmul.f32 %v415, %v422
    %v430 = vmul.f32 %v416, %v422
    %v431 = vmul.f32 %v417, %v422
    %v433 = vlaneseq
    %v434 = vshrl.u32 %v433, 7
    %v435 = vsub.s32 0, %v434
    %v436 = vrot.slane %v345, %v435
    %v438 = vadd.f32 %v424, %v436
    %v439 = vadd.f32 %v425, %v436
    %v440 = vadd.f32 %v426, %v436
    %v441 = vadd.f32 %v427, %v436
    %v442 = vadd.f32 %v428, %v436
    %v443 = vadd.f32 %v429, %v436
    %v444 = vadd.f32 %v430, %v436
    %v445 = vadd.f32 %v431, %v436
    %v446 = vmax.f32 %v438, 0.0
    %v447 = vmax.f32 %v439, 0.0
    %v448 = vmax.f32 %v440, 0.0
    %v449 = vmax.f32 %v441, 0.0
    %v450 = vmax.f32 %v442, 0.0
    %v451 = vmax.f32 %v443, 0.0
    %v452 = vmax.f32 %v444, 0.0
    %v453 = vmax.f32 %v445, 0.0
    %v462 = vcombine.high %v446, %v446
    %v464 = vunpack.c.l.s4 1983009808
    %v465 = vunpack.c.0.s8 %v464
    %v466 = vlaneseq
    %v467 = vshrl.u32 %v466, 7
    %v468 = vsub.s32 %v465, %v467
    %v469 = vrot.slane %v446, %v468
    %v471 = vunpack.c.l.s4 1983009808
    %v472 = vunpack.c.0.s8 %v471
    %v473 = vlaneseq
    %v474 = vshrl.u32 %v473, 7
    %v475 = vsub.s32 %v472, %v474
    %v476 = vrot.slane %v462, %v475
    %v477 = vcombine.high %v469, %v469
    %v478 = vcombine.high %v476, %v476
    %v479 = vcombine.high %v447, %v447
    %v481 = vunpack.c.l.s4 1983009808
    %v482 = vunpack.c.0.s8 %v481
    %v483 = vlaneseq
    %v484 = vshrl.u32 %v483, 7
    %v485 = vsub.s32 %v482, %v484
    %v486 = vrot.slane %v447, %v485
    %v488 = vunpack.c.l.s4 1983009808
    %v489 = vunpack.c.0.s8 %v488
    %v490 = vlaneseq
    %v491 = vshrl.u32 %v490, 7
    %v492 = vsub.s32 %v489, %v491
    %v493 = vrot.slane %v479, %v492
    %v494 = vcombine.high %v486, %v486
    %v495 = vcombine.high %v493, %v493
    %v496 = vcombine.high %v448, %v448
    %v498 = vunpack.c.l.s4 1983009808
    %v499 = vunpack.c.0.s8 %v498
    %v500 = vlaneseq
    %v501 = vshrl.u32 %v500, 7
    %v502 = vsub.s32 %v499, %v501
    %v503 = vrot.slane %v448, %v502
    %v505 = vunpack.c.l.s4 1983009808
    %v506 = vunpack.c.0.s8 %v505
    %v507 = vlaneseq
    %v508 = vshrl.u32 %v507, 7
    %v509 = vsub.s32 %v506, %v508
    %v510 = vrot.slane %v496, %v509
    %v511 = vcombine.high %v503, %v503
    %v512 = vcombine.high %v510, %v510
    %v513 = vcombine.high %v449, %v449
    %v515 = vunpack.c.l.s4 1983009808
    %v516 = vunpack.c.0.s8 %v515
    %v517 = vlaneseq
    %v518 = vshrl.u32 %v517, 7
    %v519 = vsub.s32 %v516, %v518
    %v520 = vrot.slane %v449, %v519
    %v522 = vunpack.c.l.s4 1983009808
    %v523 = vunpack.c.0.s8 %v522
    %v524 = vlaneseq
    %v525 = vshrl.u32 %v524, 7
    %v526 = vsub.s32 %v523, %v525
    %v527 = vrot.slane %v513, %v526
    %v528 = vcombine.high %v520, %v520
    %v529 = vcombine.high %v527, %v527
    %v530 = vcombine.high %v450, %v450
    %v532 = vunpack.c.l.s4 1983009808
    %v533 = vunpack.c.0.s8 %v532
    %v534 = vlaneseq
    %v535 = vshrl.u32 %v534, 7
    %v536 = vsub.s32 %v533, %v535
    %v537 = vrot.slane %v450, %v536
    %v539 = vunpack.c.l.s4 1983009808
    %v540 = vunpack.c.0.s8 %v539
    %v541 = vlaneseq
    %v542 = vshrl.u32 %v541, 7
    %v543 = vsub.s32 %v540, %v542
    %v544 = vrot.slane %v530, %v543
    %v545 = vcombine.high %v537, %v537
    %v546 = vcombine.high %v544, %v544
    %v547 = vcombine.high %v451, %v451
    %v549 = vunpack.c.l.s4 1983009808
    %v550 = vunpack.c.0.s8 %v549
    %v551 = vlaneseq
    %v552 = vshrl.u32 %v551, 7
    %v553 = vsub.s32 %v550, %v552
    %v554 = vrot.slane %v451, %v553
    %v556 = vunpack.c.l.s4 1983009808
    %v557 = vunpack.c.0.s8 %v556
    %v558 = vlaneseq
    %v559 = vshrl.u32 %v558, 7
    %v560 = vsub.s32 %v557, %v559
    %v561 = vrot.slane %v547, %v560
    %v562 = vcombine.high %v554, %v554
    %v563 = vcombine.high %v561, %v561
    %v564 = vcombine.high %v452, %v452
    %v566 = vunpack.c.l.s4 1983009808
    %v567 = vunpack.c.0.s8 %v566
    %v568 = vlaneseq
    %v569 = vshrl.u32 %v568, 7
    %v570 = vsub.s32 %v567, %v569
    %v571 = vrot.slane %v452, %v570
    %v573 = vunpack.c.l.s4 1983009808
    %v574 = vunpack.c.0.s8 %v573
    %v575 = vlaneseq
    %v576 = vshrl.u32 %v575, 7
    %v577 = vsub.s32 %v574, %v576
    %v578 = vrot.slane %v564, %v577
    %v579 = vcombine.high %v571, %v571
    %v580 = vcombine.high %v578, %v578
    %v581 = vcombine.high %v453, %v453
    %v583 = vunpack.c.l.s4 1983009808
    %v584 = vunpack.c.0.s8 %v583
    %v585 = vlaneseq
    %v586 = vshrl.u32 %v585, 7
    %v587 = vsub.s32 %v584, %v586
    %v588 = vrot.slane %v453, %v587
    %v590 = vunpack.c.l.s4 1983009808
    %v591 = vunpack.c.0.s8 %v590
    %v592 = vlaneseq
    %v593 = vshrl.u32 %v592, 7
    %v594 = vsub.s32 %v591, %v593
    %v595 = vrot.slane %v581, %v594
    %v596 = vcombine.high %v588, %v588
    %v597 = vcombine.high %v595, %v595
    %v598 = vlaneseq
    %v599 = vshrl.u32 %v598, 7
    %v600 = vsub.s32 1, %v599
    %v601 = vrot.slane %v469, %v600
    %v602 = vlaneseq
    %v603 = vshrl.u32 %v602, 7
    %v604 = vsub.s32 1, %v603
    %v605 = vrot.slane %v477, %v604
    %v606 = vlaneseq
    %v607 = vshrl.u32 %v606, 7
    %v608 = vsub.s32 1, %v607
    %v609 = vrot.slane %v476, %v608
    %v610 = vlaneseq
    %v611 = vshrl.u32 %v610, 7
    %v612 = vsub.s32 1, %v611
    %v613 = vrot.slane %v478, %v612
    %v614 = vlaneseq
    %v615 = vshrl.u32 %v614, 7
    %v616 = vsub.s32 1, %v615
    %v617 = vrot.slane %v486, %v616
    %v618 = vlaneseq
    %v619 = vshrl.u32 %v618, 7
    %v620 = vsub.s32 1, %v619
    %v621 = vrot.slane %v494, %v620
    %v622 = vlaneseq
    %v623 = vshrl.u32 %v622, 7
    %v624 = vsub.s32 1, %v623
    %v625 = vrot.slane %v493, %v624
    %v626 = vlaneseq
    %v627 = vshrl.u32 %v626, 7
    %v628 = vsub.s32 1, %v627
    %v629 = vrot.slane %v495, %v628
    %v630 = vlaneseq
    %v631 = vshrl.u32 %v630, 7
    %v632 = vsub.s32 1, %v631
    %v633 = vrot.slane %v503, %v632
    %v634 = vlaneseq
    %v635 = vshrl.u32 %v634, 7
    %v636 = vsub.s32 1, %v635
    %v637 = vrot.slane %v511, %v636
    %v638 = vlaneseq
    %v639 = vshrl.u32 %v638, 7
    %v640 = vsub.s32 1, %v639
    %v641 = vrot.slane %v510, %v640
    %v642 = vlaneseq
    %v643 = vshrl.u32 %v642, 7
    %v644 = vsub.s32 1, %v643
    %v645 = vrot.slane %v512, %v644
    %v646 = vlaneseq
    %v647 = vshrl.u32 %v646, 7
    %v648 = vsub.s32 1, %v647
    %v649 = vrot.slane %v520, %v648
    %v650 = vlaneseq
    %v651 = vshrl.u32 %v650, 7
    %v652 = vsub.s32 1, %v651
    %v653 = vrot.slane %v528, %v652
    %v654 = vlaneseq
    %v655 = vshrl.u32 %v654, 7
    %v656 = vsub.s32 1, %v655
    %v657 = vrot.slane %v527, %v656
    %v658 = vlaneseq
    %v659 = vshrl.u32 %v658, 7
    %v660 = vsub.s32 1, %v659
    %v661 = vrot.slane %v537, %v660
    %v662 = vlaneseq
    %v663 = vshrl.u32 %v662, 7
    %v664 = vsub.s32 1, %v663
    %v665 = vrot.slane %v545, %v664
    %v666 = vlaneseq
    %v667 = vshrl.u32 %v666, 7
    %v668 = vsub.s32 1, %v667
    %v669 = vrot.slane %v544, %v668
    %v670 = vlaneseq
    %v671 = vshrl.u32 %v670, 7
    %v672 = vsub.s32 1, %v671
    %v673 = vrot.slane %v546, %v672
    %v674 = vlaneseq
    %v675 = vshrl.u32 %v674, 7
    %v676 = vsub.s32 1, %v675
    %v677 = vrot.slane %v554, %v676
    %v678 = vlaneseq
    %v679 = vshrl.u32 %v678, 7
    %v680 = vsub.s32 1, %v679
    %v681 = vrot.slane %v562, %v680
    %v682 = vlaneseq
    %v683 = vshrl.u32 %v682, 7
    %v684 = vsub.s32 1, %v683
    %v685 = vrot.slane %v561, %v684
    %v686 = vlaneseq
    %v687 = vshrl.u32 %v686, 7
    %v688 = vsub.s32 1, %v687
    %v689 = vrot.slane %v563, %v688
    %v690 = vlaneseq
    %v691 = vshrl.u32 %v690, 7
    %v692 = vsub.s32 1, %v691
    %v693 = vrot.slane %v571, %v692
    %v694 = vlaneseq
    %v695 = vshrl.u32 %v694, 7
    %v696 = vsub.s32 1, %v695
    %v697 = vrot.slane %v579, %v696
    %v698 = vlaneseq
    %v699 = vshrl.u32 %v698, 7
    %v700 = vsub.s32 1, %v699
    %v701 = vrot.slane %v578, %v700
    %v702 = vlaneseq
    %v703 = vshrl.u32 %v702, 7
    %v704 = vsub.s32 1, %v703
    %v705 = vrot.slane %v580, %v704
    %v706 = vlaneseq
    %v707 = vshrl.u32 %v706, 7
    %v708 = vsub.s32 1, %v707
    %v709 = vrot.slane %v588, %v708
    %v710 = vlaneseq
    %v711 = vshrl.u32 %v710, 7
    %v712 = vsub.s32 1, %v711
    %v713 = vrot.slane %v596, %v712
    %v714 = vlaneseq
    %v715 = vshrl.u32 %v714, 7
    %v716 = vsub.s32 1, %v715
    %v717 = vrot.slane %v595, %v716
    %vm718 = vcmask 1042434
    %v719 = vsel %vm718, %v605, %v601
    %vm720 = vcmask 1043459
    %v721 = vsel %vm720, %v609, %v719
    %vm722 = vcmask 1044484
    %v723 = vsel %vm722, %v613, %v721
    %vm724 = vcmask 1045509
    %v725 = vsel %vm724, %v617, %v723
    %vm726 = vcmask 1046534
    %v727 = vsel %vm726, %v621, %v725
    %vm728 = vcmask 1047559
    %v729 = vsel %vm728, %v625, %v727
    %vm730 = vcmask 1041409
    %v731 = vsel %vm730, %v633, %v629
    %v732 = vsel %vm718, %v637, %v731
    %v733 = vsel %vm720, %v641, %v732
    %v734 = vsel %vm722, %v645, %v733
    %v735 = vsel %vm724, %v649, %v734
    %v736 = vsel %vm726, %v653, %v735
    %v737 = vsel %vm728, %v657, %v736
    %v738 = vsel %vm718, %v665, %v661
    %v739 = vsel %vm720, %v669, %v738
    %v740 = vsel %vm722, %v673, %v739
    %v741 = vsel %vm724, %v677, %v740
    %v742 = vsel %vm726, %v681, %v741
    %v743 = vsel %vm728, %v685, %v742
    %v744 = vsel %vm730, %v693, %v689
    %v745 = vsel %vm718, %v697, %v744
    %v746 = vsel %vm720, %v701, %v745
    %v747 = vsel %vm722, %v705, %v746
    %v748 = vsel %vm724, %v709, %v747
    %v749 = vsel %vm726, %v713, %v748
    %v750 = vsel %vm728, %v717, %v749
    %vm755 = vcmask 1040384
    %v756 = vsel %vm755, 0.0, %v729
    %v757 = vsel %vm755, 0.0, %v743
    %v758 = vlaneseq
    %v759 = vshrl.u32 %v758, 7
    %v760 = vsub.s32 0, %v759
    %v761 = vrot.slane %v477, %v760
    %v762 = vlaneseq
    %v763 = vshrl.u32 %v762, 7
    %v764 = vsub.s32 0, %v763
    %v765 = vrot.slane %v476, %v764
    %v766 = vlaneseq
    %v767 = vshrl.u32 %v766, 7
    %v768 = vsub.s32 0, %v767
    %v769 = vrot.slane %v478, %v768
    %v770 = vlaneseq
    %v771 = vshrl.u32 %v770, 7
    %v772 = vsub.s32 0, %v771
    %v773 = vrot.slane %v486, %v772
    %v774 = vlaneseq
    %v775 = vshrl.u32 %v774, 7
    %v776 = vsub.s32 0, %v775
    %v777 = vrot.slane %v494, %v776
    %v778 = vlaneseq
    %v779 = vshrl.u32 %v778, 7
    %v780 = vsub.s32 0, %v779
    %v781 = vrot.slane %v493, %v780
    %v782 = vlaneseq
    %v783 = vshrl.u32 %v782, 7
    %v784 = vsub.s32 0, %v783
    %v785 = vrot.slane %v495, %v784
    %v786 = vlaneseq
    %v787 = vshrl.u32 %v786, 7
    %v788 = vsub.s32 0, %v787
    %v789 = vrot.slane %v503, %v788
    %v790 = vlaneseq
    %v791 = vshrl.u32 %v790, 7
    %v792 = vsub.s32 0, %v791
    %v793 = vrot.slane %v511, %v792
    %v794 = vlaneseq
    %v795 = vshrl.u32 %v794, 7
    %v796 = vsub.s32 0, %v795
    %v797 = vrot.slane %v510, %v796
    %v798 = vlaneseq
    %v799 = vshrl.u32 %v798, 7
    %v800 = vsub.s32 0, %v799
    %v801 = vrot.slane %v512, %v800
    %v802 = vlaneseq
    %v803 = vshrl.u32 %v802, 7
    %v804 = vsub.s32 0, %v803
    %v805 = vrot.slane %v520, %v804
    %v806 = vlaneseq
    %v807 = vshrl.u32 %v806, 7
    %v808 = vsub.s32 0, %v807
    %v809 = vrot.slane %v528, %v808
    %v810 = vlaneseq
    %v811 = vshrl.u32 %v810, 7
    %v812 = vsub.s32 0, %v811
    %v813 = vrot.slane %v527, %v812
    %v814 = vlaneseq
    %v815 = vshrl.u32 %v814, 7
    %v816 = vsub.s32 0, %v815
    %v817 = vrot.slane %v529, %v816
    %v818 = vlaneseq
    %v819 = vshrl.u32 %v818, 7
    %v820 = vsub.s32 0, %v819
    %v821 = vrot.slane %v545, %v820
    %v822 = vlaneseq
    %v823 = vshrl.u32 %v822, 7
    %v824 = vsub.s32 0, %v823
    %v825 = vrot.slane %v544, %v824
    %v826 = vlaneseq
    %v827 = vshrl.u32 %v826, 7
    %v828 = vsub.s32 0, %v827
    %v829 = vrot.slane %v546, %v828
    %v830 = vlaneseq
    %v831 = vshrl.u32 %v830, 7
    %v832 = vsub.s32 0, %v831
    %v833 = vrot.slane %v554, %v832
    %v834 = vlaneseq
    %v835 = vshrl.u32 %v834, 7
    %v836 = vsub.s32 0, %v835
    %v837 = vrot.slane %v562, %v836
    %v838 = vlaneseq
    %v839 = vshrl.u32 %v838, 7
    %v840 = vsub.s32 0, %v839
    %v841 = vrot.slane %v561, %v840
    %v842 = vlaneseq
    %v843 = vshrl.u32 %v842, 7
    %v844 = vsub.s32 0, %v843
    %v845 = vrot.slane %v563, %v844
    %v846 = vlaneseq
    %v847 = vshrl.u32 %v846, 7
    %v848 = vsub.s32 0, %v847
    %v849 = vrot.slane %v571, %v848
    %v850 = vlaneseq
    %v851 = vshrl.u32 %v850, 7
    %v852 = vsub.s32 0, %v851
    %v853 = vrot.slane %v579, %v852
    %v854 = vlaneseq
    %v855 = vshrl.u32 %v854, 7
    %v856 = vsub.s32 0, %v855
    %v857 = vrot.slane %v578, %v856
    %v858 = vlaneseq
    %v859 = vshrl.u32 %v858, 7
    %v860 = vsub.s32 0, %v859
    %v861 = vrot.slane %v580, %v860
    %v862 = vlaneseq
    %v863 = vshrl.u32 %v862, 7
    %v864 = vsub.s32 0, %v863
    %v865 = vrot.slane %v588, %v864
    %v866 = vlaneseq
    %v867 = vshrl.u32 %v866, 7
    %v868 = vsub.s32 0, %v867
    %v869 = vrot.slane %v596, %v868
    %v870 = vlaneseq
    %v871 = vshrl.u32 %v870, 7
    %v872 = vsub.s32 0, %v871
    %v873 = vrot.slane %v595, %v872
    %v874 = vlaneseq
    %v875 = vshrl.u32 %v874, 7
    %v876 = vsub.s32 0, %v875
    %v877 = vrot.slane %v597, %v876
    %v878 = vsel %vm730, %v765, %v761
    %v879 = vsel %vm718, %v769, %v878
    %v880 = vsel %vm720, %v773, %v879
    %v881 = vsel %vm722, %v777, %v880
    %v882 = vsel %vm724, %v781, %v881
    %v883 = vsel %vm726, %v785, %v882
    %v884 = vsel %vm728, %v789, %v883
    %v885 = vsel %vm730, %v797, %v793
    %v886 = vsel %vm718, %v801, %v885
    %v887 = vsel %vm720, %v805, %v886
    %v888 = vsel %vm722, %v809, %v887
    %v889 = vsel %vm724, %v813, %v888
    %v890 = vsel %vm726, %v817, %v889
    %v891 = vsel %vm730, %v825, %v821
    %v892 = vsel %vm718, %v829, %v891
    %v893 = vsel %vm720, %v833, %v892
    %v894 = vsel %vm722, %v837, %v893
    %v895 = vsel %vm724, %v841, %v894
    %v896 = vsel %vm726, %v845, %v895
    %v897 = vsel %vm728, %v849, %v896
    %v898 = vsel %vm730, %v857, %v853
    %v899 = vsel %vm718, %v861, %v898
    %v900 = vsel %vm720, %v865, %v899
    %v901 = vsel %vm722, %v869, %v900
    %v902 = vsel %vm724, %v873, %v901
    %v903 = vsel %vm726, %v877, %v902
    %vm906 = vcmask 1046528
    %v907 = vsel %vm906, %v890, 0.0
    %v908 = vsel %vm906, %v903, 0.0
    %v909 = vlaneseq
    %v910 = vshrl.u32 %v909, 7
    %v911 = vsub.s32 0, %v910
    %v912 = vrot.slane %v469, %v911
    %v913 = vlaneseq
    %v914 = vshrl.u32 %v913, 7
    %v915 = vsub.s32 0, %v914
    %v916 = vrot.slane %v537, %v915
    %v917 = vsel %vm730, %v761, %v912
    %v918 = vsel %vm718, %v765, %v917
    %v919 = vsel %vm720, %v769, %v918
    %v920 = vsel %vm722, %v773, %v919
    %v921 = vsel %vm724, %v777, %v920
    %v922 = vsel %vm726, %v781, %v921
    %v923 = vsel %vm728, %v785, %v922
    %v924 = vsel %vm730, %v793, %v789
    %v925 = vsel %vm718, %v797, %v924
    %v926 = vsel %vm720, %v801, %v925
    %v927 = vsel %vm722, %v805, %v926
    %v928 = vsel %vm724, %v809, %v927
    %v929 = vsel %vm726, %v813, %v928
    %v930 = vsel %vm728, %v817, %v929
    %v931 = vsel %vm730, %v821, %v916
    %v932 = vsel %vm718, %v825, %v931
    %v933 = vsel %vm720, %v829, %v932
    %v934 = vsel %vm722, %v833, %v933
    %v935 = vsel %vm724, %v837, %v934
    %v936 = vsel %vm726, %v841, %v935
    %v937 = vsel %vm728, %v845, %v936
    %v938 = vsel %vm730, %v853, %v849
    %v939 = vsel %vm718, %v857, %v938
    %v940 = vsel %vm720, %v861, %v939
    %v941 = vsel %vm722, %v865, %v940
    %v942 = vsel %vm724, %v869, %v941
    %v943 = vsel %vm726, %v873, %v942
    %v944 = vsel %vm728, %v877, %v943
    %945 = vrot.lane.b32.xlu0 %v923, 64
    %v946 = vpop.permute.xlu0 %945
    %947 = vrot.lane.b32.xlu0 %v930, 64
    %v948 = vpop.permute.xlu0 %947
    %949 = vrot.lane.b32.xlu0 %v937, 64
    %v950 = vpop.permute.xlu0 %949
    %951 = vrot.lane.b32.xlu0 %v944, 64
    %v952 = vpop.permute.xlu0 %951
    %v957 = vlaneseq
    %v958 = vshrl.u32 %v957, 7
    %v959 = vsub.s32 1, %v958
    %v960 = vrot.slane %v529, %v959
    %v961 = vlaneseq
    %v962 = vshrl.u32 %v961, 7
    %v963 = vsub.s32 1, %v962
    %v964 = vrot.slane %v597, %v963
    %v965 = vsel %vm730, %v605, %v601
    %v966 = vsel %vm718, %v609, %v965
    %v967 = vsel %vm720, %v613, %v966
    %v968 = vsel %vm722, %v617, %v967
    %v969 = vsel %vm724, %v621, %v968
    %v970 = vsel %vm726, %v625, %v969
    %v971 = vsel %vm728, %v629, %v970
    %v972 = vsel %vm730, %v637, %v633
    %v973 = vsel %vm718, %v641, %v972
    %v974 = vsel %vm720, %v645, %v973
    %v975 = vsel %vm722, %v649, %v974
    %v976 = vsel %vm724, %v653, %v975
    %v977 = vsel %vm726, %v657, %v976
    %v978 = vsel %vm728, %v960, %v977
    %v979 = vsel %vm730, %v665, %v661
    %v980 = vsel %vm718, %v669, %v979
    %v981 = vsel %vm720, %v673, %v980
    %v982 = vsel %vm722, %v677, %v981
    %v983 = vsel %vm724, %v681, %v982
    %v984 = vsel %vm726, %v685, %v983
    %v985 = vsel %vm728, %v689, %v984
    %v986 = vsel %vm730, %v697, %v693
    %v987 = vsel %vm718, %v701, %v986
    %v988 = vsel %vm720, %v705, %v987
    %v989 = vsel %vm722, %v709, %v988
    %v990 = vsel %vm724, %v713, %v989
    %v991 = vsel %vm726, %v717, %v990
    %v992 = vsel %vm728, %v964, %v991
    %999 = vrot.lane.b32.xlu0 %v884, 64
    %v1000 = vpop.permute.xlu0 %999
    %1001 = vrot.lane.b32.xlu0 %v907, 64
    %v1002 = vpop.permute.xlu0 %1001
    %1003 = vrot.lane.b32.xlu0 %v897, 64
    %v1004 = vpop.permute.xlu0 %1003
    %1005 = vrot.lane.b32.xlu0 %v908, 64
    %v1006 = vpop.permute.xlu0 %1005
    %v1011 = vsel %vm346, %v756, %v946
    %v1012 = vsel %vm346, %v737, %v948
    %v1013 = vsel %vm346, %v757, %v950
    %v1014 = vsel %vm346, %v750, %v952
    %v1015 = vsel %vm346, %v971, %v1000
    %v1016 = vsel %vm346, %v978, %v1002
    %v1017 = vsel %vm346, %v985, %v1004
    %v1018 = vsel %vm346, %v992, %v1006
    %v1019 = vld [vmem:[%s4] sm:$0xf]
    %v1020 = vld [vmem:[%s4 + $0x4] sm:$0xf]
    %v1021 = vld [vmem:[%s4 + $0x8] sm:$0xf]
    %v1022 = vld [vmem:[%s4 + $0xc] sm:$0xf]
    %v1023 = vld [vmem:[%s4 + $0x10] sm:$0xf]
    %v1024 = vld [vmem:[%s4 + $0x14] sm:$0xf]
    %v1025 = vld [vmem:[%s4 + $0x18] sm:$0xf]
    %v1026 = vld [vmem:[%s4 + $0x1c] sm:$0xf]
    %v1027 = vld [vmem:[%s4 + $0x20] sm:$0xf]
    %v1028 = vld [vmem:[%s4 + $0x24] sm:$0xf]
    %v1029 = vld [vmem:[%s4 + $0x28] sm:$0xf]
    %v1030 = vld [vmem:[%s4 + $0x2c] sm:$0xf]
    %v1031 = vld [vmem:[%s4 + $0x30] sm:$0xf]
    %v1032 = vld [vmem:[%s4 + $0x34] sm:$0xf]
    %v1033 = vld [vmem:[%s4 + $0x38] sm:$0xf]
    %v1034 = vld [vmem:[%s4 + $0x3c] sm:$0xf]
    %v1035 = vld [vmem:[%s4 + $0x40] sm:$0xf]
    %v1036 = vld [vmem:[%s4 + $0x44] sm:$0xf]
    %v1037 = vld [vmem:[%s4 + $0x48] sm:$0xf]
    %v1038 = vld [vmem:[%s4 + $0x4c] sm:$0xf]
    %v1039 = vld [vmem:[%s4 + $0x50] sm:$0xf]
    %v1040 = vld [vmem:[%s4 + $0x54] sm:$0xf]
    %v1041 = vld [vmem:[%s4 + $0x58] sm:$0xf]
    %v1042 = vld [vmem:[%s4 + $0x5c] sm:$0xf]
    %v1043 = vld [vmem:[%s4 + $0x60] sm:$0xf]
    %v1044 = vld [vmem:[%s4 + $0x64] sm:$0xf]
    %v1045 = vld [vmem:[%s4 + $0x68] sm:$0xf]
    %v1046 = vld [vmem:[%s4 + $0x6c] sm:$0xf]
    %v1047 = vld [vmem:[%s4 + $0x70] sm:$0xf]
    %v1048 = vld [vmem:[%s4 + $0x74] sm:$0xf]
    %v1049 = vld [vmem:[%s4 + $0x78] sm:$0xf]
    %v1050 = vld [vmem:[%s4 + $0x7c] sm:$0xf]
    %v1051 = vpack.c.bf16 %v1012, %v1011
    %v1052 = vpack.c.bf16 %v1016, %v1015
    %v1053 = vpack.c.bf16 %v1014, %v1013
    %v1054 = vpack.c.bf16 %v1018, %v1017
    %v1087 = vunpack.c.l.b16 %v1019
    %v1088 = vunpack.c.l.b16 %v1020
    %v1089 = vunpack.c.l.b16 %v1021
    %v1090 = vunpack.c.l.b16 %v1022
    %v1091 = vunpack.c.l.b16 %v1023
    %v1092 = vunpack.c.l.b16 %v1024
    %v1093 = vunpack.c.l.b16 %v1025
    %v1094 = vunpack.c.l.b16 %v1026
    %v1095 = vunpack.c.l.b16 %v1027
    %v1096 = vunpack.c.l.b16 %v1028
    %v1097 = vunpack.c.l.b16 %v1029
    %v1098 = vunpack.c.l.b16 %v1030
    %v1099 = vunpack.c.l.b16 %v1031
    %v1100 = vunpack.c.l.b16 %v1032
    %v1101 = vunpack.c.l.b16 %v1033
    %v1102 = vunpack.c.l.b16 %v1034
    %v1103 = vunpack.c.l.b16 %v1035
    %v1104 = vunpack.c.l.b16 %v1036
    %v1105 = vunpack.c.l.b16 %v1037
    %v1106 = vunpack.c.l.b16 %v1038
    %v1107 = vunpack.c.l.b16 %v1039
    %v1108 = vunpack.c.l.b16 %v1040
    %v1109 = vunpack.c.l.b16 %v1041
    %v1110 = vunpack.c.l.b16 %v1042
    %v1111 = vunpack.c.l.b16 %v1043
    %v1112 = vunpack.c.l.b16 %v1044
    %v1113 = vunpack.c.l.b16 %v1045
    %v1114 = vunpack.c.l.b16 %v1046
    %v1115 = vunpack.c.l.b16 %v1047
    %v1116 = vunpack.c.l.b16 %v1048
    %v1117 = vunpack.c.l.b16 %v1049
    %v1118 = vunpack.c.l.b16 %v1050
    %v1119 = vpack.c.b16 %v1088, %v1087
    %v1120 = vpack.c.b16 %v1090, %v1089
    %v1121 = vpack.c.b16 %v1092, %v1091
    %v1122 = vpack.c.b16 %v1094, %v1093
    %v1123 = vpack.c.b16 %v1096, %v1095
    %v1124 = vpack.c.b16 %v1098, %v1097
    %v1125 = vpack.c.b16 %v1100, %v1099
    %v1126 = vpack.c.b16 %v1102, %v1101
    %v1127 = vpack.c.b16 %v1104, %v1103
    %v1128 = vpack.c.b16 %v1106, %v1105
    %v1129 = vpack.c.b16 %v1108, %v1107
    %v1130 = vpack.c.b16 %v1110, %v1109
    %v1131 = vpack.c.b16 %v1112, %v1111
    %v1132 = vpack.c.b16 %v1114, %v1113
    %v1133 = vpack.c.b16 %v1116, %v1115
    %v1134 = vpack.c.b16 %v1118, %v1117
    %1151 = vmatprep.subr.bf16.mxu0 0
    %1152 = vmatpush1.bf16.msra.mxu0 %v1119
    %1153 = vmatprep.subr.bf16.mxu0 0
    %1154 = vmatpush1.bf16.msra.mxu0 %v1120
    %1155 = vmatprep.subr.bf16.mxu0 0
    %1156 = vmatpush1.bf16.msra.mxu0 %v1121
    %1157 = vmatprep.subr.bf16.mxu0 0
    %1158 = vmatpush1.bf16.msra.mxu0 %v1122
    %1159 = vmatprep.subr.bf16.mxu0 0
    %1160 = vmatpush1.bf16.msra.mxu0 %v1123
    %1161 = vmatprep.subr.bf16.mxu0 0
    %1162 = vmatpush1.bf16.msra.mxu0 %v1124
    %1163 = vmatprep.subr.bf16.mxu0 0
    %1164 = vmatpush1.bf16.msra.mxu0 %v1125
    %1165 = vmatprep.subr.bf16.mxu0 0
    %1166 = vmatpush1.bf16.msra.mxu0 %v1126
    %1167 = vmatprep.subr.bf16.mxu0 0
    %1168 = vmatpush1.bf16.msra.mxu0 %v1127
    %1169 = vmatprep.subr.bf16.mxu0 0
    %1170 = vmatpush1.bf16.msra.mxu0 %v1128
    %1171 = vmatprep.subr.bf16.mxu0 0
    %1172 = vmatpush1.bf16.msra.mxu0 %v1129
    %1173 = vmatprep.subr.bf16.mxu0 0
    %1174 = vmatpush1.bf16.msra.mxu0 %v1130
    %1175 = vmatprep.subr.bf16.mxu0 0
    %1176 = vmatpush1.bf16.msra.mxu0 %v1131
    %1177 = vmatprep.subr.bf16.mxu0 0
    %1178 = vmatpush1.bf16.msra.mxu0 %v1132
    %1179 = vmatprep.subr.bf16.mxu0 0
    %1180 = vmatpush1.bf16.msra.mxu0 %v1133
    %1181 = vmatprep.subr.bf16.mxu0 0
    %1182 = vmatpush1.bf16.msra.mxu0 %v1134
    %1183 = vmatprep.mubr.bf16.mxu0 %v1052
    %1184 = vmatmul.mubr.bf16.gmra.mrb[0].mxu0 %v1051
    %v1185 = vpop.f32.mrb[0].mxu0
    %v1186 = vadd.f32 0.0, %v1185
    %v1187 = vpop.f32.mrb[0].mxu0
    %v1188 = vpop.f32.mrb[0].mxu0
    %v1189 = vadd.f32 0.0, %v1188
    %v1190 = vpop.f32.mrb[0].mxu0
    %1191 = vmatprep.mubr.bf16.mxu0 %v1054
    %1192 = vmatmul.mubr.bf16.gmra.mrb[0].mxu0 %v1053
    %v1193 = vpop.f32.mrb[0].mxu0
    %v1194 = vadd.f32 0.0, %v1193
    %v1195 = vpop.f32.mrb[0].mxu0
    %v1196 = vpop.f32.mrb[0].mxu0
    %v1197 = vadd.f32 0.0, %v1196
    %v1198 = vpop.f32.mrb[0].mxu0
    %1199 = vdwg.mxu0
    %v1200 = vld [vmem:[#allocation6] sm:$0x1]
    %v1201 = vld [vmem:[#allocation7] sm:$0x1]
    %v1202 = vadd.f32 %v1186, %v1189
    %v1203 = vadd.f32 %v1202, %v1194
    %v1204 = vadd.f32 %v1203, %v1197
    %v1205 = vrot.slane %v1204, 4
    %v1206 = vadd.f32 %v1204, %v1205
    %v1207 = vrot.slane %v1206, 2
    %v1208 = vadd.f32 %v1206, %v1207
    %v1209 = vrot.slane %v1208, 1
    %v1210 = vadd.f32 %v1208, %v1209
    %v1211 = vrcp.pop 32.0
    %v1212 = vmul.f32 %v1210, %v1211
    %v1213 = vsub.f32 %v1186, %v1212
    %v1214 = vsub.f32 %v1189, %v1212
    %v1215 = vsub.f32 %v1194, %v1212
    %v1216 = vsub.f32 %v1197, %v1212
    %v1217 = vmul.f32 %v1213, %v1213
    %v1218 = vmul.f32 %v1214, %v1214
    %v1219 = vmul.f32 %v1215, %v1215
    %v1220 = vmul.f32 %v1216, %v1216
    %v1221 = vadd.f32 %v1217, %v1218
    %v1222 = vadd.f32 %v1221, %v1219
    %v1223 = vadd.f32 %v1222, %v1220
    %v1224 = vrot.slane %v1223, 4
    %v1225 = vadd.f32 %v1223, %v1224
    %v1226 = vrot.slane %v1225, 2
    %v1227 = vadd.f32 %v1225, %v1226
    %v1228 = vrot.slane %v1227, 1
    %v1229 = vadd.f32 %v1227, %v1228
    %v1230 = vmul.f32 %v1229, %v1211
    %v1231 = vadd.f32 %v1230, 1e-05
    %v1232 = vrsqrt.pop %v1231
    %v1233 = vmul.f32 %v1213, %v1232
    %v1234 = vmul.f32 %v1214, %v1232
    %v1235 = vmul.f32 %v1215, %v1232
    %v1236 = vmul.f32 %v1216, %v1232
    %v1238 = vlaneseq
    %v1239 = vshrl.u32 %v1238, 7
    %v1240 = vsub.s32 0, %v1239
    %v1241 = vrot.slane %v1200, %v1240
    %v1243 = vmul.f32 %v1233, %v1241
    %v1244 = vmul.f32 %v1234, %v1241
    %v1245 = vmul.f32 %v1235, %v1241
    %v1246 = vmul.f32 %v1236, %v1241
    %v1248 = vlaneseq
    %v1249 = vshrl.u32 %v1248, 7
    %v1250 = vsub.s32 0, %v1249
    %v1251 = vrot.slane %v1201, %v1250
    %v1253 = vadd.f32 %v1243, %v1251
    %v1254 = vadd.f32 %v1244, %v1251
    %v1255 = vadd.f32 %v1245, %v1251
    %v1256 = vadd.f32 %v1246, %v1251
    %v1257 = vmax.f32 %v1253, 0.0
    %v1258 = vmax.f32 %v1254, 0.0
    %v1259 = vmax.f32 %v1255, 0.0
    %v1260 = vmax.f32 %v1256, 0.0
    %v1265 = vcombine.high %v1257, %v1257
    %v1267 = vunpack.c.l.s4 1983009808
    %v1268 = vunpack.c.0.s8 %v1267
    %v1269 = vlaneseq
    %v1270 = vshrl.u32 %v1269, 7
    %v1271 = vsub.s32 %v1268, %v1270
    %v1272 = vrot.slane %v1257, %v1271
    %v1274 = vunpack.c.l.s4 1983009808
    %v1275 = vunpack.c.0.s8 %v1274
    %v1276 = vlaneseq
    %v1277 = vshrl.u32 %v1276, 7
    %v1278 = vsub.s32 %v1275, %v1277
    %v1279 = vrot.slane %v1265, %v1278
    %v1280 = vcombine.high %v1272, %v1272
    %v1281 = vcombine.high %v1279, %v1279
    %v1282 = vcombine.high %v1258, %v1258
    %v1284 = vunpack.c.l.s4 1983009808
    %v1285 = vunpack.c.0.s8 %v1284
    %v1286 = vlaneseq
    %v1287 = vshrl.u32 %v1286, 7
    %v1288 = vsub.s32 %v1285, %v1287
    %v1289 = vrot.slane %v1258, %v1288
    %v1291 = vunpack.c.l.s4 1983009808
    %v1292 = vunpack.c.0.s8 %v1291
    %v1293 = vlaneseq
    %v1294 = vshrl.u32 %v1293, 7
    %v1295 = vsub.s32 %v1292, %v1294
    %v1296 = vrot.slane %v1282, %v1295
    %v1297 = vcombine.high %v1289, %v1289
    %v1298 = vcombine.high %v1296, %v1296
    %v1299 = vcombine.high %v1259, %v1259
    %v1301 = vunpack.c.l.s4 1983009808
    %v1302 = vunpack.c.0.s8 %v1301
    %v1303 = vlaneseq
    %v1304 = vshrl.u32 %v1303, 7
    %v1305 = vsub.s32 %v1302, %v1304
    %v1306 = vrot.slane %v1259, %v1305
    %v1308 = vunpack.c.l.s4 1983009808
    %v1309 = vunpack.c.0.s8 %v1308
    %v1310 = vlaneseq
    %v1311 = vshrl.u32 %v1310, 7
    %v1312 = vsub.s32 %v1309, %v1311
    %v1313 = vrot.slane %v1299, %v1312
    %v1314 = vcombine.high %v1306, %v1306
    %v1315 = vcombine.high %v1313, %v1313
    %v1316 = vcombine.high %v1260, %v1260
    %v1318 = vunpack.c.l.s4 1983009808
    %v1319 = vunpack.c.0.s8 %v1318
    %v1320 = vlaneseq
    %v1321 = vshrl.u32 %v1320, 7
    %v1322 = vsub.s32 %v1319, %v1321
    %v1323 = vrot.slane %v1260, %v1322
    %v1325 = vunpack.c.l.s4 1983009808
    %v1326 = vunpack.c.0.s8 %v1325
    %v1327 = vlaneseq
    %v1328 = vshrl.u32 %v1327, 7
    %v1329 = vsub.s32 %v1326, %v1328
    %v1330 = vrot.slane %v1316, %v1329
    %v1331 = vcombine.high %v1323, %v1323
    %v1332 = vcombine.high %v1330, %v1330
    %v1333 = vlaneseq
    %v1334 = vshrl.u32 %v1333, 7
    %v1335 = vsub.s32 1, %v1334
    %v1336 = vrot.slane %v1272, %v1335
    %v1337 = vlaneseq
    %v1338 = vshrl.u32 %v1337, 7
    %v1339 = vsub.s32 1, %v1338
    %v1340 = vrot.slane %v1280, %v1339
    %v1341 = vlaneseq
    %v1342 = vshrl.u32 %v1341, 7
    %v1343 = vsub.s32 1, %v1342
    %v1344 = vrot.slane %v1279, %v1343
    %v1345 = vlaneseq
    %v1346 = vshrl.u32 %v1345, 7
    %v1347 = vsub.s32 1, %v1346
    %v1348 = vrot.slane %v1281, %v1347
    %v1349 = vlaneseq
    %v1350 = vshrl.u32 %v1349, 7
    %v1351 = vsub.s32 1, %v1350
    %v1352 = vrot.slane %v1289, %v1351
    %v1353 = vlaneseq
    %v1354 = vshrl.u32 %v1353, 7
    %v1355 = vsub.s32 1, %v1354
    %v1356 = vrot.slane %v1297, %v1355
    %v1357 = vlaneseq
    %v1358 = vshrl.u32 %v1357, 7
    %v1359 = vsub.s32 1, %v1358
    %v1360 = vrot.slane %v1296, %v1359
    %v1361 = vlaneseq
    %v1362 = vshrl.u32 %v1361, 7
    %v1363 = vsub.s32 1, %v1362
    %v1364 = vrot.slane %v1306, %v1363
    %v1365 = vlaneseq
    %v1366 = vshrl.u32 %v1365, 7
    %v1367 = vsub.s32 1, %v1366
    %v1368 = vrot.slane %v1314, %v1367
    %v1369 = vlaneseq
    %v1370 = vshrl.u32 %v1369, 7
    %v1371 = vsub.s32 1, %v1370
    %v1372 = vrot.slane %v1313, %v1371
    %v1373 = vlaneseq
    %v1374 = vshrl.u32 %v1373, 7
    %v1375 = vsub.s32 1, %v1374
    %v1376 = vrot.slane %v1315, %v1375
    %v1377 = vlaneseq
    %v1378 = vshrl.u32 %v1377, 7
    %v1379 = vsub.s32 1, %v1378
    %v1380 = vrot.slane %v1323, %v1379
    %v1381 = vlaneseq
    %v1382 = vshrl.u32 %v1381, 7
    %v1383 = vsub.s32 1, %v1382
    %v1384 = vrot.slane %v1331, %v1383
    %v1385 = vlaneseq
    %v1386 = vshrl.u32 %v1385, 7
    %v1387 = vsub.s32 1, %v1386
    %v1388 = vrot.slane %v1330, %v1387
    %v1389 = vsel %vm718, %v1340, %v1336
    %v1390 = vsel %vm720, %v1344, %v1389
    %v1391 = vsel %vm722, %v1348, %v1390
    %v1392 = vsel %vm724, %v1352, %v1391
    %v1393 = vsel %vm726, %v1356, %v1392
    %v1394 = vsel %vm728, %v1360, %v1393
    %v1395 = vsel %vm718, %v1368, %v1364
    %v1396 = vsel %vm720, %v1372, %v1395
    %v1397 = vsel %vm722, %v1376, %v1396
    %v1398 = vsel %vm724, %v1380, %v1397
    %v1399 = vsel %vm726, %v1384, %v1398
    %v1400 = vsel %vm728, %v1388, %v1399
    %v1403 = vsel %vm755, 0.0, %v1394
    %v1404 = vsel %vm755, 0.0, %v1400
    %v1405 = vlaneseq
    %v1406 = vshrl.u32 %v1405, 7
    %v1407 = vsub.s32 0, %v1406
    %v1408 = vrot.slane %v1280, %v1407
    %v1409 = vlaneseq
    %v1410 = vshrl.u32 %v1409, 7
    %v1411 = vsub.s32 0, %v1410
    %v1412 = vrot.slane %v1279, %v1411
    %v1413 = vlaneseq
    %v1414 = vshrl.u32 %v1413, 7
    %v1415 = vsub.s32 0, %v1414
    %v1416 = vrot.slane %v1281, %v1415
    %v1417 = vlaneseq
    %v1418 = vshrl.u32 %v1417, 7
    %v1419 = vsub.s32 0, %v1418
    %v1420 = vrot.slane %v1289, %v1419
    %v1421 = vlaneseq
    %v1422 = vshrl.u32 %v1421, 7
    %v1423 = vsub.s32 0, %v1422
    %v1424 = vrot.slane %v1297, %v1423
    %v1425 = vlaneseq
    %v1426 = vshrl.u32 %v1425, 7
    %v1427 = vsub.s32 0, %v1426
    %v1428 = vrot.slane %v1296, %v1427
    %v1429 = vlaneseq
    %v1430 = vshrl.u32 %v1429, 7
    %v1431 = vsub.s32 0, %v1430
    %v1432 = vrot.slane %v1298, %v1431
    %v1433 = vlaneseq
    %v1434 = vshrl.u32 %v1433, 7
    %v1435 = vsub.s32 0, %v1434
    %v1436 = vrot.slane %v1314, %v1435
    %v1437 = vlaneseq
    %v1438 = vshrl.u32 %v1437, 7
    %v1439 = vsub.s32 0, %v1438
    %v1440 = vrot.slane %v1313, %v1439
    %v1441 = vlaneseq
    %v1442 = vshrl.u32 %v1441, 7
    %v1443 = vsub.s32 0, %v1442
    %v1444 = vrot.slane %v1315, %v1443
    %v1445 = vlaneseq
    %v1446 = vshrl.u32 %v1445, 7
    %v1447 = vsub.s32 0, %v1446
    %v1448 = vrot.slane %v1323, %v1447
    %v1449 = vlaneseq
    %v1450 = vshrl.u32 %v1449, 7
    %v1451 = vsub.s32 0, %v1450
    %v1452 = vrot.slane %v1331, %v1451
    %v1453 = vlaneseq
    %v1454 = vshrl.u32 %v1453, 7
    %v1455 = vsub.s32 0, %v1454
    %v1456 = vrot.slane %v1330, %v1455
    %v1457 = vlaneseq
    %v1458 = vshrl.u32 %v1457, 7
    %v1459 = vsub.s32 0, %v1458
    %v1460 = vrot.slane %v1332, %v1459
    %v1461 = vsel %vm730, %v1412, %v1408
    %v1462 = vsel %vm718, %v1416, %v1461
    %v1463 = vsel %vm720, %v1420, %v1462
    %v1464 = vsel %vm722, %v1424, %v1463
    %v1465 = vsel %vm724, %v1428, %v1464
    %v1466 = vsel %vm726, %v1432, %v1465
    %v1467 = vsel %vm730, %v1440, %v1436
    %v1468 = vsel %vm718, %v1444, %v1467
    %v1469 = vsel %vm720, %v1448, %v1468
    %v1470 = vsel %vm722, %v1452, %v1469
    %v1471 = vsel %vm724, %v1456, %v1470
    %v1472 = vsel %vm726, %v1460, %v1471
    %v1475 = vsel %vm906, %v1466, 0.0
    %v1476 = vsel %vm906, %v1472, 0.0
    %v1477 = vlaneseq
    %v1478 = vshrl.u32 %v1477, 7
    %v1479 = vsub.s32 0, %v1478
    %v1480 = vrot.slane %v1272, %v1479
    %v1481 = vlaneseq
    %v1482 = vshrl.u32 %v1481, 7
    %v1483 = vsub.s32 0, %v1482
    %v1484 = vrot.slane %v1306, %v1483
    %v1485 = vsel %vm730, %v1408, %v1480
    %v1486 = vsel %vm718, %v1412, %v1485
    %v1487 = vsel %vm720, %v1416, %v1486
    %v1488 = vsel %vm722, %v1420, %v1487
    %v1489 = vsel %vm724, %v1424, %v1488
    %v1490 = vsel %vm726, %v1428, %v1489
    %v1491 = vsel %vm728, %v1432, %v1490
    %v1492 = vsel %vm730, %v1436, %v1484
    %v1493 = vsel %vm718, %v1440, %v1492
    %v1494 = vsel %vm720, %v1444, %v1493
    %v1495 = vsel %vm722, %v1448, %v1494
    %v1496 = vsel %vm724, %v1452, %v1495
    %v1497 = vsel %vm726, %v1456, %v1496
    %v1498 = vsel %vm728, %v1460, %v1497
    %v1501 = vlaneseq
    %v1502 = vshrl.u32 %v1501, 7
    %v1503 = vsub.s32 1, %v1502
    %v1504 = vrot.slane %v1298, %v1503
    %v1505 = vlaneseq
    %v1506 = vshrl.u32 %v1505, 7
    %v1507 = vsub.s32 1, %v1506
    %v1508 = vrot.slane %v1332, %v1507
    %v1509 = vsel %vm730, %v1340, %v1336
    %v1510 = vsel %vm718, %v1344, %v1509
    %v1511 = vsel %vm720, %v1348, %v1510
    %v1512 = vsel %vm722, %v1352, %v1511
    %v1513 = vsel %vm724, %v1356, %v1512
    %v1514 = vsel %vm726, %v1360, %v1513
    %v1515 = vsel %vm728, %v1504, %v1514
    %v1516 = vsel %vm730, %v1368, %v1364
    %v1517 = vsel %vm718, %v1372, %v1516
    %v1518 = vsel %vm720, %v1376, %v1517
    %v1519 = vsel %vm722, %v1380, %v1518
    %v1520 = vsel %vm724, %v1384, %v1519
    %v1521 = vsel %vm726, %v1388, %v1520
    %v1522 = vsel %vm728, %v1508, %v1521
    %v1525 = vld [vmem:[%s7] sm:$0xff]
    %v1526 = vld [vmem:[%s7 + $0x8] sm:$0xff]
    %v1527 = vld [vmem:[%s7 + $0x10] sm:$0xff]
    %v1528 = vld [vmem:[%s7 + $0x18] sm:$0xff]
    %v1529 = vld [vmem:[%s7 + $0x20] sm:$0xff]
    %v1530 = vld [vmem:[%s7 + $0x28] sm:$0xff]
    %v1531 = vld [vmem:[%s7 + $0x30] sm:$0xff]
    %v1532 = vld [vmem:[%s7 + $0x38] sm:$0xff]
    %v1533 = vld [vmem:[%s7 + $0x40] sm:$0xff]
    %v1534 = vld [vmem:[%s7 + $0x48] sm:$0xff]
    %v1535 = vld [vmem:[%s7 + $0x50] sm:$0xff]
    %v1536 = vld [vmem:[%s7 + $0x58] sm:$0xff]
    %v1537 = vld [vmem:[%s7 + $0x60] sm:$0xff]
    %v1538 = vld [vmem:[%s7 + $0x68] sm:$0xff]
    %v1539 = vld [vmem:[%s7 + $0x70] sm:$0xff]
    %v1540 = vld [vmem:[%s7 + $0x78] sm:$0xff]
    %v1541 = vld [vmem:[%s7 + $0x80] sm:$0xff]
    %v1542 = vld [vmem:[%s7 + $0x88] sm:$0xff]
    %v1543 = vld [vmem:[%s7 + $0x90] sm:$0xff]
    %v1544 = vld [vmem:[%s7 + $0x98] sm:$0xff]
    %v1545 = vld [vmem:[%s7 + $0xa0] sm:$0xff]
    %v1546 = vld [vmem:[%s7 + $0xa8] sm:$0xff]
    %v1547 = vld [vmem:[%s7 + $0xb0] sm:$0xff]
    %v1548 = vld [vmem:[%s7 + $0xb8] sm:$0xff]
    %v1549 = vld [vmem:[%s7 + $0xc0] sm:$0xff]
    %v1550 = vld [vmem:[%s7 + $0xc8] sm:$0xff]
    %v1551 = vld [vmem:[%s7 + $0xd0] sm:$0xff]
    %v1552 = vld [vmem:[%s7 + $0xd8] sm:$0xff]
    %v1553 = vld [vmem:[%s7 + $0xe0] sm:$0xff]
    %v1554 = vld [vmem:[%s7 + $0xe8] sm:$0xff]
    %v1555 = vld [vmem:[%s7 + $0xf0] sm:$0xff]
    %v1556 = vld [vmem:[%s7 + $0xf8] sm:$0xff]
    %v1557 = vld [vmem:[%s7 + $0x100] sm:$0xff]
    %v1558 = vld [vmem:[%s7 + $0x108] sm:$0xff]
    %v1559 = vld [vmem:[%s7 + $0x110] sm:$0xff]
    %v1560 = vld [vmem:[%s7 + $0x118] sm:$0xff]
    %v1561 = vld [vmem:[%s7 + $0x120] sm:$0xff]
    %v1562 = vld [vmem:[%s7 + $0x128] sm:$0xff]
    %v1563 = vld [vmem:[%s7 + $0x130] sm:$0xff]
    %v1564 = vld [vmem:[%s7 + $0x138] sm:$0xff]
    %v1565 = vld [vmem:[%s7 + $0x140] sm:$0xff]
    %v1566 = vld [vmem:[%s7 + $0x148] sm:$0xff]
    %v1567 = vld [vmem:[%s7 + $0x150] sm:$0xff]
    %v1568 = vld [vmem:[%s7 + $0x158] sm:$0xff]
    %v1569 = vld [vmem:[%s7 + $0x160] sm:$0xff]
    %v1570 = vld [vmem:[%s7 + $0x168] sm:$0xff]
    %v1571 = vld [vmem:[%s7 + $0x170] sm:$0xff]
    %v1572 = vld [vmem:[%s7 + $0x178] sm:$0xff]
    %v1573 = vld [vmem:[%s7 + $0x180] sm:$0xff]
    %v1574 = vld [vmem:[%s7 + $0x188] sm:$0xff]
    %v1575 = vld [vmem:[%s7 + $0x190] sm:$0xff]
    %v1576 = vld [vmem:[%s7 + $0x198] sm:$0xff]
    %v1577 = vld [vmem:[%s7 + $0x1a0] sm:$0xff]
    %v1578 = vld [vmem:[%s7 + $0x1a8] sm:$0xff]
    %v1579 = vld [vmem:[%s7 + $0x1b0] sm:$0xff]
    %v1580 = vld [vmem:[%s7 + $0x1b8] sm:$0xff]
    %v1581 = vld [vmem:[%s7 + $0x1c0] sm:$0xff]
    %v1582 = vld [vmem:[%s7 + $0x1c8] sm:$0xff]
    %v1583 = vld [vmem:[%s7 + $0x1d0] sm:$0xff]
    %v1584 = vld [vmem:[%s7 + $0x1d8] sm:$0xff]
    %v1585 = vld [vmem:[%s7 + $0x1e0] sm:$0xff]
    %v1586 = vld [vmem:[%s7 + $0x1e8] sm:$0xff]
    %v1587 = vld [vmem:[%s7 + $0x1f0] sm:$0xff]
    %v1588 = vld [vmem:[%s7 + $0x1f8] sm:$0xff]
    %v1589 = vpack.c.bf16 %v1404, %v1403
    %v1590 = vpack.c.bf16 %v1498, %v1491
    %v1591 = vpack.c.bf16 %v1522, %v1515
    %v1592 = vpack.c.bf16 %v1476, %v1475
    %v1657 = vunpack.c.l.b16 %v1525
    %v1658 = vunpack.c.h.b16 %v1525
    %v1659 = vunpack.c.l.b16 %v1526
    %v1660 = vunpack.c.h.b16 %v1526
    %v1661 = vunpack.c.l.b16 %v1527
    %v1662 = vunpack.c.h.b16 %v1527
    %v1663 = vunpack.c.l.b16 %v1528
    %v1664 = vunpack.c.h.b16 %v1528
    %v1665 = vunpack.c.l.b16 %v1529
    %v1666 = vunpack.c.h.b16 %v1529
    %v1667 = vunpack.c.l.b16 %v1530
    %v1668 = vunpack.c.h.b16 %v1530
    %v1669 = vunpack.c.l.b16 %v1531
    %v1670 = vunpack.c.h.b16 %v1531
    %v1671 = vunpack.c.l.b16 %v1532
    %v1672 = vunpack.c.h.b16 %v1532
    %v1673 = vunpack.c.l.b16 %v1533
    %v1674 = vunpack.c.h.b16 %v1533
    %v1675 = vunpack.c.l.b16 %v1534
    %v1676 = vunpack.c.h.b16 %v1534
    %v1677 = vunpack.c.l.b16 %v1535
    %v1678 = vunpack.c.h.b16 %v1535
    %v1679 = vunpack.c.l.b16 %v1536
    %v1680 = vunpack.c.h.b16 %v1536
    %v1681 = vunpack.c.l.b16 %v1537
    %v1682 = vunpack.c.h.b16 %v1537
    %v1683 = vunpack.c.l.b16 %v1538
    %v1684 = vunpack.c.h.b16 %v1538
    %v1685 = vunpack.c.l.b16 %v1539
    %v1686 = vunpack.c.h.b16 %v1539
    %v1687 = vunpack.c.l.b16 %v1540
    %v1688 = vunpack.c.h.b16 %v1540
    %v1689 = vunpack.c.l.b16 %v1541
    %v1690 = vunpack.c.h.b16 %v1541
    %v1691 = vunpack.c.l.b16 %v1542
    %v1692 = vunpack.c.h.b16 %v1542
    %v1693 = vunpack.c.l.b16 %v1543
    %v1694 = vunpack.c.h.b16 %v1543
    %v1695 = vunpack.c.l.b16 %v1544
    %v1696 = vunpack.c.h.b16 %v1544
    %v1697 = vunpack.c.l.b16 %v1545
    %v1698 = vunpack.c.h.b16 %v1545
    %v1699 = vunpack.c.l.b16 %v1546
    %v1700 = vunpack.c.h.b16 %v1546
    %v1701 = vunpack.c.l.b16 %v1547
    %v1702 = vunpack.c.h.b16 %v1547
    %v1703 = vunpack.c.l.b16 %v1548
    %v1704 = vunpack.c.h.b16 %v1548
    %v1705 = vunpack.c.l.b16 %v1549
    %v1706 = vunpack.c.h.b16 %v1549
    %v1707 = vunpack.c.l.b16 %v1550
    %v1708 = vunpack.c.h.b16 %v1550
    %v1709 = vunpack.c.l.b16 %v1551
    %v1710 = vunpack.c.h.b16 %v1551
    %v1711 = vunpack.c.l.b16 %v1552
    %v1712 = vunpack.c.h.b16 %v1552
    %v1713 = vunpack.c.l.b16 %v1553
    %v1714 = vunpack.c.h.b16 %v1553
    %v1715 = vunpack.c.l.b16 %v1554
    %v1716 = vunpack.c.h.b16 %v1554
    %v1717 = vunpack.c.l.b16 %v1555
    %v1718 = vunpack.c.h.b16 %v1555
    %v1719 = vunpack.c.l.b16 %v1556
    %v1720 = vunpack.c.h.b16 %v1556
    %v1721 = vunpack.c.l.b16 %v1557
    %v1722 = vunpack.c.h.b16 %v1557
    %v1723 = vunpack.c.l.b16 %v1558
    %v1724 = vunpack.c.h.b16 %v1558
    %v1725 = vunpack.c.l.b16 %v1559
    %v1726 = vunpack.c.h.b16 %v1559
    %v1727 = vunpack.c.l.b16 %v1560
    %v1728 = vunpack.c.h.b16 %v1560
    %v1729 = vunpack.c.l.b16 %v1561
    %v1730 = vunpack.c.h.b16 %v1561
    %v1731 = vunpack.c.l.b16 %v1562
    %v1732 = vunpack.c.h.b16 %v1562
    %v1733 = vunpack.c.l.b16 %v1563
    %v1734 = vunpack.c.h.b16 %v1563
    %v1735 = vunpack.c.l.b16 %v1564
    %v1736 = vunpack.c.h.b16 %v1564
    %v1737 = vunpack.c.l.b16 %v1565
    %v1738 = vunpack.c.h.b16 %v1565
    %v1739 = vunpack.c.l.b16 %v1566
    %v1740 = vunpack.c.h.b16 %v1566
    %v1741 = vunpack.c.l.b16 %v1567
    %v1742 = vunpack.c.h.b16 %v1567
    %v1743 = vunpack.c.l.b16 %v1568
    %v1744 = vunpack.c.h.b16 %v1568
    %v1745 = vunpack.c.l.b16 %v1569
    %v1746 = vunpack.c.h.b16 %v1569
    %v1747 = vunpack.c.l.b16 %v1570
    %v1748 = vunpack.c.h.b16 %v1570
    %v1749 = vunpack.c.l.b16 %v1571
    %v1750 = vunpack.c.h.b16 %v1571
    %v1751 = vunpack.c.l.b16 %v1572
    %v1752 = vunpack.c.h.b16 %v1572
    %v1753 = vunpack.c.l.b16 %v1573
    %v1754 = vunpack.c.h.b16 %v1573
    %v1755 = vunpack.c.l.b16 %v1574
    %v1756 = vunpack.c.h.b16 %v1574
    %v1757 = vunpack.c.l.b16 %v1575
    %v1758 = vunpack.c.h.b16 %v1575
    %v1759 = vunpack.c.l.b16 %v1576
    %v1760 = vunpack.c.h.b16 %v1576
    %v1761 = vunpack.c.l.b16 %v1577
    %v1762 = vunpack.c.h.b16 %v1577
    %v1763 = vunpack.c.l.b16 %v1578
    %v1764 = vunpack.c.h.b16 %v1578
    %v1765 = vunpack.c.l.b16 %v1579
    %v1766 = vunpack.c.h.b16 %v1579
    %v1767 = vunpack.c.l.b16 %v1580
    %v1768 = vunpack.c.h.b16 %v1580
    %v1769 = vunpack.c.l.b16 %v1581
    %v1770 = vunpack.c.h.b16 %v1581
    %v1771 = vunpack.c.l.b16 %v1582
    %v1772 = vunpack.c.h.b16 %v1582
    %v1773 = vunpack.c.l.b16 %v1583
    %v1774 = vunpack.c.h.b16 %v1583
    %v1775 = vunpack.c.l.b16 %v1584
    %v1776 = vunpack.c.h.b16 %v1584
    %v1777 = vunpack.c.l.b16 %v1585
    %v1778 = vunpack.c.h.b16 %v1585
    %v1779 = vunpack.c.l.b16 %v1586
    %v1780 = vunpack.c.h.b16 %v1586
    %v1781 = vunpack.c.l.b16 %v1587
    %v1782 = vunpack.c.h.b16 %v1587
    %v1783 = vunpack.c.l.b16 %v1588
    %v1784 = vunpack.c.h.b16 %v1588
    %v1785 = vpack.c.b16 %v1659, %v1657
    %v1786 = vpack.c.b16 %v1660, %v1658
    %v1787 = vpack.c.b16 %v1663, %v1661
    %v1788 = vpack.c.b16 %v1664, %v1662
    %v1789 = vpack.c.b16 %v1667, %v1665
    %v1790 = vpack.c.b16 %v1668, %v1666
    %v1791 = vpack.c.b16 %v1671, %v1669
    %v1792 = vpack.c.b16 %v1672, %v1670
    %v1793 = vpack.c.b16 %v1675, %v1673
    %v1794 = vpack.c.b16 %v1676, %v1674
    %v1795 = vpack.c.b16 %v1679, %v1677
    %v1796 = vpack.c.b16 %v1680, %v1678
    %v1797 = vpack.c.b16 %v1683, %v1681
    %v1798 = vpack.c.b16 %v1684, %v1682
    %v1799 = vpack.c.b16 %v1687, %v1685
    %v1800 = vpack.c.b16 %v1688, %v1686
    %v1801 = vpack.c.b16 %v1691, %v1689
    %v1802 = vpack.c.b16 %v1692, %v1690
    %v1803 = vpack.c.b16 %v1695, %v1693
    %v1804 = vpack.c.b16 %v1696, %v1694
    %v1805 = vpack.c.b16 %v1699, %v1697
    %v1806 = vpack.c.b16 %v1700, %v1698
    %v1807 = vpack.c.b16 %v1703, %v1701
    %v1808 = vpack.c.b16 %v1704, %v1702
    %v1809 = vpack.c.b16 %v1707, %v1705
    %v1810 = vpack.c.b16 %v1708, %v1706
    %v1811 = vpack.c.b16 %v1711, %v1709
    %v1812 = vpack.c.b16 %v1712, %v1710
    %v1813 = vpack.c.b16 %v1715, %v1713
    %v1814 = vpack.c.b16 %v1716, %v1714
    %v1815 = vpack.c.b16 %v1719, %v1717
    %v1816 = vpack.c.b16 %v1720, %v1718
    %v1817 = vpack.c.b16 %v1723, %v1721
    %v1818 = vpack.c.b16 %v1724, %v1722
    %v1819 = vpack.c.b16 %v1727, %v1725
    %v1820 = vpack.c.b16 %v1728, %v1726
    %v1821 = vpack.c.b16 %v1731, %v1729
    %v1822 = vpack.c.b16 %v1732, %v1730
    %v1823 = vpack.c.b16 %v1735, %v1733
    %v1824 = vpack.c.b16 %v1736, %v1734
    %v1825 = vpack.c.b16 %v1739, %v1737
    %v1826 = vpack.c.b16 %v1740, %v1738
    %v1827 = vpack.c.b16 %v1743, %v1741
    %v1828 = vpack.c.b16 %v1744, %v1742
    %v1829 = vpack.c.b16 %v1747, %v1745
    %v1830 = vpack.c.b16 %v1748, %v1746
    %v1831 = vpack.c.b16 %v1751, %v1749
    %v1832 = vpack.c.b16 %v1752, %v1750
    %v1833 = vpack.c.b16 %v1755, %v1753
    %v1834 = vpack.c.b16 %v1756, %v1754
    %v1835 = vpack.c.b16 %v1759, %v1757
    %v1836 = vpack.c.b16 %v1760, %v1758
    %v1837 = vpack.c.b16 %v1763, %v1761
    %v1838 = vpack.c.b16 %v1764, %v1762
    %v1839 = vpack.c.b16 %v1767, %v1765
    %v1840 = vpack.c.b16 %v1768, %v1766
    %v1841 = vpack.c.b16 %v1771, %v1769
    %v1842 = vpack.c.b16 %v1772, %v1770
    %v1843 = vpack.c.b16 %v1775, %v1773
    %v1844 = vpack.c.b16 %v1776, %v1774
    %v1845 = vpack.c.b16 %v1779, %v1777
    %v1846 = vpack.c.b16 %v1780, %v1778
    %v1847 = vpack.c.b16 %v1783, %v1781
    %v1848 = vpack.c.b16 %v1784, %v1782
    %1913 = vmatprep.subr.bf16.mxu0 %v1786
    %1914 = vmatpush1.bf16.msra.mxu0 %v1785
    %1915 = vmatprep.subr.bf16.mxu0 %v1788
    %1916 = vmatpush1.bf16.msra.mxu0 %v1787
    %1917 = vmatprep.subr.bf16.mxu0 %v1790
    %1918 = vmatpush1.bf16.msra.mxu0 %v1789
    %1919 = vmatprep.subr.bf16.mxu0 %v1792
    %1920 = vmatpush1.bf16.msra.mxu0 %v1791
    %1921 = vmatprep.subr.bf16.mxu0 %v1794
    %1922 = vmatpush1.bf16.msra.mxu0 %v1793
    %1923 = vmatprep.subr.bf16.mxu0 %v1796
    %1924 = vmatpush1.bf16.msra.mxu0 %v1795
    %1925 = vmatprep.subr.bf16.mxu0 %v1798
    %1926 = vmatpush1.bf16.msra.mxu0 %v1797
    %1927 = vmatprep.subr.bf16.mxu0 %v1800
    %1928 = vmatpush1.bf16.msra.mxu0 %v1799
    %1929 = vmatprep.subr.bf16.mxu0 %v1802
    %1930 = vmatpush1.bf16.msra.mxu0 %v1801
    %1931 = vmatprep.subr.bf16.mxu0 %v1804
    %1932 = vmatpush1.bf16.msra.mxu0 %v1803
    %1933 = vmatprep.subr.bf16.mxu0 %v1806
    %1934 = vmatpush1.bf16.msra.mxu0 %v1805
    %1935 = vmatprep.subr.bf16.mxu0 %v1808
    %1936 = vmatpush1.bf16.msra.mxu0 %v1807
    %1937 = vmatprep.subr.bf16.mxu0 %v1810
    %1938 = vmatpush1.bf16.msra.mxu0 %v1809
    %1939 = vmatprep.subr.bf16.mxu0 %v1812
    %1940 = vmatpush1.bf16.msra.mxu0 %v1811
    %1941 = vmatprep.subr.bf16.mxu0 %v1814
    %1942 = vmatpush1.bf16.msra.mxu0 %v1813
    %1943 = vmatprep.subr.bf16.mxu0 %v1816
    %1944 = vmatpush1.bf16.msra.mxu0 %v1815
    %1945 = vmatprep.mubr.bf16.mxu0 %v1590
    %1946 = vmatmul.mubr.bf16.gmra.mrb[0].mxu0 %v1589
    %v1947 = vpop.f32.mrb[0].mxu0
    %v1948 = vadd.f32 0.0, %v1947
    %v1949 = vpop.f32.mrb[0].mxu0
    %v1950 = vadd.f32 0.0, %v1949
    %v1951 = vpop.f32.mrb[0].mxu0
    %v1952 = vadd.f32 0.0, %v1951
    %v1953 = vpop.f32.mrb[0].mxu0
    %v1954 = vadd.f32 0.0, %v1953
    %1955 = vdwg.mxu0
    %1956 = vmatprep.subr.bf16.mxu0 %v1818
    %1957 = vmatpush1.bf16.msra.mxu0 %v1817
    %1958 = vmatprep.subr.bf16.mxu0 %v1820
    %1959 = vmatpush1.bf16.msra.mxu0 %v1819
    %1960 = vmatprep.subr.bf16.mxu0 %v1822
    %1961 = vmatpush1.bf16.msra.mxu0 %v1821
    %1962 = vmatprep.subr.bf16.mxu0 %v1824
    %1963 = vmatpush1.bf16.msra.mxu0 %v1823
    %1964 = vmatprep.subr.bf16.mxu0 %v1826
    %1965 = vmatpush1.bf16.msra.mxu0 %v1825
    %1966 = vmatprep.subr.bf16.mxu0 %v1828
    %1967 = vmatpush1.bf16.msra.mxu0 %v1827
    %1968 = vmatprep.subr.bf16.mxu0 %v1830
    %1969 = vmatpush1.bf16.msra.mxu0 %v1829
    %1970 = vmatprep.subr.bf16.mxu0 %v1832
    %1971 = vmatpush1.bf16.msra.mxu0 %v1831
    %1972 = vmatprep.subr.bf16.mxu0 %v1834
    %1973 = vmatpush1.bf16.msra.mxu0 %v1833
    %1974 = vmatprep.subr.bf16.mxu0 %v1836
    %1975 = vmatpush1.bf16.msra.mxu0 %v1835
    %1976 = vmatprep.subr.bf16.mxu0 %v1838
    %1977 = vmatpush1.bf16.msra.mxu0 %v1837
    %1978 = vmatprep.subr.bf16.mxu0 %v1840
    %1979 = vmatpush1.bf16.msra.mxu0 %v1839
    %1980 = vmatprep.subr.bf16.mxu0 %v1842
    %1981 = vmatpush1.bf16.msra.mxu0 %v1841
    %1982 = vmatprep.subr.bf16.mxu0 %v1844
    %1983 = vmatpush1.bf16.msra.mxu0 %v1843
    %1984 = vmatprep.subr.bf16.mxu0 %v1846
    %1985 = vmatpush1.bf16.msra.mxu0 %v1845
    %1986 = vmatprep.subr.bf16.mxu0 %v1848
    %1987 = vmatpush1.bf16.msra.mxu0 %v1847
    %1988 = vmatprep.mubr.bf16.mxu0 %v1592
    %1989 = vmatmul.mubr.bf16.gmra.mrb[0].mxu0 %v1591
    %v1990 = vpop.f32.mrb[0].mxu0
    %v1991 = vadd.f32 %v1948, %v1990
    %v1992 = vpop.f32.mrb[0].mxu0
    %v1993 = vadd.f32 %v1950, %v1992
    %v1994 = vpop.f32.mrb[0].mxu0
    %v1995 = vadd.f32 %v1952, %v1994
    %v1996 = vpop.f32.mrb[0].mxu0
    %v1997 = vadd.f32 %v1954, %v1996
    %1998 = vdwg.mxu0
    %v1999 = vld [vmem:[#allocation9] sm:$0x3]
    %v2000 = vld [vmem:[#allocation10] sm:$0x3]
    %v2001 = vadd.f32 %v1991, %v1995
    %v2002 = vrot.slane %v2001, 4
    %v2003 = vadd.f32 %v2001, %v2002
    %v2004 = vrot.slane %v2003, 2
    %v2005 = vadd.f32 %v2003, %v2004
    %v2006 = vrot.slane %v2005, 1
    %v2007 = vadd.f32 %v2005, %v2006
    %v2008 = vadd.f32 %v1993, %v1997
    %v2009 = vrot.slane %v2008, 4
    %v2010 = vadd.f32 %v2008, %v2009
    %v2011 = vrot.slane %v2010, 2
    %v2012 = vadd.f32 %v2010, %v2011
    %v2013 = vrot.slane %v2012, 1
    %v2014 = vadd.f32 %v2012, %v2013
    %v2015 = vrcp.pop 16.0
    %v2016 = vmul.f32 %v2007, %v2015
    %v2017 = vmul.f32 %v2014, %v2015
    %v2018 = vsub.f32 %v1991, %v2016
    %v2019 = vsub.f32 %v1993, %v2017
    %v2020 = vsub.f32 %v1995, %v2016
    %v2021 = vsub.f32 %v1997, %v2017
    %v2022 = vmul.f32 %v2018, %v2018
    %v2023 = vmul.f32 %v2019, %v2019
    %v2024 = vmul.f32 %v2020, %v2020
    %v2025 = vmul.f32 %v2021, %v2021
    %v2026 = vadd.f32 %v2022, %v2024
    %v2027 = vrot.slane %v2026, 4
    %v2028 = vadd.f32 %v2026, %v2027
    %v2029 = vrot.slane %v2028, 2
    %v2030 = vadd.f32 %v2028, %v2029
    %v2031 = vrot.slane %v2030, 1
    %v2032 = vadd.f32 %v2030, %v2031
    %v2033 = vadd.f32 %v2023, %v2025
    %v2034 = vrot.slane %v2033, 4
    %v2035 = vadd.f32 %v2033, %v2034
    %v2036 = vrot.slane %v2035, 2
    %v2037 = vadd.f32 %v2035, %v2036
    %v2038 = vrot.slane %v2037, 1
    %v2039 = vadd.f32 %v2037, %v2038
    %v2040 = vmul.f32 %v2032, %v2015
    %v2041 = vmul.f32 %v2039, %v2015
    %v2042 = vadd.f32 %v2040, 1e-05
    %v2043 = vadd.f32 %v2041, 1e-05
    %v2044 = vrsqrt.pop %v2042
    %v2045 = vrsqrt.pop %v2043
    %v2046 = vmul.f32 %v2018, %v2044
    %v2047 = vmul.f32 %v2019, %v2045
    %v2048 = vmul.f32 %v2020, %v2044
    %v2049 = vmul.f32 %v2021, %v2045
    %v2051 = vlaneseq
    %v2052 = vshrl.u32 %v2051, 7
    %v2053 = vsub.s32 0, %v2052
    %v2054 = vrot.slane %v1999, %v2053
    %v2055 = vlaneseq
    %v2056 = vshrl.u32 %v2055, 7
    %v2057 = vsub.s32 1, %v2056
    %v2058 = vrot.slane %v1999, %v2057
    %v2061 = vmul.f32 %v2046, %v2054
    %v2062 = vmul.f32 %v2047, %v2058
    %v2063 = vmul.f32 %v2048, %v2054
    %v2064 = vmul.f32 %v2049, %v2058
    %v2066 = vlaneseq
    %v2067 = vshrl.u32 %v2066, 7
    %v2068 = vsub.s32 0, %v2067
    %v2069 = vrot.slane %v2000, %v2068
    %v2070 = vlaneseq
    %v2071 = vshrl.u32 %v2070, 7
    %v2072 = vsub.s32 1, %v2071
    %v2073 = vrot.slane %v2000, %v2072
    %v2076 = vadd.f32 %v2061, %v2069
    %v2077 = vadd.f32 %v2062, %v2073
    %v2078 = vadd.f32 %v2063, %v2069
    %v2079 = vadd.f32 %v2064, %v2073
    %v2080 = vmax.f32 %v2076, 0.0
    %v2081 = vmax.f32 %v2077, 0.0
    %v2082 = vmax.f32 %v2078, 0.0
    %v2083 = vmax.f32 %v2079, 0.0
    %v2088 = vcombine.low %v2080, %v2081
    %v2089 = vcombine.high %v2080, %v2081
    %v2090 = vcombine.low %v2082, %v2083
    %v2091 = vcombine.high %v2082, %v2083
    %v2097 = vunpack.c.l.s4 1935823168
    %v2098 = vunpack.c.0.s8 %v2097
    %v2099 = vlaneseq
    %v2100 = vshrl.u32 %v2099, 7
    %v2101 = vsub.s32 %v2098, %v2100
    %v2102 = vrot.slane %v2088, %v2101
    %v2104 = vunpack.c.l.s4 1935823168
    %v2105 = vunpack.c.0.s8 %v2104
    %v2106 = vlaneseq
    %v2107 = vshrl.u32 %v2106, 7
    %v2108 = vsub.s32 %v2105, %v2107
    %v2109 = vrot.slane %v2089, %v2108
    %v2111 = vunpack.c.l.s4 1935823168
    %v2112 = vunpack.c.0.s8 %v2111
    %v2113 = vlaneseq
    %v2114 = vshrl.u32 %v2113, 7
    %v2115 = vsub.s32 %v2112, %v2114
    %v2116 = vrot.slane %v2090, %v2115
    %v2118 = vunpack.c.l.s4 1935823168
    %v2119 = vunpack.c.0.s8 %v2118
    %v2120 = vlaneseq
    %v2121 = vshrl.u32 %v2120, 7
    %v2122 = vsub.s32 %v2119, %v2121
    %v2123 = vrot.slane %v2091, %v2122
    %v2128 = vcombine.low %v2102, %v2116
    %v2129 = vcombine.high %v2102, %v2116
    %v2131 = vunpack.c.l.s4 1966171168
    %v2132 = vunpack.c.0.s8 %v2131
    %v2133 = vlaneseq
    %v2134 = vshrl.u32 %v2133, 7
    %v2135 = vsub.s32 %v2132, %v2134
    %v2136 = vrot.slane %v2128, %v2135
    %v2138 = vunpack.c.l.s4 1966171168
    %v2139 = vunpack.c.0.s8 %v2138
    %v2140 = vlaneseq
    %v2141 = vshrl.u32 %v2140, 7
    %v2142 = vsub.s32 %v2139, %v2141
    %v2143 = vrot.slane %v2129, %v2142
    %v2144 = vcombine.high %v2136, %v2136
    %v2145 = vcombine.high %v2143, %v2143
    %v2147 = vunpack.c.l.s4 1966171168
    %v2148 = vunpack.c.0.s8 %v2147
    %v2149 = vlaneseq
    %v2150 = vshrl.u32 %v2149, 7
    %v2151 = vsub.s32 %v2148, %v2150
    %v2152 = vrot.slane %v2136, %v2151
    %v2154 = vunpack.c.l.s4 1966171168
    %v2155 = vunpack.c.0.s8 %v2154
    %v2156 = vlaneseq
    %v2157 = vshrl.u32 %v2156, 7
    %v2158 = vsub.s32 %v2155, %v2157
    %v2159 = vrot.slane %v2143, %v2158
    %v2161 = vunpack.c.l.s4 1966171168
    %v2162 = vunpack.c.0.s8 %v2161
    %v2163 = vlaneseq
    %v2164 = vshrl.u32 %v2163, 7
    %v2165 = vsub.s32 %v2162, %v2164
    %v2166 = vrot.slane %v2144, %v2165
    %v2168 = vunpack.c.l.s4 1966171168
    %v2169 = vunpack.c.0.s8 %v2168
    %v2170 = vlaneseq
    %v2171 = vshrl.u32 %v2170, 7
    %v2172 = vsub.s32 %v2169, %v2171
    %v2173 = vrot.slane %v2145, %v2172
    %v2174 = vcombine.high %v2152, %v2152
    %v2175 = vcombine.high %v2159, %v2159
    %v2176 = vcombine.high %v2166, %v2166
    %v2177 = vcombine.high %v2173, %v2173
    %v2178 = vcombine.low %v2109, %v2123
    %v2179 = vcombine.high %v2109, %v2123
    %v2181 = vunpack.c.l.s4 1966171168
    %v2182 = vunpack.c.0.s8 %v2181
    %v2183 = vlaneseq
    %v2184 = vshrl.u32 %v2183, 7
    %v2185 = vsub.s32 %v2182, %v2184
    %v2186 = vrot.slane %v2178, %v2185
    %v2188 = vunpack.c.l.s4 1966171168
    %v2189 = vunpack.c.0.s8 %v2188
    %v2190 = vlaneseq
    %v2191 = vshrl.u32 %v2190, 7
    %v2192 = vsub.s32 %v2189, %v2191
    %v2193 = vrot.slane %v2179, %v2192
    %v2194 = vcombine.high %v2186, %v2186
    %v2195 = vcombine.high %v2193, %v2193
    %v2197 = vunpack.c.l.s4 1966171168
    %v2198 = vunpack.c.0.s8 %v2197
    %v2199 = vlaneseq
    %v2200 = vshrl.u32 %v2199, 7
    %v2201 = vsub.s32 %v2198, %v2200
    %v2202 = vrot.slane %v2186, %v2201
    %v2204 = vunpack.c.l.s4 1966171168
    %v2205 = vunpack.c.0.s8 %v2204
    %v2206 = vlaneseq
    %v2207 = vshrl.u32 %v2206, 7
    %v2208 = vsub.s32 %v2205, %v2207
    %v2209 = vrot.slane %v2193, %v2208
    %v2211 = vunpack.c.l.s4 1966171168
    %v2212 = vunpack.c.0.s8 %v2211
    %v2213 = vlaneseq
    %v2214 = vshrl.u32 %v2213, 7
    %v2215 = vsub.s32 %v2212, %v2214
    %v2216 = vrot.slane %v2194, %v2215
    %v2218 = vunpack.c.l.s4 1966171168
    %v2219 = vunpack.c.0.s8 %v2218
    %v2220 = vlaneseq
    %v2221 = vshrl.u32 %v2220, 7
    %v2222 = vsub.s32 %v2219, %v2221
    %v2223 = vrot.slane %v2195, %v2222
    %v2224 = vcombine.high %v2202, %v2202
    %v2225 = vcombine.high %v2209, %v2209
    %v2226 = vcombine.high %v2216, %v2216
    %v2227 = vcombine.high %v2223, %v2223
    %v2244 = vpack.c.bf16 %v2152, %v2152
    %v2245 = vpack.c.bf16 %v2166, %v2166
    %v2246 = vpack.c.bf16 %v2174, %v2174
    %v2247 = vpack.c.bf16 %v2176, %v2176
    %v2248 = vpack.c.bf16 %v2159, %v2159
    %v2249 = vpack.c.bf16 %v2173, %v2173
    %v2250 = vpack.c.bf16 %v2175, %v2175
    %v2251 = vpack.c.bf16 %v2177, %v2177
    %v2252 = vpack.c.bf16 %v2202, %v2202
    %v2253 = vpack.c.bf16 %v2216, %v2216
    %v2254 = vpack.c.bf16 %v2224, %v2224
    %v2255 = vpack.c.bf16 %v2226, %v2226
    %v2256 = vpack.c.bf16 %v2209, %v2209
    %v2257 = vpack.c.bf16 %v2223, %v2223
    %v2258 = vpack.c.bf16 %v2225, %v2225
    %v2259 = vpack.c.bf16 %v2227, %v2227
    %v2260 = vld [vmem:[#allocation12] sm:$0xf]
    %v2261 = vld [vmem:[#allocation12 + $0x4] sm:$0xf]
    %v2262 = vld [vmem:[#allocation12 + $0x8] sm:$0xf]
    %v2263 = vld [vmem:[#allocation12 + $0xc] sm:$0xf]
    %v2264 = vld [vmem:[#allocation12 + $0x10] sm:$0xf]
    %v2265 = vld [vmem:[#allocation12 + $0x14] sm:$0xf]
    %v2266 = vld [vmem:[#allocation12 + $0x18] sm:$0xf]
    %v2267 = vld [vmem:[#allocation12 + $0x1c] sm:$0xf]
    %v2268 = vld [vmem:[#allocation12 + $0x20] sm:$0xf]
    %v2269 = vld [vmem:[#allocation12 + $0x24] sm:$0xf]
    %v2270 = vld [vmem:[#allocation12 + $0x28] sm:$0xf]
    %v2271 = vld [vmem:[#allocation12 + $0x2c] sm:$0xf]
    %v2272 = vld [vmem:[#allocation12 + $0x30] sm:$0xf]
    %v2273 = vld [vmem:[#allocation12 + $0x34] sm:$0xf]
    %v2274 = vld [vmem:[#allocation12 + $0x38] sm:$0xf]
    %v2275 = vld [vmem:[#allocation12 + $0x3c] sm:$0xf]
    %v2276 = vld [vmem:[#allocation12 + $0x40] sm:$0xf]
    %v2277 = vld [vmem:[#allocation12 + $0x44] sm:$0xf]
    %v2278 = vld [vmem:[#allocation12 + $0x48] sm:$0xf]
    %v2279 = vld [vmem:[#allocation12 + $0x4c] sm:$0xf]
    %v2280 = vld [vmem:[#allocation12 + $0x50] sm:$0xf]
    %v2281 = vld [vmem:[#allocation12 + $0x54] sm:$0xf]
    %v2282 = vld [vmem:[#allocation12 + $0x58] sm:$0xf]
    %v2283 = vld [vmem:[#allocation12 + $0x5c] sm:$0xf]
    %v2284 = vld [vmem:[#allocation12 + $0x60] sm:$0xf]
    %v2285 = vld [vmem:[#allocation12 + $0x64] sm:$0xf]
    %v2286 = vld [vmem:[#allocation12 + $0x68] sm:$0xf]
    %v2287 = vld [vmem:[#allocation12 + $0x6c] sm:$0xf]
    %v2288 = vld [vmem:[#allocation12 + $0x70] sm:$0xf]
    %v2289 = vld [vmem:[#allocation12 + $0x74] sm:$0xf]
    %v2290 = vld [vmem:[#allocation12 + $0x78] sm:$0xf]
    %v2291 = vld [vmem:[#allocation12 + $0x7c] sm:$0xf]
    %v2292 = vld [vmem:[#allocation12 + $0x80] sm:$0xf]
    %v2293 = vld [vmem:[#allocation12 + $0x84] sm:$0xf]
    %v2294 = vld [vmem:[#allocation12 + $0x88] sm:$0xf]
    %v2295 = vld [vmem:[#allocation12 + $0x8c] sm:$0xf]
    %v2296 = vld [vmem:[#allocation12 + $0x90] sm:$0xf]
    %v2297 = vld [vmem:[#allocation12 + $0x94] sm:$0xf]
    %v2298 = vld [vmem:[#allocation12 + $0x98] sm:$0xf]
    %v2299 = vld [vmem:[#allocation12 + $0x9c] sm:$0xf]
    %v2300 = vld [vmem:[#allocation12 + $0xa0] sm:$0xf]
    %v2301 = vld [vmem:[#allocation12 + $0xa4] sm:$0xf]
    %v2302 = vld [vmem:[#allocation12 + $0xa8] sm:$0xf]
    %v2303 = vld [vmem:[#allocation12 + $0xac] sm:$0xf]
    %v2304 = vld [vmem:[#allocation12 + $0xb0] sm:$0xf]
    %v2305 = vld [vmem:[#allocation12 + $0xb4] sm:$0xf]
    %v2306 = vld [vmem:[#allocation12 + $0xb8] sm:$0xf]
    %v2307 = vld [vmem:[#allocation12 + $0xbc] sm:$0xf]
    %v2308 = vld [vmem:[#allocation12 + $0xc0] sm:$0xf]
    %v2309 = vld [vmem:[#allocation12 + $0xc4] sm:$0xf]
    %v2310 = vld [vmem:[#allocation12 + $0xc8] sm:$0xf]
    %v2311 = vld [vmem:[#allocation12 + $0xcc] sm:$0xf]
    %v2312 = vld [vmem:[#allocation12 + $0xd0] sm:$0xf]
    %v2313 = vld [vmem:[#allocation12 + $0xd4] sm:$0xf]
    %v2314 = vld [vmem:[#allocation12 + $0xd8] sm:$0xf]
    %v2315 = vld [vmem:[#allocation12 + $0xdc] sm:$0xf]
    %v2316 = vld [vmem:[#allocation12 + $0xe0] sm:$0xf]
    %v2317 = vld [vmem:[#allocation12 + $0xe4] sm:$0xf]
    %v2318 = vld [vmem:[#allocation12 + $0xe8] sm:$0xf]
    %v2319 = vld [vmem:[#allocation12 + $0xec] sm:$0xf]
    %v2320 = vld [vmem:[#allocation12 + $0xf0] sm:$0xf]
    %v2321 = vld [vmem:[#allocation12 + $0xf4] sm:$0xf]
    %v2322 = vld [vmem:[#allocation12 + $0xf8] sm:$0xf]
    %v2323 = vld [vmem:[#allocation12 + $0xfc] sm:$0xf]
    %v2324 = vld [vmem:[#allocation12 + $0x100] sm:$0xf]
    %v2325 = vld [vmem:[#allocation12 + $0x104] sm:$0xf]
    %v2326 = vld [vmem:[#allocation12 + $0x108] sm:$0xf]
    %v2327 = vld [vmem:[#allocation12 + $0x10c] sm:$0xf]
    %v2328 = vld [vmem:[#allocation12 + $0x110] sm:$0xf]
    %v2329 = vld [vmem:[#allocation12 + $0x114] sm:$0xf]
    %v2330 = vld [vmem:[#allocation12 + $0x118] sm:$0xf]
    %v2331 = vld [vmem:[#allocation12 + $0x11c] sm:$0xf]
    %v2332 = vld [vmem:[#allocation12 + $0x120] sm:$0xf]
    %v2333 = vld [vmem:[#allocation12 + $0x124] sm:$0xf]
    %v2334 = vld [vmem:[#allocation12 + $0x128] sm:$0xf]
    %v2335 = vld [vmem:[#allocation12 + $0x12c] sm:$0xf]
    %v2336 = vld [vmem:[#allocation12 + $0x130] sm:$0xf]
    %v2337 = vld [vmem:[#allocation12 + $0x134] sm:$0xf]
    %v2338 = vld [vmem:[#allocation12 + $0x138] sm:$0xf]
    %v2339 = vld [vmem:[#allocation12 + $0x13c] sm:$0xf]
    %v2340 = vld [vmem:[#allocation12 + $0x140] sm:$0xf]
    %v2341 = vld [vmem:[#allocation12 + $0x144] sm:$0xf]
    %v2342 = vld [vmem:[#allocation12 + $0x148] sm:$0xf]
    %v2343 = vld [vmem:[#allocation12 + $0x14c] sm:$0xf]
    %v2344 = vld [vmem:[#allocation12 + $0x150] sm:$0xf]
    %v2345 = vld [vmem:[#allocation12 + $0x154] sm:$0xf]
    %v2346 = vld [vmem:[#allocation12 + $0x158] sm:$0xf]
    %v2347 = vld [vmem:[#allocation12 + $0x15c] sm:$0xf]
    %v2348 = vld [vmem:[#allocation12 + $0x160] sm:$0xf]
    %v2349 = vld [vmem:[#allocation12 + $0x164] sm:$0xf]
    %v2350 = vld [vmem:[#allocation12 + $0x168] sm:$0xf]
    %v2351 = vld [vmem:[#allocation12 + $0x16c] sm:$0xf]
    %v2352 = vld [vmem:[#allocation12 + $0x170] sm:$0xf]
    %v2353 = vld [vmem:[#allocation12 + $0x174] sm:$0xf]
    %v2354 = vld [vmem:[#allocation12 + $0x178] sm:$0xf]
    %v2355 = vld [vmem:[#allocation12 + $0x17c] sm:$0xf]
    %v2356 = vld [vmem:[#allocation12 + $0x180] sm:$0xf]
    %v2357 = vld [vmem:[#allocation12 + $0x184] sm:$0xf]
    %v2358 = vld [vmem:[#allocation12 + $0x188] sm:$0xf]
    %v2359 = vld [vmem:[#allocation12 + $0x18c] sm:$0xf]
    %v2360 = vld [vmem:[#allocation12 + $0x190] sm:$0xf]
    %v2361 = vld [vmem:[#allocation12 + $0x194] sm:$0xf]
    %v2362 = vld [vmem:[#allocation12 + $0x198] sm:$0xf]
    %v2363 = vld [vmem:[#allocation12 + $0x19c] sm:$0xf]
    %v2364 = vld [vmem:[#allocation12 + $0x1a0] sm:$0xf]
    %v2365 = vld [vmem:[#allocation12 + $0x1a4] sm:$0xf]
    %v2366 = vld [vmem:[#allocation12 + $0x1a8] sm:$0xf]
    %v2367 = vld [vmem:[#allocation12 + $0x1ac] sm:$0xf]
    %v2368 = vld [vmem:[#allocation12 + $0x1b0] sm:$0xf]
    %v2369 = vld [vmem:[#allocation12 + $0x1b4] sm:$0xf]
    %v2370 = vld [vmem:[#allocation12 + $0x1b8] sm:$0xf]
    %v2371 = vld [vmem:[#allocation12 + $0x1bc] sm:$0xf]
    %v2372 = vld [vmem:[#allocation12 + $0x1c0] sm:$0xf]
    %v2373 = vld [vmem:[#allocation12 + $0x1c4] sm:$0xf]
    %v2374 = vld [vmem:[#allocation12 + $0x1c8] sm:$0xf]
    %v2375 = vld [vmem:[#allocation12 + $0x1cc] sm:$0xf]
    %v2376 = vld [vmem:[#allocation12 + $0x1d0] sm:$0xf]
    %v2377 = vld [vmem:[#allocation12 + $0x1d4] sm:$0xf]
    %v2378 = vld [vmem:[#allocation12 + $0x1d8] sm:$0xf]
    %v2379 = vld [vmem:[#allocation12 + $0x1dc] sm:$0xf]
    %v2380 = vld [vmem:[#allocation12 + $0x1e0] sm:$0xf]
    %v2381 = vld [vmem:[#allocation12 + $0x1e4] sm:$0xf]
    %v2382 = vld [vmem:[#allocation12 + $0x1e8] sm:$0xf]
    %v2383 = vld [vmem:[#allocation12 + $0x1ec] sm:$0xf]
    %v2384 = vld [vmem:[#allocation12 + $0x1f0] sm:$0xf]
    %v2385 = vld [vmem:[#allocation12 + $0x1f4] sm:$0xf]
    %v2386 = vld [vmem:[#allocation12 + $0x1f8] sm:$0xf]
    %v2387 = vld [vmem:[#allocation12 + $0x1fc] sm:$0xf]
    %v2388 = vld [vmem:[#allocation12 + $0x200] sm:$0xf]
    %v2389 = vld [vmem:[#allocation12 + $0x204] sm:$0xf]
    %v2390 = vld [vmem:[#allocation12 + $0x208] sm:$0xf]
    %v2391 = vld [vmem:[#allocation12 + $0x20c] sm:$0xf]
    %v2392 = vld [vmem:[#allocation12 + $0x210] sm:$0xf]
    %v2393 = vld [vmem:[#allocation12 + $0x214] sm:$0xf]
    %v2394 = vld [vmem:[#allocation12 + $0x218] sm:$0xf]
    %v2395 = vld [vmem:[#allocation12 + $0x21c] sm:$0xf]
    %v2396 = vld [vmem:[#allocation12 + $0x220] sm:$0xf]
    %v2397 = vld [vmem:[#allocation12 + $0x224] sm:$0xf]
    %v2398 = vld [vmem:[#allocation12 + $0x228] sm:$0xf]
    %v2399 = vld [vmem:[#allocation12 + $0x22c] sm:$0xf]
    %v2400 = vld [vmem:[#allocation12 + $0x230] sm:$0xf]
    %v2401 = vld [vmem:[#allocation12 + $0x234] sm:$0xf]
    %v2402 = vld [vmem:[#allocation12 + $0x238] sm:$0xf]
    %v2403 = vld [vmem:[#allocation12 + $0x23c] sm:$0xf]
    %v2404 = vld [vmem:[#allocation12 + $0x240] sm:$0xf]
    %v2405 = vld [vmem:[#allocation12 + $0x244] sm:$0xf]
    %v2406 = vld [vmem:[#allocation12 + $0x248] sm:$0xf]
    %v2407 = vld [vmem:[#allocation12 + $0x24c] sm:$0xf]
    %v2408 = vld [vmem:[#allocation12 + $0x250] sm:$0xf]
    %v2409 = vld [vmem:[#allocation12 + $0x254] sm:$0xf]
    %v2410 = vld [vmem:[#allocation12 + $0x258] sm:$0xf]
    %v2411 = vld [vmem:[#allocation12 + $0x25c] sm:$0xf]
    %v2412 = vld [vmem:[#allocation12 + $0x260] sm:$0xf]
    %v2413 = vld [vmem:[#allocation12 + $0x264] sm:$0xf]
    %v2414 = vld [vmem:[#allocation12 + $0x268] sm:$0xf]
    %v2415 = vld [vmem:[#allocation12 + $0x26c] sm:$0xf]
    %v2416 = vld [vmem:[#allocation12 + $0x270] sm:$0xf]
    %v2417 = vld [vmem:[#allocation12 + $0x274] sm:$0xf]
    %v2418 = vld [vmem:[#allocation12 + $0x278] sm:$0xf]
    %v2419 = vld [vmem:[#allocation12 + $0x27c] sm:$0xf]
    %v2420 = vld [vmem:[#allocation12 + $0x280] sm:$0xf]
    %v2421 = vld [vmem:[#allocation12 + $0x284] sm:$0xf]
    %v2422 = vld [vmem:[#allocation12 + $0x288] sm:$0xf]
    %v2423 = vld [vmem:[#allocation12 + $0x28c] sm:$0xf]
    %v2424 = vld [vmem:[#allocation12 + $0x290] sm:$0xf]
    %v2425 = vld [vmem:[#allocation12 + $0x294] sm:$0xf]
    %v2426 = vld [vmem:[#allocation12 + $0x298] sm:$0xf]
    %v2427 = vld [vmem:[#allocation12 + $0x29c] sm:$0xf]
    %v2428 = vld [vmem:[#allocation12 + $0x2a0] sm:$0xf]
    %v2429 = vld [vmem:[#allocation12 + $0x2a4] sm:$0xf]
    %v2430 = vld [vmem:[#allocation12 + $0x2a8] sm:$0xf]
    %v2431 = vld [vmem:[#allocation12 + $0x2ac] sm:$0xf]
    %v2432 = vld [vmem:[#allocation12 + $0x2b0] sm:$0xf]
    %v2433 = vld [vmem:[#allocation12 + $0x2b4] sm:$0xf]
    %v2434 = vld [vmem:[#allocation12 + $0x2b8] sm:$0xf]
    %v2435 = vld [vmem:[#allocation12 + $0x2bc] sm:$0xf]
    %v2436 = vld [vmem:[#allocation12 + $0x2c0] sm:$0xf]
    %v2437 = vld [vmem:[#allocation12 + $0x2c4] sm:$0xf]
    %v2438 = vld [vmem:[#allocation12 + $0x2c8] sm:$0xf]
    %v2439 = vld [vmem:[#allocation12 + $0x2cc] sm:$0xf]
    %v2440 = vld [vmem:[#allocation12 + $0x2d0] sm:$0xf]
    %v2441 = vld [vmem:[#allocation12 + $0x2d4] sm:$0xf]
    %v2442 = vld [vmem:[#allocation12 + $0x2d8] sm:$0xf]
    %v2443 = vld [vmem:[#allocation12 + $0x2dc] sm:$0xf]
    %v2444 = vld [vmem:[#allocation12 + $0x2e0] sm:$0xf]
    %v2445 = vld [vmem:[#allocation12 + $0x2e4] sm:$0xf]
    %v2446 = vld [vmem:[#allocation12 + $0x2e8] sm:$0xf]
    %v2447 = vld [vmem:[#allocation12 + $0x2ec] sm:$0xf]
    %v2448 = vld [vmem:[#allocation12 + $0x2f0] sm:$0xf]
    %v2449 = vld [vmem:[#allocation12 + $0x2f4] sm:$0xf]
    %v2450 = vld [vmem:[#allocation12 + $0x2f8] sm:$0xf]
    %v2451 = vld [vmem:[#allocation12 + $0x2fc] sm:$0xf]
    %v2452 = vld [vmem:[#allocation12 + $0x300] sm:$0xf]
    %v2453 = vld [vmem:[#allocation12 + $0x304] sm:$0xf]
    %v2454 = vld [vmem:[#allocation12 + $0x308] sm:$0xf]
    %v2455 = vld [vmem:[#allocation12 + $0x30c] sm:$0xf]
    %v2456 = vld [vmem:[#allocation12 + $0x310] sm:$0xf]
    %v2457 = vld [vmem:[#allocation12 + $0x314] sm:$0xf]
    %v2458 = vld [vmem:[#allocation12 + $0x318] sm:$0xf]
    %v2459 = vld [vmem:[#allocation12 + $0x31c] sm:$0xf]
    %v2460 = vld [vmem:[#allocation12 + $0x320] sm:$0xf]
    %v2461 = vld [vmem:[#allocation12 + $0x324] sm:$0xf]
    %v2462 = vld [vmem:[#allocation12 + $0x328] sm:$0xf]
    %v2463 = vld [vmem:[#allocation12 + $0x32c] sm:$0xf]
    %v2464 = vld [vmem:[#allocation12 + $0x330] sm:$0xf]
    %v2465 = vld [vmem:[#allocation12 + $0x334] sm:$0xf]
    %v2466 = vld [vmem:[#allocation12 + $0x338] sm:$0xf]
    %v2467 = vld [vmem:[#allocation12 + $0x33c] sm:$0xf]
    %v2468 = vld [vmem:[#allocation12 + $0x340] sm:$0xf]
    %v2469 = vld [vmem:[#allocation12 + $0x344] sm:$0xf]
    %v2470 = vld [vmem:[#allocation12 + $0x348] sm:$0xf]
    %v2471 = vld [vmem:[#allocation12 + $0x34c] sm:$0xf]
    %v2472 = vld [vmem:[#allocation12 + $0x350] sm:$0xf]
    %v2473 = vld [vmem:[#allocation12 + $0x354] sm:$0xf]
    %v2474 = vld [vmem:[#allocation12 + $0x358] sm:$0xf]
    %v2475 = vld [vmem:[#allocation12 + $0x35c] sm:$0xf]
    %v2476 = vld [vmem:[#allocation12 + $0x360] sm:$0xf]
    %v2477 = vld [vmem:[#allocation12 + $0x364] sm:$0xf]
    %v2478 = vld [vmem:[#allocation12 + $0x368] sm:$0xf]
    %v2479 = vld [vmem:[#allocation12 + $0x36c] sm:$0xf]
    %v2480 = vld [vmem:[#allocation12 + $0x370] sm:$0xf]
    %v2481 = vld [vmem:[#allocation12 + $0x374] sm:$0xf]
    %v2482 = vld [vmem:[#allocation12 + $0x378] sm:$0xf]
    %v2483 = vld [vmem:[#allocation12 + $0x37c] sm:$0xf]
    %v2484 = vld [vmem:[#allocation12 + $0x380] sm:$0xf]
    %v2485 = vld [vmem:[#allocation12 + $0x384] sm:$0xf]
    %v2486 = vld [vmem:[#allocation12 + $0x388] sm:$0xf]
    %v2487 = vld [vmem:[#allocation12 + $0x38c] sm:$0xf]
    %v2488 = vld [vmem:[#allocation12 + $0x390] sm:$0xf]
    %v2489 = vld [vmem:[#allocation12 + $0x394] sm:$0xf]
    %v2490 = vld [vmem:[#allocation12 + $0x398] sm:$0xf]
    %v2491 = vld [vmem:[#allocation12 + $0x39c] sm:$0xf]
    %v2492 = vld [vmem:[#allocation12 + $0x3a0] sm:$0xf]
    %v2493 = vld [vmem:[#allocation12 + $0x3a4] sm:$0xf]
    %v2494 = vld [vmem:[#allocation12 + $0x3a8] sm:$0xf]
    %v2495 = vld [vmem:[#allocation12 + $0x3ac] sm:$0xf]
    %v2496 = vld [vmem:[#allocation12 + $0x3b0] sm:$0xf]
    %v2497 = vld [vmem:[#allocation12 + $0x3b4] sm:$0xf]
    %v2498 = vld [vmem:[#allocation12 + $0x3b8] sm:$0xf]
    %v2499 = vld [vmem:[#allocation12 + $0x3bc] sm:$0xf]
    %v2500 = vld [vmem:[#allocation12 + $0x3c0] sm:$0xf]
    %v2501 = vld [vmem:[#allocation12 + $0x3c4] sm:$0xf]
    %v2502 = vld [vmem:[#allocation12 + $0x3c8] sm:$0xf]
    %v2503 = vld [vmem:[#allocation12 + $0x3cc] sm:$0xf]
    %v2504 = vld [vmem:[#allocation12 + $0x3d0] sm:$0xf]
    %v2505 = vld [vmem:[#allocation12 + $0x3d4] sm:$0xf]
    %v2506 = vld [vmem:[#allocation12 + $0x3d8] sm:$0xf]
    %v2507 = vld [vmem:[#allocation12 + $0x3dc] sm:$0xf]
    %v2508 = vld [vmem:[#allocation12 + $0x3e0] sm:$0xf]
    %v2509 = vld [vmem:[#allocation12 + $0x3e4] sm:$0xf]
    %v2510 = vld [vmem:[#allocation12 + $0x3e8] sm:$0xf]
    %v2511 = vld [vmem:[#allocation12 + $0x3ec] sm:$0xf]
    %v2512 = vld [vmem:[#allocation12 + $0x3f0] sm:$0xf]
    %v2513 = vld [vmem:[#allocation12 + $0x3f4] sm:$0xf]
    %v2514 = vld [vmem:[#allocation12 + $0x3f8] sm:$0xf]
    %v2515 = vld [vmem:[#allocation12 + $0x3fc] sm:$0xf]
    %v2772 = vunpack.c.l.b16 %v2260
    %v2773 = vunpack.c.l.b16 %v2261
    %v2774 = vunpack.c.l.b16 %v2262
    %v2775 = vunpack.c.l.b16 %v2263
    %v2776 = vunpack.c.l.b16 %v2264
    %v2777 = vunpack.c.l.b16 %v2265
    %v2778 = vunpack.c.l.b16 %v2266
    %v2779 = vunpack.c.l.b16 %v2267
    %v2780 = vunpack.c.l.b16 %v2268
    %v2781 = vunpack.c.l.b16 %v2269
    %v2782 = vunpack.c.l.b16 %v2270
    %v2783 = vunpack.c.l.b16 %v2271
    %v2784 = vunpack.c.l.b16 %v2272
    %v2785 = vunpack.c.l.b16 %v2273
    %v2786 = vunpack.c.l.b16 %v2274
    %v2787 = vunpack.c.l.b16 %v2275
    %v2788 = vunpack.c.l.b16 %v2276
    %v2789 = vunpack.c.l.b16 %v2277
    %v2790 = vunpack.c.l.b16 %v2278
    %v2791 = vunpack.c.l.b16 %v2279
    %v2792 = vunpack.c.l.b16 %v2280
    %v2793 = vunpack.c.l.b16 %v2281
    %v2794 = vunpack.c.l.b16 %v2282
    %v2795 = vunpack.c.l.b16 %v2283
    %v2796 = vunpack.c.l.b16 %v2284
    %v2797 = vunpack.c.l.b16 %v2285
    %v2798 = vunpack.c.l.b16 %v2286
    %v2799 = vunpack.c.l.b16 %v2287
    %v2800 = vunpack.c.l.b16 %v2288
    %v2801 = vunpack.c.l.b16 %v2289
    %v2802 = vunpack.c.l.b16 %v2290
    %v2803 = vunpack.c.l.b16 %v2291
    %v2804 = vunpack.c.l.b16 %v2292
    %v2805 = vunpack.c.l.b16 %v2293
    %v2806 = vunpack.c.l.b16 %v2294
    %v2807 = vunpack.c.l.b16 %v2295
    %v2808 = vunpack.c.l.b16 %v2296
    %v2809 = vunpack.c.l.b16 %v2297
    %v2810 = vunpack.c.l.b16 %v2298
    %v2811 = vunpack.c.l.b16 %v2299
    %v2812 = vunpack.c.l.b16 %v2300
    %v2813 = vunpack.c.l.b16 %v2301
    %v2814 = vunpack.c.l.b16 %v2302
    %v2815 = vunpack.c.l.b16 %v2303
    %v2816 = vunpack.c.l.b16 %v2304
    %v2817 = vunpack.c.l.b16 %v2305
    %v2818 = vunpack.c.l.b16 %v2306
    %v2819 = vunpack.c.l.b16 %v2307
    %v2820 = vunpack.c.l.b16 %v2308
    %v2821 = vunpack.c.l.b16 %v2309
    %v2822 = vunpack.c.l.b16 %v2310
    %v2823 = vunpack.c.l.b16 %v2311
    %v2824 = vunpack.c.l.b16 %v2312
    %v2825 = vunpack.c.l.b16 %v2313
    %v2826 = vunpack.c.l.b16 %v2314
    %v2827 = vunpack.c.l.b16 %v2315
    %v2828 = vunpack.c.l.b16 %v2316
    %v2829 = vunpack.c.l.b16 %v2317
    %v2830 = vunpack.c.l.b16 %v2318
    %v2831 = vunpack.c.l.b16 %v2319
    %v2832 = vunpack.c.l.b16 %v2320
    %v2833 = vunpack.c.l.b16 %v2321
    %v2834 = vunpack.c.l.b16 %v2322
    %v2835 = vunpack.c.l.b16 %v2323
    %v2836 = vunpack.c.l.b16 %v2324
    %v2837 = vunpack.c.l.b16 %v2325
    %v2838 = vunpack.c.l.b16 %v2326
    %v2839 = vunpack.c.l.b16 %v2327
    %v2840 = vunpack.c.l.b16 %v2328
    %v2841 = vunpack.c.l.b16 %v2329
    %v2842 = vunpack.c.l.b16 %v2330
    %v2843 = vunpack.c.l.b16 %v2331
    %v2844 = vunpack.c.l.b16 %v2332
    %v2845 = vunpack.c.l.b16 %v2333
    %v2846 = vunpack.c.l.b16 %v2334
    %v2847 = vunpack.c.l.b16 %v2335
    %v2848 = vunpack.c.l.b16 %v2336
    %v2849 = vunpack.c.l.b16 %v2337
    %v2850 = vunpack.c.l.b16 %v2338
    %v2851 = vunpack.c.l.b16 %v2339
    %v2852 = vunpack.c.l.b16 %v2340
    %v2853 = vunpack.c.l.b16 %v2341
    %v2854 = vunpack.c.l.b16 %v2342
    %v2855 = vunpack.c.l.b16 %v2343
    %v2856 = vunpack.c.l.b16 %v2344
    %v2857 = vunpack.c.l.b16 %v2345
    %v2858 = vunpack.c.l.b16 %v2346
    %v2859 = vunpack.c.l.b16 %v2347
    %v2860 = vunpack.c.l.b16 %v2348
    %v2861 = vunpack.c.l.b16 %v2349
    %v2862 = vunpack.c.l.b16 %v2350
    %v2863 = vunpack.c.l.b16 %v2351
    %v2864 = vunpack.c.l.b16 %v2352
    %v2865 = vunpack.c.l.b16 %v2353
    %v2866 = vunpack.c.l.b16 %v2354
    %v2867 = vunpack.c.l.b16 %v2355
    %v2868 = vunpack.c.l.b16 %v2356
    %v2869 = vunpack.c.l.b16 %v2357
    %v2870 = vunpack.c.l.b16 %v2358
    %v2871 = vunpack.c.l.b16 %v2359
    %v2872 = vunpack.c.l.b16 %v2360
    %v2873 = vunpack.c.l.b16 %v2361
    %v2874 = vunpack.c.l.b16 %v2362
    %v2875 = vunpack.c.l.b16 %v2363
    %v2876 = vunpack.c.l.b16 %v2364
    %v2877 = vunpack.c.l.b16 %v2365
    %v2878 = vunpack.c.l.b16 %v2366
    %v2879 = vunpack.c.l.b16 %v2367
    %v2880 = vunpack.c.l.b16 %v2368
    %v2881 = vunpack.c.l.b16 %v2369
    %v2882 = vunpack.c.l.b16 %v2370
    %v2883 = vunpack.c.l.b16 %v2371
    %v2884 = vunpack.c.l.b16 %v2372
    %v2885 = vunpack.c.l.b16 %v2373
    %v2886 = vunpack.c.l.b16 %v2374
    %v2887 = vunpack.c.l.b16 %v2375
    %v2888 = vunpack.c.l.b16 %v2376
    %v2889 = vunpack.c.l.b16 %v2377
    %v2890 = vunpack.c.l.b16 %v2378
    %v2891 = vunpack.c.l.b16 %v2379
    %v2892 = vunpack.c.l.b16 %v2380
    %v2893 = vunpack.c.l.b16 %v2381
    %v2894 = vunpack.c.l.b16 %v2382
    %v2895 = vunpack.c.l.b16 %v2383
    %v2896 = vunpack.c.l.b16 %v2384
    %v2897 = vunpack.c.l.b16 %v2385
    %v2898 = vunpack.c.l.b16 %v2386
    %v2899 = vunpack.c.l.b16 %v2387
    %v2900 = vunpack.c.l.b16 %v2388
    %v2901 = vunpack.c.l.b16 %v2389
    %v2902 = vunpack.c.l.b16 %v2390
    %v2903 = vunpack.c.l.b16 %v2391
    %v2904 = vunpack.c.l.b16 %v2392
    %v2905 = vunpack.c.l.b16 %v2393
    %v2906 = vunpack.c.l.b16 %v2394
    %v2907 = vunpack.c.l.b16 %v2395
    %v2908 = vunpack.c.l.b16 %v2396
    %v2909 = vunpack.c.l.b16 %v2397
    %v2910 = vunpack.c.l.b16 %v2398
    %v2911 = vunpack.c.l.b16 %v2399
    %v2912 = vunpack.c.l.b16 %v2400
    %v2913 = vunpack.c.l.b16 %v2401
    %v2914 = vunpack.c.l.b16 %v2402
    %v2915 = vunpack.c.l.b16 %v2403
    %v2916 = vunpack.c.l.b16 %v2404
    %v2917 = vunpack.c.l.b16 %v2405
    %v2918 = vunpack.c.l.b16 %v2406
    %v2919 = vunpack.c.l.b16 %v2407
    %v2920 = vunpack.c.l.b16 %v2408
    %v2921 = vunpack.c.l.b16 %v2409
    %v2922 = vunpack.c.l.b16 %v2410
    %v2923 = vunpack.c.l.b16 %v2411
    %v2924 = vunpack.c.l.b16 %v2412
    %v2925 = vunpack.c.l.b16 %v2413
    %v2926 = vunpack.c.l.b16 %v2414
    %v2927 = vunpack.c.l.b16 %v2415
    %v2928 = vunpack.c.l.b16 %v2416
    %v2929 = vunpack.c.l.b16 %v2417
    %v2930 = vunpack.c.l.b16 %v2418
    %v2931 = vunpack.c.l.b16 %v2419
    %v2932 = vunpack.c.l.b16 %v2420
    %v2933 = vunpack.c.l.b16 %v2421
    %v2934 = vunpack.c.l.b16 %v2422
    %v2935 = vunpack.c.l.b16 %v2423
    %v2936 = vunpack.c.l.b16 %v2424
    %v2937 = vunpack.c.l.b16 %v2425
    %v2938 = vunpack.c.l.b16 %v2426
    %v2939 = vunpack.c.l.b16 %v2427
    %v2940 = vunpack.c.l.b16 %v2428
    %v2941 = vunpack.c.l.b16 %v2429
    %v2942 = vunpack.c.l.b16 %v2430
    %v2943 = vunpack.c.l.b16 %v2431
    %v2944 = vunpack.c.l.b16 %v2432
    %v2945 = vunpack.c.l.b16 %v2433
    %v2946 = vunpack.c.l.b16 %v2434
    %v2947 = vunpack.c.l.b16 %v2435
    %v2948 = vunpack.c.l.b16 %v2436
    %v2949 = vunpack.c.l.b16 %v2437
    %v2950 = vunpack.c.l.b16 %v2438
    %v2951 = vunpack.c.l.b16 %v2439
    %v2952 = vunpack.c.l.b16 %v2440
    %v2953 = vunpack.c.l.b16 %v2441
    %v2954 = vunpack.c.l.b16 %v2442
    %v2955 = vunpack.c.l.b16 %v2443
    %v2956 = vunpack.c.l.b16 %v2444
    %v2957 = vunpack.c.l.b16 %v2445
    %v2958 = vunpack.c.l.b16 %v2446
    %v2959 = vunpack.c.l.b16 %v2447
    %v2960 = vunpack.c.l.b16 %v2448
    %v2961 = vunpack.c.l.b16 %v2449
    %v2962 = vunpack.c.l.b16 %v2450
    %v2963 = vunpack.c.l.b16 %v2451
    %v2964 = vunpack.c.l.b16 %v2452
    %v2965 = vunpack.c.l.b16 %v2453
    %v2966 = vunpack.c.l.b16 %v2454
    %v2967 = vunpack.c.l.b16 %v2455
    %v2968 = vunpack.c.l.b16 %v2456
    %v2969 = vunpack.c.l.b16 %v2457
    %v2970 = vunpack.c.l.b16 %v2458
    %v2971 = vunpack.c.l.b16 %v2459
    %v2972 = vunpack.c.l.b16 %v2460
    %v2973 = vunpack.c.l.b16 %v2461
    %v2974 = vunpack.c.l.b16 %v2462
    %v2975 = vunpack.c.l.b16 %v2463
    %v2976 = vunpack.c.l.b16 %v2464
    %v2977 = vunpack.c.l.b16 %v2465
    %v2978 = vunpack.c.l.b16 %v2466
    %v2979 = vunpack.c.l.b16 %v2467
    %v2980 = vunpack.c.l.b16 %v2468
    %v2981 = vunpack.c.l.b16 %v2469
    %v2982 = vunpack.c.l.b16 %v2470
    %v2983 = vunpack.c.l.b16 %v2471
    %v2984 = vunpack.c.l.b16 %v2472
    %v2985 = vunpack.c.l.b16 %v2473
    %v2986 = vunpack.c.l.b16 %v2474
    %v2987 = vunpack.c.l.b16 %v2475
    %v2988 = vunpack.c.l.b16 %v2476
    %v2989 = vunpack.c.l.b16 %v2477
    %v2990 = vunpack.c.l.b16 %v2478
    %v2991 = vunpack.c.l.b16 %v2479
    %v2992 = vunpack.c.l.b16 %v2480
    %v2993 = vunpack.c.l.b16 %v2481
    %v2994 = vunpack.c.l.b16 %v2482
    %v2995 = vunpack.c.l.b16 %v2483
    %v2996 = vunpack.c.l.b16 %v2484
    %v2997 = vunpack.c.l.b16 %v2485
    %v2998 = vunpack.c.l.b16 %v2486
    %v2999 = vunpack.c.l.b16 %v2487
    %v3000 = vunpack.c.l.b16 %v2488
    %v3001 = vunpack.c.l.b16 %v2489
    %v3002 = vunpack.c.l.b16 %v2490
    %v3003 = vunpack.c.l.b16 %v2491
    %v3004 = vunpack.c.l.b16 %v2492
    %v3005 = vunpack.c.l.b16 %v2493
    %v3006 = vunpack.c.l.b16 %v2494
    %v3007 = vunpack.c.l.b16 %v2495
    %v3008 = vunpack.c.l.b16 %v2496
    %v3009 = vunpack.c.l.b16 %v2497
    %v3010 = vunpack.c.l.b16 %v2498
    %v3011 = vunpack.c.l.b16 %v2499
    %v3012 = vunpack.c.l.b16 %v2500
    %v3013 = vunpack.c.l.b16 %v2501
    %v3014 = vunpack.c.l.b16 %v2502
    %v3015 = vunpack.c.l.b16 %v2503
    %v3016 = vunpack.c.l.b16 %v2504
    %v3017 = vunpack.c.l.b16 %v2505
    %v3018 = vunpack.c.l.b16 %v2506
    %v3019 = vunpack.c.l.b16 %v2507
    %v3020 = vunpack.c.l.b16 %v2508
    %v3021 = vunpack.c.l.b16 %v2509
    %v3022 = vunpack.c.l.b16 %v2510
    %v3023 = vunpack.c.l.b16 %v2511
    %v3024 = vunpack.c.l.b16 %v2512
    %v3025 = vunpack.c.l.b16 %v2513
    %v3026 = vunpack.c.l.b16 %v2514
    %v3027 = vunpack.c.l.b16 %v2515
    %v3028 = vpack.c.b16 %v2773, %v2772
    %v3029 = vpack.c.b16 %v2775, %v2774
    %v3030 = vpack.c.b16 %v2777, %v2776
    %v3031 = vpack.c.b16 %v2779, %v2778
    %v3032 = vpack.c.b16 %v2781, %v2780
    %v3033 = vpack.c.b16 %v2783, %v2782
    %v3034 = vpack.c.b16 %v2785, %v2784
    %v3035 = vpack.c.b16 %v2787, %v2786
    %v3036 = vpack.c.b16 %v2789, %v2788
    %v3037 = vpack.c.b16 %v2791, %v2790
    %v3038 = vpack.c.b16 %v2793, %v2792
    %v3039 = vpack.c.b16 %v2795, %v2794
    %v3040 = vpack.c.b16 %v2797, %v2796
    %v3041 = vpack.c.b16 %v2799, %v2798
    %v3042 = vpack.c.b16 %v2801, %v2800
    %v3043 = vpack.c.b16 %v2803, %v2802
    %v3044 = vpack.c.b16 %v2805, %v2804
    %v3045 = vpack.c.b16 %v2807, %v2806
    %v3046 = vpack.c.b16 %v2809, %v2808
    %v3047 = vpack.c.b16 %v2811, %v2810
    %v3048 = vpack.c.b16 %v2813, %v2812
    %v3049 = vpack.c.b16 %v2815, %v2814
    %v3050 = vpack.c.b16 %v2817, %v2816
    %v3051 = vpack.c.b16 %v2819, %v2818
    %v3052 = vpack.c.b16 %v2821, %v2820
    %v3053 = vpack.c.b16 %v2823, %v2822
    %v3054 = vpack.c.b16 %v2825, %v2824
    %v3055 = vpack.c.b16 %v2827, %v2826
    %v3056 = vpack.c.b16 %v2829, %v2828
    %v3057 = vpack.c.b16 %v2831, %v2830
    %v3058 = vpack.c.b16 %v2833, %v2832
    %v3059 = vpack.c.b16 %v2835, %v2834
    %v3060 = vpack.c.b16 %v2837, %v2836
    %v3061 = vpack.c.b16 %v2839, %v2838
    %v3062 = vpack.c.b16 %v2841, %v2840
    %v3063 = vpack.c.b16 %v2843, %v2842
    %v3064 = vpack.c.b16 %v2845, %v2844
    %v3065 = vpack.c.b16 %v2847, %v2846
    %v3066 = vpack.c.b16 %v2849, %v2848
    %v3067 = vpack.c.b16 %v2851, %v2850
    %v3068 = vpack.c.b16 %v2853, %v2852
    %v3069 = vpack.c.b16 %v2855, %v2854
    %v3070 = vpack.c.b16 %v2857, %v2856
    %v3071 = vpack.c.b16 %v2859, %v2858
    %v3072 = vpack.c.b16 %v2861, %v2860
    %v3073 = vpack.c.b16 %v2863, %v2862
    %v3074 = vpack.c.b16 %v2865, %v2864
    %v3075 = vpack.c.b16 %v2867, %v2866
    %v3076 = vpack.c.b16 %v2869, %v2868
    %v3077 = vpack.c.b16 %v2871, %v2870
    %v3078 = vpack.c.b16 %v2873, %v2872
    %v3079 = vpack.c.b16 %v2875, %v2874
    %v3080 = vpack.c.b16 %v2877, %v2876
    %v3081 = vpack.c.b16 %v2879, %v2878
    %v3082 = vpack.c.b16 %v2881, %v2880
    %v3083 = vpack.c.b16 %v2883, %v2882
    %v3084 = vpack.c.b16 %v2885, %v2884
    %v3085 = vpack.c.b16 %v2887, %v2886
    %v3086 = vpack.c.b16 %v2889, %v2888
    %v3087 = vpack.c.b16 %v2891, %v2890
    %v3088 = vpack.c.b16 %v2893, %v2892
    %v3089 = vpack.c.b16 %v2895, %v2894
    %v3090 = vpack.c.b16 %v2897, %v2896
    %v3091 = vpack.c.b16 %v2899, %v2898
    %v3092 = vpack.c.b16 %v2901, %v2900
    %v3093 = vpack.c.b16 %v2903, %v2902
    %v3094 = vpack.c.b16 %v2905, %v2904
    %v3095 = vpack.c.b16 %v2907, %v2906
    %v3096 = vpack.c.b16 %v2909, %v2908
    %v3097 = vpack.c.b16 %v2911, %v2910
    %v3098 = vpack.c.b16 %v2913, %v2912
    %v3099 = vpack.c.b16 %v2915, %v2914
    %v3100 = vpack.c.b16 %v2917, %v2916
    %v3101 = vpack.c.b16 %v2919, %v2918
    %v3102 = vpack.c.b16 %v2921, %v2920
    %v3103 = vpack.c.b16 %v2923, %v2922
    %v3104 = vpack.c.b16 %v2925, %v2924
    %v3105 = vpack.c.b16 %v2927, %v2926
    %v3106 = vpack.c.b16 %v2929, %v2928
    %v3107 = vpack.c.b16 %v2931, %v2930
    %v3108 = vpack.c.b16 %v2933, %v2932
    %v3109 = vpack.c.b16 %v2935, %v2934
    %v3110 = vpack.c.b16 %v2937, %v2936
    %v3111 = vpack.c.b16 %v2939, %v2938
    %v3112 = vpack.c.b16 %v2941, %v2940
    %v3113 = vpack.c.b16 %v2943, %v2942
    %v3114 = vpack.c.b16 %v2945, %v2944
    %v3115 = vpack.c.b16 %v2947, %v2946
    %v3116 = vpack.c.b16 %v2949, %v2948
    %v3117 = vpack.c.b16 %v2951, %v2950
    %v3118 = vpack.c.b16 %v2953, %v2952
    %v3119 = vpack.c.b16 %v2955, %v2954
    %v3120 = vpack.c.b16 %v2957, %v2956
    %v3121 = vpack.c.b16 %v2959, %v2958
    %v3122 = vpack.c.b16 %v2961, %v2960
    %v3123 = vpack.c.b16 %v2963, %v2962
    %v3124 = vpack.c.b16 %v2965, %v2964
    %v3125 = vpack.c.b16 %v2967, %v2966
    %v3126 = vpack.c.b16 %v2969, %v2968
    %v3127 = vpack.c.b16 %v2971, %v2970
    %v3128 = vpack.c.b16 %v2973, %v2972
    %v3129 = vpack.c.b16 %v2975, %v2974
    %v3130 = vpack.c.b16 %v2977, %v2976
    %v3131 = vpack.c.b16 %v2979, %v2978
    %v3132 = vpack.c.b16 %v2981, %v2980
    %v3133 = vpack.c.b16 %v2983, %v2982
    %v3134 = vpack.c.b16 %v2985, %v2984
    %v3135 = vpack.c.b16 %v2987, %v2986
    %v3136 = vpack.c.b16 %v2989, %v2988
    %v3137 = vpack.c.b16 %v2991, %v2990
    %v3138 = vpack.c.b16 %v2993, %v2992
    %v3139 = vpack.c.b16 %v2995, %v2994
    %v3140 = vpack.c.b16 %v2997, %v2996
    %v3141 = vpack.c.b16 %v2999, %v2998
    %v3142 = vpack.c.b16 %v3001, %v3000
    %v3143 = vpack.c.b16 %v3003, %v3002
    %v3144 = vpack.c.b16 %v3005, %v3004
    %v3145 = vpack.c.b16 %v3007, %v3006
    %v3146 = vpack.c.b16 %v3009, %v3008
    %v3147 = vpack.c.b16 %v3011, %v3010
    %v3148 = vpack.c.b16 %v3013, %v3012
    %v3149 = vpack.c.b16 %v3015, %v3014
    %v3150 = vpack.c.b16 %v3017, %v3016
    %v3151 = vpack.c.b16 %v3019, %v3018
    %v3152 = vpack.c.b16 %v3021, %v3020
    %v3153 = vpack.c.b16 %v3023, %v3022
    %v3154 = vpack.c.b16 %v3025, %v3024
    %v3155 = vpack.c.b16 %v3027, %v3026
    %3284 = vmatprep.subr.bf16.mxu0 0
    %3285 = vmatpush1.bf16.msra.mxu0 %v3028
    %3286 = vmatprep.subr.bf16.mxu0 0
    %3287 = vmatpush1.bf16.msra.mxu0 %v3029
    %3288 = vmatprep.subr.bf16.mxu0 0
    %3289 = vmatpush1.bf16.msra.mxu0 %v3030
    %3290 = vmatprep.subr.bf16.mxu0 0
    %3291 = vmatpush1.bf16.msra.mxu0 %v3031
    %3292 = vmatprep.subr.bf16.mxu0 0
    %3293 = vmatpush1.bf16.msra.mxu0 %v3032
    %3294 = vmatprep.subr.bf16.mxu0 0
    %3295 = vmatpush1.bf16.msra.mxu0 %v3033
    %3296 = vmatprep.subr.bf16.mxu0 0
    %3297 = vmatpush1.bf16.msra.mxu0 %v3034
    %3298 = vmatprep.subr.bf16.mxu0 0
    %3299 = vmatpush1.bf16.msra.mxu0 %v3035
    %3300 = vmatprep.subr.bf16.mxu0 0
    %3301 = vmatpush1.bf16.msra.mxu0 %v3036
    %3302 = vmatprep.subr.bf16.mxu0 0
    %3303 = vmatpush1.bf16.msra.mxu0 %v3037
    %3304 = vmatprep.subr.bf16.mxu0 0
    %3305 = vmatpush1.bf16.msra.mxu0 %v3038
    %3306 = vmatprep.subr.bf16.mxu0 0
    %3307 = vmatpush1.bf16.msra.mxu0 %v3039
    %3308 = vmatprep.subr.bf16.mxu0 0
    %3309 = vmatpush1.bf16.msra.mxu0 %v3040
    %3310 = vmatprep.subr.bf16.mxu0 0
    %3311 = vmatpush1.bf16.msra.mxu0 %v3041
    %3312 = vmatprep.subr.bf16.mxu0 0
    %3313 = vmatpush1.bf16.msra.mxu0 %v3042
    %3314 = vmatprep.subr.bf16.mxu0 0
    %3315 = vmatpush1.bf16.msra.mxu0 %v3043
    %3316 = vmatprep.mubr.bf16.mxu0 %v2245
    %3317 = vmatmul.mubr.bf16.gmra.mrb[0].mxu0 %v2244
    %v3318 = vpop.f32.mrb[0].mxu0
    %v3319 = vadd.f32 0.0, %v3318
    %v3320 = vpop.f32.mrb[0].mxu0
    %v3321 = vpop.f32.mrb[0].mxu0
    %v3322 = vpop.f32.mrb[0].mxu0
    %3323 = vdwg.mxu0
    %3324 = vmatprep.subr.bf16.mxu0 0
    %3325 = vmatpush1.bf16.msra.mxu0 %v3044
    %3326 = vmatprep.subr.bf16.mxu0 0
    %3327 = vmatpush1.bf16.msra.mxu0 %v3045
    %3328 = vmatprep.subr.bf16.mxu0 0
    %3329 = vmatpush1.bf16.msra.mxu0 %v3046
    %3330 = vmatprep.subr.bf16.mxu0 0
    %3331 = vmatpush1.bf16.msra.mxu0 %v3047
    %3332 = vmatprep.subr.bf16.mxu0 0
    %3333 = vmatpush1.bf16.msra.mxu0 %v3048
    %3334 = vmatprep.subr.bf16.mxu0 0
    %3335 = vmatpush1.bf16.msra.mxu0 %v3049
    %3336 = vmatprep.subr.bf16.mxu0 0
    %3337 = vmatpush1.bf16.msra.mxu0 %v3050
    %3338 = vmatprep.subr.bf16.mxu0 0
    %3339 = vmatpush1.bf16.msra.mxu0 %v3051
    %3340 = vmatprep.subr.bf16.mxu0 0
    %3341 = vmatpush1.bf16.msra.mxu0 %v3052
    %3342 = vmatprep.subr.bf16.mxu0 0
    %3343 = vmatpush1.bf16.msra.mxu0 %v3053
    %3344 = vmatprep.subr.bf16.mxu0 0
    %3345 = vmatpush1.bf16.msra.mxu0 %v3054
    %3346 = vmatprep.subr.bf16.mxu0 0
    %3347 = vmatpush1.bf16.msra.mxu0 %v3055
    %3348 = vmatprep.subr.bf16.mxu0 0
    %3349 = vmatpush1.bf16.msra.mxu0 %v3056
    %3350 = vmatprep.subr.bf16.mxu0 0
    %3351 = vmatpush1.bf16.msra.mxu0 %v3057
    %3352 = vmatprep.subr.bf16.mxu0 0
    %3353 = vmatpush1.bf16.msra.mxu0 %v3058
    %3354 = vmatprep.subr.bf16.mxu0 0
    %3355 = vmatpush1.bf16.msra.mxu0 %v3059
    %3356 = vmatprep.mubr.bf16.mxu0 %v2247
    %3357 = vmatmul.mubr.bf16.gmra.mrb[0].mxu0 %v2246
    %v3358 = vpop.f32.mrb[0].mxu0
    %v3359 = vadd.f32 %v3319, %v3358
    %v3360 = vpop.f32.mrb[0].mxu0
    %v3361 = vpop.f32.mrb[0].mxu0
    %v3362 = vpop.f32.mrb[0].mxu0
    %3363 = vdwg.mxu0
    %3364 = vmatprep.subr.bf16.mxu0 0
    %3365 = vmatpush1.bf16.msra.mxu0 %v3060
    %3366 = vmatprep.subr.bf16.mxu0 0
    %3367 = vmatpush1.bf16.msra.mxu0 %v3061
    %3368 = vmatprep.subr.bf16.mxu0 0
    %3369 = vmatpush1.bf16.msra.mxu0 %v3062
    %3370 = vmatprep.subr.bf16.mxu0 0
    %3371 = vmatpush1.bf16.msra.mxu0 %v3063
    %3372 = vmatprep.subr.bf16.mxu0 0
    %3373 = vmatpush1.bf16.msra.mxu0 %v3064
    %3374 = vmatprep.subr.bf16.mxu0 0
    %3375 = vmatpush1.bf16.msra.mxu0 %v3065
    %3376 = vmatprep.subr.bf16.mxu0 0
    %3377 = vmatpush1.bf16.msra.mxu0 %v3066
    %3378 = vmatprep.subr.bf16.mxu0 0
    %3379 = vmatpush1.bf16.msra.mxu0 %v3067
    %3380 = vmatprep.subr.bf16.mxu0 0
    %3381 = vmatpush1.bf16.msra.mxu0 %v3068
    %3382 = vmatprep.subr.bf16.mxu0 0
    %3383 = vmatpush1.bf16.msra.mxu0 %v3069
    %3384 = vmatprep.subr.bf16.mxu0 0
    %3385 = vmatpush1.bf16.msra.mxu0 %v3070
    %3386 = vmatprep.subr.bf16.mxu0 0
    %3387 = vmatpush1.bf16.msra.mxu0 %v3071
    %3388 = vmatprep.subr.bf16.mxu0 0
    %3389 = vmatpush1.bf16.msra.mxu0 %v3072
    %3390 = vmatprep.subr.bf16.mxu0 0
    %3391 = vmatpush1.bf16.msra.mxu0 %v3073
    %3392 = vmatprep.subr.bf16.mxu0 0
    %3393 = vmatpush1.bf16.msra.mxu0 %v3074
    %3394 = vmatprep.subr.bf16.mxu0 0
    %3395 = vmatpush1.bf16.msra.mxu0 %v3075
    %3396 = vmatprep.mubr.bf16.mxu0 %v2249
    %3397 = vmatmul.mubr.bf16.gmra.mrb[0].mxu0 %v2248
    %v3398 = vpop.f32.mrb[0].mxu0
    %v3399 = vadd.f32 %v3359, %v3398
    %v3400 = vpop.f32.mrb[0].mxu0
    %v3401 = vpop.f32.mrb[0].mxu0
    %v3402 = vpop.f32.mrb[0].mxu0
    %3403 = vdwg.mxu0
    %3404 = vmatprep.subr.bf16.mxu0 0
    %3405 = vmatpush1.bf16.msra.mxu0 %v3076
    %3406 = vmatprep.subr.bf16.mxu0 0
    %3407 = vmatpush1.bf16.msra.mxu0 %v3077
    %3408 = vmatprep.subr.bf16.mxu0 0
    %3409 = vmatpush1.bf16.msra.mxu0 %v3078
    %3410 = vmatprep.subr.bf16.mxu0 0
    %3411 = vmatpush1.bf16.msra.mxu0 %v3079
    %3412 = vmatprep.subr.bf16.mxu0 0
    %3413 = vmatpush1.bf16.msra.mxu0 %v3080
    %3414 = vmatprep.subr.bf16.mxu0 0
    %3415 = vmatpush1.bf16.msra.mxu0 %v3081
    %3416 = vmatprep.subr.bf16.mxu0 0
    %3417 = vmatpush1.bf16.msra.mxu0 %v3082
    %3418 = vmatprep.subr.bf16.mxu0 0
    %3419 = vmatpush1.bf16.msra.mxu0 %v3083
    %3420 = vmatprep.subr.bf16.mxu0 0
    %3421 = vmatpush1.bf16.msra.mxu0 %v3084
    %3422 = vmatprep.subr.bf16.mxu0 0
    %3423 = vmatpush1.bf16.msra.mxu0 %v3085
    %3424 = vmatprep.subr.bf16.mxu0 0
    %3425 = vmatpush1.bf16.msra.mxu0 %v3086
    %3426 = vmatprep.subr.bf16.mxu0 0
    %3427 = vmatpush1.bf16.msra.mxu0 %v3087
    %3428 = vmatprep.subr.bf16.mxu0 0
    %3429 = vmatpush1.bf16.msra.mxu0 %v3088
    %3430 = vmatprep.subr.bf16.mxu0 0
    %3431 = vmatpush1.bf16.msra.mxu0 %v3089
    %3432 = vmatprep.subr.bf16.mxu0 0
    %3433 = vmatpush1.bf16.msra.mxu0 %v3090
    %3434 = vmatprep.subr.bf16.mxu0 0
    %3435 = vmatpush1.bf16.msra.mxu0 %v3091
    %3436 = vmatprep.mubr.bf16.mxu0 %v2251
    %3437 = vmatmul.mubr.bf16.gmra.mrb[0].mxu0 %v2250
    %v3438 = vpop.f32.mrb[0].mxu0
    %v3439 = vadd.f32 %v3399, %v3438
    %v3440 = vpop.f32.mrb[0].mxu0
    %v3441 = vpop.f32.mrb[0].mxu0
    %v3442 = vpop.f32.mrb[0].mxu0
    %3443 = vdwg.mxu0
    %3444 = vmatprep.subr.bf16.mxu0 0
    %3445 = vmatpush1.bf16.msra.mxu0 %v3092
    %3446 = vmatprep.subr.bf16.mxu0 0
    %3447 = vmatpush1.bf16.msra.mxu0 %v3093
    %3448 = vmatprep.subr.bf16.mxu0 0
    %3449 = vmatpush1.bf16.msra.mxu0 %v3094
    %3450 = vmatprep.subr.bf16.mxu0 0
    %3451 = vmatpush1.bf16.msra.mxu0 %v3095
    %3452 = vmatprep.subr.bf16.mxu0 0
    %3453 = vmatpush1.bf16.msra.mxu0 %v3096
    %3454 = vmatprep.subr.bf16.mxu0 0
    %3455 = vmatpush1.bf16.msra.mxu0 %v3097
    %3456 = vmatprep.subr.bf16.mxu0 0
    %3457 = vmatpush1.bf16.msra.mxu0 %v3098
    %3458 = vmatprep.subr.bf16.mxu0 0
    %3459 = vmatpush1.bf16.msra.mxu0 %v3099
    %3460 = vmatprep.subr.bf16.mxu0 0
    %3461 = vmatpush1.bf16.msra.mxu0 %v3100
    %3462 = vmatprep.subr.bf16.mxu0 0
    %3463 = vmatpush1.bf16.msra.mxu0 %v3101
    %3464 = vmatprep.subr.bf16.mxu0 0
    %3465 = vmatpush1.bf16.msra.mxu0 %v3102
    %3466 = vmatprep.subr.bf16.mxu0 0
    %3467 = vmatpush1.bf16.msra.mxu0 %v3103
    %3468 = vmatprep.subr.bf16.mxu0 0
    %3469 = vmatpush1.bf16.msra.mxu0 %v3104
    %3470 = vmatprep.subr.bf16.mxu0 0
    %3471 = vmatpush1.bf16.msra.mxu0 %v3105
    %3472 = vmatprep.subr.bf16.mxu0 0
    %3473 = vmatpush1.bf16.msra.mxu0 %v3106
    %3474 = vmatprep.subr.bf16.mxu0 0
    %3475 = vmatpush1.bf16.msra.mxu0 %v3107
    %3476 = vmatprep.mubr.bf16.mxu0 %v2253
    %3477 = vmatmul.mubr.bf16.gmra.mrb[0].mxu0 %v2252
    %v3478 = vpop.f32.mrb[0].mxu0
    %v3479 = vadd.f32 %v3439, %v3478
    %v3480 = vpop.f32.mrb[0].mxu0
    %v3481 = vpop.f32.mrb[0].mxu0
    %v3482 = vpop.f32.mrb[0].mxu0
    %3483 = vdwg.mxu0
    %3484 = vmatprep.subr.bf16.mxu0 0
    %3485 = vmatpush1.bf16.msra.mxu0 %v3108
    %3486 = vmatprep.subr.bf16.mxu0 0
    %3487 = vmatpush1.bf16.msra.mxu0 %v3109
    %3488 = vmatprep.subr.bf16.mxu0 0
    %3489 = vmatpush1.bf16.msra.mxu0 %v3110
    %3490 = vmatprep.subr.bf16.mxu0 0
    %3491 = vmatpush1.bf16.msra.mxu0 %v3111
    %3492 = vmatprep.subr.bf16.mxu0 0
    %3493 = vmatpush1.bf16.msra.mxu0 %v3112
    %3494 = vmatprep.subr.bf16.mxu0 0
    %3495 = vmatpush1.bf16.msra.mxu0 %v3113
    %3496 = vmatprep.subr.bf16.mxu0 0
    %3497 = vmatpush1.bf16.msra.mxu0 %v3114
    %3498 = vmatprep.subr.bf16.mxu0 0
    %3499 = vmatpush1.bf16.msra.mxu0 %v3115
    %3500 = vmatprep.subr.bf16.mxu0 0
    %3501 = vmatpush1.bf16.msra.mxu0 %v3116
    %3502 = vmatprep.subr.bf16.mxu0 0
    %3503 = vmatpush1.bf16.msra.mxu0 %v3117
    %3504 = vmatprep.subr.bf16.mxu0 0
    %3505 = vmatpush1.bf16.msra.mxu0 %v3118
    %3506 = vmatprep.subr.bf16.mxu0 0
    %3507 = vmatpush1.bf16.msra.mxu0 %v3119
    %3508 = vmatprep.subr.bf16.mxu0 0
    %3509 = vmatpush1.bf16.msra.mxu0 %v3120
    %3510 = vmatprep.subr.bf16.mxu0 0
    %3511 = vmatpush1.bf16.msra.mxu0 %v3121
    %3512 = vmatprep.subr.bf16.mxu0 0
    %3513 = vmatpush1.bf16.msra.mxu0 %v3122
    %3514 = vmatprep.subr.bf16.mxu0 0
    %3515 = vmatpush1.bf16.msra.mxu0 %v3123
    %3516 = vmatprep.mubr.bf16.mxu0 %v2255
    %3517 = vmatmul.mubr.bf16.gmra.mrb[0].mxu0 %v2254
    %v3518 = vpop.f32.mrb[0].mxu0
    %v3519 = vadd.f32 %v3479, %v3518
    %v3520 = vpop.f32.mrb[0].mxu0
    %v3521 = vpop.f32.mrb[0].mxu0
    %v3522 = vpop.f32.mrb[0].mxu0
    %3523 = vdwg.mxu0
    %3524 = vmatprep.subr.bf16.mxu0 0
    %3525 = vmatpush1.bf16.msra.mxu0 %v3124
    %3526 = vmatprep.subr.bf16.mxu0 0
    %3527 = vmatpush1.bf16.msra.mxu0 %v3125
    %3528 = vmatprep.subr.bf16.mxu0 0
    %3529 = vmatpush1.bf16.msra.mxu0 %v3126
    %3530 = vmatprep.subr.bf16.mxu0 0
    %3531 = vmatpush1.bf16.msra.mxu0 %v3127
    %3532 = vmatprep.subr.bf16.mxu0 0
    %3533 = vmatpush1.bf16.msra.mxu0 %v3128
    %3534 = vmatprep.subr.bf16.mxu0 0
    %3535 = vmatpush1.bf16.msra.mxu0 %v3129
    %3536 = vmatprep.subr.bf16.mxu0 0
    %3537 = vmatpush1.bf16.msra.mxu0 %v3130
    %3538 = vmatprep.subr.bf16.mxu0 0
    %3539 = vmatpush1.bf16.msra.mxu0 %v3131
    %3540 = vmatprep.subr.bf16.mxu0 0
    %3541 = vmatpush1.bf16.msra.mxu0 %v3132
    %3542 = vmatprep.subr.bf16.mxu0 0
    %3543 = vmatpush1.bf16.msra.mxu0 %v3133
    %3544 = vmatprep.subr.bf16.mxu0 0
    %3545 = vmatpush1.bf16.msra.mxu0 %v3134
    %3546 = vmatprep.subr.bf16.mxu0 0
    %3547 = vmatpush1.bf16.msra.mxu0 %v3135
    %3548 = vmatprep.subr.bf16.mxu0 0
    %3549 = vmatpush1.bf16.msra.mxu0 %v3136
    %3550 = vmatprep.subr.bf16.mxu0 0
    %3551 = vmatpush1.bf16.msra.mxu0 %v3137
    %3552 = vmatprep.subr.bf16.mxu0 0
    %3553 = vmatpush1.bf16.msra.mxu0 %v3138
    %3554 = vmatprep.subr.bf16.mxu0 0
    %3555 = vmatpush1.bf16.msra.mxu0 %v3139
    %3556 = vmatprep.mubr.bf16.mxu0 %v2257
    %3557 = vmatmul.mubr.bf16.gmra.mrb[0].mxu0 %v2256
    %v3558 = vpop.f32.mrb[0].mxu0
    %v3559 = vadd.f32 %v3519, %v3558
    %v3560 = vpop.f32.mrb[0].mxu0
    %v3561 = vpop.f32.mrb[0].mxu0
    %v3562 = vpop.f32.mrb[0].mxu0
    %3563 = vdwg.mxu0
    %3564 = vmatprep.subr.bf16.mxu0 0
    %3565 = vmatpush1.bf16.msra.mxu0 %v3140
    %3566 = vmatprep.subr.bf16.mxu0 0
    %3567 = vmatpush1.bf16.msra.mxu0 %v3141
    %3568 = vmatprep.subr.bf16.mxu0 0
    %3569 = vmatpush1.bf16.msra.mxu0 %v3142
    %3570 = vmatprep.subr.bf16.mxu0 0
    %3571 = vmatpush1.bf16.msra.mxu0 %v3143
    %3572 = vmatprep.subr.bf16.mxu0 0
    %3573 = vmatpush1.bf16.msra.mxu0 %v3144
    %3574 = vmatprep.subr.bf16.mxu0 0
    %3575 = vmatpush1.bf16.msra.mxu0 %v3145
    %3576 = vmatprep.subr.bf16.mxu0 0
    %3577 = vmatpush1.bf16.msra.mxu0 %v3146
    %3578 = vmatprep.subr.bf16.mxu0 0
    %3579 = vmatpush1.bf16.msra.mxu0 %v3147
    %3580 = vmatprep.subr.bf16.mxu0 0
    %3581 = vmatpush1.bf16.msra.mxu0 %v3148
    %3582 = vmatprep.subr.bf16.mxu0 0
    %3583 = vmatpush1.bf16.msra.mxu0 %v3149
    %3584 = vmatprep.subr.bf16.mxu0 0
    %3585 = vmatpush1.bf16.msra.mxu0 %v3150
    %3586 = vmatprep.subr.bf16.mxu0 0
    %3587 = vmatpush1.bf16.msra.mxu0 %v3151
    %3588 = vmatprep.subr.bf16.mxu0 0
    %3589 = vmatpush1.bf16.msra.mxu0 %v3152
    %3590 = vmatprep.subr.bf16.mxu0 0
    %3591 = vmatpush1.bf16.msra.mxu0 %v3153
    %3592 = vmatprep.subr.bf16.mxu0 0
    %3593 = vmatpush1.bf16.msra.mxu0 %v3154
    %3594 = vmatprep.subr.bf16.mxu0 0
    %3595 = vmatpush1.bf16.msra.mxu0 %v3155
    %3596 = vmatprep.mubr.bf16.mxu0 %v2259
    %3597 = vmatmul.mubr.bf16.gmra.mrb[0].mxu0 %v2258
    %v3598 = vpop.f32.mrb[0].mxu0
    %v3599 = vadd.f32 %v3559, %v3598
    %v3600 = vpop.f32.mrb[0].mxu0
    %v3601 = vpop.f32.mrb[0].mxu0
    %v3602 = vpop.f32.mrb[0].mxu0
    %3603 = vdwg.mxu0
    %v3604 = vtanh.pop %v3599
    %v3605 = vpack.c.bf16 %v3604, %v3604
    %v3606 = vld [vmem:[#allocation13] sm:$0xff]
    %v3607 = vld [vmem:[#allocation13 + $0x8] sm:$0xff]
    %v3608 = vld [vmem:[#allocation13 + $0x10] sm:$0xff]
    %v3609 = vld [vmem:[#allocation13 + $0x18] sm:$0xff]
    %v3610 = vld [vmem:[#allocation13 + $0x20] sm:$0xff]
    %v3611 = vld [vmem:[#allocation13 + $0x28] sm:$0xff]
    %v3612 = vld [vmem:[#allocation13 + $0x30] sm:$0xff]
    %v3613 = vld [vmem:[#allocation13 + $0x38] sm:$0xff]
    %v3614 = vld [vmem:[#allocation13 + $0x40] sm:$0xff]
    %v3615 = vld [vmem:[#allocation13 + $0x48] sm:$0xff]
    %v3616 = vld [vmem:[#allocation13 + $0x50] sm:$0xff]
    %v3617 = vld [vmem:[#allocation13 + $0x58] sm:$0xff]
    %v3618 = vld [vmem:[#allocation13 + $0x60] sm:$0xff]
    %v3619 = vld [vmem:[#allocation13 + $0x68] sm:$0xff]
    %v3620 = vld [vmem:[#allocation13 + $0x70] sm:$0xff]
    %v3621 = vld [vmem:[#allocation13 + $0x78] sm:$0xff]
    %v3622 = vld [vmem:[#allocation13 + $0x80] sm:$0xff]
    %v3623 = vld [vmem:[#allocation13 + $0x88] sm:$0xff]
    %v3624 = vld [vmem:[#allocation13 + $0x90] sm:$0xff]
    %v3625 = vld [vmem:[#allocation13 + $0x98] sm:$0xff]
    %v3626 = vld [vmem:[#allocation13 + $0xa0] sm:$0xff]
    %v3627 = vld [vmem:[#allocation13 + $0xa8] sm:$0xff]
    %v3628 = vld [vmem:[#allocation13 + $0xb0] sm:$0xff]
    %v3629 = vld [vmem:[#allocation13 + $0xb8] sm:$0xff]
    %v3630 = vld [vmem:[#allocation13 + $0xc0] sm:$0xff]
    %v3631 = vld [vmem:[#allocation13 + $0xc8] sm:$0xff]
    %v3632 = vld [vmem:[#allocation13 + $0xd0] sm:$0xff]
    %v3633 = vld [vmem:[#allocation13 + $0xd8] sm:$0xff]
    %v3634 = vld [vmem:[#allocation13 + $0xe0] sm:$0xff]
    %v3635 = vld [vmem:[#allocation13 + $0xe8] sm:$0xff]
    %v3636 = vld [vmem:[#allocation13 + $0xf0] sm:$0xff]
    %v3637 = vld [vmem:[#allocation13 + $0xf8] sm:$0xff]
    %v3638 = vld [vmem:[#allocation13 + $0x100] sm:$0xff]
    %v3639 = vld [vmem:[#allocation13 + $0x108] sm:$0xff]
    %v3640 = vld [vmem:[#allocation13 + $0x110] sm:$0xff]
    %v3641 = vld [vmem:[#allocation13 + $0x118] sm:$0xff]
    %v3642 = vld [vmem:[#allocation13 + $0x120] sm:$0xff]
    %v3643 = vld [vmem:[#allocation13 + $0x128] sm:$0xff]
    %v3644 = vld [vmem:[#allocation13 + $0x130] sm:$0xff]
    %v3645 = vld [vmem:[#allocation13 + $0x138] sm:$0xff]
    %v3646 = vld [vmem:[#allocation13 + $0x140] sm:$0xff]
    %v3647 = vld [vmem:[#allocation13 + $0x148] sm:$0xff]
    %v3648 = vld [vmem:[#allocation13 + $0x150] sm:$0xff]
    %v3649 = vld [vmem:[#allocation13 + $0x158] sm:$0xff]
    %v3650 = vld [vmem:[#allocation13 + $0x160] sm:$0xff]
    %v3651 = vld [vmem:[#allocation13 + $0x168] sm:$0xff]
    %v3652 = vld [vmem:[#allocation13 + $0x170] sm:$0xff]
    %v3653 = vld [vmem:[#allocation13 + $0x178] sm:$0xff]
    %v3654 = vld [vmem:[#allocation13 + $0x180] sm:$0xff]
    %v3655 = vld [vmem:[#allocation13 + $0x188] sm:$0xff]
    %v3656 = vld [vmem:[#allocation13 + $0x190] sm:$0xff]
    %v3657 = vld [vmem:[#allocation13 + $0x198] sm:$0xff]
    %v3658 = vld [vmem:[#allocation13 + $0x1a0] sm:$0xff]
    %v3659 = vld [vmem:[#allocation13 + $0x1a8] sm:$0xff]
    %v3660 = vld [vmem:[#allocation13 + $0x1b0] sm:$0xff]
    %v3661 = vld [vmem:[#allocation13 + $0x1b8] sm:$0xff]
    %v3662 = vld [vmem:[#allocation13 + $0x1c0] sm:$0xff]
    %v3663 = vld [vmem:[#allocation13 + $0x1c8] sm:$0xff]
    %v3664 = vld [vmem:[#allocation13 + $0x1d0] sm:$0xff]
    %v3665 = vld [vmem:[#allocation13 + $0x1d8] sm:$0xff]
    %v3666 = vld [vmem:[#allocation13 + $0x1e0] sm:$0xff]
    %v3667 = vld [vmem:[#allocation13 + $0x1e8] sm:$0xff]
    %v3668 = vld [vmem:[#allocation13 + $0x1f0] sm:$0xff]
    %v3669 = vld [vmem:[#allocation13 + $0x1f8] sm:$0xff]
    %v3670 = vld [vmem:[#allocation13 + $0x200] sm:$0xff]
    %v3671 = vld [vmem:[#allocation13 + $0x208] sm:$0xff]
    %v3672 = vld [vmem:[#allocation13 + $0x210] sm:$0xff]
    %v3673 = vld [vmem:[#allocation13 + $0x218] sm:$0xff]
    %v3674 = vld [vmem:[#allocation13 + $0x220] sm:$0xff]
    %v3675 = vld [vmem:[#allocation13 + $0x228] sm:$0xff]
    %v3676 = vld [vmem:[#allocation13 + $0x230] sm:$0xff]
    %v3677 = vld [vmem:[#allocation13 + $0x238] sm:$0xff]
    %v3678 = vld [vmem:[#allocation13 + $0x240] sm:$0xff]
    %v3679 = vld [vmem:[#allocation13 + $0x248] sm:$0xff]
    %v3680 = vld [vmem:[#allocation13 + $0x250] sm:$0xff]
    %v3681 = vld [vmem:[#allocation13 + $0x258] sm:$0xff]
    %v3682 = vld [vmem:[#allocation13 + $0x260] sm:$0xff]
    %v3683 = vld [vmem:[#allocation13 + $0x268] sm:$0xff]
    %v3684 = vld [vmem:[#allocation13 + $0x270] sm:$0xff]
    %v3685 = vld [vmem:[#allocation13 + $0x278] sm:$0xff]
    %v3686 = vld [vmem:[#allocation13 + $0x280] sm:$0xff]
    %v3687 = vld [vmem:[#allocation13 + $0x288] sm:$0xff]
    %v3688 = vld [vmem:[#allocation13 + $0x290] sm:$0xff]
    %v3689 = vld [vmem:[#allocation13 + $0x298] sm:$0xff]
    %v3690 = vld [vmem:[#allocation13 + $0x2a0] sm:$0xff]
    %v3691 = vld [vmem:[#allocation13 + $0x2a8] sm:$0xff]
    %v3692 = vld [vmem:[#allocation13 + $0x2b0] sm:$0xff]
    %v3693 = vld [vmem:[#allocation13 + $0x2b8] sm:$0xff]
    %v3694 = vld [vmem:[#allocation13 + $0x2c0] sm:$0xff]
    %v3695 = vld [vmem:[#allocation13 + $0x2c8] sm:$0xff]
    %v3696 = vld [vmem:[#allocation13 + $0x2d0] sm:$0xff]
    %v3697 = vld [vmem:[#allocation13 + $0x2d8] sm:$0xff]
    %v3698 = vld [vmem:[#allocation13 + $0x2e0] sm:$0xff]
    %v3699 = vld [vmem:[#allocation13 + $0x2e8] sm:$0xff]
    %v3700 = vld [vmem:[#allocation13 + $0x2f0] sm:$0xff]
    %v3701 = vld [vmem:[#allocation13 + $0x2f8] sm:$0xff]
    %v3702 = vld [vmem:[#allocation13 + $0x300] sm:$0xff]
    %v3703 = vld [vmem:[#allocation13 + $0x308] sm:$0xff]
    %v3704 = vld [vmem:[#allocation13 + $0x310] sm:$0xff]
    %v3705 = vld [vmem:[#allocation13 + $0x318] sm:$0xff]
    %v3706 = vld [vmem:[#allocation13 + $0x320] sm:$0xff]
    %v3707 = vld [vmem:[#allocation13 + $0x328] sm:$0xff]
    %v3708 = vld [vmem:[#allocation13 + $0x330] sm:$0xff]
    %v3709 = vld [vmem:[#allocation13 + $0x338] sm:$0xff]
    %v3710 = vld [vmem:[#allocation13 + $0x340] sm:$0xff]
    %v3711 = vld [vmem:[#allocation13 + $0x348] sm:$0xff]
    %v3712 = vld [vmem:[#allocation13 + $0x350] sm:$0xff]
    %v3713 = vld [vmem:[#allocation13 + $0x358] sm:$0xff]
    %v3714 = vld [vmem:[#allocation13 + $0x360] sm:$0xff]
    %v3715 = vld [vmem:[#allocation13 + $0x368] sm:$0xff]
    %v3716 = vld [vmem:[#allocation13 + $0x370] sm:$0xff]
    %v3717 = vld [vmem:[#allocation13 + $0x378] sm:$0xff]
    %v3718 = vld [vmem:[#allocation13 + $0x380] sm:$0xff]
    %v3719 = vld [vmem:[#allocation13 + $0x388] sm:$0xff]
    %v3720 = vld [vmem:[#allocation13 + $0x390] sm:$0xff]
    %v3721 = vld [vmem:[#allocation13 + $0x398] sm:$0xff]
    %v3722 = vld [vmem:[#allocation13 + $0x3a0] sm:$0xff]
    %v3723 = vld [vmem:[#allocation13 + $0x3a8] sm:$0xff]
    %v3724 = vld [vmem:[#allocation13 + $0x3b0] sm:$0xff]
    %v3725 = vld [vmem:[#allocation13 + $0x3b8] sm:$0xff]
    %v3726 = vld [vmem:[#allocation13 + $0x3c0] sm:$0xff]
    %v3727 = vld [vmem:[#allocation13 + $0x3c8] sm:$0xff]
    %v3728 = vld [vmem:[#allocation13 + $0x3d0] sm:$0xff]
    %v3729 = vld [vmem:[#allocation13 + $0x3d8] sm:$0xff]
    %v3730 = vld [vmem:[#allocation13 + $0x3e0] sm:$0xff]
    %v3731 = vld [vmem:[#allocation13 + $0x3e8] sm:$0xff]
    %v3732 = vld [vmem:[#allocation13 + $0x3f0] sm:$0xff]
    %v3733 = vld [vmem:[#allocation13 + $0x3f8] sm:$0xff]
    %v3862 = vunpack.c.l.b16 %v3606
    %v3863 = vunpack.c.h.b16 %v3606
    %v3864 = vunpack.c.l.b16 %v3607
    %v3865 = vunpack.c.h.b16 %v3607
    %v3866 = vunpack.c.l.b16 %v3608
    %v3867 = vunpack.c.h.b16 %v3608
    %v3868 = vunpack.c.l.b16 %v3609
    %v3869 = vunpack.c.h.b16 %v3609
    %v3870 = vunpack.c.l.b16 %v3610
    %v3871 = vunpack.c.h.b16 %v3610
    %v3872 = vunpack.c.l.b16 %v3611
    %v3873 = vunpack.c.h.b16 %v3611
    %v3874 = vunpack.c.l.b16 %v3612
    %v3875 = vunpack.c.h.b16 %v3612
    %v3876 = vunpack.c.l.b16 %v3613
    %v3877 = vunpack.c.h.b16 %v3613
    %v3878 = vunpack.c.l.b16 %v3614
    %v3879 = vunpack.c.h.b16 %v3614
    %v3880 = vunpack.c.l.b16 %v3615
    %v3881 = vunpack.c.h.b16 %v3615
    %v3882 = vunpack.c.l.b16 %v3616
    %v3883 = vunpack.c.h.b16 %v3616
    %v3884 = vunpack.c.l.b16 %v3617
    %v3885 = vunpack.c.h.b16 %v3617
    %v3886 = vunpack.c.l.b16 %v3618
    %v3887 = vunpack.c.h.b16 %v3618
    %v3888 = vunpack.c.l.b16 %v3619
    %v3889 = vunpack.c.h.b16 %v3619
    %v3890 = vunpack.c.l.b16 %v3620
    %v3891 = vunpack.c.h.b16 %v3620
    %v3892 = vunpack.c.l.b16 %v3621
    %v3893 = vunpack.c.h.b16 %v3621
    %v3894 = vunpack.c.l.b16 %v3622
    %v3895 = vunpack.c.h.b16 %v3622
    %v3896 = vunpack.c.l.b16 %v3623
    %v3897 = vunpack.c.h.b16 %v3623
    %v3898 = vunpack.c.l.b16 %v3624
    %v3899 = vunpack.c.h.b16 %v3624
    %v3900 = vunpack.c.l.b16 %v3625
    %v3901 = vunpack.c.h.b16 %v3625
    %v3902 = vunpack.c.l.b16 %v3626
    %v3903 = vunpack.c.h.b16 %v3626
    %v3904 = vunpack.c.l.b16 %v3627
    %v3905 = vunpack.c.h.b16 %v3627
    %v3906 = vunpack.c.l.b16 %v3628
    %v3907 = vunpack.c.h.b16 %v3628
    %v3908 = vunpack.c.l.b16 %v3629
    %v3909 = vunpack.c.h.b16 %v3629
    %v3910 = vunpack.c.l.b16 %v3630
    %v3911 = vunpack.c.h.b16 %v3630
    %v3912 = vunpack.c.l.b16 %v3631
    %v3913 = vunpack.c.h.b16 %v3631
    %v3914 = vunpack.c.l.b16 %v3632
    %v3915 = vunpack.c.h.b16 %v3632
    %v3916 = vunpack.c.l.b16 %v3633
    %v3917 = vunpack.c.h.b16 %v3633
    %v3918 = vunpack.c.l.b16 %v3634
    %v3919 = vunpack.c.h.b16 %v3634
    %v3920 = vunpack.c.l.b16 %v3635
    %v3921 = vunpack.c.h.b16 %v3635
    %v3922 = vunpack.c.l.b16 %v3636
    %v3923 = vunpack.c.h.b16 %v3636
    %v3924 = vunpack.c.l.b16 %v3637
    %v3925 = vunpack.c.h.b16 %v3637
    %v3926 = vunpack.c.l.b16 %v3638
    %v3927 = vunpack.c.h.b16 %v3638
    %v3928 = vunpack.c.l.b16 %v3639
    %v3929 = vunpack.c.h.b16 %v3639
    %v3930 = vunpack.c.l.b16 %v3640
    %v3931 = vunpack.c.h.b16 %v3640
    %v3932 = vunpack.c.l.b16 %v3641
    %v3933 = vunpack.c.h.b16 %v3641
    %v3934 = vunpack.c.l.b16 %v3642
    %v3935 = vunpack.c.h.b16 %v3642
    %v3936 = vunpack.c.l.b16 %v3643
    %v3937 = vunpack.c.h.b16 %v3643
    %v3938 = vunpack.c.l.b16 %v3644
    %v3939 = vunpack.c.h.b16 %v3644
    %v3940 = vunpack.c.l.b16 %v3645
    %v3941 = vunpack.c.h.b16 %v3645
    %v3942 = vunpack.c.l.b16 %v3646
    %v3943 = vunpack.c.h.b16 %v3646
    %v3944 = vunpack.c.l.b16 %v3647
    %v3945 = vunpack.c.h.b16 %v3647
    %v3946 = vunpack.c.l.b16 %v3648
    %v3947 = vunpack.c.h.b16 %v3648
    %v3948 = vunpack.c.l.b16 %v3649
    %v3949 = vunpack.c.h.b16 %v3649
    %v3950 = vunpack.c.l.b16 %v3650
    %v3951 = vunpack.c.h.b16 %v3650
    %v3952 = vunpack.c.l.b16 %v3651
    %v3953 = vunpack.c.h.b16 %v3651
    %v3954 = vunpack.c.l.b16 %v3652
    %v3955 = vunpack.c.h.b16 %v3652
    %v3956 = vunpack.c.l.b16 %v3653
    %v3957 = vunpack.c.h.b16 %v3653
    %v3958 = vunpack.c.l.b16 %v3654
    %v3959 = vunpack.c.h.b16 %v3654
    %v3960 = vunpack.c.l.b16 %v3655
    %v3961 = vunpack.c.h.b16 %v3655
    %v3962 = vunpack.c.l.b16 %v3656
    %v3963 = vunpack.c.h.b16 %v3656
    %v3964 = vunpack.c.l.b16 %v3657
    %v3965 = vunpack.c.h.b16 %v3657
    %v3966 = vunpack.c.l.b16 %v3658
    %v3967 = vunpack.c.h.b16 %v3658
    %v3968 = vunpack.c.l.b16 %v3659
    %v3969 = vunpack.c.h.b16 %v3659
    %v3970 = vunpack.c.l.b16 %v3660
    %v3971 = vunpack.c.h.b16 %v3660
    %v3972 = vunpack.c.l.b16 %v3661
    %v3973 = vunpack.c.h.b16 %v3661
    %v3974 = vunpack.c.l.b16 %v3662
    %v3975 = vunpack.c.h.b16 %v3662
    %v3976 = vunpack.c.l.b16 %v3663
    %v3977 = vunpack.c.h.b16 %v3663
    %v3978 = vunpack.c.l.b16 %v3664
    %v3979 = vunpack.c.h.b16 %v3664
    %v3980 = vunpack.c.l.b16 %v3665
    %v3981 = vunpack.c.h.b16 %v3665
    %v3982 = vunpack.c.l.b16 %v3666
    %v3983 = vunpack.c.h.b16 %v3666
    %v3984 = vunpack.c.l.b16 %v3667
    %v3985 = vunpack.c.h.b16 %v3667
    %v3986 = vunpack.c.l.b16 %v3668
    %v3987 = vunpack.c.h.b16 %v3668
    %v3988 = vunpack.c.l.b16 %v3669
    %v3989 = vunpack.c.h.b16 %v3669
    %v3990 = vunpack.c.l.b16 %v3670
    %v3991 = vunpack.c.h.b16 %v3670
    %v3992 = vunpack.c.l.b16 %v3671
    %v3993 = vunpack.c.h.b16 %v3671
    %v3994 = vunpack.c.l.b16 %v3672
    %v3995 = vunpack.c.h.b16 %v3672
    %v3996 = vunpack.c.l.b16 %v3673
    %v3997 = vunpack.c.h.b16 %v3673
    %v3998 = vunpack.c.l.b16 %v3674
    %v3999 = vunpack.c.h.b16 %v3674
    %v4000 = vunpack.c.l.b16 %v3675
    %v4001 = vunpack.c.h.b16 %v3675
    %v4002 = vunpack.c.l.b16 %v3676
    %v4003 = vunpack.c.h.b16 %v3676
    %v4004 = vunpack.c.l.b16 %v3677
    %v4005 = vunpack.c.h.b16 %v3677
    %v4006 = vunpack.c.l.b16 %v3678
    %v4007 = vunpack.c.h.b16 %v3678
    %v4008 = vunpack.c.l.b16 %v3679
    %v4009 = vunpack.c.h.b16 %v3679
    %v4010 = vunpack.c.l.b16 %v3680
    %v4011 = vunpack.c.h.b16 %v3680
    %v4012 = vunpack.c.l.b16 %v3681
    %v4013 = vunpack.c.h.b16 %v3681
    %v4014 = vunpack.c.l.b16 %v3682
    %v4015 = vunpack.c.h.b16 %v3682
    %v4016 = vunpack.c.l.b16 %v3683
    %v4017 = vunpack.c.h.b16 %v3683
    %v4018 = vunpack.c.l.b16 %v3684
    %v4019 = vunpack.c.h.b16 %v3684
    %v4020 = vunpack.c.l.b16 %v3685
    %v4021 = vunpack.c.h.b16 %v3685
    %v4022 = vunpack.c.l.b16 %v3686
    %v4023 = vunpack.c.h.b16 %v3686
    %v4024 = vunpack.c.l.b16 %v3687
    %v4025 = vunpack.c.h.b16 %v3687
    %v4026 = vunpack.c.l.b16 %v3688
    %v4027 = vunpack.c.h.b16 %v3688
    %v4028 = vunpack.c.l.b16 %v3689
    %v4029 = vunpack.c.h.b16 %v3689
    %v4030 = vunpack.c.l.b16 %v3690
    %v4031 = vunpack.c.h.b16 %v3690
    %v4032 = vunpack.c.l.b16 %v3691
    %v4033 = vunpack.c.h.b16 %v3691
    %v4034 = vunpack.c.l.b16 %v3692
    %v4035 = vunpack.c.h.b16 %v3692
    %v4036 = vunpack.c.l.b16 %v3693
    %v4037 = vunpack.c.h.b16 %v3693
    %v4038 = vunpack.c.l.b16 %v3694
    %v4039 = vunpack.c.h.b16 %v3694
    %v4040 = vunpack.c.l.b16 %v3695
    %v4041 = vunpack.c.h.b16 %v3695
    %v4042 = vunpack.c.l.b16 %v3696
    %v4043 = vunpack.c.h.b16 %v3696
    %v4044 = vunpack.c.l.b16 %v3697
    %v4045 = vunpack.c.h.b16 %v3697
    %v4046 = vunpack.c.l.b16 %v3698
    %v4047 = vunpack.c.h.b16 %v3698
    %v4048 = vunpack.c.l.b16 %v3699
    %v4049 = vunpack.c.h.b16 %v3699
    %v4050 = vunpack.c.l.b16 %v3700
    %v4051 = vunpack.c.h.b16 %v3700
    %v4052 = vunpack.c.l.b16 %v3701
    %v4053 = vunpack.c.h.b16 %v3701
    %v4054 = vunpack.c.l.b16 %v3702
    %v4055 = vunpack.c.h.b16 %v3702
    %v4056 = vunpack.c.l.b16 %v3703
    %v4057 = vunpack.c.h.b16 %v3703
    %v4058 = vunpack.c.l.b16 %v3704
    %v4059 = vunpack.c.h.b16 %v3704
    %v4060 = vunpack.c.l.b16 %v3705
    %v4061 = vunpack.c.h.b16 %v3705
    %v4062 = vunpack.c.l.b16 %v3706
    %v4063 = vunpack.c.h.b16 %v3706
    %v4064 = vunpack.c.l.b16 %v3707
    %v4065 = vunpack.c.h.b16 %v3707
    %v4066 = vunpack.c.l.b16 %v3708
    %v4067 = vunpack.c.h.b16 %v3708
    %v4068 = vunpack.c.l.b16 %v3709
    %v4069 = vunpack.c.h.b16 %v3709
    %v4070 = vunpack.c.l.b16 %v3710
    %v4071 = vunpack.c.h.b16 %v3710
    %v4072 = vunpack.c.l.b16 %v3711
    %v4073 = vunpack.c.h.b16 %v3711
    %v4074 = vunpack.c.l.b16 %v3712
    %v4075 = vunpack.c.h.b16 %v3712
    %v4076 = vunpack.c.l.b16 %v3713
    %v4077 = vunpack.c.h.b16 %v3713
    %v4078 = vunpack.c.l.b16 %v3714
    %v4079 = vunpack.c.h.b16 %v3714
    %v4080 = vunpack.c.l.b16 %v3715
    %v4081 = vunpack.c.h.b16 %v3715
    %v4082 = vunpack.c.l.b16 %v3716
    %v4083 = vunpack.c.h.b16 %v3716
    %v4084 = vunpack.c.l.b16 %v3717
    %v4085 = vunpack.c.h.b16 %v3717
    %v4086 = vunpack.c.l.b16 %v3718
    %v4087 = vunpack.c.h.b16 %v3718
    %v4088 = vunpack.c.l.b16 %v3719
    %v4089 = vunpack.c.h.b16 %v3719
    %v4090 = vunpack.c.l.b16 %v3720
    %v4091 = vunpack.c.h.b16 %v3720
    %v4092 = vunpack.c.l.b16 %v3721
    %v4093 = vunpack.c.h.b16 %v3721
    %v4094 = vunpack.c.l.b16 %v3722
    %v4095 = vunpack.c.h.b16 %v3722
    %v4096 = vunpack.c.l.b16 %v3723
    %v4097 = vunpack.c.h.b16 %v3723
    %v4098 = vunpack.c.l.b16 %v3724
    %v4099 = vunpack.c.h.b16 %v3724
    %v4100 = vunpack.c.l.b16 %v3725
    %v4101 = vunpack.c.h.b16 %v3725
    %v4102 = vunpack.c.l.b16 %v3726
    %v4103 = vunpack.c.h.b16 %v3726
    %v4104 = vunpack.c.l.b16 %v3727
    %v4105 = vunpack.c.h.b16 %v3727
    %v4106 = vunpack.c.l.b16 %v3728
    %v4107 = vunpack.c.h.b16 %v3728
    %v4108 = vunpack.c.l.b16 %v3729
    %v4109 = vunpack.c.h.b16 %v3729
    %v4110 = vunpack.c.l.b16 %v3730
    %v4111 = vunpack.c.h.b16 %v3730
    %v4112 = vunpack.c.l.b16 %v3731
    %v4113 = vunpack.c.h.b16 %v3731
    %v4114 = vunpack.c.l.b16 %v3732
    %v4115 = vunpack.c.h.b16 %v3732
    %v4116 = vunpack.c.l.b16 %v3733
    %v4117 = vunpack.c.h.b16 %v3733
    %v4118 = vpack.c.b16 %v3878, %v3862
    %v4119 = vpack.c.b16 %v3879, %v3863
    %v4120 = vpack.c.b16 %v3880, %v3864
    %v4121 = vpack.c.b16 %v3881, %v3865
    %v4122 = vpack.c.b16 %v3882, %v3866
    %v4123 = vpack.c.b16 %v3883, %v3867
    %v4124 = vpack.c.b16 %v3884, %v3868
    %v4125 = vpack.c.b16 %v3885, %v3869
    %v4126 = vpack.c.b16 %v3886, %v3870
    %v4127 = vpack.c.b16 %v3887, %v3871
    %v4128 = vpack.c.b16 %v3888, %v3872
    %v4129 = vpack.c.b16 %v3889, %v3873
    %v4130 = vpack.c.b16 %v3890, %v3874
    %v4131 = vpack.c.b16 %v3891, %v3875
    %v4132 = vpack.c.b16 %v3892, %v3876
    %v4133 = vpack.c.b16 %v3893, %v3877
    %v4134 = vpack.c.b16 %v3910, %v3894
    %v4135 = vpack.c.b16 %v3911, %v3895
    %v4136 = vpack.c.b16 %v3912, %v3896
    %v4137 = vpack.c.b16 %v3913, %v3897
    %v4138 = vpack.c.b16 %v3914, %v3898
    %v4139 = vpack.c.b16 %v3915, %v3899
    %v4140 = vpack.c.b16 %v3916, %v3900
    %v4141 = vpack.c.b16 %v3917, %v3901
    %v4142 = vpack.c.b16 %v3918, %v3902
    %v4143 = vpack.c.b16 %v3919, %v3903
    %v4144 = vpack.c.b16 %v3920, %v3904
    %v4145 = vpack.c.b16 %v3921, %v3905
    %v4146 = vpack.c.b16 %v3922, %v3906
    %v4147 = vpack.c.b16 %v3923, %v3907
    %v4148 = vpack.c.b16 %v3924, %v3908
    %v4149 = vpack.c.b16 %v3925, %v3909
    %v4150 = vpack.c.b16 %v3942, %v3926
    %v4151 = vpack.c.b16 %v3943, %v3927
    %v4152 = vpack.c.b16 %v3944, %v3928
    %v4153 = vpack.c.b16 %v3945, %v3929
    %v4154 = vpack.c.b16 %v3946, %v3930
    %v4155 = vpack.c.b16 %v3947, %v3931
    %v4156 = vpack.c.b16 %v3948, %v3932
    %v4157 = vpack.c.b16 %v3949, %v3933
    %v4158 = vpack.c.b16 %v3950, %v3934
    %v4159 = vpack.c.b16 %v3951, %v3935
    %v4160 = vpack.c.b16 %v3952, %v3936
    %v4161 = vpack.c.b16 %v3953, %v3937
    %v4162 = vpack.c.b16 %v3954, %v3938
    %v4163 = vpack.c.b16 %v3955, %v3939
    %v4164 = vpack.c.b16 %v3956, %v3940
    %v4165 = vpack.c.b16 %v3957, %v3941
    %v4166 = vpack.c.b16 %v3974, %v3958
    %v4167 = vpack.c.b16 %v3975, %v3959
    %v4168 = vpack.c.b16 %v3976, %v3960
    %v4169 = vpack.c.b16 %v3977, %v3961
    %v4170 = vpack.c.b16 %v3978, %v3962
    %v4171 = vpack.c.b16 %v3979, %v3963
    %v4172 = vpack.c.b16 %v3980, %v3964
    %v4173 = vpack.c.b16 %v3981, %v3965
    %v4174 = vpack.c.b16 %v3982, %v3966
    %v4175 = vpack.c.b16 %v3983, %v3967
    %v4176 = vpack.c.b16 %v3984, %v3968
    %v4177 = vpack.c.b16 %v3985, %v3969
    %v4178 = vpack.c.b16 %v3986, %v3970
    %v4179 = vpack.c.b16 %v3987, %v3971
    %v4180 = vpack.c.b16 %v3988, %v3972
    %v4181 = vpack.c.b16 %v3989, %v3973
    %v4182 = vpack.c.b16 %v4006, %v3990
    %v4183 = vpack.c.b16 %v4007, %v3991
    %v4184 = vpack.c.b16 %v4008, %v3992
    %v4185 = vpack.c.b16 %v4009, %v3993
    %v4186 = vpack.c.b16 %v4010, %v3994
    %v4187 = vpack.c.b16 %v4011, %v3995
    %v4188 = vpack.c.b16 %v4012, %v3996
    %v4189 = vpack.c.b16 %v4013, %v3997
    %v4190 = vpack.c.b16 %v4014, %v3998
    %v4191 = vpack.c.b16 %v4015, %v3999
    %v4192 = vpack.c.b16 %v4016, %v4000
    %v4193 = vpack.c.b16 %v4017, %v4001
    %v4194 = vpack.c.b16 %v4018, %v4002
    %v4195 = vpack.c.b16 %v4019, %v4003
    %v4196 = vpack.c.b16 %v4020, %v4004
    %v4197 = vpack.c.b16 %v4021, %v4005
    %v4198 = vpack.c.b16 %v4038, %v4022
    %v4199 = vpack.c.b16 %v4039, %v4023
    %v4200 = vpack.c.b16 %v4040, %v4024
    %v4201 = vpack.c.b16 %v4041, %v4025
    %v4202 = vpack.c.b16 %v4042, %v4026
    %v4203 = vpack.c.b16 %v4043, %v4027
    %v4204 = vpack.c.b16 %v4044, %v4028
    %v4205 = vpack.c.b16 %v4045, %v4029
    %v4206 = vpack.c.b16 %v4046, %v4030
    %v4207 = vpack.c.b16 %v4047, %v4031
    %v4208 = vpack.c.b16 %v4048, %v4032
    %v4209 = vpack.c.b16 %v4049, %v4033
    %v4210 = vpack.c.b16 %v4050, %v4034
    %v4211 = vpack.c.b16 %v4051, %v4035
    %v4212 = vpack.c.b16 %v4052, %v4036
    %v4213 = vpack.c.b16 %v4053, %v4037
    %v4214 = vpack.c.b16 %v4070, %v4054
    %v4215 = vpack.c.b16 %v4071, %v4055
    %v4216 = vpack.c.b16 %v4072, %v4056
    %v4217 = vpack.c.b16 %v4073, %v4057
    %v4218 = vpack.c.b16 %v4074, %v4058
    %v4219 = vpack.c.b16 %v4075, %v4059
    %v4220 = vpack.c.b16 %v4076, %v4060
    %v4221 = vpack.c.b16 %v4077, %v4061
    %v4222 = vpack.c.b16 %v4078, %v4062
    %v4223 = vpack.c.b16 %v4079, %v4063
    %v4224 = vpack.c.b16 %v4080, %v4064
    %v4225 = vpack.c.b16 %v4081, %v4065
    %v4226 = vpack.c.b16 %v4082, %v4066
    %v4227 = vpack.c.b16 %v4083, %v4067
    %v4228 = vpack.c.b16 %v4084, %v4068
    %v4229 = vpack.c.b16 %v4085, %v4069
    %v4230 = vpack.c.b16 %v4102, %v4086
    %v4231 = vpack.c.b16 %v4103, %v4087
    %v4232 = vpack.c.b16 %v4104, %v4088
    %v4233 = vpack.c.b16 %v4105, %v4089
    %v4234 = vpack.c.b16 %v4106, %v4090
    %v4235 = vpack.c.b16 %v4107, %v4091
    %v4236 = vpack.c.b16 %v4108, %v4092
    %v4237 = vpack.c.b16 %v4109, %v4093
    %v4238 = vpack.c.b16 %v4110, %v4094
    %v4239 = vpack.c.b16 %v4111, %v4095
    %v4240 = vpack.c.b16 %v4112, %v4096
    %v4241 = vpack.c.b16 %v4113, %v4097
    %v4242 = vpack.c.b16 %v4114, %v4098
    %v4243 = vpack.c.b16 %v4115, %v4099
    %v4244 = vpack.c.b16 %v4116, %v4100
    %v4245 = vpack.c.b16 %v4117, %v4101
    %4374 = vmatprep.subr.bf16.mxu0 %v4119
    %4375 = vmatpush1.bf16.msra.mxu0 %v4118
    %4376 = vmatprep.subr.bf16.mxu0 %v4135
    %4377 = vmatpush1.bf16.msra.mxu0 %v4134
    %4378 = vmatprep.subr.bf16.mxu0 %v4151
    %4379 = vmatpush1.bf16.msra.mxu0 %v4150
    %4380 = vmatprep.subr.bf16.mxu0 %v4167
    %4381 = vmatpush1.bf16.msra.mxu0 %v4166
    %4382 = vmatprep.subr.bf16.mxu0 %v4183
    %4383 = vmatpush1.bf16.msra.mxu0 %v4182
    %4384 = vmatprep.subr.bf16.mxu0 %v4199
    %4385 = vmatpush1.bf16.msra.mxu0 %v4198
    %4386 = vmatprep.subr.bf16.mxu0 %v4215
    %4387 = vmatpush1.bf16.msra.mxu0 %v4214
    %4388 = vmatprep.subr.bf16.mxu0 %v4231
    %4389 = vmatpush1.bf16.msra.mxu0 %v4230
    %4390 = vmatprep.subr.bf16.mxu0 0
    %4391 = vmatpush1.bf16.msra.mxu0 0
    %4392 = vmatprep.subr.bf16.mxu0 0
    %4393 = vmatpush1.bf16.msra.mxu0 0
    %4394 = vmatprep.subr.bf16.mxu0 0
    %4395 = vmatpush1.bf16.msra.mxu0 0
    %4396 = vmatprep.subr.bf16.mxu0 0
    %4397 = vmatpush1.bf16.msra.mxu0 0
    %4398 = vmatprep.subr.bf16.mxu0 0
    %4399 = vmatpush1.bf16.msra.mxu0 0
    %4400 = vmatprep.subr.bf16.mxu0 0
    %4401 = vmatpush1.bf16.msra.mxu0 0
    %4402 = vmatprep.subr.bf16.mxu0 0
    %4403 = vmatpush1.bf16.msra.mxu0 0
    %4404 = vmatprep.subr.bf16.mxu0 0
    %4405 = vmatpush1.bf16.msra.mxu0 0
    %4406 = vmatprep.mubr.bf16.mxu0 0
    %4407 = vmatmul.mubr.bf16.gmra.mrb[0].mxu0 %v3605
    %v4408 = vpop.f32.mrb[0].mxu0
    %v4409 = vadd.f32 0.0, %v4408
    %v4410 = vpop.f32.mrb[0].mxu0
    %v4411 = vadd.f32 0.0, %v4410
    %v4412 = vpop.f32.mrb[0].mxu0
    %v4413 = vpop.f32.mrb[0].mxu0
    %4414 = vdwg.mxu0
    %4415 = vmatprep.subr.bf16.mxu0 %v4121
    %4416 = vmatpush1.bf16.msra.mxu0 %v4120
    %4417 = vmatprep.subr.bf16.mxu0 %v4137
    %4418 = vmatpush1.bf16.msra.mxu0 %v4136
    %4419 = vmatprep.subr.bf16.mxu0 %v4153
    %4420 = vmatpush1.bf16.msra.mxu0 %v4152
    %4421 = vmatprep.subr.bf16.mxu0 %v4169
    %4422 = vmatpush1.bf16.msra.mxu0 %v4168
    %4423 = vmatprep.subr.bf16.mxu0 %v4185
    %4424 = vmatpush1.bf16.msra.mxu0 %v4184
    %4425 = vmatprep.subr.bf16.mxu0 %v4201
    %4426 = vmatpush1.bf16.msra.mxu0 %v4200
    %4427 = vmatprep.subr.bf16.mxu0 %v4217
    %4428 = vmatpush1.bf16.msra.mxu0 %v4216
    %4429 = vmatprep.subr.bf16.mxu0 %v4233
    %4430 = vmatpush1.bf16.msra.mxu0 %v4232
    %4431 = vmatprep.subr.bf16.mxu0 0
    %4432 = vmatpush1.bf16.msra.mxu0 0
    %4433 = vmatprep.subr.bf16.mxu0 0
    %4434 = vmatpush1.bf16.msra.mxu0 0
    %4435 = vmatprep.subr.bf16.mxu0 0
    %4436 = vmatpush1.bf16.msra.mxu0 0
    %4437 = vmatprep.subr.bf16.mxu0 0
    %4438 = vmatpush1.bf16.msra.mxu0 0
    %4439 = vmatprep.subr.bf16.mxu0 0
    %4440 = vmatpush1.bf16.msra.mxu0 0
    %4441 = vmatprep.subr.bf16.mxu0 0
    %4442 = vmatpush1.bf16.msra.mxu0 0
    %4443 = vmatprep.subr.bf16.mxu0 0
    %4444 = vmatpush1.bf16.msra.mxu0 0
    %4445 = vmatprep.subr.bf16.mxu0 0
    %4446 = vmatpush1.bf16.msra.mxu0 0
    %4447 = vmatprep.mubr.bf16.mxu0 0
    %4448 = vmatmul.mubr.bf16.gmra.mrb[0].mxu0 %v3605
    %v4449 = vpop.f32.mrb[0].mxu0
    %v4450 = vadd.f32 0.0, %v4449
    %v4451 = vpop.f32.mrb[0].mxu0
    %v4452 = vadd.f32 0.0, %v4451
    %v4453 = vpop.f32.mrb[0].mxu0
    %v4454 = vpop.f32.mrb[0].mxu0
    %4455 = vdwg.mxu0
    %4456 = vmatprep.subr.bf16.mxu0 %v4123
    %4457 = vmatpush1.bf16.msra.mxu0 %v4122
    %4458 = vmatprep.subr.bf16.mxu0 %v4139
    %4459 = vmatpush1.bf16.msra.mxu0 %v4138
    %4460 = vmatprep.subr.bf16.mxu0 %v4155
    %4461 = vmatpush1.bf16.msra.mxu0 %v4154
    %4462 = vmatprep.subr.bf16.mxu0 %v4171
    %4463 = vmatpush1.bf16.msra.mxu0 %v4170
    %4464 = vmatprep.subr.bf16.mxu0 %v4187
    %4465 = vmatpush1.bf16.msra.mxu0 %v4186
    %4466 = vmatprep.subr.bf16.mxu0 %v4203
    %4467 = vmatpush1.bf16.msra.mxu0 %v4202
    %4468 = vmatprep.subr.bf16.mxu0 %v4219
    %4469 = vmatpush1.bf16.msra.mxu0 %v4218
    %4470 = vmatprep.subr.bf16.mxu0 %v4235
    %4471 = vmatpush1.bf16.msra.mxu0 %v4234
    %4472 = vmatprep.subr.bf16.mxu0 0
    %4473 = vmatpush1.bf16.msra.mxu0 0
    %4474 = vmatprep.subr.bf16.mxu0 0
    %4475 = vmatpush1.bf16.msra.mxu0 0
    %4476 = vmatprep.subr.bf16.mxu0 0
    %4477 = vmatpush1.bf16.msra.mxu0 0
    %4478 = vmatprep.subr.bf16.mxu0 0
    %4479 = vmatpush1.bf16.msra.mxu0 0
    %4480 = vmatprep.subr.bf16.mxu0 0
    %4481 = vmatpush1.bf16.msra.mxu0 0
    %4482 = vmatprep.subr.bf16.mxu0 0
    %4483 = vmatpush1.bf16.msra.mxu0 0
    %4484 = vmatprep.subr.bf16.mxu0 0
    %4485 = vmatpush1.bf16.msra.mxu0 0
    %4486 = vmatprep.subr.bf16.mxu0 0
    %4487 = vmatpush1.bf16.msra.mxu0 0
    %4488 = vmatprep.mubr.bf16.mxu0 0
    %4489 = vmatmul.mubr.bf16.gmra.mrb[0].mxu0 %v3605
    %v4490 = vpop.f32.mrb[0].mxu0
    %v4491 = vadd.f32 0.0, %v4490
    %v4492 = vpop.f32.mrb[0].mxu0
    %v4493 = vadd.f32 0.0, %v4492
    %v4494 = vpop.f32.mrb[0].mxu0
    %v4495 = vpop.f32.mrb[0].mxu0
    %4496 = vdwg.mxu0
    %4497 = vmatprep.subr.bf16.mxu0 %v4125
    %4498 = vmatpush1.bf16.msra.mxu0 %v4124
    %4499 = vmatprep.subr.bf16.mxu0 %v4141
    %4500 = vmatpush1.bf16.msra.mxu0 %v4140
    %4501 = vmatprep.subr.bf16.mxu0 %v4157
    %4502 = vmatpush1.bf16.msra.mxu0 %v4156
    %4503 = vmatprep.subr.bf16.mxu0 %v4173
    %4504 = vmatpush1.bf16.msra.mxu0 %v4172
    %4505 = vmatprep.subr.bf16.mxu0 %v4189
    %4506 = vmatpush1.bf16.msra.mxu0 %v4188
    %4507 = vmatprep.subr.bf16.mxu0 %v4205
    %4508 = vmatpush1.bf16.msra.mxu0 %v4204
    %4509 = vmatprep.subr.bf16.mxu0 %v4221
    %4510 = vmatpush1.bf16.msra.mxu0 %v4220
    %4511 = vmatprep.subr.bf16.mxu0 %v4237
    %4512 = vmatpush1.bf16.msra.mxu0 %v4236
    %4513 = vmatprep.subr.bf16.mxu0 0
    %4514 = vmatpush1.bf16.msra.mxu0 0
    %4515 = vmatprep.subr.bf16.mxu0 0
    %4516 = vmatpush1.bf16.msra.mxu0 0
    %4517 = vmatprep.subr.bf16.mxu0 0
    %4518 = vmatpush1.bf16.msra.mxu0 0
    %4519 = vmatprep.subr.bf16.mxu0 0
    %4520 = vmatpush1.bf16.msra.mxu0 0
    %4521 = vmatprep.subr.bf16.mxu0 0
    %4522 = vmatpush1.bf16.msra.mxu0 0
    %4523 = vmatprep.subr.bf16.mxu0 0
    %4524 = vmatpush1.bf16.msra.mxu0 0
    %4525 = vmatprep.subr.bf16.mxu0 0
    %4526 = vmatpush1.bf16.msra.mxu0 0
    %4527 = vmatprep.subr.bf16.mxu0 0
    %4528 = vmatpush1.bf16.msra.mxu0 0
    %4529 = vmatprep.mubr.bf16.mxu0 0
    %4530 = vmatmul.mubr.bf16.gmra.mrb[0].mxu0 %v3605
    %v4531 = vpop.f32.mrb[0].mxu0
    %v4532 = vadd.f32 0.0, %v4531
    %v4533 = vpop.f32.mrb[0].mxu0
    %v4534 = vadd.f32 0.0, %v4533
    %v4535 = vpop.f32.mrb[0].mxu0
    %v4536 = vpop.f32.mrb[0].mxu0
    %4537 = vdwg.mxu0
    %4538 = vmatprep.subr.bf16.mxu0 %v4127
    %4539 = vmatpush1.bf16.msra.mxu0 %v4126
    %4540 = vmatprep.subr.bf16.mxu0 %v4143
    %4541 = vmatpush1.bf16.msra.mxu0 %v4142
    %4542 = vmatprep.subr.bf16.mxu0 %v4159
    %4543 = vmatpush1.bf16.msra.mxu0 %v4158
    %4544 = vmatprep.subr.bf16.mxu0 %v4175
    %4545 = vmatpush1.bf16.msra.mxu0 %v4174
    %4546 = vmatprep.subr.bf16.mxu0 %v4191
    %4547 = vmatpush1.bf16.msra.mxu0 %v4190
    %4548 = vmatprep.subr.bf16.mxu0 %v4207
    %4549 = vmatpush1.bf16.msra.mxu0 %v4206
    %4550 = vmatprep.subr.bf16.mxu0 %v4223
    %4551 = vmatpush1.bf16.msra.mxu0 %v4222
    %4552 = vmatprep.subr.bf16.mxu0 %v4239
    %4553 = vmatpush1.bf16.msra.mxu0 %v4238
    %4554 = vmatprep.subr.bf16.mxu0 0
    %4555 = vmatpush1.bf16.msra.mxu0 0
    %4556 = vmatprep.subr.bf16.mxu0 0
    %4557 = vmatpush1.bf16.msra.mxu0 0
    %4558 = vmatprep.subr.bf16.mxu0 0
    %4559 = vmatpush1.bf16.msra.mxu0 0
    %4560 = vmatprep.subr.bf16.mxu0 0
    %4561 = vmatpush1.bf16.msra.mxu0 0
    %4562 = vmatprep.subr.bf16.mxu0 0
    %4563 = vmatpush1.bf16.msra.mxu0 0
    %4564 = vmatprep.subr.bf16.mxu0 0
    %4565 = vmatpush1.bf16.msra.mxu0 0
    %4566 = vmatprep.subr.bf16.mxu0 0
    %4567 = vmatpush1.bf16.msra.mxu0 0
    %4568 = vmatprep.subr.bf16.mxu0 0
    %4569 = vmatpush1.bf16.msra.mxu0 0
    %4570 = vmatprep.mubr.bf16.mxu0 0
    %4571 = vmatmul.mubr.bf16.gmra.mrb[0].mxu0 %v3605
    %v4572 = vpop.f32.mrb[0].mxu0
    %v4573 = vadd.f32 0.0, %v4572
    %v4574 = vpop.f32.mrb[0].mxu0
    %v4575 = vadd.f32 0.0, %v4574
    %v4576 = vpop.f32.mrb[0].mxu0
    %v4577 = vpop.f32.mrb[0].mxu0
    %4578 = vdwg.mxu0
    %4579 = vmatprep.subr.bf16.mxu0 %v4129
    %4580 = vmatpush1.bf16.msra.mxu0 %v4128
    %4581 = vmatprep.subr.bf16.mxu0 %v4145
    %4582 = vmatpush1.bf16.msra.mxu0 %v4144
    %4583 = vmatprep.subr.bf16.mxu0 %v4161
    %4584 = vmatpush1.bf16.msra.mxu0 %v4160
    %4585 = vmatprep.subr.bf16.mxu0 %v4177
    %4586 = vmatpush1.bf16.msra.mxu0 %v4176
    %4587 = vmatprep.subr.bf16.mxu0 %v4193
    %4588 = vmatpush1.bf16.msra.mxu0 %v4192
    %4589 = vmatprep.subr.bf16.mxu0 %v4209
    %4590 = vmatpush1.bf16.msra.mxu0 %v4208
    %4591 = vmatprep.subr.bf16.mxu0 %v4225
    %4592 = vmatpush1.bf16.msra.mxu0 %v4224
    %4593 = vmatprep.subr.bf16.mxu0 %v4241
    %4594 = vmatpush1.bf16.msra.mxu0 %v4240
    %4595 = vmatprep.subr.bf16.mxu0 0
    %4596 = vmatpush1.bf16.msra.mxu0 0
    %4597 = vmatprep.subr.bf16.mxu0 0
    %4598 = vmatpush1.bf16.msra.mxu0 0
    %4599 = vmatprep.subr.bf16.mxu0 0
    %4600 = vmatpush1.bf16.msra.mxu0 0
    %4601 = vmatprep.subr.bf16.mxu0 0
    %4602 = vmatpush1.bf16.msra.mxu0 0
    %4603 = vmatprep.subr.bf16.mxu0 0
    %4604 = vmatpush1.bf16.msra.mxu0 0
    %4605 = vmatprep.subr.bf16.mxu0 0
    %4606 = vmatpush1.bf16.msra.mxu0 0
    %4607 = vmatprep.subr.bf16.mxu0 0
    %4608 = vmatpush1.bf16.msra.mxu0 0
    %4609 = vmatprep.subr.bf16.mxu0 0
    %4610 = vmatpush1.bf16.msra.mxu0 0
    %4611 = vmatprep.mubr.bf16.mxu0 0
    %4612 = vmatmul.mubr.bf16.gmra.mrb[0].mxu0 %v3605
    %v4613 = vpop.f32.mrb[0].mxu0
    %v4614 = vadd.f32 0.0, %v4613
    %v4615 = vpop.f32.mrb[0].mxu0
    %v4616 = vadd.f32 0.0, %v4615
    %v4617 = vpop.f32.mrb[0].mxu0
    %v4618 = vpop.f32.mrb[0].mxu0
    %4619 = vdwg.mxu0
    %4620 = vmatprep.subr.bf16.mxu0 %v4131
    %4621 = vmatpush1.bf16.msra.mxu0 %v4130
    %4622 = vmatprep.subr.bf16.mxu0 %v4147
    %4623 = vmatpush1.bf16.msra.mxu0 %v4146
    %4624 = vmatprep.subr.bf16.mxu0 %v4163
    %4625 = vmatpush1.bf16.msra.mxu0 %v4162
    %4626 = vmatprep.subr.bf16.mxu0 %v4179
    %4627 = vmatpush1.bf16.msra.mxu0 %v4178
    %4628 = vmatprep.subr.bf16.mxu0 %v4195
    %4629 = vmatpush1.bf16.msra.mxu0 %v4194
    %4630 = vmatprep.subr.bf16.mxu0 %v4211
    %4631 = vmatpush1.bf16.msra.mxu0 %v4210
    %4632 = vmatprep.subr.bf16.mxu0 %v4227
    %4633 = vmatpush1.bf16.msra.mxu0 %v4226
    %4634 = vmatprep.subr.bf16.mxu0 %v4243
    %4635 = vmatpush1.bf16.msra.mxu0 %v4242
    %4636 = vmatprep.subr.bf16.mxu0 0
    %4637 = vmatpush1.bf16.msra.mxu0 0
    %4638 = vmatprep.subr.bf16.mxu0 0
    %4639 = vmatpush1.bf16.msra.mxu0 0
    %4640 = vmatprep.subr.bf16.mxu0 0
    %4641 = vmatpush1.bf16.msra.mxu0 0
    %4642 = vmatprep.subr.bf16.mxu0 0
    %4643 = vmatpush1.bf16.msra.mxu0 0
    %4644 = vmatprep.subr.bf16.mxu0 0
    %4645 = vmatpush1.bf16.msra.mxu0 0
    %4646 = vmatprep.subr.bf16.mxu0 0
    %4647 = vmatpush1.bf16.msra.mxu0 0
    %4648 = vmatprep.subr.bf16.mxu0 0
    %4649 = vmatpush1.bf16.msra.mxu0 0
    %4650 = vmatprep.subr.bf16.mxu0 0
    %4651 = vmatpush1.bf16.msra.mxu0 0
    %4652 = vmatprep.mubr.bf16.mxu0 0
    %4653 = vmatmul.mubr.bf16.gmra.mrb[0].mxu0 %v3605
    %v4654 = vpop.f32.mrb[0].mxu0
    %v4655 = vadd.f32 0.0, %v4654
    %v4656 = vpop.f32.mrb[0].mxu0
    %v4657 = vadd.f32 0.0, %v4656
    %v4658 = vpop.f32.mrb[0].mxu0
    %v4659 = vpop.f32.mrb[0].mxu0
    %4660 = vdwg.mxu0
    %4661 = vmatprep.subr.bf16.mxu0 %v4133
    %4662 = vmatpush1.bf16.msra.mxu0 %v4132
    %4663 = vmatprep.subr.bf16.mxu0 %v4149
    %4664 = vmatpush1.bf16.msra.mxu0 %v4148
    %4665 = vmatprep.subr.bf16.mxu0 %v4165
    %4666 = vmatpush1.bf16.msra.mxu0 %v4164
    %4667 = vmatprep.subr.bf16.mxu0 %v4181
    %4668 = vmatpush1.bf16.msra.mxu0 %v4180
    %4669 = vmatprep.subr.bf16.mxu0 %v4197
    %4670 = vmatpush1.bf16.msra.mxu0 %v4196
    %4671 = vmatprep.subr.bf16.mxu0 %v4213
    %4672 = vmatpush1.bf16.msra.mxu0 %v4212
    %4673 = vmatprep.subr.bf16.mxu0 %v4229
    %4674 = vmatpush1.bf16.msra.mxu0 %v4228
    %4675 = vmatprep.subr.bf16.mxu0 %v4245
    %4676 = vmatpush1.bf16.msra.mxu0 %v4244
    %4677 = vmatprep.subr.bf16.mxu0 0
    %4678 = vmatpush1.bf16.msra.mxu0 0
    %4679 = vmatprep.subr.bf16.mxu0 0
    %4680 = vmatpush1.bf16.msra.mxu0 0
    %4681 = vmatprep.subr.bf16.mxu0 0
    %4682 = vmatpush1.bf16.msra.mxu0 0
    %4683 = vmatprep.subr.bf16.mxu0 0
    %4684 = vmatpush1.bf16.msra.mxu0 0
    %4685 = vmatprep.subr.bf16.mxu0 0
    %4686 = vmatpush1.bf16.msra.mxu0 0
    %4687 = vmatprep.subr.bf16.mxu0 0
    %4688 = vmatpush1.bf16.msra.mxu0 0
    %4689 = vmatprep.subr.bf16.mxu0 0
    %4690 = vmatpush1.bf16.msra.mxu0 0
    %4691 = vmatprep.subr.bf16.mxu0 0
    %4692 = vmatpush1.bf16.msra.mxu0 0
    %4693 = vmatprep.mubr.bf16.mxu0 0
    %4694 = vmatmul.mubr.bf16.gmra.mrb[0].mxu0 %v3605
    %v4695 = vpop.f32.mrb[0].mxu0
    %v4696 = vadd.f32 0.0, %v4695
    %v4697 = vpop.f32.mrb[0].mxu0
    %v4698 = vadd.f32 0.0, %v4697
    %v4699 = vpop.f32.mrb[0].mxu0
    %v4700 = vpop.f32.mrb[0].mxu0
    %4701 = vdwg.mxu0
    %v4702 = vld [vmem:[#allocation15] sm:$0x3]
    %v4703 = vld [vmem:[#allocation16] sm:$0x3]
    %v4720 = vcombine.low %v4409, %v4411
    %v4721 = vcombine.low %v4450, %v4452
    %v4722 = vcombine.low %v4491, %v4493
    %v4723 = vcombine.low %v4532, %v4534
    %v4725 = vunpack.c.l.s4 1966171168
    %v4726 = vunpack.c.0.s8 %v4725
    %v4727 = vlaneseq
    %v4728 = vshrl.u32 %v4727, 7
    %v4729 = vsub.s32 %v4726, %v4728
    %v4730 = vrot.slane %v4720, %v4729
    %v4732 = vunpack.c.l.s4 1966171168
    %v4733 = vunpack.c.0.s8 %v4732
    %v4734 = vlaneseq
    %v4735 = vshrl.u32 %v4734, 7
    %v4736 = vsub.s32 %v4733, %v4735
    %v4737 = vrot.slane %v4721, %v4736
    %v4739 = vunpack.c.l.s4 1966171168
    %v4740 = vunpack.c.0.s8 %v4739
    %v4741 = vlaneseq
    %v4742 = vshrl.u32 %v4741, 7
    %v4743 = vsub.s32 %v4740, %v4742
    %v4744 = vrot.slane %v4722, %v4743
    %v4746 = vunpack.c.l.s4 1966171168
    %v4747 = vunpack.c.0.s8 %v4746
    %v4748 = vlaneseq
    %v4749 = vshrl.u32 %v4748, 7
    %v4750 = vsub.s32 %v4747, %v4749
    %v4751 = vrot.slane %v4723, %v4750
    %v4752 = vcombine.low %v4730, %v4737
    %v4753 = vcombine.high %v4730, %v4737
    %v4754 = vcombine.low %v4744, %v4751
    %v4755 = vcombine.high %v4744, %v4751
    %v4757 = vunpack.c.l.s4 1966171168
    %v4758 = vunpack.c.0.s8 %v4757
    %v4759 = vlaneseq
    %v4760 = vshrl.u32 %v4759, 7
    %v4761 = vsub.s32 %v4758, %v4760
    %v4762 = vrot.slane %v4752, %v4761
    %v4764 = vunpack.c.l.s4 1966171168
    %v4765 = vunpack.c.0.s8 %v4764
    %v4766 = vlaneseq
    %v4767 = vshrl.u32 %v4766, 7
    %v4768 = vsub.s32 %v4765, %v4767
    %v4769 = vrot.slane %v4753, %v4768
    %v4771 = vunpack.c.l.s4 1966171168
    %v4772 = vunpack.c.0.s8 %v4771
    %v4773 = vlaneseq
    %v4774 = vshrl.u32 %v4773, 7
    %v4775 = vsub.s32 %v4772, %v4774
    %v4776 = vrot.slane %v4754, %v4775
    %v4778 = vunpack.c.l.s4 1966171168
    %v4779 = vunpack.c.0.s8 %v4778
    %v4780 = vlaneseq
    %v4781 = vshrl.u32 %v4780, 7
    %v4782 = vsub.s32 %v4779, %v4781
    %v4783 = vrot.slane %v4755, %v4782
    %v4784 = vcombine.low %v4762, %v4776
    %v4785 = vcombine.low %v4769, %v4783
    %v4786 = vcombine.low %v4573, %v4575
    %v4787 = vcombine.low %v4614, %v4616
    %v4788 = vcombine.low %v4655, %v4657
    %v4789 = vcombine.low %v4696, %v4698
    %v4791 = vunpack.c.l.s4 1966171168
    %v4792 = vunpack.c.0.s8 %v4791
    %v4793 = vlaneseq
    %v4794 = vshrl.u32 %v4793, 7
    %v4795 = vsub.s32 %v4792, %v4794
    %v4796 = vrot.slane %v4786, %v4795
    %v4798 = vunpack.c.l.s4 1966171168
    %v4799 = vunpack.c.0.s8 %v4798
    %v4800 = vlaneseq
    %v4801 = vshrl.u32 %v4800, 7
    %v4802 = vsub.s32 %v4799, %v4801
    %v4803 = vrot.slane %v4787, %v4802
    %v4805 = vunpack.c.l.s4 1966171168
    %v4806 = vunpack.c.0.s8 %v4805
    %v4807 = vlaneseq
    %v4808 = vshrl.u32 %v4807, 7
    %v4809 = vsub.s32 %v4806, %v4808
    %v4810 = vrot.slane %v4788, %v4809
    %v4812 = vunpack.c.l.s4 1966171168
    %v4813 = vunpack.c.0.s8 %v4812
    %v4814 = vlaneseq
    %v4815 = vshrl.u32 %v4814, 7
    %v4816 = vsub.s32 %v4813, %v4815
    %v4817 = vrot.slane %v4789, %v4816
    %v4818 = vcombine.low %v4796, %v4803
    %v4819 = vcombine.high %v4796, %v4803
    %v4820 = vcombine.low %v4810, %v4817
    %v4821 = vcombine.high %v4810, %v4817
    %v4823 = vunpack.c.l.s4 1966171168
    %v4824 = vunpack.c.0.s8 %v4823
    %v4825 = vlaneseq
    %v4826 = vshrl.u32 %v4825, 7
    %v4827 = vsub.s32 %v4824, %v4826
    %v4828 = vrot.slane %v4818, %v4827
    %v4830 = vunpack.c.l.s4 1966171168
    %v4831 = vunpack.c.0.s8 %v4830
    %v4832 = vlaneseq
    %v4833 = vshrl.u32 %v4832, 7
    %v4834 = vsub.s32 %v4831, %v4833
    %v4835 = vrot.slane %v4819, %v4834
    %v4837 = vunpack.c.l.s4 1966171168
    %v4838 = vunpack.c.0.s8 %v4837
    %v4839 = vlaneseq
    %v4840 = vshrl.u32 %v4839, 7
    %v4841 = vsub.s32 %v4838, %v4840
    %v4842 = vrot.slane %v4820, %v4841
    %v4844 = vunpack.c.l.s4 1966171168
    %v4845 = vunpack.c.0.s8 %v4844
    %v4846 = vlaneseq
    %v4847 = vshrl.u32 %v4846, 7
    %v4848 = vsub.s32 %v4845, %v4847
    %v4849 = vrot.slane %v4821, %v4848
    %v4850 = vcombine.low %v4828, %v4842
    %v4851 = vcombine.low %v4835, %v4849
    %v4857 = vunpack.c.l.s4 1966171168
    %v4858 = vunpack.c.0.s8 %v4857
    %v4859 = vlaneseq
    %v4860 = vshrl.u32 %v4859, 7
    %v4861 = vsub.s32 %v4858, %v4860
    %v4862 = vrot.slane %v4784, %v4861
    %v4864 = vunpack.c.l.s4 1966171168
    %v4865 = vunpack.c.0.s8 %v4864
    %v4866 = vlaneseq
    %v4867 = vshrl.u32 %v4866, 7
    %v4868 = vsub.s32 %v4865, %v4867
    %v4869 = vrot.slane %v4850, %v4868
    %v4871 = vunpack.c.l.s4 1966171168
    %v4872 = vunpack.c.0.s8 %v4871
    %v4873 = vlaneseq
    %v4874 = vshrl.u32 %v4873, 7
    %v4875 = vsub.s32 %v4872, %v4874
    %v4876 = vrot.slane %v4785, %v4875
    %v4878 = vunpack.c.l.s4 1966171168
    %v4879 = vunpack.c.0.s8 %v4878
    %v4880 = vlaneseq
    %v4881 = vshrl.u32 %v4880, 7
    %v4882 = vsub.s32 %v4879, %v4881
    %v4883 = vrot.slane %v4851, %v4882
    %v4888 = vcombine.low %v4862, %v4869
    %v4889 = vcombine.high %v4862, %v4869
    %v4890 = vcombine.low %v4876, %v4883
    %v4891 = vcombine.high %v4876, %v4883
    %v4896 = vadd.f32 %v4888, %v4890
    %v4897 = vrot.slane %v4896, 4
    %v4898 = vadd.f32 %v4896, %v4897
    %v4899 = vrot.slane %v4898, 2
    %v4900 = vadd.f32 %v4898, %v4899
    %v4901 = vrot.slane %v4900, 1
    %v4902 = vadd.f32 %v4900, %v4901
    %v4903 = vadd.f32 %v4889, %v4891
    %v4904 = vrot.slane %v4903, 4
    %v4905 = vadd.f32 %v4903, %v4904
    %v4906 = vrot.slane %v4905, 2
    %v4907 = vadd.f32 %v4905, %v4906
    %v4908 = vrot.slane %v4907, 1
    %v4909 = vadd.f32 %v4907, %v4908
    %v4910 = vmul.f32 %v4902, %v2015
    %v4911 = vmul.f32 %v4909, %v2015
    %v4914 = vcombine.low %v4910, %v4911
    %v4915 = vcombine.high %v4910, %v4911
    %v4918 = vsub.f32 %v4862, %v4914
    %v4919 = vsub.f32 %v4869, %v4915
    %v4920 = vsub.f32 %v4876, %v4914
    %v4921 = vsub.f32 %v4883, %v4915
    %v4922 = vmul.f32 %v4918, %v4918
    %v4923 = vmul.f32 %v4919, %v4919
    %v4924 = vmul.f32 %v4920, %v4920
    %v4925 = vmul.f32 %v4921, %v4921
    %v4930 = vcombine.low %v4922, %v4923
    %v4931 = vcombine.high %v4922, %v4923
    %v4932 = vcombine.low %v4924, %v4925
    %v4933 = vcombine.high %v4924, %v4925
    %v4938 = vadd.f32 %v4930, %v4932
    %v4939 = vrot.slane %v4938, 4
    %v4940 = vadd.f32 %v4938, %v4939
    %v4941 = vrot.slane %v4940, 2
    %v4942 = vadd.f32 %v4940, %v4941
    %v4943 = vrot.slane %v4942, 1
    %v4944 = vadd.f32 %v4942, %v4943
    %v4945 = vadd.f32 %v4931, %v4933
    %v4946 = vrot.slane %v4945, 4
    %v4947 = vadd.f32 %v4945, %v4946
    %v4948 = vrot.slane %v4947, 2
    %v4949 = vadd.f32 %v4947, %v4948
    %v4950 = vrot.slane %v4949, 1
    %v4951 = vadd.f32 %v4949, %v4950
    %v4952 = vmul.f32 %v4944, %v2015
    %v4953 = vmul.f32 %v4951, %v2015
    %v4954 = vadd.f32 %v4952, 1e-05
    %v4955 = vadd.f32 %v4953, 1e-05
    %v4956 = vrsqrt.pop %v4954
    %v4957 = vrsqrt.pop %v4955
    %v4960 = vcombine.low %v4956, %v4957
    %v4961 = vcombine.high %v4956, %v4957
    %v4964 = vmul.f32 %v4918, %v4960
    %v4965 = vmul.f32 %v4919, %v4961
    %v4966 = vmul.f32 %v4920, %v4960
    %v4967 = vmul.f32 %v4921, %v4961
    %v4969 = vlaneseq
    %v4970 = vshrl.u32 %v4969, 7
    %v4971 = vsub.s32 0, %v4970
    %v4972 = vrot.slane %v4702, %v4971
    %v4973 = vlaneseq
    %v4974 = vshrl.u32 %v4973, 7
    %v4975 = vsub.s32 1, %v4974
    %v4976 = vrot.slane %v4702, %v4975
    %v4977 = vcombine.low %v4972, %v4976
    %v4978 = vcombine.high %v4972, %v4976
    %v4981 = vmul.f32 %v4964, %v4977
    %v4982 = vmul.f32 %v4965, %v4978
    %v4983 = vmul.f32 %v4966, %v4977
    %v4984 = vmul.f32 %v4967, %v4978
    %v4986 = vlaneseq
    %v4987 = vshrl.u32 %v4986, 7
    %v4988 = vsub.s32 0, %v4987
    %v4989 = vrot.slane %v4703, %v4988
    %v4990 = vlaneseq
    %v4991 = vshrl.u32 %v4990, 7
    %v4992 = vsub.s32 1, %v4991
    %v4993 = vrot.slane %v4703, %v4992
    %v4994 = vcombine.low %v4989, %v4993
    %v4995 = vcombine.high %v4989, %v4993
    %v4998 = vadd.f32 %v4981, %v4994
    %v4999 = vadd.f32 %v4982, %v4995
    %v5000 = vadd.f32 %v4983, %v4994
    %v5001 = vadd.f32 %v4984, %v4995
    %v5002 = vmax.f32 %v4998, 0.0
    %v5003 = vmax.f32 %v4999, 0.0
    %v5004 = vmax.f32 %v5000, 0.0
    %v5005 = vmax.f32 %v5001, 0.0
    %v5006 = vld [vmem:[#allocation18] sm:$0xf]
    %v5007 = vld [vmem:[#allocation18 + $0x4] sm:$0xf]
    %v5008 = vld [vmem:[#allocation18 + $0x8] sm:$0xf]
    %v5009 = vld [vmem:[#allocation18 + $0xc] sm:$0xf]
    %v5010 = vld [vmem:[#allocation18 + $0x10] sm:$0xf]
    %v5011 = vld [vmem:[#allocation18 + $0x14] sm:$0xf]
    %v5012 = vld [vmem:[#allocation18 + $0x18] sm:$0xf]
    %v5013 = vld [vmem:[#allocation18 + $0x1c] sm:$0xf]
    %v5014 = vld [vmem:[#allocation18 + $0x20] sm:$0xf]
    %v5015 = vld [vmem:[#allocation18 + $0x24] sm:$0xf]
    %v5016 = vld [vmem:[#allocation18 + $0x28] sm:$0xf]
    %v5017 = vld [vmem:[#allocation18 + $0x2c] sm:$0xf]
    %v5018 = vld [vmem:[#allocation18 + $0x30] sm:$0xf]
    %v5019 = vld [vmem:[#allocation18 + $0x34] sm:$0xf]
    %v5020 = vld [vmem:[#allocation18 + $0x38] sm:$0xf]
    %v5021 = vld [vmem:[#allocation18 + $0x3c] sm:$0xf]
    %v5022 = vld [vmem:[#allocation18 + $0x40] sm:$0xf]
    %v5023 = vld [vmem:[#allocation18 + $0x44] sm:$0xf]
    %v5024 = vld [vmem:[#allocation18 + $0x48] sm:$0xf]
    %v5025 = vld [vmem:[#allocation18 + $0x4c] sm:$0xf]
    %v5026 = vld [vmem:[#allocation18 + $0x50] sm:$0xf]
    %v5027 = vld [vmem:[#allocation18 + $0x54] sm:$0xf]
    %v5028 = vld [vmem:[#allocation18 + $0x58] sm:$0xf]
    %v5029 = vld [vmem:[#allocation18 + $0x5c] sm:$0xf]
    %v5030 = vld [vmem:[#allocation18 + $0x60] sm:$0xf]
    %v5031 = vld [vmem:[#allocation18 + $0x64] sm:$0xf]
    %v5032 = vld [vmem:[#allocation18 + $0x68] sm:$0xf]
    %v5033 = vld [vmem:[#allocation18 + $0x6c] sm:$0xf]
    %v5034 = vld [vmem:[#allocation18 + $0x70] sm:$0xf]
    %v5035 = vld [vmem:[#allocation18 + $0x74] sm:$0xf]
    %v5036 = vld [vmem:[#allocation18 + $0x78] sm:$0xf]
    %v5037 = vld [vmem:[#allocation18 + $0x7c] sm:$0xf]
    %v5038 = vld [vmem:[#allocation18 + $0x80] sm:$0xf]
    %v5039 = vld [vmem:[#allocation18 + $0x84] sm:$0xf]
    %v5040 = vld [vmem:[#allocation18 + $0x88] sm:$0xf]
    %v5041 = vld [vmem:[#allocation18 + $0x8c] sm:$0xf]
    %v5042 = vld [vmem:[#allocation18 + $0x90] sm:$0xf]
    %v5043 = vld [vmem:[#allocation18 + $0x94] sm:$0xf]
    %v5044 = vld [vmem:[#allocation18 + $0x98] sm:$0xf]
    %v5045 = vld [vmem:[#allocation18 + $0x9c] sm:$0xf]
    %v5046 = vld [vmem:[#allocation18 + $0xa0] sm:$0xf]
    %v5047 = vld [vmem:[#allocation18 + $0xa4] sm:$0xf]
    %v5048 = vld [vmem:[#allocation18 + $0xa8] sm:$0xf]
    %v5049 = vld [vmem:[#allocation18 + $0xac] sm:$0xf]
    %v5050 = vld [vmem:[#allocation18 + $0xb0] sm:$0xf]
    %v5051 = vld [vmem:[#allocation18 + $0xb4] sm:$0xf]
    %v5052 = vld [vmem:[#allocation18 + $0xb8] sm:$0xf]
    %v5053 = vld [vmem:[#allocation18 + $0xbc] sm:$0xf]
    %v5054 = vld [vmem:[#allocation18 + $0xc0] sm:$0xf]
    %v5055 = vld [vmem:[#allocation18 + $0xc4] sm:$0xf]
    %v5056 = vld [vmem:[#allocation18 + $0xc8] sm:$0xf]
    %v5057 = vld [vmem:[#allocation18 + $0xcc] sm:$0xf]
    %v5058 = vld [vmem:[#allocation18 + $0xd0] sm:$0xf]
    %v5059 = vld [vmem:[#allocation18 + $0xd4] sm:$0xf]
    %v5060 = vld [vmem:[#allocation18 + $0xd8] sm:$0xf]
    %v5061 = vld [vmem:[#allocation18 + $0xdc] sm:$0xf]
    %v5062 = vld [vmem:[#allocation18 + $0xe0] sm:$0xf]
    %v5063 = vld [vmem:[#allocation18 + $0xe4] sm:$0xf]
    %v5064 = vld [vmem:[#allocation18 + $0xe8] sm:$0xf]
    %v5065 = vld [vmem:[#allocation18 + $0xec] sm:$0xf]
    %v5066 = vld [vmem:[#allocation18 + $0xf0] sm:$0xf]
    %v5067 = vld [vmem:[#allocation18 + $0xf4] sm:$0xf]
    %v5068 = vld [vmem:[#allocation18 + $0xf8] sm:$0xf]
    %v5069 = vld [vmem:[#allocation18 + $0xfc] sm:$0xf]
    %v5070 = vld [vmem:[#allocation19] sm:$0xf]
    %v5071 = vld [vmem:[#allocation19 + $0x4] sm:$0xf]
    %v5072 = vld [vmem:[#allocation19 + $0x8] sm:$0xf]
    %v5073 = vld [vmem:[#allocation19 + $0xc] sm:$0xf]
    %v5074 = vld [vmem:[#allocation19 + $0x10] sm:$0xf]
    %v5075 = vld [vmem:[#allocation19 + $0x14] sm:$0xf]
    %v5076 = vld [vmem:[#allocation19 + $0x18] sm:$0xf]
    %v5077 = vld [vmem:[#allocation19 + $0x1c] sm:$0xf]
    %v5078 = vld [vmem:[#allocation19 + $0x20] sm:$0xf]
    %v5079 = vld [vmem:[#allocation19 + $0x24] sm:$0xf]
    %v5080 = vld [vmem:[#allocation19 + $0x28] sm:$0xf]
    %v5081 = vld [vmem:[#allocation19 + $0x2c] sm:$0xf]
    %v5082 = vld [vmem:[#allocation19 + $0x30] sm:$0xf]
    %v5083 = vld [vmem:[#allocation19 + $0x34] sm:$0xf]
    %v5084 = vld [vmem:[#allocation19 + $0x38] sm:$0xf]
    %v5085 = vld [vmem:[#allocation19 + $0x3c] sm:$0xf]
    %v5086 = vld [vmem:[#allocation19 + $0x40] sm:$0xf]
    %v5087 = vld [vmem:[#allocation19 + $0x44] sm:$0xf]
    %v5088 = vld [vmem:[#allocation19 + $0x48] sm:$0xf]
    %v5089 = vld [vmem:[#allocation19 + $0x4c] sm:$0xf]
    %v5090 = vld [vmem:[#allocation19 + $0x50] sm:$0xf]
    %v5091 = vld [vmem:[#allocation19 + $0x54] sm:$0xf]
    %v5092 = vld [vmem:[#allocation19 + $0x58] sm:$0xf]
    %v5093 = vld [vmem:[#allocation19 + $0x5c] sm:$0xf]
    %v5094 = vld [vmem:[#allocation19 + $0x60] sm:$0xf]
    %v5095 = vld [vmem:[#allocation19 + $0x64] sm:$0xf]
    %v5096 = vld [vmem:[#allocation19 + $0x68] sm:$0xf]
    %v5097 = vld [vmem:[#allocation19 + $0x6c] sm:$0xf]
    %v5098 = vld [vmem:[#allocation19 + $0x70] sm:$0xf]
    %v5099 = vld [vmem:[#allocation19 + $0x74] sm:$0xf]
    %v5100 = vld [vmem:[#allocation19 + $0x78] sm:$0xf]
    %v5101 = vld [vmem:[#allocation19 + $0x7c] sm:$0xf]
    %v5102 = vld [vmem:[#allocation19 + $0x80] sm:$0xf]
    %v5103 = vld [vmem:[#allocation19 + $0x84] sm:$0xf]
    %v5104 = vld [vmem:[#allocation19 + $0x88] sm:$0xf]
    %v5105 = vld [vmem:[#allocation19 + $0x8c] sm:$0xf]
    %v5106 = vld [vmem:[#allocation19 + $0x90] sm:$0xf]
    %v5107 = vld [vmem:[#allocation19 + $0x94] sm:$0xf]
    %v5108 = vld [vmem:[#allocation19 + $0x98] sm:$0xf]
    %v5109 = vld [vmem:[#allocation19 + $0x9c] sm:$0xf]
    %v5110 = vld [vmem:[#allocation19 + $0xa0] sm:$0xf]
    %v5111 = vld [vmem:[#allocation19 + $0xa4] sm:$0xf]
    %v5112 = vld [vmem:[#allocation19 + $0xa8] sm:$0xf]
    %v5113 = vld [vmem:[#allocation19 + $0xac] sm:$0xf]
    %v5114 = vld [vmem:[#allocation19 + $0xb0] sm:$0xf]
    %v5115 = vld [vmem:[#allocation19 + $0xb4] sm:$0xf]
    %v5116 = vld [vmem:[#allocation19 + $0xb8] sm:$0xf]
    %v5117 = vld [vmem:[#allocation19 + $0xbc] sm:$0xf]
    %v5118 = vld [vmem:[#allocation19 + $0xc0] sm:$0xf]
    %v5119 = vld [vmem:[#allocation19 + $0xc4] sm:$0xf]
    %v5120 = vld [vmem:[#allocation19 + $0xc8] sm:$0xf]
    %v5121 = vld [vmem:[#allocation19 + $0xcc] sm:$0xf]
    %v5122 = vld [vmem:[#allocation19 + $0xd0] sm:$0xf]
    %v5123 = vld [vmem:[#allocation19 + $0xd4] sm:$0xf]
    %v5124 = vld [vmem:[#allocation19 + $0xd8] sm:$0xf]
    %v5125 = vld [vmem:[#allocation19 + $0xdc] sm:$0xf]
    %v5126 = vld [vmem:[#allocation19 + $0xe0] sm:$0xf]
    %v5127 = vld [vmem:[#allocation19 + $0xe4] sm:$0xf]
    %v5128 = vld [vmem:[#allocation19 + $0xe8] sm:$0xf]
    %v5129 = vld [vmem:[#allocation19 + $0xec] sm:$0xf]
    %v5130 = vld [vmem:[#allocation19 + $0xf0] sm:$0xf]
    %v5131 = vld [vmem:[#allocation19 + $0xf4] sm:$0xf]
    %v5132 = vld [vmem:[#allocation19 + $0xf8] sm:$0xf]
    %v5133 = vld [vmem:[#allocation19 + $0xfc] sm:$0xf]
    %v5138 = vcombine.low %v5002, %v5003
    %v5139 = vcombine.high %v5002, %v5003
    %v5140 = vcombine.low %v5004, %v5005
    %v5141 = vcombine.high %v5004, %v5005
    %v5142 = vrot.slane %v5138, 7
    %v5143 = vrot.slane %v5139, 7
    %v5144 = vrot.slane %v5140, 7
    %v5145 = vrot.slane %v5141, 7
    %v5150 = vsel %vm755, 0.0, %v5142
    %v5151 = vsel %vm755, 0.0, %v5143
    %v5152 = vsel %vm755, 0.0, %v5144
    %v5153 = vsel %vm755, 0.0, %v5145
    %v5154 = vrot.slane %v5138, 1
    %v5155 = vrot.slane %v5139, 1
    %v5156 = vrot.slane %v5140, 1
    %v5157 = vrot.slane %v5141, 1
    %v5162 = vsel %vm906, %v5154, 0.0
    %v5163 = vsel %vm906, %v5155, 0.0
    %v5164 = vsel %vm906, %v5156, 0.0
    %v5165 = vsel %vm906, %v5157, 0.0
    %v5170 = vpack.c.bf16 %v5140, %v5138
    %v5171 = vpack.c.bf16 %v5141, %v5139
    %v5172 = vpack.c.bf16 %v5152, %v5150
    %v5173 = vpack.c.bf16 %v5153, %v5151
    %v5238 = vunpack.c.l.b16 %v5006
    %v5239 = vunpack.c.l.b16 %v5007
    %v5240 = vunpack.c.l.b16 %v5008
    %v5241 = vunpack.c.l.b16 %v5009
    %v5242 = vunpack.c.l.b16 %v5010
    %v5243 = vunpack.c.l.b16 %v5011
    %v5244 = vunpack.c.l.b16 %v5012
    %v5245 = vunpack.c.l.b16 %v5013
    %v5246 = vunpack.c.l.b16 %v5014
    %v5247 = vunpack.c.l.b16 %v5015
    %v5248 = vunpack.c.l.b16 %v5016
    %v5249 = vunpack.c.l.b16 %v5017
    %v5250 = vunpack.c.l.b16 %v5018
    %v5251 = vunpack.c.l.b16 %v5019
    %v5252 = vunpack.c.l.b16 %v5020
    %v5253 = vunpack.c.l.b16 %v5021
    %v5254 = vunpack.c.l.b16 %v5022
    %v5255 = vunpack.c.l.b16 %v5023
    %v5256 = vunpack.c.l.b16 %v5024
    %v5257 = vunpack.c.l.b16 %v5025
    %v5258 = vunpack.c.l.b16 %v5026
    %v5259 = vunpack.c.l.b16 %v5027
    %v5260 = vunpack.c.l.b16 %v5028
    %v5261 = vunpack.c.l.b16 %v5029
    %v5262 = vunpack.c.l.b16 %v5030
    %v5263 = vunpack.c.l.b16 %v5031
    %v5264 = vunpack.c.l.b16 %v5032
    %v5265 = vunpack.c.l.b16 %v5033
    %v5266 = vunpack.c.l.b16 %v5034
    %v5267 = vunpack.c.l.b16 %v5035
    %v5268 = vunpack.c.l.b16 %v5036
    %v5269 = vunpack.c.l.b16 %v5037
    %v5270 = vunpack.c.l.b16 %v5038
    %v5271 = vunpack.c.l.b16 %v5039
    %v5272 = vunpack.c.l.b16 %v5040
    %v5273 = vunpack.c.l.b16 %v5041
    %v5274 = vunpack.c.l.b16 %v5042
    %v5275 = vunpack.c.l.b16 %v5043
    %v5276 = vunpack.c.l.b16 %v5044
    %v5277 = vunpack.c.l.b16 %v5045
    %v5278 = vunpack.c.l.b16 %v5046
    %v5279 = vunpack.c.l.b16 %v5047
    %v5280 = vunpack.c.l.b16 %v5048
    %v5281 = vunpack.c.l.b16 %v5049
    %v5282 = vunpack.c.l.b16 %v5050
    %v5283 = vunpack.c.l.b16 %v5051
    %v5284 = vunpack.c.l.b16 %v5052
    %v5285 = vunpack.c.l.b16 %v5053
    %v5286 = vunpack.c.l.b16 %v5054
    %v5287 = vunpack.c.l.b16 %v5055
    %v5288 = vunpack.c.l.b16 %v5056
    %v5289 = vunpack.c.l.b16 %v5057
    %v5290 = vunpack.c.l.b16 %v5058
    %v5291 = vunpack.c.l.b16 %v5059
    %v5292 = vunpack.c.l.b16 %v5060
    %v5293 = vunpack.c.l.b16 %v5061
    %v5294 = vunpack.c.l.b16 %v5062
    %v5295 = vunpack.c.l.b16 %v5063
    %v5296 = vunpack.c.l.b16 %v5064
    %v5297 = vunpack.c.l.b16 %v5065
    %v5298 = vunpack.c.l.b16 %v5066
    %v5299 = vunpack.c.l.b16 %v5067
    %v5300 = vunpack.c.l.b16 %v5068
    %v5301 = vunpack.c.l.b16 %v5069
    %v5302 = vpack.c.b16 %v5239, %v5238
    %v5303 = vpack.c.b16 %v5241, %v5240
    %v5304 = vpack.c.b16 %v5243, %v5242
    %v5305 = vpack.c.b16 %v5245, %v5244
    %v5306 = vpack.c.b16 %v5247, %v5246
    %v5307 = vpack.c.b16 %v5249, %v5248
    %v5308 = vpack.c.b16 %v5251, %v5250
    %v5309 = vpack.c.b16 %v5253, %v5252
    %v5310 = vpack.c.b16 %v5255, %v5254
    %v5311 = vpack.c.b16 %v5257, %v5256
    %v5312 = vpack.c.b16 %v5259, %v5258
    %v5313 = vpack.c.b16 %v5261, %v5260
    %v5314 = vpack.c.b16 %v5263, %v5262
    %v5315 = vpack.c.b16 %v5265, %v5264
    %v5316 = vpack.c.b16 %v5267, %v5266
    %v5317 = vpack.c.b16 %v5269, %v5268
    %v5318 = vpack.c.b16 %v5271, %v5270
    %v5319 = vpack.c.b16 %v5273, %v5272
    %v5320 = vpack.c.b16 %v5275, %v5274
    %v5321 = vpack.c.b16 %v5277, %v5276
    %v5322 = vpack.c.b16 %v5279, %v5278
    %v5323 = vpack.c.b16 %v5281, %v5280
    %v5324 = vpack.c.b16 %v5283, %v5282
    %v5325 = vpack.c.b16 %v5285, %v5284
    %v5326 = vpack.c.b16 %v5287, %v5286
    %v5327 = vpack.c.b16 %v5289, %v5288
    %v5328 = vpack.c.b16 %v5291, %v5290
    %v5329 = vpack.c.b16 %v5293, %v5292
    %v5330 = vpack.c.b16 %v5295, %v5294
    %v5331 = vpack.c.b16 %v5297, %v5296
    %v5332 = vpack.c.b16 %v5299, %v5298
    %v5333 = vpack.c.b16 %v5301, %v5300
    %5366 = vmatprep.subr.bf16.mxu0 0
    %5367 = vmatpush1.bf16.msra.mxu0 %v5302
    %5368 = vmatprep.subr.bf16.mxu0 0
    %5369 = vmatpush1.bf16.msra.mxu0 %v5303
    %5370 = vmatprep.subr.bf16.mxu0 0
    %5371 = vmatpush1.bf16.msra.mxu0 %v5304
    %5372 = vmatprep.subr.bf16.mxu0 0
    %5373 = vmatpush1.bf16.msra.mxu0 %v5305
    %5374 = vmatprep.subr.bf16.mxu0 0
    %5375 = vmatpush1.bf16.msra.mxu0 %v5306
    %5376 = vmatprep.subr.bf16.mxu0 0
    %5377 = vmatpush1.bf16.msra.mxu0 %v5307
    %5378 = vmatprep.subr.bf16.mxu0 0
    %5379 = vmatpush1.bf16.msra.mxu0 %v5308
    %5380 = vmatprep.subr.bf16.mxu0 0
    %5381 = vmatpush1.bf16.msra.mxu0 %v5309
    %5382 = vmatprep.subr.bf16.mxu0 0
    %5383 = vmatpush1.bf16.msra.mxu0 %v5310
    %5384 = vmatprep.subr.bf16.mxu0 0
    %5385 = vmatpush1.bf16.msra.mxu0 %v5311
    %5386 = vmatprep.subr.bf16.mxu0 0
    %5387 = vmatpush1.bf16.msra.mxu0 %v5312
    %5388 = vmatprep.subr.bf16.mxu0 0
    %5389 = vmatpush1.bf16.msra.mxu0 %v5313
    %5390 = vmatprep.subr.bf16.mxu0 0
    %5391 = vmatpush1.bf16.msra.mxu0 %v5314
    %5392 = vmatprep.subr.bf16.mxu0 0
    %5393 = vmatpush1.bf16.msra.mxu0 %v5315
    %5394 = vmatprep.subr.bf16.mxu0 0
    %5395 = vmatpush1.bf16.msra.mxu0 %v5316
    %5396 = vmatprep.subr.bf16.mxu0 0
    %5397 = vmatpush1.bf16.msra.mxu0 %v5317
    %5398 = vmatprep.mubr.bf16.mxu0 %v5171
    %5399 = vmatmul.mubr.bf16.gmra.mrb[0].mxu0 %v5170
    %v5400 = vpop.f32.mrb[0].mxu0
    %v5401 = vadd.f32 0.0, %v5400
    %v5402 = vpop.f32.mrb[0].mxu0
    %v5403 = vpop.f32.mrb[0].mxu0
    %v5404 = vadd.f32 0.0, %v5403
    %v5405 = vpop.f32.mrb[0].mxu0
    %5406 = vdwg.mxu0
    %5407 = vmatprep.subr.bf16.mxu0 0
    %5408 = vmatpush1.bf16.msra.mxu0 %v5318
    %5409 = vmatprep.subr.bf16.mxu0 0
    %5410 = vmatpush1.bf16.msra.mxu0 %v5319
    %5411 = vmatprep.subr.bf16.mxu0 0
    %5412 = vmatpush1.bf16.msra.mxu0 %v5320
    %5413 = vmatprep.subr.bf16.mxu0 0
    %5414 = vmatpush1.bf16.msra.mxu0 %v5321
    %5415 = vmatprep.subr.bf16.mxu0 0
    %5416 = vmatpush1.bf16.msra.mxu0 %v5322
    %5417 = vmatprep.subr.bf16.mxu0 0
    %5418 = vmatpush1.bf16.msra.mxu0 %v5323
    %5419 = vmatprep.subr.bf16.mxu0 0
    %5420 = vmatpush1.bf16.msra.mxu0 %v5324
    %5421 = vmatprep.subr.bf16.mxu0 0
    %5422 = vmatpush1.bf16.msra.mxu0 %v5325
    %5423 = vmatprep.subr.bf16.mxu0 0
    %5424 = vmatpush1.bf16.msra.mxu0 %v5326
    %5425 = vmatprep.subr.bf16.mxu0 0
    %5426 = vmatpush1.bf16.msra.mxu0 %v5327
    %5427 = vmatprep.subr.bf16.mxu0 0
    %5428 = vmatpush1.bf16.msra.mxu0 %v5328
    %5429 = vmatprep.subr.bf16.mxu0 0
    %5430 = vmatpush1.bf16.msra.mxu0 %v5329
    %5431 = vmatprep.subr.bf16.mxu0 0
    %5432 = vmatpush1.bf16.msra.mxu0 %v5330
    %5433 = vmatprep.subr.bf16.mxu0 0
    %5434 = vmatpush1.bf16.msra.mxu0 %v5331
    %5435 = vmatprep.subr.bf16.mxu0 0
    %5436 = vmatpush1.bf16.msra.mxu0 %v5332
    %5437 = vmatprep.subr.bf16.mxu0 0
    %5438 = vmatpush1.bf16.msra.mxu0 %v5333
    %5439 = vmatprep.mubr.bf16.mxu0 %v5173
    %5440 = vmatmul.mubr.bf16.gmra.mrb[0].mxu0 %v5172
    %v5441 = vpop.f32.mrb[0].mxu0
    %v5442 = vadd.f32 %v5401, %v5441
    %v5443 = vpop.f32.mrb[0].mxu0
    %v5444 = vpop.f32.mrb[0].mxu0
    %v5445 = vadd.f32 %v5404, %v5444
    %v5446 = vpop.f32.mrb[0].mxu0
    %5447 = vdwg.mxu0
    %v5448 = vpack.c.bf16 %v5164, %v5162
    %v5449 = vpack.c.bf16 %v5165, %v5163
    %v5514 = vunpack.c.l.b16 %v5070
    %v5515 = vunpack.c.l.b16 %v5071
    %v5516 = vunpack.c.l.b16 %v5072
    %v5517 = vunpack.c.l.b16 %v5073
    %v5518 = vunpack.c.l.b16 %v5074
    %v5519 = vunpack.c.l.b16 %v5075
    %v5520 = vunpack.c.l.b16 %v5076
    %v5521 = vunpack.c.l.b16 %v5077
    %v5522 = vunpack.c.l.b16 %v5078
    %v5523 = vunpack.c.l.b16 %v5079
    %v5524 = vunpack.c.l.b16 %v5080
    %v5525 = vunpack.c.l.b16 %v5081
    %v5526 = vunpack.c.l.b16 %v5082
    %v5527 = vunpack.c.l.b16 %v5083
    %v5528 = vunpack.c.l.b16 %v5084
    %v5529 = vunpack.c.l.b16 %v5085
    %v5530 = vunpack.c.l.b16 %v5086
    %v5531 = vunpack.c.l.b16 %v5087
    %v5532 = vunpack.c.l.b16 %v5088
    %v5533 = vunpack.c.l.b16 %v5089
    %v5534 = vunpack.c.l.b16 %v5090
    %v5535 = vunpack.c.l.b16 %v5091
    %v5536 = vunpack.c.l.b16 %v5092
    %v5537 = vunpack.c.l.b16 %v5093
    %v5538 = vunpack.c.l.b16 %v5094
    %v5539 = vunpack.c.l.b16 %v5095
    %v5540 = vunpack.c.l.b16 %v5096
    %v5541 = vunpack.c.l.b16 %v5097
    %v5542 = vunpack.c.l.b16 %v5098
    %v5543 = vunpack.c.l.b16 %v5099
    %v5544 = vunpack.c.l.b16 %v5100
    %v5545 = vunpack.c.l.b16 %v5101
    %v5546 = vunpack.c.l.b16 %v5102
    %v5547 = vunpack.c.l.b16 %v5103
    %v5548 = vunpack.c.l.b16 %v5104
    %v5549 = vunpack.c.l.b16 %v5105
    %v5550 = vunpack.c.l.b16 %v5106
    %v5551 = vunpack.c.l.b16 %v5107
    %v5552 = vunpack.c.l.b16 %v5108
    %v5553 = vunpack.c.l.b16 %v5109
    %v5554 = vunpack.c.l.b16 %v5110
    %v5555 = vunpack.c.l.b16 %v5111
    %v5556 = vunpack.c.l.b16 %v5112
    %v5557 = vunpack.c.l.b16 %v5113
    %v5558 = vunpack.c.l.b16 %v5114
    %v5559 = vunpack.c.l.b16 %v5115
    %v5560 = vunpack.c.l.b16 %v5116
    %v5561 = vunpack.c.l.b16 %v5117
    %v5562 = vunpack.c.l.b16 %v5118
    %v5563 = vunpack.c.l.b16 %v5119
    %v5564 = vunpack.c.l.b16 %v5120
    %v5565 = vunpack.c.l.b16 %v5121
    %v5566 = vunpack.c.l.b16 %v5122
    %v5567 = vunpack.c.l.b16 %v5123
    %v5568 = vunpack.c.l.b16 %v5124
    %v5569 = vunpack.c.l.b16 %v5125
    %v5570 = vunpack.c.l.b16 %v5126
    %v5571 = vunpack.c.l.b16 %v5127
    %v5572 = vunpack.c.l.b16 %v5128
    %v5573 = vunpack.c.l.b16 %v5129
    %v5574 = vunpack.c.l.b16 %v5130
    %v5575 = vunpack.c.l.b16 %v5131
    %v5576 = vunpack.c.l.b16 %v5132
    %v5577 = vunpack.c.l.b16 %v5133
    %v5578 = vpack.c.b16 %v5515, %v5514
    %v5579 = vpack.c.b16 %v5517, %v5516
    %v5580 = vpack.c.b16 %v5519, %v5518
    %v5581 = vpack.c.b16 %v5521, %v5520
    %v5582 = vpack.c.b16 %v5523, %v5522
    %v5583 = vpack.c.b16 %v5525, %v5524
    %v5584 = vpack.c.b16 %v5527, %v5526
    %v5585 = vpack.c.b16 %v5529, %v5528
    %v5586 = vpack.c.b16 %v5531, %v5530
    %v5587 = vpack.c.b16 %v5533, %v5532
    %v5588 = vpack.c.b16 %v5535, %v5534
    %v5589 = vpack.c.b16 %v5537, %v5536
    %v5590 = vpack.c.b16 %v5539, %v5538
    %v5591 = vpack.c.b16 %v5541, %v5540
    %v5592 = vpack.c.b16 %v5543, %v5542
    %v5593 = vpack.c.b16 %v5545, %v5544
    %v5594 = vpack.c.b16 %v5547, %v5546
    %v5595 = vpack.c.b16 %v5549, %v5548
    %v5596 = vpack.c.b16 %v5551, %v5550
    %v5597 = vpack.c.b16 %v5553, %v5552
    %v5598 = vpack.c.b16 %v5555, %v5554
    %v5599 = vpack.c.b16 %v5557, %v5556
    %v5600 = vpack.c.b16 %v5559, %v5558
    %v5601 = vpack.c.b16 %v5561, %v5560
    %v5602 = vpack.c.b16 %v5563, %v5562
    %v5603 = vpack.c.b16 %v5565, %v5564
    %v5604 = vpack.c.b16 %v5567, %v5566
    %v5605 = vpack.c.b16 %v5569, %v5568
    %v5606 = vpack.c.b16 %v5571, %v5570
    %v5607 = vpack.c.b16 %v5573, %v5572
    %v5608 = vpack.c.b16 %v5575, %v5574
    %v5609 = vpack.c.b16 %v5577, %v5576
    %5642 = vmatprep.subr.bf16.mxu0 0
    %5643 = vmatpush1.bf16.msra.mxu0 %v5578
    %5644 = vmatprep.subr.bf16.mxu0 0
    %5645 = vmatpush1.bf16.msra.mxu0 %v5579
    %5646 = vmatprep.subr.bf16.mxu0 0
    %5647 = vmatpush1.bf16.msra.mxu0 %v5580
    %5648 = vmatprep.subr.bf16.mxu0 0
    %5649 = vmatpush1.bf16.msra.mxu0 %v5581
    %5650 = vmatprep.subr.bf16.mxu0 0
    %5651 = vmatpush1.bf16.msra.mxu0 %v5582
    %5652 = vmatprep.subr.bf16.mxu0 0
    %5653 = vmatpush1.bf16.msra.mxu0 %v5583
    %5654 = vmatprep.subr.bf16.mxu0 0
    %5655 = vmatpush1.bf16.msra.mxu0 %v5584
    %5656 = vmatprep.subr.bf16.mxu0 0
    %5657 = vmatpush1.bf16.msra.mxu0 %v5585
    %5658 = vmatprep.subr.bf16.mxu0 0
    %5659 = vmatpush1.bf16.msra.mxu0 %v5586
    %5660 = vmatprep.subr.bf16.mxu0 0
    %5661 = vmatpush1.bf16.msra.mxu0 %v5587
    %5662 = vmatprep.subr.bf16.mxu0 0
    %5663 = vmatpush1.bf16.msra.mxu0 %v5588
    %5664 = vmatprep.subr.bf16.mxu0 0
    %5665 = vmatpush1.bf16.msra.mxu0 %v5589
    %5666 = vmatprep.subr.bf16.mxu0 0
    %5667 = vmatpush1.bf16.msra.mxu0 %v5590
    %5668 = vmatprep.subr.bf16.mxu0 0
    %5669 = vmatpush1.bf16.msra.mxu0 %v5591
    %5670 = vmatprep.subr.bf16.mxu0 0
    %5671 = vmatpush1.bf16.msra.mxu0 %v5592
    %5672 = vmatprep.subr.bf16.mxu0 0
    %5673 = vmatpush1.bf16.msra.mxu0 %v5593
    %5674 = vmatprep.mubr.bf16.mxu0 %v5449
    %5675 = vmatmul.mubr.bf16.gmra.mrb[0].mxu0 %v5448
    %v5676 = vpop.f32.mrb[0].mxu0
    %v5677 = vadd.f32 0.0, %v5676
    %v5678 = vpop.f32.mrb[0].mxu0
    %v5679 = vpop.f32.mrb[0].mxu0
    %v5680 = vadd.f32 0.0, %v5679
    %v5681 = vpop.f32.mrb[0].mxu0
    %5682 = vdwg.mxu0
    %5683 = vmatprep.subr.bf16.mxu0 0
    %5684 = vmatpush1.bf16.msra.mxu0 %v5594
    %5685 = vmatprep.subr.bf16.mxu0 0
    %5686 = vmatpush1.bf16.msra.mxu0 %v5595
    %5687 = vmatprep.subr.bf16.mxu0 0
    %5688 = vmatpush1.bf16.msra.mxu0 %v5596
    %5689 = vmatprep.subr.bf16.mxu0 0
    %5690 = vmatpush1.bf16.msra.mxu0 %v5597
    %5691 = vmatprep.subr.bf16.mxu0 0
    %5692 = vmatpush1.bf16.msra.mxu0 %v5598
    %5693 = vmatprep.subr.bf16.mxu0 0
    %5694 = vmatpush1.bf16.msra.mxu0 %v5599
    %5695 = vmatprep.subr.bf16.mxu0 0
    %5696 = vmatpush1.bf16.msra.mxu0 %v5600
    %5697 = vmatprep.subr.bf16.mxu0 0
    %5698 = vmatpush1.bf16.msra.mxu0 %v5601
    %5699 = vmatprep.subr.bf16.mxu0 0
    %5700 = vmatpush1.bf16.msra.mxu0 %v5602
    %5701 = vmatprep.subr.bf16.mxu0 0
    %5702 = vmatpush1.bf16.msra.mxu0 %v5603
    %5703 = vmatprep.subr.bf16.mxu0 0
    %5704 = vmatpush1.bf16.msra.mxu0 %v5604
    %5705 = vmatprep.subr.bf16.mxu0 0
    %5706 = vmatpush1.bf16.msra.mxu0 %v5605
    %5707 = vmatprep.subr.bf16.mxu0 0
    %5708 = vmatpush1.bf16.msra.mxu0 %v5606
    %5709 = vmatprep.subr.bf16.mxu0 0
    %5710 = vmatpush1.bf16.msra.mxu0 %v5607
    %5711 = vmatprep.subr.bf16.mxu0 0
    %5712 = vmatpush1.bf16.msra.mxu0 %v5608
    %5713 = vmatprep.subr.bf16.mxu0 0
    %5714 = vmatpush1.bf16.msra.mxu0 %v5609
    %5715 = vmatprep.mubr.bf16.mxu0 %v5171
    %5716 = vmatmul.mubr.bf16.gmra.mrb[0].mxu0 %v5170
    %v5717 = vpop.f32.mrb[0].mxu0
    %v5718 = vadd.f32 %v5677, %v5717
    %v5719 = vpop.f32.mrb[0].mxu0
    %v5720 = vpop.f32.mrb[0].mxu0
    %v5721 = vadd.f32 %v5680, %v5720
    %v5722 = vpop.f32.mrb[0].mxu0
    %5723 = vdwg.mxu0
    %v5726 = vcombine.high %v5442, %v5442
    %v5728 = vunpack.c.l.s4 1966171168
    %v5729 = vunpack.c.0.s8 %v5728
    %v5730 = vlaneseq
    %v5731 = vshrl.u32 %v5730, 7
    %v5732 = vsub.s32 %v5729, %v5731
    %v5733 = vrot.slane %v5442, %v5732
    %v5735 = vunpack.c.l.s4 1966171168
    %v5736 = vunpack.c.0.s8 %v5735
    %v5737 = vlaneseq
    %v5738 = vshrl.u32 %v5737, 7
    %v5739 = vsub.s32 %v5736, %v5738
    %v5740 = vrot.slane %v5726, %v5739
    %v5741 = vcombine.high %v5733, %v5733
    %v5742 = vcombine.high %v5740, %v5740
    %v5744 = vunpack.c.l.s4 1966171168
    %v5745 = vunpack.c.0.s8 %v5744
    %v5746 = vlaneseq
    %v5747 = vshrl.u32 %v5746, 7
    %v5748 = vsub.s32 %v5745, %v5747
    %v5749 = vrot.slane %v5733, %v5748
    %v5751 = vunpack.c.l.s4 1966171168
    %v5752 = vunpack.c.0.s8 %v5751
    %v5753 = vlaneseq
    %v5754 = vshrl.u32 %v5753, 7
    %v5755 = vsub.s32 %v5752, %v5754
    %v5756 = vrot.slane %v5740, %v5755
    %v5758 = vunpack.c.l.s4 1966171168
    %v5759 = vunpack.c.0.s8 %v5758
    %v5760 = vlaneseq
    %v5761 = vshrl.u32 %v5760, 7
    %v5762 = vsub.s32 %v5759, %v5761
    %v5763 = vrot.slane %v5741, %v5762
    %v5765 = vunpack.c.l.s4 1966171168
    %v5766 = vunpack.c.0.s8 %v5765
    %v5767 = vlaneseq
    %v5768 = vshrl.u32 %v5767, 7
    %v5769 = vsub.s32 %v5766, %v5768
    %v5770 = vrot.slane %v5742, %v5769
    %v5771 = vcombine.high %v5749, %v5749
    %v5772 = vcombine.high %v5756, %v5756
    %v5773 = vcombine.high %v5763, %v5763
    %v5774 = vcombine.high %v5770, %v5770
    %v5775 = vcombine.high %v5445, %v5445
    %v5777 = vunpack.c.l.s4 1966171168
    %v5778 = vunpack.c.0.s8 %v5777
    %v5779 = vlaneseq
    %v5780 = vshrl.u32 %v5779, 7
    %v5781 = vsub.s32 %v5778, %v5780
    %v5782 = vrot.slane %v5445, %v5781
    %v5784 = vunpack.c.l.s4 1966171168
    %v5785 = vunpack.c.0.s8 %v5784
    %v5786 = vlaneseq
    %v5787 = vshrl.u32 %v5786, 7
    %v5788 = vsub.s32 %v5785, %v5787
    %v5789 = vrot.slane %v5775, %v5788
    %v5790 = vcombine.high %v5782, %v5782
    %v5791 = vcombine.high %v5789, %v5789
    %v5793 = vunpack.c.l.s4 1966171168
    %v5794 = vunpack.c.0.s8 %v5793
    %v5795 = vlaneseq
    %v5796 = vshrl.u32 %v5795, 7
    %v5797 = vsub.s32 %v5794, %v5796
    %v5798 = vrot.slane %v5782, %v5797
    %v5800 = vunpack.c.l.s4 1966171168
    %v5801 = vunpack.c.0.s8 %v5800
    %v5802 = vlaneseq
    %v5803 = vshrl.u32 %v5802, 7
    %v5804 = vsub.s32 %v5801, %v5803
    %v5805 = vrot.slane %v5789, %v5804
    %v5807 = vunpack.c.l.s4 1966171168
    %v5808 = vunpack.c.0.s8 %v5807
    %v5809 = vlaneseq
    %v5810 = vshrl.u32 %v5809, 7
    %v5811 = vsub.s32 %v5808, %v5810
    %v5812 = vrot.slane %v5790, %v5811
    %v5814 = vunpack.c.l.s4 1966171168
    %v5815 = vunpack.c.0.s8 %v5814
    %v5816 = vlaneseq
    %v5817 = vshrl.u32 %v5816, 7
    %v5818 = vsub.s32 %v5815, %v5817
    %v5819 = vrot.slane %v5791, %v5818
    %v5820 = vcombine.high %v5798, %v5798
    %v5821 = vcombine.high %v5805, %v5805
    %v5822 = vcombine.high %v5812, %v5812
    %v5823 = vcombine.high %v5819, %v5819
    %v5842 = vcombine.high %v5718, %v5718
    %v5844 = vunpack.c.l.s4 1966171168
    %v5845 = vunpack.c.0.s8 %v5844
    %v5846 = vlaneseq
    %v5847 = vshrl.u32 %v5846, 7
    %v5848 = vsub.s32 %v5845, %v5847
    %v5849 = vrot.slane %v5718, %v5848
    %v5851 = vunpack.c.l.s4 1966171168
    %v5852 = vunpack.c.0.s8 %v5851
    %v5853 = vlaneseq
    %v5854 = vshrl.u32 %v5853, 7
    %v5855 = vsub.s32 %v5852, %v5854
    %v5856 = vrot.slane %v5842, %v5855
    %v5857 = vcombine.high %v5849, %v5849
    %v5858 = vcombine.high %v5856, %v5856
    %v5860 = vunpack.c.l.s4 1966171168
    %v5861 = vunpack.c.0.s8 %v5860
    %v5862 = vlaneseq
    %v5863 = vshrl.u32 %v5862, 7
    %v5864 = vsub.s32 %v5861, %v5863
    %v5865 = vrot.slane %v5849, %v5864
    %v5867 = vunpack.c.l.s4 1966171168
    %v5868 = vunpack.c.0.s8 %v5867
    %v5869 = vlaneseq
    %v5870 = vshrl.u32 %v5869, 7
    %v5871 = vsub.s32 %v5868, %v5870
    %v5872 = vrot.slane %v5856, %v5871
    %v5874 = vunpack.c.l.s4 1966171168
    %v5875 = vunpack.c.0.s8 %v5874
    %v5876 = vlaneseq
    %v5877 = vshrl.u32 %v5876, 7
    %v5878 = vsub.s32 %v5875, %v5877
    %v5879 = vrot.slane %v5857, %v5878
    %v5881 = vunpack.c.l.s4 1966171168
    %v5882 = vunpack.c.0.s8 %v5881
    %v5883 = vlaneseq
    %v5884 = vshrl.u32 %v5883, 7
    %v5885 = vsub.s32 %v5882, %v5884
    %v5886 = vrot.slane %v5858, %v5885
    %v5887 = vcombine.high %v5865, %v5865
    %v5888 = vcombine.high %v5872, %v5872
    %v5889 = vcombine.high %v5879, %v5879
    %v5890 = vcombine.high %v5886, %v5886
    %v5891 = vcombine.high %v5721, %v5721
    %v5893 = vunpack.c.l.s4 1966171168
    %v5894 = vunpack.c.0.s8 %v5893
    %v5895 = vlaneseq
    %v5896 = vshrl.u32 %v5895, 7
    %v5897 = vsub.s32 %v5894, %v5896
    %v5898 = vrot.slane %v5721, %v5897
    %v5900 = vunpack.c.l.s4 1966171168
    %v5901 = vunpack.c.0.s8 %v5900
    %v5902 = vlaneseq
    %v5903 = vshrl.u32 %v5902, 7
    %v5904 = vsub.s32 %v5901, %v5903
    %v5905 = vrot.slane %v5891, %v5904
    %v5906 = vcombine.high %v5898, %v5898
    %v5907 = vcombine.high %v5905, %v5905
    %v5909 = vunpack.c.l.s4 1966171168
    %v5910 = vunpack.c.0.s8 %v5909
    %v5911 = vlaneseq
    %v5912 = vshrl.u32 %v5911, 7
    %v5913 = vsub.s32 %v5910, %v5912
    %v5914 = vrot.slane %v5898, %v5913
    %v5916 = vunpack.c.l.s4 1966171168
    %v5917 = vunpack.c.0.s8 %v5916
    %v5918 = vlaneseq
    %v5919 = vshrl.u32 %v5918, 7
    %v5920 = vsub.s32 %v5917, %v5919
    %v5921 = vrot.slane %v5905, %v5920
    %v5923 = vunpack.c.l.s4 1966171168
    %v5924 = vunpack.c.0.s8 %v5923
    %v5925 = vlaneseq
    %v5926 = vshrl.u32 %v5925, 7
    %v5927 = vsub.s32 %v5924, %v5926
    %v5928 = vrot.slane %v5906, %v5927
    %v5930 = vunpack.c.l.s4 1966171168
    %v5931 = vunpack.c.0.s8 %v5930
    %v5932 = vlaneseq
    %v5933 = vshrl.u32 %v5932, 7
    %v5934 = vsub.s32 %v5931, %v5933
    %v5935 = vrot.slane %v5907, %v5934
    %v5936 = vcombine.high %v5914, %v5914
    %v5937 = vcombine.high %v5921, %v5921
    %v5938 = vcombine.high %v5928, %v5928
    %v5939 = vcombine.high %v5935, %v5935
    %v5940 = vlaneseq
    %v5941 = vshrl.u32 %v5940, 7
    %v5942 = vsub.s32 0, %v5941
    %v5943 = vrot.slane %v5865, %v5942
    %v5944 = vlaneseq
    %v5945 = vshrl.u32 %v5944, 7
    %v5946 = vsub.s32 0, %v5945
    %v5947 = vrot.slane %v5879, %v5946
    %v5948 = vlaneseq
    %v5949 = vshrl.u32 %v5948, 7
    %v5950 = vsub.s32 0, %v5949
    %v5951 = vrot.slane %v5887, %v5950
    %v5952 = vlaneseq
    %v5953 = vshrl.u32 %v5952, 7
    %v5954 = vsub.s32 0, %v5953
    %v5955 = vrot.slane %v5889, %v5954
    %v5956 = vlaneseq
    %v5957 = vshrl.u32 %v5956, 7
    %v5958 = vsub.s32 0, %v5957
    %v5959 = vrot.slane %v5872, %v5958
    %v5960 = vlaneseq
    %v5961 = vshrl.u32 %v5960, 7
    %v5962 = vsub.s32 0, %v5961
    %v5963 = vrot.slane %v5886, %v5962
    %v5964 = vlaneseq
    %v5965 = vshrl.u32 %v5964, 7
    %v5966 = vsub.s32 0, %v5965
    %v5967 = vrot.slane %v5888, %v5966
    %v5968 = vlaneseq
    %v5969 = vshrl.u32 %v5968, 7
    %v5970 = vsub.s32 0, %v5969
    %v5971 = vrot.slane %v5890, %v5970
    %v5972 = vlaneseq
    %v5973 = vshrl.u32 %v5972, 7
    %v5974 = vsub.s32 0, %v5973
    %v5975 = vrot.slane %v5914, %v5974
    %v5976 = vlaneseq
    %v5977 = vshrl.u32 %v5976, 7
    %v5978 = vsub.s32 0, %v5977
    %v5979 = vrot.slane %v5928, %v5978
    %v5980 = vlaneseq
    %v5981 = vshrl.u32 %v5980, 7
    %v5982 = vsub.s32 0, %v5981
    %v5983 = vrot.slane %v5936, %v5982
    %v5984 = vlaneseq
    %v5985 = vshrl.u32 %v5984, 7
    %v5986 = vsub.s32 0, %v5985
    %v5987 = vrot.slane %v5938, %v5986
    %v5988 = vlaneseq
    %v5989 = vshrl.u32 %v5988, 7
    %v5990 = vsub.s32 0, %v5989
    %v5991 = vrot.slane %v5921, %v5990
    %v5992 = vlaneseq
    %v5993 = vshrl.u32 %v5992, 7
    %v5994 = vsub.s32 0, %v5993
    %v5995 = vrot.slane %v5935, %v5994
    %v5996 = vlaneseq
    %v5997 = vshrl.u32 %v5996, 7
    %v5998 = vsub.s32 0, %v5997
    %v5999 = vrot.slane %v5937, %v5998
    %v6000 = vlaneseq
    %v6001 = vshrl.u32 %v6000, 7
    %v6002 = vsub.s32 0, %v6001
    %v6003 = vrot.slane %v5939, %v6002
    %v6020 = vsel %vm755, %v5749, %v5943
    %v6021 = vsel %vm755, %v5763, %v5947
    %v6022 = vsel %vm755, %v5771, %v5951
    %v6023 = vsel %vm755, %v5773, %v5955
    %v6024 = vsel %vm755, %v5756, %v5959
    %v6025 = vsel %vm755, %v5770, %v5963
    %v6026 = vsel %vm755, %v5772, %v5967
    %v6027 = vsel %vm755, %v5774, %v5971
    %v6028 = vsel %vm755, %v5798, %v5975
    %v6029 = vsel %vm755, %v5812, %v5979
    %v6030 = vsel %vm755, %v5820, %v5983
    %v6031 = vsel %vm755, %v5822, %v5987
    %v6032 = vsel %vm755, %v5805, %v5991
    %v6033 = vsel %vm755, %v5819, %v5995
    %v6034 = vsel %vm755, %v5821, %v5999
    %v6035 = vsel %vm755, %v5823, %v6003
    %v6036 = vld [vmem:[#allocation21] sm:$0x1]
    %v6037 = vld [vmem:[%s17] sm:$0x1]
    %v6054 = vcombine.low %v6020, %v6021
    %v6055 = vcombine.low %v6022, %v6023
    %v6057 = vunpack.c.l.s4 1983009808
    %v6058 = vunpack.c.0.s8 %v6057
    %v6059 = vlaneseq
    %v6060 = vshrl.u32 %v6059, 7
    %v6061 = vsub.s32 %v6058, %v6060
    %v6062 = vrot.slane %v6054, %v6061
    %v6064 = vunpack.c.l.s4 1983009808
    %v6065 = vunpack.c.0.s8 %v6064
    %v6066 = vlaneseq
    %v6067 = vshrl.u32 %v6066, 7
    %v6068 = vsub.s32 %v6065, %v6067
    %v6069 = vrot.slane %v6055, %v6068
    %v6070 = vcombine.low %v6062, %v6069
    %v6071 = vcombine.low %v6024, %v6025
    %v6072 = vcombine.low %v6026, %v6027
    %v6074 = vunpack.c.l.s4 1983009808
    %v6075 = vunpack.c.0.s8 %v6074
    %v6076 = vlaneseq
    %v6077 = vshrl.u32 %v6076, 7
    %v6078 = vsub.s32 %v6075, %v6077
    %v6079 = vrot.slane %v6071, %v6078
    %v6081 = vunpack.c.l.s4 1983009808
    %v6082 = vunpack.c.0.s8 %v6081
    %v6083 = vlaneseq
    %v6084 = vshrl.u32 %v6083, 7
    %v6085 = vsub.s32 %v6082, %v6084
    %v6086 = vrot.slane %v6072, %v6085
    %v6087 = vcombine.low %v6079, %v6086
    %v6088 = vcombine.low %v6028, %v6029
    %v6089 = vcombine.low %v6030, %v6031
    %v6091 = vunpack.c.l.s4 1983009808
    %v6092 = vunpack.c.0.s8 %v6091
    %v6093 = vlaneseq
    %v6094 = vshrl.u32 %v6093, 7
    %v6095 = vsub.s32 %v6092, %v6094
    %v6096 = vrot.slane %v6088, %v6095
    %v6098 = vunpack.c.l.s4 1983009808
    %v6099 = vunpack.c.0.s8 %v6098
    %v6100 = vlaneseq
    %v6101 = vshrl.u32 %v6100, 7
    %v6102 = vsub.s32 %v6099, %v6101
    %v6103 = vrot.slane %v6089, %v6102
    %v6104 = vcombine.low %v6096, %v6103
    %v6105 = vcombine.low %v6032, %v6033
    %v6106 = vcombine.low %v6034, %v6035
    %v6108 = vunpack.c.l.s4 1983009808
    %v6109 = vunpack.c.0.s8 %v6108
    %v6110 = vlaneseq
    %v6111 = vshrl.u32 %v6110, 7
    %v6112 = vsub.s32 %v6109, %v6111
    %v6113 = vrot.slane %v6105, %v6112
    %v6115 = vunpack.c.l.s4 1983009808
    %v6116 = vunpack.c.0.s8 %v6115
    %v6117 = vlaneseq
    %v6118 = vshrl.u32 %v6117, 7
    %v6119 = vsub.s32 %v6116, %v6118
    %v6120 = vrot.slane %v6106, %v6119
    %v6121 = vcombine.low %v6113, %v6120
    %v6126 = vadd.f32 %v6070, %v6087
    %v6127 = vadd.f32 %v6126, %v6104
    %v6128 = vadd.f32 %v6127, %v6121
    %v6129 = vrot.slane %v6128, 4
    %v6130 = vadd.f32 %v6128, %v6129
    %v6131 = vrot.slane %v6130, 2
    %v6132 = vadd.f32 %v6130, %v6131
    %v6133 = vrot.slane %v6132, 1
    %v6134 = vadd.f32 %v6132, %v6133
    %v6135 = vmul.f32 %v6134, %v1211
    %v6137 = vcombine.high %v6135, %v6135
    %v6139 = vunpack.c.l.s4 1983009808
    %v6140 = vunpack.c.0.s8 %v6139
    %v6141 = vlaneseq
    %v6142 = vshrl.u32 %v6141, 7
    %v6143 = vsub.s32 %v6140, %v6142
    %v6144 = vrot.slane %v6135, %v6143
    %v6146 = vunpack.c.l.s4 1983009808
    %v6147 = vunpack.c.0.s8 %v6146
    %v6148 = vlaneseq
    %v6149 = vshrl.u32 %v6148, 7
    %v6150 = vsub.s32 %v6147, %v6149
    %v6151 = vrot.slane %v6137, %v6150
    %v6152 = vcombine.high %v6144, %v6144
    %v6153 = vcombine.high %v6151, %v6151
    %v6158 = vsub.f32 %v6020, %v6144
    %v6159 = vsub.f32 %v6021, %v6152
    %v6160 = vsub.f32 %v6022, %v6151
    %v6161 = vsub.f32 %v6023, %v6153
    %v6162 = vsub.f32 %v6024, %v6144
    %v6163 = vsub.f32 %v6025, %v6152
    %v6164 = vsub.f32 %v6026, %v6151
    %v6165 = vsub.f32 %v6027, %v6153
    %v6166 = vsub.f32 %v6028, %v6144
    %v6167 = vsub.f32 %v6029, %v6152
    %v6168 = vsub.f32 %v6030, %v6151
    %v6169 = vsub.f32 %v6031, %v6153
    %v6170 = vsub.f32 %v6032, %v6144
    %v6171 = vsub.f32 %v6033, %v6152
    %v6172 = vsub.f32 %v6034, %v6151
    %v6173 = vsub.f32 %v6035, %v6153
    %v6174 = vmul.f32 %v6158, %v6158
    %v6175 = vmul.f32 %v6159, %v6159
    %v6176 = vmul.f32 %v6160, %v6160
    %v6177 = vmul.f32 %v6161, %v6161
    %v6178 = vmul.f32 %v6162, %v6162
    %v6179 = vmul.f32 %v6163, %v6163
    %v6180 = vmul.f32 %v6164, %v6164
    %v6181 = vmul.f32 %v6165, %v6165
    %v6182 = vmul.f32 %v6166, %v6166
    %v6183 = vmul.f32 %v6167, %v6167
    %v6184 = vmul.f32 %v6168, %v6168
    %v6185 = vmul.f32 %v6169, %v6169
    %v6186 = vmul.f32 %v6170, %v6170
    %v6187 = vmul.f32 %v6171, %v6171
    %v6188 = vmul.f32 %v6172, %v6172
    %v6189 = vmul.f32 %v6173, %v6173
    %v6206 = vcombine.low %v6174, %v6175
    %v6207 = vcombine.low %v6176, %v6177
    %v6209 = vunpack.c.l.s4 1983009808
    %v6210 = vunpack.c.0.s8 %v6209
    %v6211 = vlaneseq
    %v6212 = vshrl.u32 %v6211, 7
    %v6213 = vsub.s32 %v6210, %v6212
    %v6214 = vrot.slane %v6206, %v6213
    %v6216 = vunpack.c.l.s4 1983009808
    %v6217 = vunpack.c.0.s8 %v6216
    %v6218 = vlaneseq
    %v6219 = vshrl.u32 %v6218, 7
    %v6220 = vsub.s32 %v6217, %v6219
    %v6221 = vrot.slane %v6207, %v6220
    %v6222 = vcombine.low %v6214, %v6221
    %v6223 = vcombine.low %v6178, %v6179
    %v6224 = vcombine.low %v6180, %v6181
    %v6226 = vunpack.c.l.s4 1983009808
    %v6227 = vunpack.c.0.s8 %v6226
    %v6228 = vlaneseq
    %v6229 = vshrl.u32 %v6228, 7
    %v6230 = vsub.s32 %v6227, %v6229
    %v6231 = vrot.slane %v6223, %v6230
    %v6233 = vunpack.c.l.s4 1983009808
    %v6234 = vunpack.c.0.s8 %v6233
    %v6235 = vlaneseq
    %v6236 = vshrl.u32 %v6235, 7
    %v6237 = vsub.s32 %v6234, %v6236
    %v6238 = vrot.slane %v6224, %v6237
    %v6239 = vcombine.low %v6231, %v6238
    %v6240 = vcombine.low %v6182, %v6183
    %v6241 = vcombine.low %v6184, %v6185
    %v6243 = vunpack.c.l.s4 1983009808
    %v6244 = vunpack.c.0.s8 %v6243
    %v6245 = vlaneseq
    %v6246 = vshrl.u32 %v6245, 7
    %v6247 = vsub.s32 %v6244, %v6246
    %v6248 = vrot.slane %v6240, %v6247
    %v6250 = vunpack.c.l.s4 1983009808
    %v6251 = vunpack.c.0.s8 %v6250
    %v6252 = vlaneseq
    %v6253 = vshrl.u32 %v6252, 7
    %v6254 = vsub.s32 %v6251, %v6253
    %v6255 = vrot.slane %v6241, %v6254
    %v6256 = vcombine.low %v6248, %v6255
    %v6257 = vcombine.low %v6186, %v6187
    %v6258 = vcombine.low %v6188, %v6189
    %v6260 = vunpack.c.l.s4 1983009808
    %v6261 = vunpack.c.0.s8 %v6260
    %v6262 = vlaneseq
    %v6263 = vshrl.u32 %v6262, 7
    %v6264 = vsub.s32 %v6261, %v6263
    %v6265 = vrot.slane %v6257, %v6264
    %v6267 = vunpack.c.l.s4 1983009808
    %v6268 = vunpack.c.0.s8 %v6267
    %v6269 = vlaneseq
    %v6270 = vshrl.u32 %v6269, 7
    %v6271 = vsub.s32 %v6268, %v6270
    %v6272 = vrot.slane %v6258, %v6271
    %v6273 = vcombine.low %v6265, %v6272
    %v6278 = vadd.f32 %v6222, %v6239
    %v6279 = vadd.f32 %v6278, %v6256
    %v6280 = vadd.f32 %v6279, %v6273
    %v6281 = vrot.slane %v6280, 4
    %v6282 = vadd.f32 %v6280, %v6281
    %v6283 = vrot.slane %v6282, 2
    %v6284 = vadd.f32 %v6282, %v6283
    %v6285 = vrot.slane %v6284, 1
    %v6286 = vadd.f32 %v6284, %v6285
    %v6287 = vmul.f32 %v6286, %v1211
    %v6288 = vadd.f32 %v6287, 1e-05
    %v6289 = vrsqrt.pop %v6288
    %v6291 = vcombine.high %v6289, %v6289
    %v6293 = vunpack.c.l.s4 1983009808
    %v6294 = vunpack.c.0.s8 %v6293
    %v6295 = vlaneseq
    %v6296 = vshrl.u32 %v6295, 7
    %v6297 = vsub.s32 %v6294, %v6296
    %v6298 = vrot.slane %v6289, %v6297
    %v6300 = vunpack.c.l.s4 1983009808
    %v6301 = vunpack.c.0.s8 %v6300
    %v6302 = vlaneseq
    %v6303 = vshrl.u32 %v6302, 7
    %v6304 = vsub.s32 %v6301, %v6303
    %v6305 = vrot.slane %v6291, %v6304
    %v6306 = vcombine.high %v6298, %v6298
    %v6307 = vcombine.high %v6305, %v6305
    %v6312 = vmul.f32 %v6158, %v6298
    %v6313 = vmul.f32 %v6159, %v6306
    %v6314 = vmul.f32 %v6160, %v6305
    %v6315 = vmul.f32 %v6161, %v6307
    %v6316 = vmul.f32 %v6162, %v6298
    %v6317 = vmul.f32 %v6163, %v6306
    %v6318 = vmul.f32 %v6164, %v6305
    %v6319 = vmul.f32 %v6165, %v6307
    %v6320 = vmul.f32 %v6166, %v6298
    %v6321 = vmul.f32 %v6167, %v6306
    %v6322 = vmul.f32 %v6168, %v6305
    %v6323 = vmul.f32 %v6169, %v6307
    %v6324 = vmul.f32 %v6170, %v6298
    %v6325 = vmul.f32 %v6171, %v6306
    %v6326 = vmul.f32 %v6172, %v6305
    %v6327 = vmul.f32 %v6173, %v6307
    %v6329 = vlaneseq
    %v6330 = vshrl.u32 %v6329, 7
    %v6331 = vsub.s32 0, %v6330
    %v6332 = vrot.slane %v6036, %v6331
    %v6333 = vcombine.high %v6332, %v6332
    %v6335 = vunpack.c.l.s4 1983009808
    %v6336 = vunpack.c.0.s8 %v6335
    %v6337 = vlaneseq
    %v6338 = vshrl.u32 %v6337, 7
    %v6339 = vsub.s32 %v6336, %v6338
    %v6340 = vrot.slane %v6332, %v6339
    %v6342 = vunpack.c.l.s4 1983009808
    %v6343 = vunpack.c.0.s8 %v6342
    %v6344 = vlaneseq
    %v6345 = vshrl.u32 %v6344, 7
    %v6346 = vsub.s32 %v6343, %v6345
    %v6347 = vrot.slane %v6333, %v6346
    %v6348 = vcombine.high %v6340, %v6340
    %v6349 = vcombine.high %v6347, %v6347
    %v6354 = vmul.f32 %v6312, %v6340
    %v6355 = vmul.f32 %v6313, %v6348
    %v6356 = vmul.f32 %v6314, %v6347
    %v6357 = vmul.f32 %v6315, %v6349
    %v6358 = vmul.f32 %v6316, %v6340
    %v6359 = vmul.f32 %v6317, %v6348
    %v6360 = vmul.f32 %v6318, %v6347
    %v6361 = vmul.f32 %v6319, %v6349
    %v6362 = vmul.f32 %v6320, %v6340
    %v6363 = vmul.f32 %v6321, %v6348
    %v6364 = vmul.f32 %v6322, %v6347
    %v6365 = vmul.f32 %v6323, %v6349
    %v6366 = vmul.f32 %v6324, %v6340
    %v6367 = vmul.f32 %v6325, %v6348
    %v6368 = vmul.f32 %v6326, %v6347
    %v6369 = vmul.f32 %v6327, %v6349
    %v6371 = vlaneseq
    %v6372 = vshrl.u32 %v6371, 7
    %v6373 = vsub.s32 0, %v6372
    %v6374 = vrot.slane %v6037, %v6373
    %v6375 = vcombine.high %v6374, %v6374
    %v6377 = vunpack.c.l.s4 1983009808
    %v6378 = vunpack.c.0.s8 %v6377
    %v6379 = vlaneseq
    %v6380 = vshrl.u32 %v6379, 7
    %v6381 = vsub.s32 %v6378, %v6380
    %v6382 = vrot.slane %v6374, %v6381
    %v6384 = vunpack.c.l.s4 1983009808
    %v6385 = vunpack.c.0.s8 %v6384
    %v6386 = vlaneseq
    %v6387 = vshrl.u32 %v6386, 7
    %v6388 = vsub.s32 %v6385, %v6387
    %v6389 = vrot.slane %v6375, %v6388
    %v6390 = vcombine.high %v6382, %v6382
    %v6391 = vcombine.high %v6389, %v6389
    %v6396 = vadd.f32 %v6354, %v6382
    %v6397 = vadd.f32 %v6355, %v6390
    %v6398 = vadd.f32 %v6356, %v6389
    %v6399 = vadd.f32 %v6357, %v6391
    %v6400 = vadd.f32 %v6358, %v6382
    %v6401 = vadd.f32 %v6359, %v6390
    %v6402 = vadd.f32 %v6360, %v6389
    %v6403 = vadd.f32 %v6361, %v6391
    %v6404 = vadd.f32 %v6362, %v6382
    %v6405 = vadd.f32 %v6363, %v6390
    %v6406 = vadd.f32 %v6364, %v6389
    %v6407 = vadd.f32 %v6365, %v6391
    %v6408 = vadd.f32 %v6366, %v6382
    %v6409 = vadd.f32 %v6367, %v6390
    %v6410 = vadd.f32 %v6368, %v6389
    %v6411 = vadd.f32 %v6369, %v6391
    %v6412 = vmax.f32 %v6396, 0.0
    %v6413 = vmax.f32 %v6397, 0.0
    %v6414 = vmax.f32 %v6398, 0.0
    %v6415 = vmax.f32 %v6399, 0.0
    %v6416 = vmax.f32 %v6400, 0.0
    %v6417 = vmax.f32 %v6401, 0.0
    %v6418 = vmax.f32 %v6402, 0.0
    %v6419 = vmax.f32 %v6403, 0.0
    %v6420 = vmax.f32 %v6404, 0.0
    %v6421 = vmax.f32 %v6405, 0.0
    %v6422 = vmax.f32 %v6406, 0.0
    %v6423 = vmax.f32 %v6407, 0.0
    %v6424 = vmax.f32 %v6408, 0.0
    %v6425 = vmax.f32 %v6409, 0.0
    %v6426 = vmax.f32 %v6410, 0.0
    %v6427 = vmax.f32 %v6411, 0.0
    %v6428 = vld [vmem:[%s18] sm:$0xf]
    %v6429 = vld [vmem:[%s18 + $0x4] sm:$0xf]
    %v6430 = vld [vmem:[%s18 + $0x8] sm:$0xf]
    %v6431 = vld [vmem:[%s18 + $0xc] sm:$0xf]
    %v6432 = vld [vmem:[%s18 + $0x10] sm:$0xf]
    %v6433 = vld [vmem:[%s18 + $0x14] sm:$0xf]
    %v6434 = vld [vmem:[%s18 + $0x18] sm:$0xf]
    %v6435 = vld [vmem:[%s18 + $0x1c] sm:$0xf]
    %v6436 = vld [vmem:[%s18 + $0x20] sm:$0xf]
    %v6437 = vld [vmem:[%s18 + $0x24] sm:$0xf]
    %v6438 = vld [vmem:[%s18 + $0x28] sm:$0xf]
    %v6439 = vld [vmem:[%s18 + $0x2c] sm:$0xf]
    %v6440 = vld [vmem:[%s18 + $0x30] sm:$0xf]
    %v6441 = vld [vmem:[%s18 + $0x34] sm:$0xf]
    %v6442 = vld [vmem:[%s18 + $0x38] sm:$0xf]
    %v6443 = vld [vmem:[%s18 + $0x3c] sm:$0xf]
    %v6444 = vld [vmem:[%s18 + $0x40] sm:$0xf]
    %v6445 = vld [vmem:[%s18 + $0x44] sm:$0xf]
    %v6446 = vld [vmem:[%s18 + $0x48] sm:$0xf]
    %v6447 = vld [vmem:[%s18 + $0x4c] sm:$0xf]
    %v6448 = vld [vmem:[%s18 + $0x50] sm:$0xf]
    %v6449 = vld [vmem:[%s18 + $0x54] sm:$0xf]
    %v6450 = vld [vmem:[%s18 + $0x58] sm:$0xf]
    %v6451 = vld [vmem:[%s18 + $0x5c] sm:$0xf]
    %v6452 = vld [vmem:[%s18 + $0x60] sm:$0xf]
    %v6453 = vld [vmem:[%s18 + $0x64] sm:$0xf]
    %v6454 = vld [vmem:[%s18 + $0x68] sm:$0xf]
    %v6455 = vld [vmem:[%s18 + $0x6c] sm:$0xf]
    %v6456 = vld [vmem:[%s18 + $0x70] sm:$0xf]
    %v6457 = vld [vmem:[%s18 + $0x74] sm:$0xf]
    %v6458 = vld [vmem:[%s18 + $0x78] sm:$0xf]
    %v6459 = vld [vmem:[%s18 + $0x7c] sm:$0xf]
    %v6460 = vld [vmem:[%s19] sm:$0xf]
    %v6461 = vld [vmem:[%s19 + $0x4] sm:$0xf]
    %v6462 = vld [vmem:[%s19 + $0x8] sm:$0xf]
    %v6463 = vld [vmem:[%s19 + $0xc] sm:$0xf]
    %v6464 = vld [vmem:[%s19 + $0x10] sm:$0xf]
    %v6465 = vld [vmem:[%s19 + $0x14] sm:$0xf]
    %v6466 = vld [vmem:[%s19 + $0x18] sm:$0xf]
    %v6467 = vld [vmem:[%s19 + $0x1c] sm:$0xf]
    %v6468 = vld [vmem:[%s19 + $0x20] sm:$0xf]
    %v6469 = vld [vmem:[%s19 + $0x24] sm:$0xf]
    %v6470 = vld [vmem:[%s19 + $0x28] sm:$0xf]
    %v6471 = vld [vmem:[%s19 + $0x2c] sm:$0xf]
    %v6472 = vld [vmem:[%s19 + $0x30] sm:$0xf]
    %v6473 = vld [vmem:[%s19 + $0x34] sm:$0xf]
    %v6474 = vld [vmem:[%s19 + $0x38] sm:$0xf]
    %v6475 = vld [vmem:[%s19 + $0x3c] sm:$0xf]
    %v6476 = vld [vmem:[%s19 + $0x40] sm:$0xf]
    %v6477 = vld [vmem:[%s19 + $0x44] sm:$0xf]
    %v6478 = vld [vmem:[%s19 + $0x48] sm:$0xf]
    %v6479 = vld [vmem:[%s19 + $0x4c] sm:$0xf]
    %v6480 = vld [vmem:[%s19 + $0x50] sm:$0xf]
    %v6481 = vld [vmem:[%s19 + $0x54] sm:$0xf]
    %v6482 = vld [vmem:[%s19 + $0x58] sm:$0xf]
    %v6483 = vld [vmem:[%s19 + $0x5c] sm:$0xf]
    %v6484 = vld [vmem:[%s19 + $0x60] sm:$0xf]
    %v6485 = vld [vmem:[%s19 + $0x64] sm:$0xf]
    %v6486 = vld [vmem:[%s19 + $0x68] sm:$0xf]
    %v6487 = vld [vmem:[%s19 + $0x6c] sm:$0xf]
    %v6488 = vld [vmem:[%s19 + $0x70] sm:$0xf]
    %v6489 = vld [vmem:[%s19 + $0x74] sm:$0xf]
    %v6490 = vld [vmem:[%s19 + $0x78] sm:$0xf]
    %v6491 = vld [vmem:[%s19 + $0x7c] sm:$0xf]
    %v6508 = vcombine.low %v6412, %v6413
    %v6509 = vcombine.low %v6414, %v6415
    %v6511 = vunpack.c.l.s4 1983009808
    %v6512 = vunpack.c.0.s8 %v6511
    %v6513 = vlaneseq
    %v6514 = vshrl.u32 %v6513, 7
    %v6515 = vsub.s32 %v6512, %v6514
    %v6516 = vrot.slane %v6508, %v6515
    %v6518 = vunpack.c.l.s4 1983009808
    %v6519 = vunpack.c.0.s8 %v6518
    %v6520 = vlaneseq
    %v6521 = vshrl.u32 %v6520, 7
    %v6522 = vsub.s32 %v6519, %v6521
    %v6523 = vrot.slane %v6509, %v6522
    %v6524 = vcombine.low %v6516, %v6523
    %v6525 = vcombine.low %v6416, %v6417
    %v6526 = vcombine.low %v6418, %v6419
    %v6528 = vunpack.c.l.s4 1983009808
    %v6529 = vunpack.c.0.s8 %v6528
    %v6530 = vlaneseq
    %v6531 = vshrl.u32 %v6530, 7
    %v6532 = vsub.s32 %v6529, %v6531
    %v6533 = vrot.slane %v6525, %v6532
    %v6535 = vunpack.c.l.s4 1983009808
    %v6536 = vunpack.c.0.s8 %v6535
    %v6537 = vlaneseq
    %v6538 = vshrl.u32 %v6537, 7
    %v6539 = vsub.s32 %v6536, %v6538
    %v6540 = vrot.slane %v6526, %v6539
    %v6541 = vcombine.low %v6533, %v6540
    %v6542 = vcombine.low %v6420, %v6421
    %v6543 = vcombine.low %v6422, %v6423
    %v6545 = vunpack.c.l.s4 1983009808
    %v6546 = vunpack.c.0.s8 %v6545
    %v6547 = vlaneseq
    %v6548 = vshrl.u32 %v6547, 7
    %v6549 = vsub.s32 %v6546, %v6548
    %v6550 = vrot.slane %v6542, %v6549
    %v6552 = vunpack.c.l.s4 1983009808
    %v6553 = vunpack.c.0.s8 %v6552
    %v6554 = vlaneseq
    %v6555 = vshrl.u32 %v6554, 7
    %v6556 = vsub.s32 %v6553, %v6555
    %v6557 = vrot.slane %v6543, %v6556
    %v6558 = vcombine.low %v6550, %v6557
    %v6559 = vcombine.low %v6424, %v6425
    %v6560 = vcombine.low %v6426, %v6427
    %v6562 = vunpack.c.l.s4 1983009808
    %v6563 = vunpack.c.0.s8 %v6562
    %v6564 = vlaneseq
    %v6565 = vshrl.u32 %v6564, 7
    %v6566 = vsub.s32 %v6563, %v6565
    %v6567 = vrot.slane %v6559, %v6566
    %v6569 = vunpack.c.l.s4 1983009808
    %v6570 = vunpack.c.0.s8 %v6569
    %v6571 = vlaneseq
    %v6572 = vshrl.u32 %v6571, 7
    %v6573 = vsub.s32 %v6570, %v6572
    %v6574 = vrot.slane %v6560, %v6573
    %v6575 = vcombine.low %v6567, %v6574
    %v6576 = vrot.slane %v6524, 7
    %v6577 = vrot.slane %v6541, 7
    %v6578 = vsel %vm755, %v6576, %v6577
    %v6579 = vrot.slane %v6558, 7
    %v6580 = vrot.slane %v6575, 7
    %v6581 = vsel %vm755, %v6579, %v6580
    %v6586 = vsel %vm755, 0.0, %v6576
    %v6587 = vsel %vm755, 0.0, %v6579
    %v6588 = vrot.slane %v6524, 1
    %v6589 = vrot.slane %v6541, 1
    %v6590 = vsel %vm906, %v6588, %v6589
    %v6591 = vrot.slane %v6558, 1
    %v6592 = vrot.slane %v6575, 1
    %v6593 = vsel %vm906, %v6591, %v6592
    %v6598 = vsel %vm906, %v6589, 0.0
    %v6599 = vsel %vm906, %v6592, 0.0
    %v6604 = vpack.c.bf16 %v6541, %v6524
    %v6605 = vpack.c.bf16 %v6578, %v6586
    %v6606 = vpack.c.bf16 %v6575, %v6558
    %v6607 = vpack.c.bf16 %v6581, %v6587
    %v6640 = vunpack.c.l.b16 %v6428
    %v6641 = vunpack.c.l.b16 %v6429
    %v6642 = vunpack.c.l.b16 %v6430
    %v6643 = vunpack.c.l.b16 %v6431
    %v6644 = vunpack.c.l.b16 %v6432
    %v6645 = vunpack.c.l.b16 %v6433
    %v6646 = vunpack.c.l.b16 %v6434
    %v6647 = vunpack.c.l.b16 %v6435
    %v6648 = vunpack.c.l.b16 %v6436
    %v6649 = vunpack.c.l.b16 %v6437
    %v6650 = vunpack.c.l.b16 %v6438
    %v6651 = vunpack.c.l.b16 %v6439
    %v6652 = vunpack.c.l.b16 %v6440
    %v6653 = vunpack.c.l.b16 %v6441
    %v6654 = vunpack.c.l.b16 %v6442
    %v6655 = vunpack.c.l.b16 %v6443
    %v6656 = vunpack.c.l.b16 %v6444
    %v6657 = vunpack.c.l.b16 %v6445
    %v6658 = vunpack.c.l.b16 %v6446
    %v6659 = vunpack.c.l.b16 %v6447
    %v6660 = vunpack.c.l.b16 %v6448
    %v6661 = vunpack.c.l.b16 %v6449
    %v6662 = vunpack.c.l.b16 %v6450
    %v6663 = vunpack.c.l.b16 %v6451
    %v6664 = vunpack.c.l.b16 %v6452
    %v6665 = vunpack.c.l.b16 %v6453
    %v6666 = vunpack.c.l.b16 %v6454
    %v6667 = vunpack.c.l.b16 %v6455
    %v6668 = vunpack.c.l.b16 %v6456
    %v6669 = vunpack.c.l.b16 %v6457
    %v6670 = vunpack.c.l.b16 %v6458
    %v6671 = vunpack.c.l.b16 %v6459
    %v6672 = vpack.c.b16 %v6641, %v6640
    %v6673 = vpack.c.b16 %v6643, %v6642
    %v6674 = vpack.c.b16 %v6645, %v6644
    %v6675 = vpack.c.b16 %v6647, %v6646
    %v6676 = vpack.c.b16 %v6649, %v6648
    %v6677 = vpack.c.b16 %v6651, %v6650
    %v6678 = vpack.c.b16 %v6653, %v6652
    %v6679 = vpack.c.b16 %v6655, %v6654
    %v6680 = vpack.c.b16 %v6657, %v6656
    %v6681 = vpack.c.b16 %v6659, %v6658
    %v6682 = vpack.c.b16 %v6661, %v6660
    %v6683 = vpack.c.b16 %v6663, %v6662
    %v6684 = vpack.c.b16 %v6665, %v6664
    %v6685 = vpack.c.b16 %v6667, %v6666
    %v6686 = vpack.c.b16 %v6669, %v6668
    %v6687 = vpack.c.b16 %v6671, %v6670
    %6704 = vmatprep.subr.bf16.mxu0 0
    %6705 = vmatpush1.bf16.msra.mxu0 %v6672
    %6706 = vmatprep.subr.bf16.mxu0 0
    %6707 = vmatpush1.bf16.msra.mxu0 %v6673
    %6708 = vmatprep.subr.bf16.mxu0 0
    %6709 = vmatpush1.bf16.msra.mxu0 %v6674
    %6710 = vmatprep.subr.bf16.mxu0 0
    %6711 = vmatpush1.bf16.msra.mxu0 %v6675
    %6712 = vmatprep.subr.bf16.mxu0 0
    %6713 = vmatpush1.bf16.msra.mxu0 %v6676
    %6714 = vmatprep.subr.bf16.mxu0 0
    %6715 = vmatpush1.bf16.msra.mxu0 %v6677
    %6716 = vmatprep.subr.bf16.mxu0 0
    %6717 = vmatpush1.bf16.msra.mxu0 %v6678
    %6718 = vmatprep.subr.bf16.mxu0 0
    %6719 = vmatpush1.bf16.msra.mxu0 %v6679
    %6720 = vmatprep.subr.bf16.mxu0 0
    %6721 = vmatpush1.bf16.msra.mxu0 %v6680
    %6722 = vmatprep.subr.bf16.mxu0 0
    %6723 = vmatpush1.bf16.msra.mxu0 %v6681
    %6724 = vmatprep.subr.bf16.mxu0 0
    %6725 = vmatpush1.bf16.msra.mxu0 %v6682
    %6726 = vmatprep.subr.bf16.mxu0 0
    %6727 = vmatpush1.bf16.msra.mxu0 %v6683
    %6728 = vmatprep.subr.bf16.mxu0 0
    %6729 = vmatpush1.bf16.msra.mxu0 %v6684
    %6730 = vmatprep.subr.bf16.mxu0 0
    %6731 = vmatpush1.bf16.msra.mxu0 %v6685
    %6732 = vmatprep.subr.bf16.mxu0 0
    %6733 = vmatpush1.bf16.msra.mxu0 %v6686
    %6734 = vmatprep.subr.bf16.mxu0 0
    %6735 = vmatpush1.bf16.msra.mxu0 %v6687
    %6736 = vmatprep.mubr.bf16.mxu0 %v6605
    %6737 = vmatmul.mubr.bf16.gmra.mrb[0].mxu0 %v6604
    %v6738 = vpop.f32.mrb[0].mxu0
    %v6739 = vadd.f32 0.0, %v6738
    %v6740 = vpop.f32.mrb[0].mxu0
    %v6741 = vpop.f32.mrb[0].mxu0
    %v6742 = vadd.f32 0.0, %v6741
    %v6743 = vpop.f32.mrb[0].mxu0
    %6744 = vmatprep.mubr.bf16.mxu0 %v6607
    %6745 = vmatmul.mubr.bf16.gmra.mrb[0].mxu0 %v6606
    %v6746 = vpop.f32.mrb[0].mxu0
    %v6747 = vadd.f32 0.0, %v6746
    %v6748 = vpop.f32.mrb[0].mxu0
    %v6749 = vpop.f32.mrb[0].mxu0
    %v6750 = vadd.f32 0.0, %v6749
    %v6751 = vpop.f32.mrb[0].mxu0
    %6752 = vdwg.mxu0
    %v6753 = vpack.c.bf16 %v6598, %v6590
    %v6754 = vpack.c.bf16 %v6599, %v6593
    %v6787 = vunpack.c.l.b16 %v6460
    %v6788 = vunpack.c.l.b16 %v6461
    %v6789 = vunpack.c.l.b16 %v6462
    %v6790 = vunpack.c.l.b16 %v6463
    %v6791 = vunpack.c.l.b16 %v6464
    %v6792 = vunpack.c.l.b16 %v6465
    %v6793 = vunpack.c.l.b16 %v6466
    %v6794 = vunpack.c.l.b16 %v6467
    %v6795 = vunpack.c.l.b16 %v6468
    %v6796 = vunpack.c.l.b16 %v6469
    %v6797 = vunpack.c.l.b16 %v6470
    %v6798 = vunpack.c.l.b16 %v6471
    %v6799 = vunpack.c.l.b16 %v6472
    %v6800 = vunpack.c.l.b16 %v6473
    %v6801 = vunpack.c.l.b16 %v6474
    %v6802 = vunpack.c.l.b16 %v6475
    %v6803 = vunpack.c.l.b16 %v6476
    %v6804 = vunpack.c.l.b16 %v6477
    %v6805 = vunpack.c.l.b16 %v6478
    %v6806 = vunpack.c.l.b16 %v6479
    %v6807 = vunpack.c.l.b16 %v6480
    %v6808 = vunpack.c.l.b16 %v6481
    %v6809 = vunpack.c.l.b16 %v6482
    %v6810 = vunpack.c.l.b16 %v6483
    %v6811 = vunpack.c.l.b16 %v6484
    %v6812 = vunpack.c.l.b16 %v6485
    %v6813 = vunpack.c.l.b16 %v6486
    %v6814 = vunpack.c.l.b16 %v6487
    %v6815 = vunpack.c.l.b16 %v6488
    %v6816 = vunpack.c.l.b16 %v6489
    %v6817 = vunpack.c.l.b16 %v6490
    %v6818 = vunpack.c.l.b16 %v6491
    %v6819 = vpack.c.b16 %v6788, %v6787
    %v6820 = vpack.c.b16 %v6790, %v6789
    %v6821 = vpack.c.b16 %v6792, %v6791
    %v6822 = vpack.c.b16 %v6794, %v6793
    %v6823 = vpack.c.b16 %v6796, %v6795
    %v6824 = vpack.c.b16 %v6798, %v6797
    %v6825 = vpack.c.b16 %v6800, %v6799
    %v6826 = vpack.c.b16 %v6802, %v6801
    %v6827 = vpack.c.b16 %v6804, %v6803
    %v6828 = vpack.c.b16 %v6806, %v6805
    %v6829 = vpack.c.b16 %v6808, %v6807
    %v6830 = vpack.c.b16 %v6810, %v6809
    %v6831 = vpack.c.b16 %v6812, %v6811
    %v6832 = vpack.c.b16 %v6814, %v6813
    %v6833 = vpack.c.b16 %v6816, %v6815
    %v6834 = vpack.c.b16 %v6818, %v6817
    %6851 = vmatprep.subr.bf16.mxu0 0
    %6852 = vmatpush1.bf16.msra.mxu0 %v6819
    %6853 = vmatprep.subr.bf16.mxu0 0
    %6854 = vmatpush1.bf16.msra.mxu0 %v6820
    %6855 = vmatprep.subr.bf16.mxu0 0
    %6856 = vmatpush1.bf16.msra.mxu0 %v6821
    %6857 = vmatprep.subr.bf16.mxu0 0
    %6858 = vmatpush1.bf16.msra.mxu0 %v6822
    %6859 = vmatprep.subr.bf16.mxu0 0
    %6860 = vmatpush1.bf16.msra.mxu0 %v6823
    %6861 = vmatprep.subr.bf16.mxu0 0
    %6862 = vmatpush1.bf16.msra.mxu0 %v6824
    %6863 = vmatprep.subr.bf16.mxu0 0
    %6864 = vmatpush1.bf16.msra.mxu0 %v6825
    %6865 = vmatprep.subr.bf16.mxu0 0
    %6866 = vmatpush1.bf16.msra.mxu0 %v6826
    %6867 = vmatprep.subr.bf16.mxu0 0
    %6868 = vmatpush1.bf16.msra.mxu0 %v6827
    %6869 = vmatprep.subr.bf16.mxu0 0
    %6870 = vmatpush1.bf16.msra.mxu0 %v6828
    %6871 = vmatprep.subr.bf16.mxu0 0
    %6872 = vmatpush1.bf16.msra.mxu0 %v6829
    %6873 = vmatprep.subr.bf16.mxu0 0
    %6874 = vmatpush1.bf16.msra.mxu0 %v6830
    %6875 = vmatprep.subr.bf16.mxu0 0
    %6876 = vmatpush1.bf16.msra.mxu0 %v6831
    %6877 = vmatprep.subr.bf16.mxu0 0
    %6878 = vmatpush1.bf16.msra.mxu0 %v6832
    %6879 = vmatprep.subr.bf16.mxu0 0
    %6880 = vmatpush1.bf16.msra.mxu0 %v6833
    %6881 = vmatprep.subr.bf16.mxu0 0
    %6882 = vmatpush1.bf16.msra.mxu0 %v6834
    %6883 = vmatprep.mubr.bf16.mxu0 %v6604
    %6884 = vmatmul.mubr.bf16.gmra.mrb[0].mxu0 %v6753
    %v6885 = vpop.f32.mrb[0].mxu0
    %v6886 = vadd.f32 0.0, %v6885
    %v6887 = vpop.f32.mrb[0].mxu0
    %v6888 = vpop.f32.mrb[0].mxu0
    %v6889 = vadd.f32 0.0, %v6888
    %v6890 = vpop.f32.mrb[0].mxu0
    %6891 = vmatprep.mubr.bf16.mxu0 %v6606
    %6892 = vmatmul.mubr.bf16.gmra.mrb[0].mxu0 %v6754
    %v6893 = vpop.f32.mrb[0].mxu0
    %v6894 = vadd.f32 0.0, %v6893
    %v6895 = vpop.f32.mrb[0].mxu0
    %v6896 = vpop.f32.mrb[0].mxu0
    %v6897 = vadd.f32 0.0, %v6896
    %v6898 = vpop.f32.mrb[0].mxu0
    %6899 = vdwg.mxu0
    %v6904 = vcombine.high %v6739, %v6739
    %v6906 = vunpack.c.l.s4 1966171168
    %v6907 = vunpack.c.0.s8 %v6906
    %v6908 = vlaneseq
    %v6909 = vshrl.u32 %v6908, 7
    %v6910 = vsub.s32 %v6907, %v6909
    %v6911 = vrot.slane %v6739, %v6910
    %v6913 = vunpack.c.l.s4 1966171168
    %v6914 = vunpack.c.0.s8 %v6913
    %v6915 = vlaneseq
    %v6916 = vshrl.u32 %v6915, 7
    %v6917 = vsub.s32 %v6914, %v6916
    %v6918 = vrot.slane %v6904, %v6917
    %v6919 = vcombine.high %v6911, %v6911
    %v6920 = vcombine.high %v6918, %v6918
    %v6922 = vunpack.c.l.s4 1966171168
    %v6923 = vunpack.c.0.s8 %v6922
    %v6924 = vlaneseq
    %v6925 = vshrl.u32 %v6924, 7
    %v6926 = vsub.s32 %v6923, %v6925
    %v6927 = vrot.slane %v6911, %v6926
    %v6929 = vunpack.c.l.s4 1966171168
    %v6930 = vunpack.c.0.s8 %v6929
    %v6931 = vlaneseq
    %v6932 = vshrl.u32 %v6931, 7
    %v6933 = vsub.s32 %v6930, %v6932
    %v6934 = vrot.slane %v6918, %v6933
    %v6936 = vunpack.c.l.s4 1966171168
    %v6937 = vunpack.c.0.s8 %v6936
    %v6938 = vlaneseq
    %v6939 = vshrl.u32 %v6938, 7
    %v6940 = vsub.s32 %v6937, %v6939
    %v6941 = vrot.slane %v6919, %v6940
    %v6943 = vunpack.c.l.s4 1966171168
    %v6944 = vunpack.c.0.s8 %v6943
    %v6945 = vlaneseq
    %v6946 = vshrl.u32 %v6945, 7
    %v6947 = vsub.s32 %v6944, %v6946
    %v6948 = vrot.slane %v6920, %v6947
    %v6949 = vcombine.high %v6927, %v6927
    %v6950 = vcombine.high %v6934, %v6934
    %v6951 = vcombine.high %v6941, %v6941
    %v6952 = vcombine.high %v6948, %v6948
    %v6953 = vcombine.high %v6742, %v6742
    %v6955 = vunpack.c.l.s4 1966171168
    %v6956 = vunpack.c.0.s8 %v6955
    %v6957 = vlaneseq
    %v6958 = vshrl.u32 %v6957, 7
    %v6959 = vsub.s32 %v6956, %v6958
    %v6960 = vrot.slane %v6742, %v6959
    %v6962 = vunpack.c.l.s4 1966171168
    %v6963 = vunpack.c.0.s8 %v6962
    %v6964 = vlaneseq
    %v6965 = vshrl.u32 %v6964, 7
    %v6966 = vsub.s32 %v6963, %v6965
    %v6967 = vrot.slane %v6953, %v6966
    %v6968 = vcombine.high %v6960, %v6960
    %v6969 = vcombine.high %v6967, %v6967
    %v6971 = vunpack.c.l.s4 1966171168
    %v6972 = vunpack.c.0.s8 %v6971
    %v6973 = vlaneseq
    %v6974 = vshrl.u32 %v6973, 7
    %v6975 = vsub.s32 %v6972, %v6974
    %v6976 = vrot.slane %v6960, %v6975
    %v6978 = vunpack.c.l.s4 1966171168
    %v6979 = vunpack.c.0.s8 %v6978
    %v6980 = vlaneseq
    %v6981 = vshrl.u32 %v6980, 7
    %v6982 = vsub.s32 %v6979, %v6981
    %v6983 = vrot.slane %v6967, %v6982
    %v6985 = vunpack.c.l.s4 1966171168
    %v6986 = vunpack.c.0.s8 %v6985
    %v6987 = vlaneseq
    %v6988 = vshrl.u32 %v6987, 7
    %v6989 = vsub.s32 %v6986, %v6988
    %v6990 = vrot.slane %v6968, %v6989
    %v6992 = vunpack.c.l.s4 1966171168
    %v6993 = vunpack.c.0.s8 %v6992
    %v6994 = vlaneseq
    %v6995 = vshrl.u32 %v6994, 7
    %v6996 = vsub.s32 %v6993, %v6995
    %v6997 = vrot.slane %v6969, %v6996
    %v6998 = vcombine.high %v6976, %v6976
    %v6999 = vcombine.high %v6983, %v6983
    %v7000 = vcombine.high %v6990, %v6990
    %v7001 = vcombine.high %v6997, %v6997
    %v7002 = vcombine.high %v6747, %v6747
    %v7004 = vunpack.c.l.s4 1966171168
    %v7005 = vunpack.c.0.s8 %v7004
    %v7006 = vlaneseq
    %v7007 = vshrl.u32 %v7006, 7
    %v7008 = vsub.s32 %v7005, %v7007
    %v7009 = vrot.slane %v6747, %v7008
    %v7011 = vunpack.c.l.s4 1966171168
    %v7012 = vunpack.c.0.s8 %v7011
    %v7013 = vlaneseq
    %v7014 = vshrl.u32 %v7013, 7
    %v7015 = vsub.s32 %v7012, %v7014
    %v7016 = vrot.slane %v7002, %v7015
    %v7017 = vcombine.high %v7009, %v7009
    %v7018 = vcombine.high %v7016, %v7016
    %v7020 = vunpack.c.l.s4 1966171168
    %v7021 = vunpack.c.0.s8 %v7020
    %v7022 = vlaneseq
    %v7023 = vshrl.u32 %v7022, 7
    %v7024 = vsub.s32 %v7021, %v7023
    %v7025 = vrot.slane %v7009, %v7024
    %v7027 = vunpack.c.l.s4 1966171168
    %v7028 = vunpack.c.0.s8 %v7027
    %v7029 = vlaneseq
    %v7030 = vshrl.u32 %v7029, 7
    %v7031 = vsub.s32 %v7028, %v7030
    %v7032 = vrot.slane %v7016, %v7031
    %v7034 = vunpack.c.l.s4 1966171168
    %v7035 = vunpack.c.0.s8 %v7034
    %v7036 = vlaneseq
    %v7037 = vshrl.u32 %v7036, 7
    %v7038 = vsub.s32 %v7035, %v7037
    %v7039 = vrot.slane %v7017, %v7038
    %v7041 = vunpack.c.l.s4 1966171168
    %v7042 = vunpack.c.0.s8 %v7041
    %v7043 = vlaneseq
    %v7044 = vshrl.u32 %v7043, 7
    %v7045 = vsub.s32 %v7042, %v7044
    %v7046 = vrot.slane %v7018, %v7045
    %v7047 = vcombine.high %v7025, %v7025
    %v7048 = vcombine.high %v7032, %v7032
    %v7049 = vcombine.high %v7039, %v7039
    %v7050 = vcombine.high %v7046, %v7046
    %v7051 = vcombine.high %v6750, %v6750
    %v7053 = vunpack.c.l.s4 1966171168
    %v7054 = vunpack.c.0.s8 %v7053
    %v7055 = vlaneseq
    %v7056 = vshrl.u32 %v7055, 7
    %v7057 = vsub.s32 %v7054, %v7056
    %v7058 = vrot.slane %v6750, %v7057
    %v7060 = vunpack.c.l.s4 1966171168
    %v7061 = vunpack.c.0.s8 %v7060
    %v7062 = vlaneseq
    %v7063 = vshrl.u32 %v7062, 7
    %v7064 = vsub.s32 %v7061, %v7063
    %v7065 = vrot.slane %v7051, %v7064
    %v7066 = vcombine.high %v7058, %v7058
    %v7067 = vcombine.high %v7065, %v7065
    %v7069 = vunpack.c.l.s4 1966171168
    %v7070 = vunpack.c.0.s8 %v7069
    %v7071 = vlaneseq
    %v7072 = vshrl.u32 %v7071, 7
    %v7073 = vsub.s32 %v7070, %v7072
    %v7074 = vrot.slane %v7058, %v7073
    %v7076 = vunpack.c.l.s4 1966171168
    %v7077 = vunpack.c.0.s8 %v7076
    %v7078 = vlaneseq
    %v7079 = vshrl.u32 %v7078, 7
    %v7080 = vsub.s32 %v7077, %v7079
    %v7081 = vrot.slane %v7065, %v7080
    %v7083 = vunpack.c.l.s4 1966171168
    %v7084 = vunpack.c.0.s8 %v7083
    %v7085 = vlaneseq
    %v7086 = vshrl.u32 %v7085, 7
    %v7087 = vsub.s32 %v7084, %v7086
    %v7088 = vrot.slane %v7066, %v7087
    %v7090 = vunpack.c.l.s4 1966171168
    %v7091 = vunpack.c.0.s8 %v7090
    %v7092 = vlaneseq
    %v7093 = vshrl.u32 %v7092, 7
    %v7094 = vsub.s32 %v7091, %v7093
    %v7095 = vrot.slane %v7067, %v7094
    %v7096 = vcombine.high %v7074, %v7074
    %v7097 = vcombine.high %v7081, %v7081
    %v7098 = vcombine.high %v7088, %v7088
    %v7099 = vcombine.high %v7095, %v7095
    %v7136 = vcombine.high %v6886, %v6886
    %v7138 = vunpack.c.l.s4 1966171168
    %v7139 = vunpack.c.0.s8 %v7138
    %v7140 = vlaneseq
    %v7141 = vshrl.u32 %v7140, 7
    %v7142 = vsub.s32 %v7139, %v7141
    %v7143 = vrot.slane %v6886, %v7142
    %v7145 = vunpack.c.l.s4 1966171168
    %v7146 = vunpack.c.0.s8 %v7145
    %v7147 = vlaneseq
    %v7148 = vshrl.u32 %v7147, 7
    %v7149 = vsub.s32 %v7146, %v7148
    %v7150 = vrot.slane %v7136, %v7149
    %v7151 = vcombine.high %v7143, %v7143
    %v7152 = vcombine.high %v7150, %v7150
    %v7154 = vunpack.c.l.s4 1966171168
    %v7155 = vunpack.c.0.s8 %v7154
    %v7156 = vlaneseq
    %v7157 = vshrl.u32 %v7156, 7
    %v7158 = vsub.s32 %v7155, %v7157
    %v7159 = vrot.slane %v7143, %v7158
    %v7161 = vunpack.c.l.s4 1966171168
    %v7162 = vunpack.c.0.s8 %v7161
    %v7163 = vlaneseq
    %v7164 = vshrl.u32 %v7163, 7
    %v7165 = vsub.s32 %v7162, %v7164
    %v7166 = vrot.slane %v7150, %v7165
    %v7168 = vunpack.c.l.s4 1966171168
    %v7169 = vunpack.c.0.s8 %v7168
    %v7170 = vlaneseq
    %v7171 = vshrl.u32 %v7170, 7
    %v7172 = vsub.s32 %v7169, %v7171
    %v7173 = vrot.slane %v7151, %v7172
    %v7175 = vunpack.c.l.s4 1966171168
    %v7176 = vunpack.c.0.s8 %v7175
    %v7177 = vlaneseq
    %v7178 = vshrl.u32 %v7177, 7
    %v7179 = vsub.s32 %v7176, %v7178
    %v7180 = vrot.slane %v7152, %v7179
    %v7181 = vcombine.high %v7159, %v7159
    %v7182 = vcombine.high %v7166, %v7166
    %v7183 = vcombine.high %v7173, %v7173
    %v7184 = vcombine.high %v7180, %v7180
    %v7185 = vcombine.high %v6889, %v6889
    %v7187 = vunpack.c.l.s4 1966171168
    %v7188 = vunpack.c.0.s8 %v7187
    %v7189 = vlaneseq
    %v7190 = vshrl.u32 %v7189, 7
    %v7191 = vsub.s32 %v7188, %v7190
    %v7192 = vrot.slane %v6889, %v7191
    %v7194 = vunpack.c.l.s4 1966171168
    %v7195 = vunpack.c.0.s8 %v7194
    %v7196 = vlaneseq
    %v7197 = vshrl.u32 %v7196, 7
    %v7198 = vsub.s32 %v7195, %v7197
    %v7199 = vrot.slane %v7185, %v7198
    %v7200 = vcombine.high %v7192, %v7192
    %v7201 = vcombine.high %v7199, %v7199
    %v7203 = vunpack.c.l.s4 1966171168
    %v7204 = vunpack.c.0.s8 %v7203
    %v7205 = vlaneseq
    %v7206 = vshrl.u32 %v7205, 7
    %v7207 = vsub.s32 %v7204, %v7206
    %v7208 = vrot.slane %v7192, %v7207
    %v7210 = vunpack.c.l.s4 1966171168
    %v7211 = vunpack.c.0.s8 %v7210
    %v7212 = vlaneseq
    %v7213 = vshrl.u32 %v7212, 7
    %v7214 = vsub.s32 %v7211, %v7213
    %v7215 = vrot.slane %v7199, %v7214
    %v7217 = vunpack.c.l.s4 1966171168
    %v7218 = vunpack.c.0.s8 %v7217
    %v7219 = vlaneseq
    %v7220 = vshrl.u32 %v7219, 7
    %v7221 = vsub.s32 %v7218, %v7220
    %v7222 = vrot.slane %v7200, %v7221
    %v7224 = vunpack.c.l.s4 1966171168
    %v7225 = vunpack.c.0.s8 %v7224
    %v7226 = vlaneseq
    %v7227 = vshrl.u32 %v7226, 7
    %v7228 = vsub.s32 %v7225, %v7227
    %v7229 = vrot.slane %v7201, %v7228
    %v7230 = vcombine.high %v7208, %v7208
    %v7231 = vcombine.high %v7215, %v7215
    %v7232 = vcombine.high %v7222, %v7222
    %v7233 = vcombine.high %v7229, %v7229
    %v7234 = vcombine.high %v6894, %v6894
    %v7236 = vunpack.c.l.s4 1966171168
    %v7237 = vunpack.c.0.s8 %v7236
    %v7238 = vlaneseq
    %v7239 = vshrl.u32 %v7238, 7
    %v7240 = vsub.s32 %v7237, %v7239
    %v7241 = vrot.slane %v6894, %v7240
    %v7243 = vunpack.c.l.s4 1966171168
    %v7244 = vunpack.c.0.s8 %v7243
    %v7245 = vlaneseq
    %v7246 = vshrl.u32 %v7245, 7
    %v7247 = vsub.s32 %v7244, %v7246
    %v7248 = vrot.slane %v7234, %v7247
    %v7249 = vcombine.high %v7241, %v7241
    %v7250 = vcombine.high %v7248, %v7248
    %v7252 = vunpack.c.l.s4 1966171168
    %v7253 = vunpack.c.0.s8 %v7252
    %v7254 = vlaneseq
    %v7255 = vshrl.u32 %v7254, 7
    %v7256 = vsub.s32 %v7253, %v7255
    %v7257 = vrot.slane %v7241, %v7256
    %v7259 = vunpack.c.l.s4 1966171168
    %v7260 = vunpack.c.0.s8 %v7259
    %v7261 = vlaneseq
    %v7262 = vshrl.u32 %v7261, 7
    %v7263 = vsub.s32 %v7260, %v7262
    %v7264 = vrot.slane %v7248, %v7263
    %v7266 = vunpack.c.l.s4 1966171168
    %v7267 = vunpack.c.0.s8 %v7266
    %v7268 = vlaneseq
    %v7269 = vshrl.u32 %v7268, 7
    %v7270 = vsub.s32 %v7267, %v7269
    %v7271 = vrot.slane %v7249, %v7270
    %v7273 = vunpack.c.l.s4 1966171168
    %v7274 = vunpack.c.0.s8 %v7273
    %v7275 = vlaneseq
    %v7276 = vshrl.u32 %v7275, 7
    %v7277 = vsub.s32 %v7274, %v7276
    %v7278 = vrot.slane %v7250, %v7277
    %v7279 = vcombine.high %v7257, %v7257
    %v7280 = vcombine.high %v7264, %v7264
    %v7281 = vcombine.high %v7271, %v7271
    %v7282 = vcombine.high %v7278, %v7278
    %v7283 = vcombine.high %v6897, %v6897
    %v7285 = vunpack.c.l.s4 1966171168
    %v7286 = vunpack.c.0.s8 %v7285
    %v7287 = vlaneseq
    %v7288 = vshrl.u32 %v7287, 7
    %v7289 = vsub.s32 %v7286, %v7288
    %v7290 = vrot.slane %v6897, %v7289
    %v7292 = vunpack.c.l.s4 1966171168
    %v7293 = vunpack.c.0.s8 %v7292
    %v7294 = vlaneseq
    %v7295 = vshrl.u32 %v7294, 7
    %v7296 = vsub.s32 %v7293, %v7295
    %v7297 = vrot.slane %v7283, %v7296
    %v7298 = vcombine.high %v7290, %v7290
    %v7299 = vcombine.high %v7297, %v7297
    %v7301 = vunpack.c.l.s4 1966171168
    %v7302 = vunpack.c.0.s8 %v7301
    %v7303 = vlaneseq
    %v7304 = vshrl.u32 %v7303, 7
    %v7305 = vsub.s32 %v7302, %v7304
    %v7306 = vrot.slane %v7290, %v7305
    %v7308 = vunpack.c.l.s4 1966171168
    %v7309 = vunpack.c.0.s8 %v7308
    %v7310 = vlaneseq
    %v7311 = vshrl.u32 %v7310, 7
    %v7312 = vsub.s32 %v7309, %v7311
    %v7313 = vrot.slane %v7297, %v7312
    %v7315 = vunpack.c.l.s4 1966171168
    %v7316 = vunpack.c.0.s8 %v7315
    %v7317 = vlaneseq
    %v7318 = vshrl.u32 %v7317, 7
    %v7319 = vsub.s32 %v7316, %v7318
    %v7320 = vrot.slane %v7298, %v7319
    %v7322 = vunpack.c.l.s4 1966171168
    %v7323 = vunpack.c.0.s8 %v7322
    %v7324 = vlaneseq
    %v7325 = vshrl.u32 %v7324, 7
    %v7326 = vsub.s32 %v7323, %v7325
    %v7327 = vrot.slane %v7299, %v7326
    %v7328 = vcombine.high %v7306, %v7306
    %v7329 = vcombine.high %v7313, %v7313
    %v7330 = vcombine.high %v7320, %v7320
    %v7331 = vcombine.high %v7327, %v7327
    %v7332 = vlaneseq
    %v7333 = vshrl.u32 %v7332, 7
    %v7334 = vsub.s32 0, %v7333
    %v7335 = vrot.slane %v7159, %v7334
    %v7336 = vlaneseq
    %v7337 = vshrl.u32 %v7336, 7
    %v7338 = vsub.s32 0, %v7337
    %v7339 = vrot.slane %v7173, %v7338
    %v7340 = vlaneseq
    %v7341 = vshrl.u32 %v7340, 7
    %v7342 = vsub.s32 0, %v7341
    %v7343 = vrot.slane %v7181, %v7342
    %v7344 = vlaneseq
    %v7345 = vshrl.u32 %v7344, 7
    %v7346 = vsub.s32 0, %v7345
    %v7347 = vrot.slane %v7183, %v7346
    %v7348 = vlaneseq
    %v7349 = vshrl.u32 %v7348, 7
    %v7350 = vsub.s32 0, %v7349
    %v7351 = vrot.slane %v7166, %v7350
    %v7352 = vlaneseq
    %v7353 = vshrl.u32 %v7352, 7
    %v7354 = vsub.s32 0, %v7353
    %v7355 = vrot.slane %v7180, %v7354
    %v7356 = vlaneseq
    %v7357 = vshrl.u32 %v7356, 7
    %v7358 = vsub.s32 0, %v7357
    %v7359 = vrot.slane %v7182, %v7358
    %v7360 = vlaneseq
    %v7361 = vshrl.u32 %v7360, 7
    %v7362 = vsub.s32 0, %v7361
    %v7363 = vrot.slane %v7184, %v7362
    %v7364 = vlaneseq
    %v7365 = vshrl.u32 %v7364, 7
    %v7366 = vsub.s32 0, %v7365
    %v7367 = vrot.slane %v7208, %v7366
    %v7368 = vlaneseq
    %v7369 = vshrl.u32 %v7368, 7
    %v7370 = vsub.s32 0, %v7369
    %v7371 = vrot.slane %v7222, %v7370
    %v7372 = vlaneseq
    %v7373 = vshrl.u32 %v7372, 7
    %v7374 = vsub.s32 0, %v7373
    %v7375 = vrot.slane %v7230, %v7374
    %v7376 = vlaneseq
    %v7377 = vshrl.u32 %v7376, 7
    %v7378 = vsub.s32 0, %v7377
    %v7379 = vrot.slane %v7232, %v7378
    %v7380 = vlaneseq
    %v7381 = vshrl.u32 %v7380, 7
    %v7382 = vsub.s32 0, %v7381
    %v7383 = vrot.slane %v7215, %v7382
    %v7384 = vlaneseq
    %v7385 = vshrl.u32 %v7384, 7
    %v7386 = vsub.s32 0, %v7385
    %v7387 = vrot.slane %v7229, %v7386
    %v7388 = vlaneseq
    %v7389 = vshrl.u32 %v7388, 7
    %v7390 = vsub.s32 0, %v7389
    %v7391 = vrot.slane %v7231, %v7390
    %v7392 = vlaneseq
    %v7393 = vshrl.u32 %v7392, 7
    %v7394 = vsub.s32 0, %v7393
    %v7395 = vrot.slane %v7233, %v7394
    %v7396 = vlaneseq
    %v7397 = vshrl.u32 %v7396, 7
    %v7398 = vsub.s32 0, %v7397
    %v7399 = vrot.slane %v7257, %v7398
    %v7400 = vlaneseq
    %v7401 = vshrl.u32 %v7400, 7
    %v7402 = vsub.s32 0, %v7401
    %v7403 = vrot.slane %v7271, %v7402
    %v7404 = vlaneseq
    %v7405 = vshrl.u32 %v7404, 7
    %v7406 = vsub.s32 0, %v7405
    %v7407 = vrot.slane %v7279, %v7406
    %v7408 = vlaneseq
    %v7409 = vshrl.u32 %v7408, 7
    %v7410 = vsub.s32 0, %v7409
    %v7411 = vrot.slane %v7281, %v7410
    %v7412 = vlaneseq
    %v7413 = vshrl.u32 %v7412, 7
    %v7414 = vsub.s32 0, %v7413
    %v7415 = vrot.slane %v7264, %v7414
    %v7416 = vlaneseq
    %v7417 = vshrl.u32 %v7416, 7
    %v7418 = vsub.s32 0, %v7417
    %v7419 = vrot.slane %v7278, %v7418
    %v7420 = vlaneseq
    %v7421 = vshrl.u32 %v7420, 7
    %v7422 = vsub.s32 0, %v7421
    %v7423 = vrot.slane %v7280, %v7422
    %v7424 = vlaneseq
    %v7425 = vshrl.u32 %v7424, 7
    %v7426 = vsub.s32 0, %v7425
    %v7427 = vrot.slane %v7282, %v7426
    %v7428 = vlaneseq
    %v7429 = vshrl.u32 %v7428, 7
    %v7430 = vsub.s32 0, %v7429
    %v7431 = vrot.slane %v7306, %v7430
    %v7432 = vlaneseq
    %v7433 = vshrl.u32 %v7432, 7
    %v7434 = vsub.s32 0, %v7433
    %v7435 = vrot.slane %v7320, %v7434
    %v7436 = vlaneseq
    %v7437 = vshrl.u32 %v7436, 7
    %v7438 = vsub.s32 0, %v7437
    %v7439 = vrot.slane %v7328, %v7438
    %v7440 = vlaneseq
    %v7441 = vshrl.u32 %v7440, 7
    %v7442 = vsub.s32 0, %v7441
    %v7443 = vrot.slane %v7330, %v7442
    %v7444 = vlaneseq
    %v7445 = vshrl.u32 %v7444, 7
    %v7446 = vsub.s32 0, %v7445
    %v7447 = vrot.slane %v7313, %v7446
    %v7448 = vlaneseq
    %v7449 = vshrl.u32 %v7448, 7
    %v7450 = vsub.s32 0, %v7449
    %v7451 = vrot.slane %v7327, %v7450
    %v7452 = vlaneseq
    %v7453 = vshrl.u32 %v7452, 7
    %v7454 = vsub.s32 0, %v7453
    %v7455 = vrot.slane %v7329, %v7454
    %v7456 = vlaneseq
    %v7457 = vshrl.u32 %v7456, 7
    %v7458 = vsub.s32 0, %v7457
    %v7459 = vrot.slane %v7331, %v7458
    %v7492 = vsel %vm755, %v6927, %v7335
    %v7493 = vsel %vm755, %v6941, %v7339
    %v7494 = vsel %vm755, %v6949, %v7343
    %v7495 = vsel %vm755, %v6951, %v7347
    %v7496 = vsel %vm755, %v6934, %v7351
    %v7497 = vsel %vm755, %v6948, %v7355
    %v7498 = vsel %vm755, %v6950, %v7359
    %v7499 = vsel %vm755, %v6952, %v7363
    %v7500 = vsel %vm755, %v6976, %v7367
    %v7501 = vsel %vm755, %v6990, %v7371
    %v7502 = vsel %vm755, %v6998, %v7375
    %v7503 = vsel %vm755, %v7000, %v7379
    %v7504 = vsel %vm755, %v6983, %v7383
    %v7505 = vsel %vm755, %v6997, %v7387
    %v7506 = vsel %vm755, %v6999, %v7391
    %v7507 = vsel %vm755, %v7001, %v7395
    %v7508 = vsel %vm755, %v7025, %v7399
    %v7509 = vsel %vm755, %v7039, %v7403
    %v7510 = vsel %vm755, %v7047, %v7407
    %v7511 = vsel %vm755, %v7049, %v7411
    %v7512 = vsel %vm755, %v7032, %v7415
    %v7513 = vsel %vm755, %v7046, %v7419
    %v7514 = vsel %vm755, %v7048, %v7423
    %v7515 = vsel %vm755, %v7050, %v7427
    %v7516 = vsel %vm755, %v7074, %v7431
    %v7517 = vsel %vm755, %v7088, %v7435
    %v7518 = vsel %vm755, %v7096, %v7439
    %v7519 = vsel %vm755, %v7098, %v7443
    %v7520 = vsel %vm755, %v7081, %v7447
    %v7521 = vsel %vm755, %v7095, %v7451
    %v7522 = vsel %vm755, %v7097, %v7455
    %v7523 = vsel %vm755, %v7099, %v7459
    %v7524 = vld [vmem:[%s20] sm:$0x1]
    %v7525 = vld [vmem:[%s21] sm:$0x1]
    %v7558 = vcombine.low %v7492, %v7493
    %v7559 = vcombine.low %v7494, %v7495
    %v7561 = vunpack.c.l.s4 1983009808
    %v7562 = vunpack.c.0.s8 %v7561
    %v7563 = vlaneseq
    %v7564 = vshrl.u32 %v7563, 7
    %v7565 = vsub.s32 %v7562, %v7564
    %v7566 = vrot.slane %v7558, %v7565
    %v7568 = vunpack.c.l.s4 1983009808
    %v7569 = vunpack.c.0.s8 %v7568
    %v7570 = vlaneseq
    %v7571 = vshrl.u32 %v7570, 7
    %v7572 = vsub.s32 %v7569, %v7571
    %v7573 = vrot.slane %v7559, %v7572
    %v7574 = vcombine.low %v7566, %v7573
    %v7575 = vcombine.low %v7496, %v7497
    %v7576 = vcombine.low %v7498, %v7499
    %v7578 = vunpack.c.l.s4 1983009808
    %v7579 = vunpack.c.0.s8 %v7578
    %v7580 = vlaneseq
    %v7581 = vshrl.u32 %v7580, 7
    %v7582 = vsub.s32 %v7579, %v7581
    %v7583 = vrot.slane %v7575, %v7582
    %v7585 = vunpack.c.l.s4 1983009808
    %v7586 = vunpack.c.0.s8 %v7585
    %v7587 = vlaneseq
    %v7588 = vshrl.u32 %v7587, 7
    %v7589 = vsub.s32 %v7586, %v7588
    %v7590 = vrot.slane %v7576, %v7589
    %v7591 = vcombine.low %v7583, %v7590
    %v7592 = vcombine.low %v7500, %v7501
    %v7593 = vcombine.low %v7502, %v7503
    %v7595 = vunpack.c.l.s4 1983009808
    %v7596 = vunpack.c.0.s8 %v7595
    %v7597 = vlaneseq
    %v7598 = vshrl.u32 %v7597, 7
    %v7599 = vsub.s32 %v7596, %v7598
    %v7600 = vrot.slane %v7592, %v7599
    %v7602 = vunpack.c.l.s4 1983009808
    %v7603 = vunpack.c.0.s8 %v7602
    %v7604 = vlaneseq
    %v7605 = vshrl.u32 %v7604, 7
    %v7606 = vsub.s32 %v7603, %v7605
    %v7607 = vrot.slane %v7593, %v7606
    %v7608 = vcombine.low %v7600, %v7607
    %v7609 = vcombine.low %v7504, %v7505
    %v7610 = vcombine.low %v7506, %v7507
    %v7612 = vunpack.c.l.s4 1983009808
    %v7613 = vunpack.c.0.s8 %v7612
    %v7614 = vlaneseq
    %v7615 = vshrl.u32 %v7614, 7
    %v7616 = vsub.s32 %v7613, %v7615
    %v7617 = vrot.slane %v7609, %v7616
    %v7619 = vunpack.c.l.s4 1983009808
    %v7620 = vunpack.c.0.s8 %v7619
    %v7621 = vlaneseq
    %v7622 = vshrl.u32 %v7621, 7
    %v7623 = vsub.s32 %v7620, %v7622
    %v7624 = vrot.slane %v7610, %v7623
    %v7625 = vcombine.low %v7617, %v7624
    %v7626 = vcombine.low %v7508, %v7509
    %v7627 = vcombine.low %v7510, %v7511
    %v7629 = vunpack.c.l.s4 1983009808
    %v7630 = vunpack.c.0.s8 %v7629
    %v7631 = vlaneseq
    %v7632 = vshrl.u32 %v7631, 7
    %v7633 = vsub.s32 %v7630, %v7632
    %v7634 = vrot.slane %v7626, %v7633
    %v7636 = vunpack.c.l.s4 1983009808
    %v7637 = vunpack.c.0.s8 %v7636
    %v7638 = vlaneseq
    %v7639 = vshrl.u32 %v7638, 7
    %v7640 = vsub.s32 %v7637, %v7639
    %v7641 = vrot.slane %v7627, %v7640
    %v7642 = vcombine.low %v7634, %v7641
    %v7643 = vcombine.low %v7512, %v7513
    %v7644 = vcombine.low %v7514, %v7515
    %v7646 = vunpack.c.l.s4 1983009808
    %v7647 = vunpack.c.0.s8 %v7646
    %v7648 = vlaneseq
    %v7649 = vshrl.u32 %v7648, 7
    %v7650 = vsub.s32 %v7647, %v7649
    %v7651 = vrot.slane %v7643, %v7650
    %v7653 = vunpack.c.l.s4 1983009808
    %v7654 = vunpack.c.0.s8 %v7653
    %v7655 = vlaneseq
    %v7656 = vshrl.u32 %v7655, 7
    %v7657 = vsub.s32 %v7654, %v7656
    %v7658 = vrot.slane %v7644, %v7657
    %v7659 = vcombine.low %v7651, %v7658
    %v7660 = vcombine.low %v7516, %v7517
    %v7661 = vcombine.low %v7518, %v7519
    %v7663 = vunpack.c.l.s4 1983009808
    %v7664 = vunpack.c.0.s8 %v7663
    %v7665 = vlaneseq
    %v7666 = vshrl.u32 %v7665, 7
    %v7667 = vsub.s32 %v7664, %v7666
    %v7668 = vrot.slane %v7660, %v7667
    %v7670 = vunpack.c.l.s4 1983009808
    %v7671 = vunpack.c.0.s8 %v7670
    %v7672 = vlaneseq
    %v7673 = vshrl.u32 %v7672, 7
    %v7674 = vsub.s32 %v7671, %v7673
    %v7675 = vrot.slane %v7661, %v7674
    %v7676 = vcombine.low %v7668, %v7675
    %v7677 = vcombine.low %v7520, %v7521
    %v7678 = vcombine.low %v7522, %v7523
    %v7680 = vunpack.c.l.s4 1983009808
    %v7681 = vunpack.c.0.s8 %v7680
    %v7682 = vlaneseq
    %v7683 = vshrl.u32 %v7682, 7
    %v7684 = vsub.s32 %v7681, %v7683
    %v7685 = vrot.slane %v7677, %v7684
    %v7687 = vunpack.c.l.s4 1983009808
    %v7688 = vunpack.c.0.s8 %v7687
    %v7689 = vlaneseq
    %v7690 = vshrl.u32 %v7689, 7
    %v7691 = vsub.s32 %v7688, %v7690
    %v7692 = vrot.slane %v7678, %v7691
    %v7693 = vcombine.low %v7685, %v7692
    %v7702 = vsel %vm346, %v7574, 0.0
    %v7703 = vsel %vm346, %v7591, 0.0
    %v7704 = vadd.f32 %v7702, %v7703
    %v7705 = vsel %vm346, %v7608, 0.0
    %v7706 = vadd.f32 %v7704, %v7705
    %v7707 = vsel %vm346, %v7625, 0.0
    %v7708 = vadd.f32 %v7706, %v7707
    %v7709 = vsel %vm346, %v7642, 0.0
    %v7710 = vadd.f32 %v7708, %v7709
    %v7711 = vsel %vm346, %v7659, 0.0
    %v7712 = vadd.f32 %v7710, %v7711
    %v7713 = vsel %vm346, %v7676, 0.0
    %v7714 = vadd.f32 %v7712, %v7713
    %v7715 = vsel %vm346, %v7693, 0.0
    %v7716 = vadd.f32 %v7714, %v7715
    %v7717 = vrot.slane %v7716, 4
    %v7718 = vadd.f32 %v7716, %v7717
    %v7719 = vrot.slane %v7718, 2
    %v7720 = vadd.f32 %v7718, %v7719
    %v7721 = vrot.slane %v7720, 1
    %v7722 = vadd.f32 %v7720, %v7721
    %v7723 = vmul.f32 %v7722, %v368
    %v7725 = vcombine.high %v7723, %v7723
    %v7727 = vunpack.c.l.s4 1983009808
    %v7728 = vunpack.c.0.s8 %v7727
    %v7729 = vlaneseq
    %v7730 = vshrl.u32 %v7729, 7
    %v7731 = vsub.s32 %v7728, %v7730
    %v7732 = vrot.slane %v7723, %v7731
    %v7734 = vunpack.c.l.s4 1983009808
    %v7735 = vunpack.c.0.s8 %v7734
    %v7736 = vlaneseq
    %v7737 = vshrl.u32 %v7736, 7
    %v7738 = vsub.s32 %v7735, %v7737
    %v7739 = vrot.slane %v7725, %v7738
    %v7740 = vcombine.high %v7732, %v7732
    %v7741 = vcombine.high %v7739, %v7739
    %v7746 = vsub.f32 %v7492, %v7732
    %v7747 = vsub.f32 %v7493, %v7740
    %v7748 = vsub.f32 %v7494, %v7739
    %v7749 = vsub.f32 %v7495, %v7741
    %v7750 = vsub.f32 %v7496, %v7732
    %v7751 = vsub.f32 %v7497, %v7740
    %v7752 = vsub.f32 %v7498, %v7739
    %v7753 = vsub.f32 %v7499, %v7741
    %v7754 = vsub.f32 %v7500, %v7732
    %v7755 = vsub.f32 %v7501, %v7740
    %v7756 = vsub.f32 %v7502, %v7739
    %v7757 = vsub.f32 %v7503, %v7741
    %v7758 = vsub.f32 %v7504, %v7732
    %v7759 = vsub.f32 %v7505, %v7740
    %v7760 = vsub.f32 %v7506, %v7739
    %v7761 = vsub.f32 %v7507, %v7741
    %v7762 = vsub.f32 %v7508, %v7732
    %v7763 = vsub.f32 %v7509, %v7740
    %v7764 = vsub.f32 %v7510, %v7739
    %v7765 = vsub.f32 %v7511, %v7741
    %v7766 = vsub.f32 %v7512, %v7732
    %v7767 = vsub.f32 %v7513, %v7740
    %v7768 = vsub.f32 %v7514, %v7739
    %v7769 = vsub.f32 %v7515, %v7741
    %v7770 = vsub.f32 %v7516, %v7732
    %v7771 = vsub.f32 %v7517, %v7740
    %v7772 = vsub.f32 %v7518, %v7739
    %v7773 = vsub.f32 %v7519, %v7741
    %v7774 = vsub.f32 %v7520, %v7732
    %v7775 = vsub.f32 %v7521, %v7740
    %v7776 = vsub.f32 %v7522, %v7739
    %v7777 = vsub.f32 %v7523, %v7741
    %v7778 = vmul.f32 %v7746, %v7746
    %v7779 = vmul.f32 %v7747, %v7747
    %v7780 = vmul.f32 %v7748, %v7748
    %v7781 = vmul.f32 %v7749, %v7749
    %v7782 = vmul.f32 %v7750, %v7750
    %v7783 = vmul.f32 %v7751, %v7751
    %v7784 = vmul.f32 %v7752, %v7752
    %v7785 = vmul.f32 %v7753, %v7753
    %v7786 = vmul.f32 %v7754, %v7754
    %v7787 = vmul.f32 %v7755, %v7755
    %v7788 = vmul.f32 %v7756, %v7756
    %v7789 = vmul.f32 %v7757, %v7757
    %v7790 = vmul.f32 %v7758, %v7758
    %v7791 = vmul.f32 %v7759, %v7759
    %v7792 = vmul.f32 %v7760, %v7760
    %v7793 = vmul.f32 %v7761, %v7761
    %v7794 = vmul.f32 %v7762, %v7762
    %v7795 = vmul.f32 %v7763, %v7763
    %v7796 = vmul.f32 %v7764, %v7764
    %v7797 = vmul.f32 %v7765, %v7765
    %v7798 = vmul.f32 %v7766, %v7766
    %v7799 = vmul.f32 %v7767, %v7767
    %v7800 = vmul.f32 %v7768, %v7768
    %v7801 = vmul.f32 %v7769, %v7769
    %v7802 = vmul.f32 %v7770, %v7770
    %v7803 = vmul.f32 %v7771, %v7771
    %v7804 = vmul.f32 %v7772, %v7772
    %v7805 = vmul.f32 %v7773, %v7773
    %v7806 = vmul.f32 %v7774, %v7774
    %v7807 = vmul.f32 %v7775, %v7775
    %v7808 = vmul.f32 %v7776, %v7776
    %v7809 = vmul.f32 %v7777, %v7777
    %v7842 = vcombine.low %v7778, %v7779
    %v7843 = vcombine.low %v7780, %v7781
    %v7845 = vunpack.c.l.s4 1983009808
    %v7846 = vunpack.c.0.s8 %v7845
    %v7847 = vlaneseq
    %v7848 = vshrl.u32 %v7847, 7
    %v7849 = vsub.s32 %v7846, %v7848
    %v7850 = vrot.slane %v7842, %v7849
    %v7852 = vunpack.c.l.s4 1983009808
    %v7853 = vunpack.c.0.s8 %v7852
    %v7854 = vlaneseq
    %v7855 = vshrl.u32 %v7854, 7
    %v7856 = vsub.s32 %v7853, %v7855
    %v7857 = vrot.slane %v7843, %v7856
    %v7858 = vcombine.low %v7850, %v7857
    %v7859 = vcombine.low %v7782, %v7783
    %v7860 = vcombine.low %v7784, %v7785
    %v7862 = vunpack.c.l.s4 1983009808
    %v7863 = vunpack.c.0.s8 %v7862
    %v7864 = vlaneseq
    %v7865 = vshrl.u32 %v7864, 7
    %v7866 = vsub.s32 %v7863, %v7865
    %v7867 = vrot.slane %v7859, %v7866
    %v7869 = vunpack.c.l.s4 1983009808
    %v7870 = vunpack.c.0.s8 %v7869
    %v7871 = vlaneseq
    %v7872 = vshrl.u32 %v7871, 7
    %v7873 = vsub.s32 %v7870, %v7872
    %v7874 = vrot.slane %v7860, %v7873
    %v7875 = vcombine.low %v7867, %v7874
    %v7876 = vcombine.low %v7786, %v7787
    %v7877 = vcombine.low %v7788, %v7789
    %v7879 = vunpack.c.l.s4 1983009808
    %v7880 = vunpack.c.0.s8 %v7879
    %v7881 = vlaneseq
    %v7882 = vshrl.u32 %v7881, 7
    %v7883 = vsub.s32 %v7880, %v7882
    %v7884 = vrot.slane %v7876, %v7883
    %v7886 = vunpack.c.l.s4 1983009808
    %v7887 = vunpack.c.0.s8 %v7886
    %v7888 = vlaneseq
    %v7889 = vshrl.u32 %v7888, 7
    %v7890 = vsub.s32 %v7887, %v7889
    %v7891 = vrot.slane %v7877, %v7890
    %v7892 = vcombine.low %v7884, %v7891
    %v7893 = vcombine.low %v7790, %v7791
    %v7894 = vcombine.low %v7792, %v7793
    %v7896 = vunpack.c.l.s4 1983009808
    %v7897 = vunpack.c.0.s8 %v7896
    %v7898 = vlaneseq
    %v7899 = vshrl.u32 %v7898, 7
    %v7900 = vsub.s32 %v7897, %v7899
    %v7901 = vrot.slane %v7893, %v7900
    %v7903 = vunpack.c.l.s4 1983009808
    %v7904 = vunpack.c.0.s8 %v7903
    %v7905 = vlaneseq
    %v7906 = vshrl.u32 %v7905, 7
    %v7907 = vsub.s32 %v7904, %v7906
    %v7908 = vrot.slane %v7894, %v7907
    %v7909 = vcombine.low %v7901, %v7908
    %v7910 = vcombine.low %v7794, %v7795
    %v7911 = vcombine.low %v7796, %v7797
    %v7913 = vunpack.c.l.s4 1983009808
    %v7914 = vunpack.c.0.s8 %v7913
    %v7915 = vlaneseq
    %v7916 = vshrl.u32 %v7915, 7
    %v7917 = vsub.s32 %v7914, %v7916
    %v7918 = vrot.slane %v7910, %v7917
    %v7920 = vunpack.c.l.s4 1983009808
    %v7921 = vunpack.c.0.s8 %v7920
    %v7922 = vlaneseq
    %v7923 = vshrl.u32 %v7922, 7
    %v7924 = vsub.s32 %v7921, %v7923
    %v7925 = vrot.slane %v7911, %v7924
    %v7926 = vcombine.low %v7918, %v7925
    %v7927 = vcombine.low %v7798, %v7799
    %v7928 = vcombine.low %v7800, %v7801
    %v7930 = vunpack.c.l.s4 1983009808
    %v7931 = vunpack.c.0.s8 %v7930
    %v7932 = vlaneseq
    %v7933 = vshrl.u32 %v7932, 7
    %v7934 = vsub.s32 %v7931, %v7933
    %v7935 = vrot.slane %v7927, %v7934
    %v7937 = vunpack.c.l.s4 1983009808
    %v7938 = vunpack.c.0.s8 %v7937
    %v7939 = vlaneseq
    %v7940 = vshrl.u32 %v7939, 7
    %v7941 = vsub.s32 %v7938, %v7940
    %v7942 = vrot.slane %v7928, %v7941
    %v7943 = vcombine.low %v7935, %v7942
    %v7944 = vcombine.low %v7802, %v7803
    %v7945 = vcombine.low %v7804, %v7805
    %v7947 = vunpack.c.l.s4 1983009808
    %v7948 = vunpack.c.0.s8 %v7947
    %v7949 = vlaneseq
    %v7950 = vshrl.u32 %v7949, 7
    %v7951 = vsub.s32 %v7948, %v7950
    %v7952 = vrot.slane %v7944, %v7951
    %v7954 = vunpack.c.l.s4 1983009808
    %v7955 = vunpack.c.0.s8 %v7954
    %v7956 = vlaneseq
    %v7957 = vshrl.u32 %v7956, 7
    %v7958 = vsub.s32 %v7955, %v7957
    %v7959 = vrot.slane %v7945, %v7958
    %v7960 = vcombine.low %v7952, %v7959
    %v7961 = vcombine.low %v7806, %v7807
    %v7962 = vcombine.low %v7808, %v7809
    %v7964 = vunpack.c.l.s4 1983009808
    %v7965 = vunpack.c.0.s8 %v7964
    %v7966 = vlaneseq
    %v7967 = vshrl.u32 %v7966, 7
    %v7968 = vsub.s32 %v7965, %v7967
    %v7969 = vrot.slane %v7961, %v7968
    %v7971 = vunpack.c.l.s4 1983009808
    %v7972 = vunpack.c.0.s8 %v7971
    %v7973 = vlaneseq
    %v7974 = vshrl.u32 %v7973, 7
    %v7975 = vsub.s32 %v7972, %v7974
    %v7976 = vrot.slane %v7962, %v7975
    %v7977 = vcombine.low %v7969, %v7976
    %v7986 = vsel %vm346, %v7858, 0.0
    %v7987 = vsel %vm346, %v7875, 0.0
    %v7988 = vadd.f32 %v7986, %v7987
    %v7989 = vsel %vm346, %v7892, 0.0
    %v7990 = vadd.f32 %v7988, %v7989
    %v7991 = vsel %vm346, %v7909, 0.0
    %v7992 = vadd.f32 %v7990, %v7991
    %v7993 = vsel %vm346, %v7926, 0.0
    %v7994 = vadd.f32 %v7992, %v7993
    %v7995 = vsel %vm346, %v7943, 0.0
    %v7996 = vadd.f32 %v7994, %v7995
    %v7997 = vsel %vm346, %v7960, 0.0
    %v7998 = vadd.f32 %v7996, %v7997
    %v7999 = vsel %vm346, %v7977, 0.0
    %v8000 = vadd.f32 %v7998, %v7999
    %v8001 = vrot.slane %v8000, 4
    %v8002 = vadd.f32 %v8000, %v8001
    %v8003 = vrot.slane %v8002, 2
    %v8004 = vadd.f32 %v8002, %v8003
    %v8005 = vrot.slane %v8004, 1
    %v8006 = vadd.f32 %v8004, %v8005
    %v8007 = vmul.f32 %v8006, %v368
    %v8008 = vadd.f32 %v8007, 1e-05
    %v8009 = vrsqrt.pop %v8008
    %v8011 = vcombine.high %v8009, %v8009
    %v8013 = vunpack.c.l.s4 1983009808
    %v8014 = vunpack.c.0.s8 %v8013
    %v8015 = vlaneseq
    %v8016 = vshrl.u32 %v8015, 7
    %v8017 = vsub.s32 %v8014, %v8016
    %v8018 = vrot.slane %v8009, %v8017
    %v8020 = vunpack.c.l.s4 1983009808
    %v8021 = vunpack.c.0.s8 %v8020
    %v8022 = vlaneseq
    %v8023 = vshrl.u32 %v8022, 7
    %v8024 = vsub.s32 %v8021, %v8023
    %v8025 = vrot.slane %v8011, %v8024
    %v8026 = vcombine.high %v8018, %v8018
    %v8027 = vcombine.high %v8025, %v8025
    %v8032 = vmul.f32 %v7746, %v8018
    %v8033 = vmul.f32 %v7747, %v8026
    %v8034 = vmul.f32 %v7748, %v8025
    %v8035 = vmul.f32 %v7749, %v8027
    %v8036 = vmul.f32 %v7750, %v8018
    %v8037 = vmul.f32 %v7751, %v8026
    %v8038 = vmul.f32 %v7752, %v8025
    %v8039 = vmul.f32 %v7753, %v8027
    %v8040 = vmul.f32 %v7754, %v8018
    %v8041 = vmul.f32 %v7755, %v8026
    %v8042 = vmul.f32 %v7756, %v8025
    %v8043 = vmul.f32 %v7757, %v8027
    %v8044 = vmul.f32 %v7758, %v8018
    %v8045 = vmul.f32 %v7759, %v8026
    %v8046 = vmul.f32 %v7760, %v8025
    %v8047 = vmul.f32 %v7761, %v8027
    %v8048 = vmul.f32 %v7762, %v8018
    %v8049 = vmul.f32 %v7763, %v8026
    %v8050 = vmul.f32 %v7764, %v8025
    %v8051 = vmul.f32 %v7765, %v8027
    %v8052 = vmul.f32 %v7766, %v8018
    %v8053 = vmul.f32 %v7767, %v8026
    %v8054 = vmul.f32 %v7768, %v8025
    %v8055 = vmul.f32 %v7769, %v8027
    %v8056 = vmul.f32 %v7770, %v8018
    %v8057 = vmul.f32 %v7771, %v8026
    %v8058 = vmul.f32 %v7772, %v8025
    %v8059 = vmul.f32 %v7773, %v8027
    %v8060 = vmul.f32 %v7774, %v8018
    %v8061 = vmul.f32 %v7775, %v8026
    %v8062 = vmul.f32 %v7776, %v8025
    %v8063 = vmul.f32 %v7777, %v8027
    %v8065 = vlaneseq
    %v8066 = vshrl.u32 %v8065, 7
    %v8067 = vsub.s32 0, %v8066
    %v8068 = vrot.slane %v7524, %v8067
    %v8069 = vcombine.high %v8068, %v8068
    %v8071 = vunpack.c.l.s4 1983009808
    %v8072 = vunpack.c.0.s8 %v8071
    %v8073 = vlaneseq
    %v8074 = vshrl.u32 %v8073, 7
    %v8075 = vsub.s32 %v8072, %v8074
    %v8076 = vrot.slane %v8068, %v8075
    %v8078 = vunpack.c.l.s4 1983009808
    %v8079 = vunpack.c.0.s8 %v8078
    %v8080 = vlaneseq
    %v8081 = vshrl.u32 %v8080, 7
    %v8082 = vsub.s32 %v8079, %v8081
    %v8083 = vrot.slane %v8069, %v8082
    %v8084 = vcombine.high %v8076, %v8076
    %v8085 = vcombine.high %v8083, %v8083
    %v8090 = vmul.f32 %v8032, %v8076
    %v8091 = vmul.f32 %v8033, %v8084
    %v8092 = vmul.f32 %v8034, %v8083
    %v8093 = vmul.f32 %v8035, %v8085
    %v8094 = vmul.f32 %v8036, %v8076
    %v8095 = vmul.f32 %v8037, %v8084
    %v8096 = vmul.f32 %v8038, %v8083
    %v8097 = vmul.f32 %v8039, %v8085
    %v8098 = vmul.f32 %v8040, %v8076
    %v8099 = vmul.f32 %v8041, %v8084
    %v8100 = vmul.f32 %v8042, %v8083
    %v8101 = vmul.f32 %v8043, %v8085
    %v8102 = vmul.f32 %v8044, %v8076
    %v8103 = vmul.f32 %v8045, %v8084
    %v8104 = vmul.f32 %v8046, %v8083
    %v8105 = vmul.f32 %v8047, %v8085
    %v8106 = vmul.f32 %v8048, %v8076
    %v8107 = vmul.f32 %v8049, %v8084
    %v8108 = vmul.f32 %v8050, %v8083
    %v8109 = vmul.f32 %v8051, %v8085
    %v8110 = vmul.f32 %v8052, %v8076
    %v8111 = vmul.f32 %v8053, %v8084
    %v8112 = vmul.f32 %v8054, %v8083
    %v8113 = vmul.f32 %v8055, %v8085
    %v8114 = vmul.f32 %v8056, %v8076
    %v8115 = vmul.f32 %v8057, %v8084
    %v8116 = vmul.f32 %v8058, %v8083
    %v8117 = vmul.f32 %v8059, %v8085
    %v8118 = vmul.f32 %v8060, %v8076
    %v8119 = vmul.f32 %v8061, %v8084
    %v8120 = vmul.f32 %v8062, %v8083
    %v8121 = vmul.f32 %v8063, %v8085
    %v8123 = vlaneseq
    %v8124 = vshrl.u32 %v8123, 7
    %v8125 = vsub.s32 0, %v8124
    %v8126 = vrot.slane %v7525, %v8125
    %v8127 = vcombine.high %v8126, %v8126
    %v8129 = vunpack.c.l.s4 1983009808
    %v8130 = vunpack.c.0.s8 %v8129
    %v8131 = vlaneseq
    %v8132 = vshrl.u32 %v8131, 7
    %v8133 = vsub.s32 %v8130, %v8132
    %v8134 = vrot.slane %v8126, %v8133
    %v8136 = vunpack.c.l.s4 1983009808
    %v8137 = vunpack.c.0.s8 %v8136
    %v8138 = vlaneseq
    %v8139 = vshrl.u32 %v8138, 7
    %v8140 = vsub.s32 %v8137, %v8139
    %v8141 = vrot.slane %v8127, %v8140
    %v8142 = vcombine.high %v8134, %v8134
    %v8143 = vcombine.high %v8141, %v8141
    %v8148 = vadd.f32 %v8090, %v8134
    %v8149 = vadd.f32 %v8091, %v8142
    %v8150 = vadd.f32 %v8092, %v8141
    %v8151 = vadd.f32 %v8093, %v8143
    %v8152 = vadd.f32 %v8094, %v8134
    %v8153 = vadd.f32 %v8095, %v8142
    %v8154 = vadd.f32 %v8096, %v8141
    %v8155 = vadd.f32 %v8097, %v8143
    %v8156 = vadd.f32 %v8098, %v8134
    %v8157 = vadd.f32 %v8099, %v8142
    %v8158 = vadd.f32 %v8100, %v8141
    %v8159 = vadd.f32 %v8101, %v8143
    %v8160 = vadd.f32 %v8102, %v8134
    %v8161 = vadd.f32 %v8103, %v8142
    %v8162 = vadd.f32 %v8104, %v8141
    %v8163 = vadd.f32 %v8105, %v8143
    %v8164 = vadd.f32 %v8106, %v8134
    %v8165 = vadd.f32 %v8107, %v8142
    %v8166 = vadd.f32 %v8108, %v8141
    %v8167 = vadd.f32 %v8109, %v8143
    %v8168 = vadd.f32 %v8110, %v8134
    %v8169 = vadd.f32 %v8111, %v8142
    %v8170 = vadd.f32 %v8112, %v8141
    %v8171 = vadd.f32 %v8113, %v8143
    %v8172 = vadd.f32 %v8114, %v8134
    %v8173 = vadd.f32 %v8115, %v8142
    %v8174 = vadd.f32 %v8116, %v8141
    %v8175 = vadd.f32 %v8117, %v8143
    %v8176 = vadd.f32 %v8118, %v8134
    %v8177 = vadd.f32 %v8119, %v8142
    %v8178 = vadd.f32 %v8120, %v8141
    %v8179 = vadd.f32 %v8121, %v8143
    %v8180 = vmax.f32 %v8148, 0.0
    %v8181 = vmax.f32 %v8149, 0.0
    %v8182 = vmax.f32 %v8150, 0.0
    %v8183 = vmax.f32 %v8151, 0.0
    %v8184 = vmax.f32 %v8152, 0.0
    %v8185 = vmax.f32 %v8153, 0.0
    %v8186 = vmax.f32 %v8154, 0.0
    %v8187 = vmax.f32 %v8155, 0.0
    %v8188 = vmax.f32 %v8156, 0.0
    %v8189 = vmax.f32 %v8157, 0.0
    %v8190 = vmax.f32 %v8158, 0.0
    %v8191 = vmax.f32 %v8159, 0.0
    %v8192 = vmax.f32 %v8160, 0.0
    %v8193 = vmax.f32 %v8161, 0.0
    %v8194 = vmax.f32 %v8162, 0.0
    %v8195 = vmax.f32 %v8163, 0.0
    %v8196 = vmax.f32 %v8164, 0.0
    %v8197 = vmax.f32 %v8165, 0.0
    %v8198 = vmax.f32 %v8166, 0.0
    %v8199 = vmax.f32 %v8167, 0.0
    %v8200 = vmax.f32 %v8168, 0.0
    %v8201 = vmax.f32 %v8169, 0.0
    %v8202 = vmax.f32 %v8170, 0.0
    %v8203 = vmax.f32 %v8171, 0.0
    %v8204 = vmax.f32 %v8172, 0.0
    %v8205 = vmax.f32 %v8173, 0.0
    %v8206 = vmax.f32 %v8174, 0.0
    %v8207 = vmax.f32 %v8175, 0.0
    %v8208 = vmax.f32 %v8176, 0.0
    %v8209 = vmax.f32 %v8177, 0.0
    %v8210 = vmax.f32 %v8178, 0.0
    %v8211 = vmax.f32 %v8179, 0.0
    %v8212 = vld [vmem:[%s22] sm:$0xf]
    %v8245 = vcombine.low %v8180, %v8181
    %v8246 = vcombine.low %v8182, %v8183
    %v8248 = vunpack.c.l.s4 1983009808
    %v8249 = vunpack.c.0.s8 %v8248
    %v8250 = vlaneseq
    %v8251 = vshrl.u32 %v8250, 7
    %v8252 = vsub.s32 %v8249, %v8251
    %v8253 = vrot.slane %v8245, %v8252
    %v8255 = vunpack.c.l.s4 1983009808
    %v8256 = vunpack.c.0.s8 %v8255
    %v8257 = vlaneseq
    %v8258 = vshrl.u32 %v8257, 7
    %v8259 = vsub.s32 %v8256, %v8258
    %v8260 = vrot.slane %v8246, %v8259
    %v8261 = vcombine.low %v8253, %v8260
    %v8262 = vcombine.low %v8184, %v8185
    %v8263 = vcombine.low %v8186, %v8187
    %v8265 = vunpack.c.l.s4 1983009808
    %v8266 = vunpack.c.0.s8 %v8265
    %v8267 = vlaneseq
    %v8268 = vshrl.u32 %v8267, 7
    %v8269 = vsub.s32 %v8266, %v8268
    %v8270 = vrot.slane %v8262, %v8269
    %v8272 = vunpack.c.l.s4 1983009808
    %v8273 = vunpack.c.0.s8 %v8272
    %v8274 = vlaneseq
    %v8275 = vshrl.u32 %v8274, 7
    %v8276 = vsub.s32 %v8273, %v8275
    %v8277 = vrot.slane %v8263, %v8276
    %v8278 = vcombine.low %v8270, %v8277
    %v8279 = vcombine.low %v8188, %v8189
    %v8280 = vcombine.low %v8190, %v8191
    %v8282 = vunpack.c.l.s4 1983009808
    %v8283 = vunpack.c.0.s8 %v8282
    %v8284 = vlaneseq
    %v8285 = vshrl.u32 %v8284, 7
    %v8286 = vsub.s32 %v8283, %v8285
    %v8287 = vrot.slane %v8279, %v8286
    %v8289 = vunpack.c.l.s4 1983009808
    %v8290 = vunpack.c.0.s8 %v8289
    %v8291 = vlaneseq
    %v8292 = vshrl.u32 %v8291, 7
    %v8293 = vsub.s32 %v8290, %v8292
    %v8294 = vrot.slane %v8280, %v8293
    %v8295 = vcombine.low %v8287, %v8294
    %v8296 = vcombine.low %v8192, %v8193
    %v8297 = vcombine.low %v8194, %v8195
    %v8299 = vunpack.c.l.s4 1983009808
    %v8300 = vunpack.c.0.s8 %v8299
    %v8301 = vlaneseq
    %v8302 = vshrl.u32 %v8301, 7
    %v8303 = vsub.s32 %v8300, %v8302
    %v8304 = vrot.slane %v8296, %v8303
    %v8306 = vunpack.c.l.s4 1983009808
    %v8307 = vunpack.c.0.s8 %v8306
    %v8308 = vlaneseq
    %v8309 = vshrl.u32 %v8308, 7
    %v8310 = vsub.s32 %v8307, %v8309
    %v8311 = vrot.slane %v8297, %v8310
    %v8312 = vcombine.low %v8304, %v8311
    %v8313 = vcombine.low %v8196, %v8197
    %v8314 = vcombine.low %v8198, %v8199
    %v8316 = vunpack.c.l.s4 1983009808
    %v8317 = vunpack.c.0.s8 %v8316
    %v8318 = vlaneseq
    %v8319 = vshrl.u32 %v8318, 7
    %v8320 = vsub.s32 %v8317, %v8319
    %v8321 = vrot.slane %v8313, %v8320
    %v8323 = vunpack.c.l.s4 1983009808
    %v8324 = vunpack.c.0.s8 %v8323
    %v8325 = vlaneseq
    %v8326 = vshrl.u32 %v8325, 7
    %v8327 = vsub.s32 %v8324, %v8326
    %v8328 = vrot.slane %v8314, %v8327
    %v8329 = vcombine.low %v8321, %v8328
    %v8330 = vcombine.low %v8200, %v8201
    %v8331 = vcombine.low %v8202, %v8203
    %v8333 = vunpack.c.l.s4 1983009808
    %v8334 = vunpack.c.0.s8 %v8333
    %v8335 = vlaneseq
    %v8336 = vshrl.u32 %v8335, 7
    %v8337 = vsub.s32 %v8334, %v8336
    %v8338 = vrot.slane %v8330, %v8337
    %v8340 = vunpack.c.l.s4 1983009808
    %v8341 = vunpack.c.0.s8 %v8340
    %v8342 = vlaneseq
    %v8343 = vshrl.u32 %v8342, 7
    %v8344 = vsub.s32 %v8341, %v8343
    %v8345 = vrot.slane %v8331, %v8344
    %v8346 = vcombine.low %v8338, %v8345
    %v8347 = vcombine.low %v8204, %v8205
    %v8348 = vcombine.low %v8206, %v8207
    %v8350 = vunpack.c.l.s4 1983009808
    %v8351 = vunpack.c.0.s8 %v8350
    %v8352 = vlaneseq
    %v8353 = vshrl.u32 %v8352, 7
    %v8354 = vsub.s32 %v8351, %v8353
    %v8355 = vrot.slane %v8347, %v8354
    %v8357 = vunpack.c.l.s4 1983009808
    %v8358 = vunpack.c.0.s8 %v8357
    %v8359 = vlaneseq
    %v8360 = vshrl.u32 %v8359, 7
    %v8361 = vsub.s32 %v8358, %v8360
    %v8362 = vrot.slane %v8348, %v8361
    %v8363 = vcombine.low %v8355, %v8362
    %v8364 = vcombine.low %v8208, %v8209
    %v8365 = vcombine.low %v8210, %v8211
    %v8367 = vunpack.c.l.s4 1983009808
    %v8368 = vunpack.c.0.s8 %v8367
    %v8369 = vlaneseq
    %v8370 = vshrl.u32 %v8369, 7
    %v8371 = vsub.s32 %v8368, %v8370
    %v8372 = vrot.slane %v8364, %v8371
    %v8374 = vunpack.c.l.s4 1983009808
    %v8375 = vunpack.c.0.s8 %v8374
    %v8376 = vlaneseq
    %v8377 = vshrl.u32 %v8376, 7
    %v8378 = vsub.s32 %v8375, %v8377
    %v8379 = vrot.slane %v8365, %v8378
    %v8380 = vcombine.low %v8372, %v8379
    %v8381 = vrot.slane %v8261, 7
    %v8382 = vrot.slane %v8278, 7
    %v8383 = vsel %vm755, %v8381, %v8382
    %v8384 = vrot.slane %v8295, 7
    %v8385 = vsel %vm755, %v8382, %v8384
    %v8386 = vrot.slane %v8312, 7
    %v8387 = vsel %vm755, %v8384, %v8386
    %v8388 = vrot.slane %v8329, 7
    %v8389 = vrot.slane %v8346, 7
    %v8390 = vsel %vm755, %v8388, %v8389
    %v8391 = vrot.slane %v8363, 7
    %v8392 = vsel %vm755, %v8389, %v8391
    %v8393 = vrot.slane %v8380, 7
    %v8394 = vsel %vm755, %v8391, %v8393
    %v8403 = vsel %vm755, 0.0, %v8381
    %v8404 = vsel %vm755, 0.0, %v8388
    %v8405 = vrot.slane %v8261, 1
    %v8406 = vrot.slane %v8278, 1
    %v8407 = vsel %vm906, %v8405, %v8406
    %v8408 = vrot.slane %v8295, 1
    %v8409 = vsel %vm906, %v8406, %v8408
    %v8410 = vrot.slane %v8312, 1
    %v8411 = vsel %vm906, %v8408, %v8410
    %v8412 = vrot.slane %v8329, 1
    %v8413 = vrot.slane %v8346, 1
    %v8414 = vsel %vm906, %v8412, %v8413
    %v8415 = vrot.slane %v8363, 1
    %v8416 = vsel %vm906, %v8413, %v8415
    %v8417 = vrot.slane %v8380, 1
    %v8418 = vsel %vm906, %v8415, %v8417
    %v8427 = vsel %vm906, %v8410, 0.0
    %v8428 = vsel %vm906, %v8417, 0.0
    %v8429 = vlaneseq
    %v8430 = vshrl.u32 %v8429, 7
    %v8431 = vsub.s32 1, %v8430
    %v8432 = vrot.slane %v8212, %v8431
    %v8434 = vcombine.high %v8432, %v8432
    %v8436 = vunpack.c.l.s4 1983009808
    %v8437 = vunpack.c.0.s8 %v8436
    %v8438 = vlaneseq
    %v8439 = vshrl.u32 %v8438, 7
    %v8440 = vsub.s32 %v8437, %v8439
    %v8441 = vrot.slane %v8432, %v8440
    %v8443 = vunpack.c.l.s4 1983009808
    %v8444 = vunpack.c.0.s8 %v8443
    %v8445 = vlaneseq
    %v8446 = vshrl.u32 %v8445, 7
    %v8447 = vsub.s32 %v8444, %v8446
    %v8448 = vrot.slane %v8434, %v8447
    %v8449 = vcombine.high %v8441, %v8441
    %v8450 = vcombine.high %v8448, %v8448
    %v8455 = vmul.f32 %v8180, %v8441
    %v8456 = vmul.f32 %v8181, %v8449
    %v8457 = vmul.f32 %v8182, %v8448
    %v8458 = vmul.f32 %v8183, %v8450
    %v8459 = vmul.f32 %v8184, %v8441
    %v8460 = vmul.f32 %v8185, %v8449
    %v8461 = vmul.f32 %v8186, %v8448
    %v8462 = vmul.f32 %v8187, %v8450
    %v8463 = vmul.f32 %v8188, %v8441
    %v8464 = vmul.f32 %v8189, %v8449
    %v8465 = vmul.f32 %v8190, %v8448
    %v8466 = vmul.f32 %v8191, %v8450
    %v8467 = vmul.f32 %v8192, %v8441
    %v8468 = vmul.f32 %v8193, %v8449
    %v8469 = vmul.f32 %v8194, %v8448
    %v8470 = vmul.f32 %v8195, %v8450
    %v8471 = vmul.f32 %v8196, %v8441
    %v8472 = vmul.f32 %v8197, %v8449
    %v8473 = vmul.f32 %v8198, %v8448
    %v8474 = vmul.f32 %v8199, %v8450
    %v8475 = vmul.f32 %v8200, %v8441
    %v8476 = vmul.f32 %v8201, %v8449
    %v8477 = vmul.f32 %v8202, %v8448
    %v8478 = vmul.f32 %v8203, %v8450
    %v8479 = vmul.f32 %v8204, %v8441
    %v8480 = vmul.f32 %v8205, %v8449
    %v8481 = vmul.f32 %v8206, %v8448
    %v8482 = vmul.f32 %v8207, %v8450
    %v8483 = vmul.f32 %v8208, %v8441
    %v8484 = vmul.f32 %v8209, %v8449
    %v8485 = vmul.f32 %v8210, %v8448
    %v8486 = vmul.f32 %v8211, %v8450
    %v8487 = vlaneseq
    %v8488 = vshrl.u32 %v8487, 7
    %v8489 = vsub.s32 3, %v8488
    %v8490 = vrot.slane %v8212, %v8489
    %v8491 = vmul.f32 %v8403, %v8490
    %v8492 = vmul.f32 %v8383, %v8490
    %v8493 = vmul.f32 %v8385, %v8490
    %v8494 = vmul.f32 %v8387, %v8490
    %v8495 = vmul.f32 %v8404, %v8490
    %v8496 = vmul.f32 %v8390, %v8490
    %v8497 = vmul.f32 %v8392, %v8490
    %v8498 = vmul.f32 %v8394, %v8490
    %v8507 = vcombine.high %v8491, %v8491
    %v8509 = vunpack.c.l.s4 1983009808
    %v8510 = vunpack.c.0.s8 %v8509
    %v8511 = vlaneseq
    %v8512 = vshrl.u32 %v8511, 7
    %v8513 = vsub.s32 %v8510, %v8512
    %v8514 = vrot.slane %v8491, %v8513
    %v8516 = vunpack.c.l.s4 1983009808
    %v8517 = vunpack.c.0.s8 %v8516
    %v8518 = vlaneseq
    %v8519 = vshrl.u32 %v8518, 7
    %v8520 = vsub.s32 %v8517, %v8519
    %v8521 = vrot.slane %v8507, %v8520
    %v8522 = vcombine.high %v8514, %v8514
    %v8523 = vcombine.high %v8521, %v8521
    %v8524 = vcombine.high %v8492, %v8492
    %v8526 = vunpack.c.l.s4 1983009808
    %v8527 = vunpack.c.0.s8 %v8526
    %v8528 = vlaneseq
    %v8529 = vshrl.u32 %v8528, 7
    %v8530 = vsub.s32 %v8527, %v8529
    %v8531 = vrot.slane %v8492, %v8530
    %v8533 = vunpack.c.l.s4 1983009808
    %v8534 = vunpack.c.0.s8 %v8533
    %v8535 = vlaneseq
    %v8536 = vshrl.u32 %v8535, 7
    %v8537 = vsub.s32 %v8534, %v8536
    %v8538 = vrot.slane %v8524, %v8537
    %v8539 = vcombine.high %v8531, %v8531
    %v8540 = vcombine.high %v8538, %v8538
    %v8541 = vcombine.high %v8493, %v8493
    %v8543 = vunpack.c.l.s4 1983009808
    %v8544 = vunpack.c.0.s8 %v8543
    %v8545 = vlaneseq
    %v8546 = vshrl.u32 %v8545, 7
    %v8547 = vsub.s32 %v8544, %v8546
    %v8548 = vrot.slane %v8493, %v8547
    %v8550 = vunpack.c.l.s4 1983009808
    %v8551 = vunpack.c.0.s8 %v8550
    %v8552 = vlaneseq
    %v8553 = vshrl.u32 %v8552, 7
    %v8554 = vsub.s32 %v8551, %v8553
    %v8555 = vrot.slane %v8541, %v8554
    %v8556 = vcombine.high %v8548, %v8548
    %v8557 = vcombine.high %v8555, %v8555
    %v8558 = vcombine.high %v8494, %v8494
    %v8560 = vunpack.c.l.s4 1983009808
    %v8561 = vunpack.c.0.s8 %v8560
    %v8562 = vlaneseq
    %v8563 = vshrl.u32 %v8562, 7
    %v8564 = vsub.s32 %v8561, %v8563
    %v8565 = vrot.slane %v8494, %v8564
    %v8567 = vunpack.c.l.s4 1983009808
    %v8568 = vunpack.c.0.s8 %v8567
    %v8569 = vlaneseq
    %v8570 = vshrl.u32 %v8569, 7
    %v8571 = vsub.s32 %v8568, %v8570
    %v8572 = vrot.slane %v8558, %v8571
    %v8573 = vcombine.high %v8565, %v8565
    %v8574 = vcombine.high %v8572, %v8572
    %v8575 = vcombine.high %v8495, %v8495
    %v8577 = vunpack.c.l.s4 1983009808
    %v8578 = vunpack.c.0.s8 %v8577
    %v8579 = vlaneseq
    %v8580 = vshrl.u32 %v8579, 7
    %v8581 = vsub.s32 %v8578, %v8580
    %v8582 = vrot.slane %v8495, %v8581
    %v8584 = vunpack.c.l.s4 1983009808
    %v8585 = vunpack.c.0.s8 %v8584
    %v8586 = vlaneseq
    %v8587 = vshrl.u32 %v8586, 7
    %v8588 = vsub.s32 %v8585, %v8587
    %v8589 = vrot.slane %v8575, %v8588
    %v8590 = vcombine.high %v8582, %v8582
    %v8591 = vcombine.high %v8589, %v8589
    %v8592 = vcombine.high %v8496, %v8496
    %v8594 = vunpack.c.l.s4 1983009808
    %v8595 = vunpack.c.0.s8 %v8594
    %v8596 = vlaneseq
    %v8597 = vshrl.u32 %v8596, 7
    %v8598 = vsub.s32 %v8595, %v8597
    %v8599 = vrot.slane %v8496, %v8598
    %v8601 = vunpack.c.l.s4 1983009808
    %v8602 = vunpack.c.0.s8 %v8601
    %v8603 = vlaneseq
    %v8604 = vshrl.u32 %v8603, 7
    %v8605 = vsub.s32 %v8602, %v8604
    %v8606 = vrot.slane %v8592, %v8605
    %v8607 = vcombine.high %v8599, %v8599
    %v8608 = vcombine.high %v8606, %v8606
    %v8609 = vcombine.high %v8497, %v8497
    %v8611 = vunpack.c.l.s4 1983009808
    %v8612 = vunpack.c.0.s8 %v8611
    %v8613 = vlaneseq
    %v8614 = vshrl.u32 %v8613, 7
    %v8615 = vsub.s32 %v8612, %v8614
    %v8616 = vrot.slane %v8497, %v8615
    %v8618 = vunpack.c.l.s4 1983009808
    %v8619 = vunpack.c.0.s8 %v8618
    %v8620 = vlaneseq
    %v8621 = vshrl.u32 %v8620, 7
    %v8622 = vsub.s32 %v8619, %v8621
    %v8623 = vrot.slane %v8609, %v8622
    %v8624 = vcombine.high %v8616, %v8616
    %v8625 = vcombine.high %v8623, %v8623
    %v8626 = vcombine.high %v8498, %v8498
    %v8628 = vunpack.c.l.s4 1983009808
    %v8629 = vunpack.c.0.s8 %v8628
    %v8630 = vlaneseq
    %v8631 = vshrl.u32 %v8630, 7
    %v8632 = vsub.s32 %v8629, %v8631
    %v8633 = vrot.slane %v8498, %v8632
    %v8635 = vunpack.c.l.s4 1983009808
    %v8636 = vunpack.c.0.s8 %v8635
    %v8637 = vlaneseq
    %v8638 = vshrl.u32 %v8637, 7
    %v8639 = vsub.s32 %v8636, %v8638
    %v8640 = vrot.slane %v8626, %v8639
    %v8641 = vcombine.high %v8633, %v8633
    %v8642 = vcombine.high %v8640, %v8640
    %v8675 = vadd.f32 %v8455, %v8514
    %v8676 = vadd.f32 %v8456, %v8522
    %v8677 = vadd.f32 %v8457, %v8521
    %v8678 = vadd.f32 %v8458, %v8523
    %v8679 = vadd.f32 %v8459, %v8531
    %v8680 = vadd.f32 %v8460, %v8539
    %v8681 = vadd.f32 %v8461, %v8538
    %v8682 = vadd.f32 %v8462, %v8540
    %v8683 = vadd.f32 %v8463, %v8548
    %v8684 = vadd.f32 %v8464, %v8556
    %v8685 = vadd.f32 %v8465, %v8555
    %v8686 = vadd.f32 %v8466, %v8557
    %v8687 = vadd.f32 %v8467, %v8565
    %v8688 = vadd.f32 %v8468, %v8573
    %v8689 = vadd.f32 %v8469, %v8572
    %v8690 = vadd.f32 %v8470, %v8574
    %v8691 = vadd.f32 %v8471, %v8582
    %v8692 = vadd.f32 %v8472, %v8590
    %v8693 = vadd.f32 %v8473, %v8589
    %v8694 = vadd.f32 %v8474, %v8591
    %v8695 = vadd.f32 %v8475, %v8599
    %v8696 = vadd.f32 %v8476, %v8607
    %v8697 = vadd.f32 %v8477, %v8606
    %v8698 = vadd.f32 %v8478, %v8608
    %v8699 = vadd.f32 %v8479, %v8616
    %v8700 = vadd.f32 %v8480, %v8624
    %v8701 = vadd.f32 %v8481, %v8623
    %v8702 = vadd.f32 %v8482, %v8625
    %v8703 = vadd.f32 %v8483, %v8633
    %v8704 = vadd.f32 %v8484, %v8641
    %v8705 = vadd.f32 %v8485, %v8640
    %v8706 = vadd.f32 %v8486, %v8642
    %v8739 = vcombine.low %v8675, %v8676
    %v8740 = vcombine.low %v8677, %v8678
    %v8742 = vunpack.c.l.s4 1983009808
    %v8743 = vunpack.c.0.s8 %v8742
    %v8744 = vlaneseq
    %v8745 = vshrl.u32 %v8744, 7
    %v8746 = vsub.s32 %v8743, %v8745
    %v8747 = vrot.slane %v8739, %v8746
    %v8749 = vunpack.c.l.s4 1983009808
    %v8750 = vunpack.c.0.s8 %v8749
    %v8751 = vlaneseq
    %v8752 = vshrl.u32 %v8751, 7
    %v8753 = vsub.s32 %v8750, %v8752
    %v8754 = vrot.slane %v8740, %v8753
    %v8755 = vcombine.low %v8747, %v8754
    %v8756 = vcombine.low %v8679, %v8680
    %v8757 = vcombine.low %v8681, %v8682
    %v8759 = vunpack.c.l.s4 1983009808
    %v8760 = vunpack.c.0.s8 %v8759
    %v8761 = vlaneseq
    %v8762 = vshrl.u32 %v8761, 7
    %v8763 = vsub.s32 %v8760, %v8762
    %v8764 = vrot.slane %v8756, %v8763
    %v8766 = vunpack.c.l.s4 1983009808
    %v8767 = vunpack.c.0.s8 %v8766
    %v8768 = vlaneseq
    %v8769 = vshrl.u32 %v8768, 7
    %v8770 = vsub.s32 %v8767, %v8769
    %v8771 = vrot.slane %v8757, %v8770
    %v8772 = vcombine.low %v8764, %v8771
    %v8773 = vcombine.low %v8683, %v8684
    %v8774 = vcombine.low %v8685, %v8686
    %v8776 = vunpack.c.l.s4 1983009808
    %v8777 = vunpack.c.0.s8 %v8776
    %v8778 = vlaneseq
    %v8779 = vshrl.u32 %v8778, 7
    %v8780 = vsub.s32 %v8777, %v8779
    %v8781 = vrot.slane %v8773, %v8780
    %v8783 = vunpack.c.l.s4 1983009808
    %v8784 = vunpack.c.0.s8 %v8783
    %v8785 = vlaneseq
    %v8786 = vshrl.u32 %v8785, 7
    %v8787 = vsub.s32 %v8784, %v8786
    %v8788 = vrot.slane %v8774, %v8787
    %v8789 = vcombine.low %v8781, %v8788
    %v8790 = vcombine.low %v8687, %v8688
    %v8791 = vcombine.low %v8689, %v8690
    %v8793 = vunpack.c.l.s4 1983009808
    %v8794 = vunpack.c.0.s8 %v8793
    %v8795 = vlaneseq
    %v8796 = vshrl.u32 %v8795, 7
    %v8797 = vsub.s32 %v8794, %v8796
    %v8798 = vrot.slane %v8790, %v8797
    %v8800 = vunpack.c.l.s4 1983009808
    %v8801 = vunpack.c.0.s8 %v8800
    %v8802 = vlaneseq
    %v8803 = vshrl.u32 %v8802, 7
    %v8804 = vsub.s32 %v8801, %v8803
    %v8805 = vrot.slane %v8791, %v8804
    %v8806 = vcombine.low %v8798, %v8805
    %v8807 = vcombine.low %v8691, %v8692
    %v8808 = vcombine.low %v8693, %v8694
    %v8810 = vunpack.c.l.s4 1983009808
    %v8811 = vunpack.c.0.s8 %v8810
    %v8812 = vlaneseq
    %v8813 = vshrl.u32 %v8812, 7
    %v8814 = vsub.s32 %v8811, %v8813
    %v8815 = vrot.slane %v8807, %v8814
    %v8817 = vunpack.c.l.s4 1983009808
    %v8818 = vunpack.c.0.s8 %v8817
    %v8819 = vlaneseq
    %v8820 = vshrl.u32 %v8819, 7
    %v8821 = vsub.s32 %v8818, %v8820
    %v8822 = vrot.slane %v8808, %v8821
    %v8823 = vcombine.low %v8815, %v8822
    %v8824 = vcombine.low %v8695, %v8696
    %v8825 = vcombine.low %v8697, %v8698
    %v8827 = vunpack.c.l.s4 1983009808
    %v8828 = vunpack.c.0.s8 %v8827
    %v8829 = vlaneseq
    %v8830 = vshrl.u32 %v8829, 7
    %v8831 = vsub.s32 %v8828, %v8830
    %v8832 = vrot.slane %v8824, %v8831
    %v8834 = vunpack.c.l.s4 1983009808
    %v8835 = vunpack.c.0.s8 %v8834
    %v8836 = vlaneseq
    %v8837 = vshrl.u32 %v8836, 7
    %v8838 = vsub.s32 %v8835, %v8837
    %v8839 = vrot.slane %v8825, %v8838
    %v8840 = vcombine.low %v8832, %v8839
    %v8841 = vcombine.low %v8699, %v8700
    %v8842 = vcombine.low %v8701, %v8702
    %v8844 = vunpack.c.l.s4 1983009808
    %v8845 = vunpack.c.0.s8 %v8844
    %v8846 = vlaneseq
    %v8847 = vshrl.u32 %v8846, 7
    %v8848 = vsub.s32 %v8845, %v8847
    %v8849 = vrot.slane %v8841, %v8848
    %v8851 = vunpack.c.l.s4 1983009808
    %v8852 = vunpack.c.0.s8 %v8851
    %v8853 = vlaneseq
    %v8854 = vshrl.u32 %v8853, 7
    %v8855 = vsub.s32 %v8852, %v8854
    %v8856 = vrot.slane %v8842, %v8855
    %v8857 = vcombine.low %v8849, %v8856
    %v8858 = vcombine.low %v8703, %v8704
    %v8859 = vcombine.low %v8705, %v8706
    %v8861 = vunpack.c.l.s4 1983009808
    %v8862 = vunpack.c.0.s8 %v8861
    %v8863 = vlaneseq
    %v8864 = vshrl.u32 %v8863, 7
    %v8865 = vsub.s32 %v8862, %v8864
    %v8866 = vrot.slane %v8858, %v8865
    %v8868 = vunpack.c.l.s4 1983009808
    %v8869 = vunpack.c.0.s8 %v8868
    %v8870 = vlaneseq
    %v8871 = vshrl.u32 %v8870, 7
    %v8872 = vsub.s32 %v8869, %v8871
    %v8873 = vrot.slane %v8859, %v8872
    %v8874 = vcombine.low %v8866, %v8873
    %v8883 = vsel %vm346, %v8755, 0.0
    %8884 = vadd.xlane.f32.xlu0 %v8883
    %v8885 = vpop.xlane.xlu0 %8884
    %v8886 = vsel %vm346, %v8772, 0.0
    %8887 = vadd.xlane.f32.xlu0 %v8886
    %v8888 = vpop.xlane.xlu0 %8887
    %v8889 = vsel %vm346, %v8789, 0.0
    %8890 = vadd.xlane.f32.xlu0 %v8889
    %v8891 = vpop.xlane.xlu0 %8890
    %v8892 = vsel %vm346, %v8806, 0.0
    %8893 = vadd.xlane.f32.xlu0 %v8892
    %v8894 = vpop.xlane.xlu0 %8893
    %v8895 = vsel %vm346, %v8823, 0.0
    %8896 = vadd.xlane.f32.xlu0 %v8895
    %v8897 = vpop.xlane.xlu0 %8896
    %v8898 = vsel %vm346, %v8840, 0.0
    %8899 = vadd.xlane.f32.xlu0 %v8898
    %v8900 = vpop.xlane.xlu0 %8899
    %v8901 = vsel %vm346, %v8857, 0.0
    %8902 = vadd.xlane.f32.xlu0 %v8901
    %v8903 = vpop.xlane.xlu0 %8902
    %v8904 = vsel %vm346, %v8874, 0.0
    %8905 = vadd.xlane.f32.xlu0 %v8904
    %v8906 = vpop.xlane.xlu0 %8905
    %v8907 = vlaneseq
    %v8908 = vshrl.u32 %v8907, 7
    %v8909 = vsub.s32 0, %v8908
    %v8910 = vrot.slane %v8212, %v8909
    %v8911 = vmul.f32 %v8407, %v8910
    %v8912 = vmul.f32 %v8409, %v8910
    %v8913 = vmul.f32 %v8411, %v8910
    %v8914 = vmul.f32 %v8427, %v8910
    %v8915 = vmul.f32 %v8414, %v8910
    %v8916 = vmul.f32 %v8416, %v8910
    %v8917 = vmul.f32 %v8418, %v8910
    %v8918 = vmul.f32 %v8428, %v8910
    %v8919 = vlaneseq
    %v8920 = vshrl.u32 %v8919, 7
    %v8921 = vsub.s32 2, %v8920
    %v8922 = vrot.slane %v8212, %v8921
    %v8924 = vcombine.high %v8922, %v8922
    %v8926 = vunpack.c.l.s4 1983009808
    %v8927 = vunpack.c.0.s8 %v8926
    %v8928 = vlaneseq
    %v8929 = vshrl.u32 %v8928, 7
    %v8930 = vsub.s32 %v8927, %v8929
    %v8931 = vrot.slane %v8922, %v8930
    %v8933 = vunpack.c.l.s4 1983009808
    %v8934 = vunpack.c.0.s8 %v8933
    %v8935 = vlaneseq
    %v8936 = vshrl.u32 %v8935, 7
    %v8937 = vsub.s32 %v8934, %v8936
    %v8938 = vrot.slane %v8924, %v8937
    %v8939 = vcombine.high %v8931, %v8931
    %v8940 = vcombine.high %v8938, %v8938
    %v8945 = vmul.f32 %v8180, %v8931
    %v8946 = vmul.f32 %v8181, %v8939
    %v8947 = vmul.f32 %v8182, %v8938
    %v8948 = vmul.f32 %v8183, %v8940
    %v8949 = vmul.f32 %v8184, %v8931
    %v8950 = vmul.f32 %v8185, %v8939
    %v8951 = vmul.f32 %v8186, %v8938
    %v8952 = vmul.f32 %v8187, %v8940
    %v8953 = vmul.f32 %v8188, %v8931
    %v8954 = vmul.f32 %v8189, %v8939
    %v8955 = vmul.f32 %v8190, %v8938
    %v8956 = vmul.f32 %v8191, %v8940
    %v8957 = vmul.f32 %v8192, %v8931
    %v8958 = vmul.f32 %v8193, %v8939
    %v8959 = vmul.f32 %v8194, %v8938
    %v8960 = vmul.f32 %v8195, %v8940
    %v8961 = vmul.f32 %v8196, %v8931
    %v8962 = vmul.f32 %v8197, %v8939
    %v8963 = vmul.f32 %v8198, %v8938
    %v8964 = vmul.f32 %v8199, %v8940
    %v8965 = vmul.f32 %v8200, %v8931
    %v8966 = vmul.f32 %v8201, %v8939
    %v8967 = vmul.f32 %v8202, %v8938
    %v8968 = vmul.f32 %v8203, %v8940
    %v8969 = vmul.f32 %v8204, %v8931
    %v8970 = vmul.f32 %v8205, %v8939
    %v8971 = vmul.f32 %v8206, %v8938
    %v8972 = vmul.f32 %v8207, %v8940
    %v8973 = vmul.f32 %v8208, %v8931
    %v8974 = vmul.f32 %v8209, %v8939
    %v8975 = vmul.f32 %v8210, %v8938
    %v8976 = vmul.f32 %v8211, %v8940
    %v9009 = vcombine.low %v8945, %v8946
    %v9010 = vcombine.low %v8947, %v8948
    %v9012 = vunpack.c.l.s4 1983009808
    %v9013 = vunpack.c.0.s8 %v9012
    %v9014 = vlaneseq
    %v9015 = vshrl.u32 %v9014, 7
    %v9016 = vsub.s32 %v9013, %v9015
    %v9017 = vrot.slane %v9009, %v9016
    %v9019 = vunpack.c.l.s4 1983009808
    %v9020 = vunpack.c.0.s8 %v9019
    %v9021 = vlaneseq
    %v9022 = vshrl.u32 %v9021, 7
    %v9023 = vsub.s32 %v9020, %v9022
    %v9024 = vrot.slane %v9010, %v9023
    %v9025 = vcombine.low %v9017, %v9024
    %v9026 = vcombine.low %v8949, %v8950
    %v9027 = vcombine.low %v8951, %v8952
    %v9029 = vunpack.c.l.s4 1983009808
    %v9030 = vunpack.c.0.s8 %v9029
    %v9031 = vlaneseq
    %v9032 = vshrl.u32 %v9031, 7
    %v9033 = vsub.s32 %v9030, %v9032
    %v9034 = vrot.slane %v9026, %v9033
    %v9036 = vunpack.c.l.s4 1983009808
    %v9037 = vunpack.c.0.s8 %v9036
    %v9038 = vlaneseq
    %v9039 = vshrl.u32 %v9038, 7
    %v9040 = vsub.s32 %v9037, %v9039
    %v9041 = vrot.slane %v9027, %v9040
    %v9042 = vcombine.low %v9034, %v9041
    %v9043 = vcombine.low %v8953, %v8954
    %v9044 = vcombine.low %v8955, %v8956
    %v9046 = vunpack.c.l.s4 1983009808
    %v9047 = vunpack.c.0.s8 %v9046
    %v9048 = vlaneseq
    %v9049 = vshrl.u32 %v9048, 7
    %v9050 = vsub.s32 %v9047, %v9049
    %v9051 = vrot.slane %v9043, %v9050
    %v9053 = vunpack.c.l.s4 1983009808
    %v9054 = vunpack.c.0.s8 %v9053
    %v9055 = vlaneseq
    %v9056 = vshrl.u32 %v9055, 7
    %v9057 = vsub.s32 %v9054, %v9056
    %v9058 = vrot.slane %v9044, %v9057
    %v9059 = vcombine.low %v9051, %v9058
    %v9060 = vcombine.low %v8957, %v8958
    %v9061 = vcombine.low %v8959, %v8960
    %v9063 = vunpack.c.l.s4 1983009808
    %v9064 = vunpack.c.0.s8 %v9063
    %v9065 = vlaneseq
    %v9066 = vshrl.u32 %v9065, 7
    %v9067 = vsub.s32 %v9064, %v9066
    %v9068 = vrot.slane %v9060, %v9067
    %v9070 = vunpack.c.l.s4 1983009808
    %v9071 = vunpack.c.0.s8 %v9070
    %v9072 = vlaneseq
    %v9073 = vshrl.u32 %v9072, 7
    %v9074 = vsub.s32 %v9071, %v9073
    %v9075 = vrot.slane %v9061, %v9074
    %v9076 = vcombine.low %v9068, %v9075
    %v9077 = vcombine.low %v8961, %v8962
    %v9078 = vcombine.low %v8963, %v8964
    %v9080 = vunpack.c.l.s4 1983009808
    %v9081 = vunpack.c.0.s8 %v9080
    %v9082 = vlaneseq
    %v9083 = vshrl.u32 %v9082, 7
    %v9084 = vsub.s32 %v9081, %v9083
    %v9085 = vrot.slane %v9077, %v9084
    %v9087 = vunpack.c.l.s4 1983009808
    %v9088 = vunpack.c.0.s8 %v9087
    %v9089 = vlaneseq
    %v9090 = vshrl.u32 %v9089, 7
    %v9091 = vsub.s32 %v9088, %v9090
    %v9092 = vrot.slane %v9078, %v9091
    %v9093 = vcombine.low %v9085, %v9092
    %v9094 = vcombine.low %v8965, %v8966
    %v9095 = vcombine.low %v8967, %v8968
    %v9097 = vunpack.c.l.s4 1983009808
    %v9098 = vunpack.c.0.s8 %v9097
    %v9099 = vlaneseq
    %v9100 = vshrl.u32 %v9099, 7
    %v9101 = vsub.s32 %v9098, %v9100
    %v9102 = vrot.slane %v9094, %v9101
    %v9104 = vunpack.c.l.s4 1983009808
    %v9105 = vunpack.c.0.s8 %v9104
    %v9106 = vlaneseq
    %v9107 = vshrl.u32 %v9106, 7
    %v9108 = vsub.s32 %v9105, %v9107
    %v9109 = vrot.slane %v9095, %v9108
    %v9110 = vcombine.low %v9102, %v9109
    %v9111 = vcombine.low %v8969, %v8970
    %v9112 = vcombine.low %v8971, %v8972
    %v9114 = vunpack.c.l.s4 1983009808
    %v9115 = vunpack.c.0.s8 %v9114
    %v9116 = vlaneseq
    %v9117 = vshrl.u32 %v9116, 7
    %v9118 = vsub.s32 %v9115, %v9117
    %v9119 = vrot.slane %v9111, %v9118
    %v9121 = vunpack.c.l.s4 1983009808
    %v9122 = vunpack.c.0.s8 %v9121
    %v9123 = vlaneseq
    %v9124 = vshrl.u32 %v9123, 7
    %v9125 = vsub.s32 %v9122, %v9124
    %v9126 = vrot.slane %v9112, %v9125
    %v9127 = vcombine.low %v9119, %v9126
    %v9128 = vcombine.low %v8973, %v8974
    %v9129 = vcombine.low %v8975, %v8976
    %v9131 = vunpack.c.l.s4 1983009808
    %v9132 = vunpack.c.0.s8 %v9131
    %v9133 = vlaneseq
    %v9134 = vshrl.u32 %v9133, 7
    %v9135 = vsub.s32 %v9132, %v9134
    %v9136 = vrot.slane %v9128, %v9135
    %v9138 = vunpack.c.l.s4 1983009808
    %v9139 = vunpack.c.0.s8 %v9138
    %v9140 = vlaneseq
    %v9141 = vshrl.u32 %v9140, 7
    %v9142 = vsub.s32 %v9139, %v9141
    %v9143 = vrot.slane %v9129, %v9142
    %v9144 = vcombine.low %v9136, %v9143
    %v9153 = vadd.f32 %v8911, %v9025
    %v9154 = vadd.f32 %v8912, %v9042
    %v9155 = vadd.f32 %v8913, %v9059
    %v9156 = vadd.f32 %v8914, %v9076
    %v9157 = vadd.f32 %v8915, %v9093
    %v9158 = vadd.f32 %v8916, %v9110
    %v9159 = vadd.f32 %v8917, %v9127
    %v9160 = vadd.f32 %v8918, %v9144
    %v9161 = vsel %vm346, %v9153, 0.0
    %9162 = vadd.xlane.f32.xlu0 %v9161
    %v9163 = vpop.xlane.xlu0 %9162
    %v9164 = vsel %vm346, %v9154, 0.0
    %9165 = vadd.xlane.f32.xlu0 %v9164
    %v9166 = vpop.xlane.xlu0 %9165
    %v9167 = vsel %vm346, %v9155, 0.0
    %9168 = vadd.xlane.f32.xlu0 %v9167
    %v9169 = vpop.xlane.xlu0 %9168
    %v9170 = vsel %vm346, %v9156, 0.0
    %9171 = vadd.xlane.f32.xlu0 %v9170
    %v9172 = vpop.xlane.xlu0 %9171
    %v9173 = vsel %vm346, %v9157, 0.0
    %9174 = vadd.xlane.f32.xlu0 %v9173
    %v9175 = vpop.xlane.xlu0 %9174
    %v9176 = vsel %vm346, %v9158, 0.0
    %9177 = vadd.xlane.f32.xlu0 %v9176
    %v9178 = vpop.xlane.xlu0 %9177
    %v9179 = vsel %vm346, %v9159, 0.0
    %9180 = vadd.xlane.f32.xlu0 %v9179
    %v9181 = vpop.xlane.xlu0 %9180
    %v9182 = vsel %vm346, %v9160, 0.0
    %9183 = vadd.xlane.f32.xlu0 %v9182
    %v9184 = vpop.xlane.xlu0 %9183
    %v9193 = vlaneseq
    %v9194 = vand.u32 %v9193, 127
    %v9195 = vlaneseq
    %v9196 = vshrl.u32 %v9195, 7
    %v9197 = vsub.s32 %v9194, %v9196
    %v9198 = vrot.slane %v8885, %v9197
    %v9199 = vadd.s32 %v9194, 4294967288
    %v9200 = vlaneseq
    %v9201 = vshrl.u32 %v9200, 7
    %v9202 = vsub.s32 %v9199, %v9201
    %v9203 = vrot.slane %v8888, %v9202
    %vm9204 = vcmask 130112
    %v9205 = vsel %vm9204, %v9203, %v9198
    %v9206 = vadd.s32 %v9194, 4294967280
    %v9207 = vlaneseq
    %v9208 = vshrl.u32 %v9207, 7
    %v9209 = vsub.s32 %v9206, %v9208
    %v9210 = vrot.slane %v8891, %v9209
    %vm9211 = vcmask 195712
    %v9212 = vsel %vm9211, %v9210, %v9205
    %v9213 = vadd.s32 %v9194, 4294967272
    %v9214 = vlaneseq
    %v9215 = vshrl.u32 %v9214, 7
    %v9216 = vsub.s32 %v9213, %v9215
    %v9217 = vrot.slane %v8894, %v9216
    %vm9218 = vcmask 261312
    %v9219 = vsel %vm9218, %v9217, %v9212
    %v9220 = vlaneseq
    %v9221 = vshrl.u32 %v9220, 7
    %v9222 = vsub.s32 %v9194, %v9221
    %v9223 = vrot.slane %v8897, %v9222
    %v9224 = vlaneseq
    %v9225 = vshrl.u32 %v9224, 7
    %v9226 = vsub.s32 %v9199, %v9225
    %v9227 = vrot.slane %v8900, %v9226
    %v9228 = vsel %vm9204, %v9227, %v9223
    %v9229 = vlaneseq
    %v9230 = vshrl.u32 %v9229, 7
    %v9231 = vsub.s32 %v9206, %v9230
    %v9232 = vrot.slane %v8903, %v9231
    %v9233 = vsel %vm9211, %v9232, %v9228
    %v9234 = vlaneseq
    %v9235 = vshrl.u32 %v9234, 7
    %v9236 = vsub.s32 %v9213, %v9235
    %v9237 = vrot.slane %v8906, %v9236
    %v9238 = vsel %vm9218, %v9237, %v9233
    %v9249 = vlaneseq
    %v9250 = vshrl.u32 %v9249, 7
    %v9251 = vsub.s32 %v9194, %v9250
    %v9252 = vrot.slane %v9163, %v9251
    %v9253 = vlaneseq
    %v9254 = vshrl.u32 %v9253, 7
    %v9255 = vsub.s32 %v9199, %v9254
    %v9256 = vrot.slane %v9166, %v9255
    %v9257 = vsel %vm9204, %v9256, %v9252
    %v9258 = vlaneseq
    %v9259 = vshrl.u32 %v9258, 7
    %v9260 = vsub.s32 %v9206, %v9259
    %v9261 = vrot.slane %v9169, %v9260
    %v9262 = vsel %vm9211, %v9261, %v9257
    %v9263 = vlaneseq
    %v9264 = vshrl.u32 %v9263, 7
    %v9265 = vsub.s32 %v9213, %v9264
    %v9266 = vrot.slane %v9172, %v9265
    %v9267 = vsel %vm9218, %v9266, %v9262
    %v9268 = vlaneseq
    %v9269 = vshrl.u32 %v9268, 7
    %v9270 = vsub.s32 %v9194, %v9269
    %v9271 = vrot.slane %v9175, %v9270
    %v9272 = vlaneseq
    %v9273 = vshrl.u32 %v9272, 7
    %v9274 = vsub.s32 %v9199, %v9273
    %v9275 = vrot.slane %v9178, %v9274
    %v9276 = vsel %vm9204, %v9275, %v9271
    %v9277 = vlaneseq
    %v9278 = vshrl.u32 %v9277, 7
    %v9279 = vsub.s32 %v9206, %v9278
    %v9280 = vrot.slane %v9181, %v9279
    %v9281 = vsel %vm9211, %v9280, %v9276
    %v9282 = vlaneseq
    %v9283 = vshrl.u32 %v9282, 7
    %v9284 = vsub.s32 %v9213, %v9283
    %v9285 = vrot.slane %v9184, %v9284
    %v9286 = vsel %vm9218, %v9285, %v9281
    %v9289 = vsel %vm755, %v9219, %v9267
    %v9290 = vsel %vm755, %v9238, %v9286
    %v9291 = vtanh.pop %v9289
    %v9292 = vtanh.pop %v9290
    %vm9293 = vcmask 254976
    %9294 = vst.msk [vmem:[%s23] sm:$0x3] %vm9293, %v9291
    %9295 = vst.msk [vmem:[%s23 + $0x2] sm:$0x3] %vm9293, %v9292
    // Predicated region
    $region146: #{autoencoder_forward.1} parent=1 // pred_check
      _
    $region147: #{autoencoder_forward.1} parent=1 // pred_check_branch
      %9297 = sbr.rel (0) target = $region149
    $region148: #{autoencoder_forward.1} parent=1 // pred_region
      _
    $region149: #{autoencoder_forward.1} parent=1 // pred_fallthru
      _
    // Predicated region
    $region150: #{autoencoder_forward.1} parent=1 // pred_check
      _
    $region151: #{autoencoder_forward.1} parent=1 // pred_check_branch
      %9299 = sbr.rel (0) target = $region153
    $region152: #{autoencoder_forward.1} parent=1 // pred_region
      _
    $region153: #{autoencoder_forward.1} parent=1 // pred_fallthru
      _
    %9300 = vsyncpa [#allocation3], 1
    %9301 = vsyncpa [#allocation5], 1
    %9302 = vsyncpa [#allocation8], 1
    %9303 = vsyncpa [#allocation11], 1
    %9304 = vsyncpa [#allocation14], 1
    %9305 = vsyncpa [#allocation17], 1
    %9306 = vsyncpa [#allocation20], 1

</llo_original>
